<compile_context>
chip_gen: v5e
topology: v5e:2x2
jax: 0.10.0
libtpu: 0.0.40
codegen_flags: <defaults>
</compile_context>

<pallas_src>
import numpy as np
import jax
import jax.numpy as jnp
from jax.experimental import pallas as pl
from jax.experimental.pallas import tpu as pltpu

RELU_SLOPE = 0.01      # args.ReLU_slope
BN_EPS = 1e-5
# TODO(synk): Dropout is omitted (inference semantics); torch training-mode
# dropout would need pltpu.prng_random_bits + masking.


def _leaky(v):
    return jnp.where(v >= 0, v, RELU_SLOPE * v)


def _sigmoid(v):
    # Exactly sigmoid(v) mathematically; single EUP tanh instead of exp+divide.
    return 0.5 * jnp.tanh(0.5 * v) + 0.5


def neuralnet_kernel(x_ref, y_ref,
                     w1_ref, b1_ref, w2_ref, b2_ref,
                     wih0_ref, bl0_ref, wwide_ref, bl1_ref,
                     w3a_ref, w3b_ref, b3_ref, w4_ref, b4_ref,
                     out_ref, xp_ref):
    T, TB, Dl = y_ref.shape
    H = bl1_ref.shape[1] // 4      # hidden_size_lstm
    H4 = 4 * H

    # ---------- MLP branch: (BatchNorm folded into w1/b1) -> Linear1 -> LeakyReLU
    #            -> Linear2 -> LeakyReLU
    x1 = _leaky(jnp.dot(x_ref[...], w1_ref[...],
                        preferred_element_type=jnp.float32) + b1_ref[...])
    x1 = _leaky(jnp.dot(x1, w2_ref[...],
                        preferred_element_type=jnp.float32) + b2_ref[...])

    # ---------- 2-layer LSTM branch (h0 = c0 = 0), take last time step of top layer
    # Hoisted layer-0 input projection for all T steps, staged in VMEM scratch
    # (bounds its live range; the unrolled loop reads one (TB, 4H) slice per step).
    xp_ref[...] = (jnp.dot(y_ref[...].reshape(T * TB, Dl), wih0_ref[...],
                           preferred_element_type=jnp.float32)
                   + bl0_ref[...]).reshape(T, TB, H4)

    def gates(g, c):
        # PyTorch gate order: i, f, g, o
        i = _sigmoid(g[:, 0 * H:1 * H])
        f = _sigmoid(g[:, 1 * H:2 * H])
        gg = jnp.tanh(g[:, 2 * H:3 * H])
        o = _sigmoid(g[:, 3 * H:4 * H])
        c_new = f * c + i * gg
        return o * jnp.tanh(c_new), c_new

    wwide = wwide_ref[...]          # (2H, 8H) = [[whh0, wih1], [0, whh1]]
    bl1 = bl1_ref[...]
    zeros = jnp.zeros((TB, H), jnp.float32)

    # Prologue: layer-0 at t=0 (h0_{-1}=0, so only the hoisted projection).
    h0, c0 = gates(xp_ref[0], zeros)
    h1, c1 = zeros, zeros

    # Fused recurrence: per step, one (TB,2H)@(2H,8H) matmul yields both the
    # layer-1(t) pre-activation and the recurrent half of layer-0(t+1).
    # T is static and small -> fully unrolled.
    for t in range(T):
        wide = jnp.dot(jnp.concatenate([h0, h1], axis=1), wwide,
                       preferred_element_type=jnp.float32)
        h1, c1 = gates(wide[:, H4:] + bl1, c1)                 # layer 1, step t
        if t + 1 < T:
            h0, c0 = gates(wide[:, :H4] + xp_ref[t + 1], c0)   # layer 0, step t+1
    x2 = h1

    # ---------- combine: LeakyReLU -> Linear3(cat) -> LeakyReLU -> Linear4 -> Softmax
    # cat([x1, x2]) @ W3 computed as a sum of two matmuls.  NOTE: re-applying
    # _leaky to the already-activated x1 is intentional: linear3 =
    # nn.Sequential(LeakyReLU, Linear, Dropout) in torch.
    x3 = (jnp.dot(_leaky(x1), w3a_ref[...], preferred_element_type=jnp.float32)
          + jnp.dot(_leaky(x2), w3b_ref[...], preferred_element_type=jnp.float32)
          + b3_ref[...])
    x4 = jnp.dot(_leaky(x3), w4_ref[...],
                 preferred_element_type=jnp.float32) + b4_ref[...]
    m = jnp.max(x4, axis=1, keepdims=True)
    e = jnp.exp(x4 - m)
    out_ref[...] = e / jnp.sum(e, axis=1, keepdims=True)       # exact divide


def pack_kernel_params(p):
    """Natural (torch-equivalent) params -> kernel params.

    - BatchNorm1d (eval) folded into linear1:  (x*s + t) @ W1 + b1
        = x @ (s^T * W1) + (t @ W1 + b1)
    - LSTM recurrent weights fused:  Wwide = [[whh0, wih1], [0, whh1]]  (2H, 8H)
    """
    Hl = p["whh0"].shape[0]
    scale = p["bn_scale"]                      # (1, D_in)
    shift = p["bn_shift"]                      # (1, D_in)
    w1 = scale.reshape(-1, 1) * p["w1"]
    b1 = shift @ p["w1"] + p["b1"]
    zeros = jnp.zeros((Hl, 4 * Hl), p["whh1"].dtype)
    wwide = jnp.concatenate(
        [jnp.concatenate([p["whh0"], p["wih1"]], axis=1),
         jnp.concatenate([zeros, p["whh1"]], axis=1)], axis=0)   # (2H, 8H)
    return dict(w1=w1, b1=b1, w2=p["w2"], b2=p["b2"],
                wih0=p["wih0"], bl0=p["bl0"], wwide=wwide, bl1=p["bl1"],
                w3a=p["w3a"], w3b=p["w3b"], b3=p["b3"],
                w4=p["w4"], b4=p["b4"])


def neuralnet_forward(x, y, p, *, batch_tile=None):
    """batch_tile=None -> full batch in one grid step (best on single-TC v5e/v6e).
    On v7x pass batch_tile=B//2 so the 'parallel' grid axis shards across both
    TensorCores."""
    B, D_in = x.shape
    _, T, Dl = y.shape
    H1 = p["w1"].shape[1]
    H2 = p["w2"].shape[1]
    Hc = p["w3a"].shape[1]
    OUT = p["w4"].shape[1]
    Hl = p["whh0"].shape[0]

    TB = B if batch_tile is None else min(batch_tile, B)
    assert B % TB == 0 and TB % 8 == 0, "batch must tile into multiples of 8"

    kp = pack_kernel_params(p)
    y_tm = jnp.transpose(y, (1, 0, 2))           # (T, B, D_lstm) time-major

    weight_names = ("w1", "b1", "w2", "b2",
                    "wih0", "bl0", "wwide", "bl1",
                    "w3a", "w3b", "b3", "w4", "b4")
    weights = tuple(kp[n] for n in weight_names)

    in_specs = ([pl.BlockSpec((TB, D_in), lambda i: (i, 0)),
                 pl.BlockSpec((T, TB, Dl), lambda i: (0, i, 0))]
                + [pl.BlockSpec(w.shape, lambda i: (0, 0)) for w in weights])
    out_spec = pl.BlockSpec((TB, OUT), lambda i: (i, 0))

    flops = int(2 * B * (D_in * H1 + H1 * H2 + H2 * Hc + Hl * Hc + Hc * OUT)
                + 2 * B * T * (Dl * 4 * Hl + 2 * Hl * 8 * Hl))
    transcendentals = int(B * T * 2 * 6 * Hl + B * OUT)
    bytes_accessed = int(4 * (x.size + y.size + B * OUT
                              + sum(int(w.size) for w in weights)))

    return pl.pallas_call(
        neuralnet_kernel,
        out_shape=jax.ShapeDtypeStruct((B, OUT), jnp.float32),
        grid_spec=pltpu.PrefetchScalarGridSpec(
            num_scalar_prefetch=0,
            grid=(B // TB,),
            in_specs=in_specs,
            out_specs=out_spec,
            scratch_shapes=[pltpu.VMEM((T, TB, 4 * Hl), jnp.float32)]),
        compiler_params=pltpu.CompilerParams(
            dimension_semantics=("parallel",)),          # megacore split on v7x
        cost_estimate=pl.CostEstimate(
            flops=flops, transcendentals=transcendentals,
            bytes_accessed=bytes_accessed),
    )(x, y_tm, *weights)


def init_params(key, D_in, H1, H2, Hc, OUT, D_lstm, Hl):
    ks = jax.random.split(key, 24)

    def u(k, shape, fan_in):
        s = 1.0 / np.sqrt(fan_in)
        return jax.random.uniform(k, shape, jnp.float32, -s, s)

    p = {}
    # BatchNorm1d (eval): fold gamma/beta/running stats into scale & shift.
    gamma = 1.0 + 0.1 * jax.random.normal(ks[0], (1, D_in), jnp.float32)
    beta = 0.1 * jax.random.normal(ks[1], (1, D_in), jnp.float32)
    r_mean = 0.1 * jax.random.normal(ks[2], (1, D_in), jnp.float32)
    r_var = jnp.abs(1.0 + 0.1 * jax.random.normal(ks[3], (1, D_in), jnp.float32))
    scale = gamma / jnp.sqrt(r_var + BN_EPS)
    p["bn_scale"] = scale
    p["bn_shift"] = beta - r_mean * scale
    # Linear layers (stored (in, out)).
    p["w1"] = u(ks[4], (D_in, H1), D_in); p["b1"] = u(ks[5], (1, H1), D_in)
    p["w2"] = u(ks[6], (H1, H2), H1);     p["b2"] = u(ks[7], (1, H2), H1)
    # LSTM layer 0: D_lstm -> Hl ; layer 1: Hl -> Hl.  Gate order i, f, g, o.
    p["wih0"] = u(ks[8], (D_lstm, 4 * Hl), Hl)
    p["whh0"] = u(ks[9], (Hl, 4 * Hl), Hl)
    p["bl0"] = u(ks[10], (1, 4 * Hl), Hl) + u(ks[11], (1, 4 * Hl), Hl)   # b_ih + b_hh
    p["wih1"] = u(ks[12], (Hl, 4 * Hl), Hl)
    p["whh1"] = u(ks[13], (Hl, 4 * Hl), Hl)
    p["bl1"] = u(ks[14], (1, 4 * Hl), Hl) + u(ks[15], (1, 4 * Hl), Hl)
    # Linear3 on concat([x1, x2]) split into two row-blocks, Linear4.
    p["w3a"] = u(ks[16], (H2, Hc), H2 + Hl)
    p["w3b"] = u(ks[17], (Hl, Hc), H2 + Hl)
    p["b3"] = u(ks[18], (1, Hc), H2 + Hl)
    p["w4"] = u(ks[19], (Hc, OUT), Hc); p["b4"] = u(ks[20], (1, OUT), Hc)
    return p


def reference_forward_np(x, y, p):
    """Host-side float64 NumPy replica of the torch forward (eval mode)."""
    def leaky(v):
        return np.where(v >= 0, v, RELU_SLOPE * v)

    def sig(v):
        return 1.0 / (1.0 + np.exp(-v))

    x1 = x * p["bn_scale"] + p["bn_shift"]
    x1 = leaky(x1 @ p["w1"] + p["b1"])
    x1 = leaky(x1 @ p["w2"] + p["b2"])

    B, T, _ = y.shape
    Hl = p["whh0"].shape[0]
    h0 = c0 = h1 = c1 = np.zeros((B, Hl), np.float64)

    def cell(xt, h, c, wih, whh, b):
        g = xt @ wih + h @ whh + b
        i, f = sig(g[:, :Hl]), sig(g[:, Hl:2 * Hl])
        gg, o = np.tanh(g[:, 2 * Hl:3 * Hl]), sig(g[:, 3 * Hl:])
        c = f * c + i * gg
        return o * np.tanh(c), c

    for t in range(T):
        h0, c0 = cell(y[:, t, :], h0, c0, p["wih0"], p["whh0"], p["bl0"])
        h1, c1 = cell(h0, h1, c1, p["wih1"], p["whh1"], p["bl1"])

    x3 = leaky(x1) @ p["w3a"] + leaky(h1) @ p["w3b"] + p["b3"]
    x4 = leaky(x3) @ p["w4"] + p["b4"]
    e = np.exp(x4 - x4.max(axis=1, keepdims=True))
    return e / e.sum(axis=1, keepdims=True)


if __name__ == "__main__":
    # Shapes consistent with the module's constructor:
    # input_size=16, hidden_size=16*4=64, hidden_size2=16+8=24,
    # hidden_size_comb=32, output_size=4 samples, input_size_lstm=8,
    # hidden_size_lstm=32, num_layers=2, seq_len=8.  B=128 fills MXU sublanes.
    B, T = 128, 8
    D_in, H1, H2, Hc, OUT = 16, 64, 24, 32, 4
    D_lstm, Hl = 8, 32

    key = jax.random.PRNGKey(0)
    kx, ky, kp = jax.random.split(key, 3)
    x = jax.random.normal(kx, (B, D_in), jnp.float32)
    y = jax.random.normal(ky, (B, T, D_lstm), jnp.float32)
    params = init_params(kp, D_in, H1, H2, Hc, OUT, D_lstm, Hl)

    out = jax.block_until_ready(neuralnet_forward(x, y, params))
    out_np = np.asarray(out)

    ref = reference_forward_np(
        np.asarray(x, np.float64), np.asarray(y, np.float64),
        {k: np.asarray(v, np.float64) for k, v in params.items()})

    assert out_np.shape == (B, OUT)
    assert np.all(np.isfinite(out_np))
    # Softmax rows must sum to 1 (precision-independent structural check).
    assert np.allclose(out_np.sum(axis=1), 1.0, atol=1e-3)
    # Tolerance sized for MXU/default-precision f32 matmul rounding across the
    # ~19 chained matmuls; structural bugs produce errors orders of magnitude
    # larger than this on softmax probabilities.
    err = float(np.max(np.abs(out_np - ref)))
    assert err < 1e-2, f"mismatch vs float64 reference (max abs diff {err:.3e})"
    print("KERNEL_OK")
</pallas_src>

<mosaic_0001>
module attributes {stable_mosaic.version = 11 : i64} {
  func.func @neuralnet_kernel(%arg0: i32, %arg1: memref<128x16xf32, #tpu.memory_space<vmem>>, %arg2: memref<8x128x8xf32, #tpu.memory_space<vmem>>, %arg3: memref<16x64xf32, #tpu.memory_space<vmem>>, %arg4: memref<1x64xf32, #tpu.memory_space<vmem>>, %arg5: memref<64x24xf32, #tpu.memory_space<vmem>>, %arg6: memref<1x24xf32, #tpu.memory_space<vmem>>, %arg7: memref<8x128xf32, #tpu.memory_space<vmem>>, %arg8: memref<1x128xf32, #tpu.memory_space<vmem>>, %arg9: memref<64x256xf32, #tpu.memory_space<vmem>>, %arg10: memref<1x128xf32, #tpu.memory_space<vmem>>, %arg11: memref<24x32xf32, #tpu.memory_space<vmem>>, %arg12: memref<32x32xf32, #tpu.memory_space<vmem>>, %arg13: memref<1x32xf32, #tpu.memory_space<vmem>>, %arg14: memref<32x4xf32, #tpu.memory_space<vmem>>, %arg15: memref<1x4xf32, #tpu.memory_space<vmem>>, %arg16: memref<128x4xf32, #tpu.memory_space<vmem>>, %arg17: memref<8x128x128xf32, #tpu.memory_space<vmem>>) attributes {dimension_semantics = [#tpu.dimension_semantics<parallel>], iteration_bounds = array<i64: 1>, scalar_prefetch = 0 : i64, scratch_operands = 1 : i64, tpu.core_type = #tpu.core_type<tc>, window_params = [{transform_indices = @transform_0, window_bounds = array<i64: 128, 16>}, {transform_indices = @transform_1, window_bounds = array<i64: 8, 128, 8>}, {pipeline_mode = #tpu.pipeline_mode<synchronous>, transform_indices = @transform_2, window_bounds = array<i64: 16, 64>}, {pipeline_mode = #tpu.pipeline_mode<synchronous>, transform_indices = @transform_3, window_bounds = array<i64: 1, 64>}, {pipeline_mode = #tpu.pipeline_mode<synchronous>, transform_indices = @transform_4, window_bounds = array<i64: 64, 24>}, {pipeline_mode = #tpu.pipeline_mode<synchronous>, transform_indices = @transform_5, window_bounds = array<i64: 1, 24>}, {pipeline_mode = #tpu.pipeline_mode<synchronous>, transform_indices = @transform_6, window_bounds = array<i64: 8, 128>}, {pipeline_mode = #tpu.pipeline_mode<synchronous>, transform_indices = @transform_7, window_bounds = array<i64: 1, 128>}, {pipeline_mode = #tpu.pipeline_mode<synchronous>, transform_indices = @transform_8, window_bounds = array<i64: 64, 256>}, {pipeline_mode = #tpu.pipeline_mode<synchronous>, transform_indices = @transform_9, window_bounds = array<i64: 1, 128>}, {pipeline_mode = #tpu.pipeline_mode<synchronous>, transform_indices = @transform_10, window_bounds = array<i64: 24, 32>}, {pipeline_mode = #tpu.pipeline_mode<synchronous>, transform_indices = @transform_11, window_bounds = array<i64: 32, 32>}, {pipeline_mode = #tpu.pipeline_mode<synchronous>, transform_indices = @transform_12, window_bounds = array<i64: 1, 32>}, {pipeline_mode = #tpu.pipeline_mode<synchronous>, transform_indices = @transform_13, window_bounds = array<i64: 32, 4>}, {pipeline_mode = #tpu.pipeline_mode<synchronous>, transform_indices = @transform_14, window_bounds = array<i64: 1, 4>}, {transform_indices = @transform_15, window_bounds = array<i64: 128, 4>}]} {
    %c0 = arith.constant 0 : index
    %c0_0 = arith.constant 0 : index
    %0 = vector.load %arg1[%c0, %c0_0] : memref<128x16xf32, #tpu.memory_space<vmem>>, vector<128x16xf32>
    %c0_1 = arith.constant 0 : index
    %c0_2 = arith.constant 0 : index
    %1 = vector.load %arg3[%c0_1, %c0_2] : memref<16x64xf32, #tpu.memory_space<vmem>>, vector<16x64xf32>
    %cst = arith.constant dense<0.000000e+00> : vector<128x64xf32>
    %2 = tpu.matmul %0, %1, %cst {dimension_numbers = #tpu.dot_dimension_numbers<[1], [0], [0], [1], [0, 0, 1, 1], [], []>} : vector<128x16xf32>, vector<16x64xf32>, vector<128x64xf32> -> vector<128x64xf32>
    %c0_3 = arith.constant 0 : index
    %c0_4 = arith.constant 0 : index
    %3 = vector.load %arg4[%c0_3, %c0_4] : memref<1x64xf32, #tpu.memory_space<vmem>>, vector<1x64xf32>
    %4 = vector.broadcast %3 : vector<1x64xf32> to vector<128x64xf32>
    %5 = arith.addf %2, %4 : vector<128x64xf32>
    %cst_5 = arith.constant 0.000000e+00 : f32
    %6 = vector.broadcast %cst_5 : f32 to vector<128x64xf32>
    %7 = arith.cmpf oge, %5, %6 : vector<128x64xf32>
    %cst_6 = arith.constant 0.00999999977 : f32
    %8 = vector.broadcast %cst_6 : f32 to vector<128x64xf32>
    %9 = arith.mulf %8, %5 : vector<128x64xf32>
    %10 = arith.select %7, %5, %9 : vector<128x64xi1>, vector<128x64xf32>
    %c0_7 = arith.constant 0 : index
    %c0_8 = arith.constant 0 : index
    %11 = vector.load %arg5[%c0_7, %c0_8] : memref<64x24xf32, #tpu.memory_space<vmem>>, vector<64x24xf32>
    %cst_9 = arith.constant dense<0.000000e+00> : vector<128x24xf32>
    %12 = tpu.matmul %10, %11, %cst_9 {dimension_numbers = #tpu.dot_dimension_numbers<[1], [0], [0], [1], [0, 0, 1, 1], [], []>} : vector<128x64xf32>, vector<64x24xf32>, vector<128x24xf32> -> vector<128x24xf32>
    %c0_10 = arith.constant 0 : index
    %c0_11 = arith.constant 0 : index
    %13 = vector.load %arg6[%c0_10, %c0_11] : memref<1x24xf32, #tpu.memory_space<vmem>>, vector<1x24xf32>
    %14 = vector.broadcast %13 : vector<1x24xf32> to vector<128x24xf32>
    %15 = arith.addf %12, %14 : vector<128x24xf32>
    %cst_12 = arith.constant 0.000000e+00 : f32
    %16 = vector.broadcast %cst_12 : f32 to vector<128x24xf32>
    %17 = arith.cmpf oge, %15, %16 : vector<128x24xf32>
    %cst_13 = arith.constant 0.00999999977 : f32
    %18 = vector.broadcast %cst_13 : f32 to vector<128x24xf32>
    %19 = arith.mulf %18, %15 : vector<128x24xf32>
    %20 = arith.select %17, %15, %19 : vector<128x24xi1>, vector<128x24xf32>
    %c0_14 = arith.constant 0 : index
    %c0_15 = arith.constant 0 : index
    %c0_16 = arith.constant 0 : index
    %21 = vector.load %arg2[%c0_14, %c0_15, %c0_16] : memref<8x128x8xf32, #tpu.memory_space<vmem>>, vector<8x128x8xf32>
    %22 = vector.shape_cast %21 : vector<8x128x8xf32> to vector<1024x8xf32>
    %c0_17 = arith.constant 0 : index
    %c0_18 = arith.constant 0 : index
    %23 = vector.load %arg7[%c0_17, %c0_18] : memref<8x128xf32, #tpu.memory_space<vmem>>, vector<8x128xf32>
    %cst_19 = arith.constant dense<0.000000e+00> : vector<1024x128xf32>
    %24 = tpu.matmul %22, %23, %cst_19 {dimension_numbers = #tpu.dot_dimension_numbers<[1], [0], [0], [1], [0, 0, 1, 1], [], []>} : vector<1024x8xf32>, vector<8x128xf32>, vector<1024x128xf32> -> vector<1024x128xf32>
    %c0_20 = arith.constant 0 : index
    %c0_21 = arith.constant 0 : index
    %25 = vector.load %arg8[%c0_20, %c0_21] : memref<1x128xf32, #tpu.memory_space<vmem>>, vector<1x128xf32>
    %26 = vector.broadcast %25 : vector<1x128xf32> to vector<1024x128xf32>
    %27 = arith.addf %24, %26 : vector<1024x128xf32>
    %28 = vector.shape_cast %27 : vector<1024x128xf32> to vector<8x128x128xf32>
    %c0_22 = arith.constant 0 : index
    %c0_23 = arith.constant 0 : index
    %c0_24 = arith.constant 0 : index
    %29 = vector.load %arg17[%c0_22, %c0_23, %c0_24] : memref<8x128x128xf32, #tpu.memory_space<vmem>>, vector<8x128x128xf32>
    tpu.vector_store %arg17[%c0_22, %c0_23, %c0_24], %28 {strides = array<i32>} : memref<8x128x128xf32, #tpu.memory_space<vmem>>, vector<8x128x128xf32>,
    %c0_25 = arith.constant 0 : index
    %c0_26 = arith.constant 0 : index
    %30 = vector.load %arg9[%c0_25, %c0_26] : memref<64x256xf32, #tpu.memory_space<vmem>>, vector<64x256xf32>
    %c0_27 = arith.constant 0 : index
    %c0_28 = arith.constant 0 : index
    %31 = vector.load %arg10[%c0_27, %c0_28] : memref<1x128xf32, #tpu.memory_space<vmem>>, vector<1x128xf32>
    %cst_29 = arith.constant 0.000000e+00 : f32
    %32 = vector.broadcast %cst_29 : f32 to vector<128x32xf32>
    %c0_30 = arith.constant 0 : index
    %c0_31 = arith.constant 0 : index
    %c0_32 = arith.constant 0 : index
    %33 = vector.load %arg17[%c0_30, %c0_31, %c0_32] : memref<8x128x128xf32, #tpu.memory_space<vmem>>, vector<1x128x128xf32>
    %34 = vector.shape_cast %33 : vector<1x128x128xf32> to vector<128x128xf32>
    %35 = vector.extract_strided_slice %34 {offsets = [0, 0], sizes = [128, 32], strides = [1, 1]} : vector<128x128xf32> to vector<128x32xf32>
    %cst_33 = arith.constant 5.000000e-01 : f32
    %36 = vector.broadcast %cst_33 : f32 to vector<128x32xf32>
    %37 = arith.mulf %36, %35 : vector<128x32xf32>
    %38 = math.tanh %37 : vector<128x32xf32>
    %cst_34 = arith.constant 5.000000e-01 : f32
    %39 = vector.broadcast %cst_34 : f32 to vector<128x32xf32>
    %40 = arith.mulf %39, %38 : vector<128x32xf32>
    %cst_35 = arith.constant 5.000000e-01 : f32
    %41 = vector.broadcast %cst_35 : f32 to vector<128x32xf32>
    %42 = arith.addf %40, %41 : vector<128x32xf32>
    %43 = vector.extract_strided_slice %34 {offsets = [0, 32], sizes = [128, 32], strides = [1, 1]} : vector<128x128xf32> to vector<128x32xf32>
    %cst_36 = arith.constant 5.000000e-01 : f32
    %44 = vector.broadcast %cst_36 : f32 to vector<128x32xf32>
    %45 = arith.mulf %44, %43 : vector<128x32xf32>
    %46 = math.tanh %45 : vector<128x32xf32>
    %cst_37 = arith.constant 5.000000e-01 : f32
    %47 = vector.broadcast %cst_37 : f32 to vector<128x32xf32>
    %48 = arith.mulf %47, %46 : vector<128x32xf32>
    %cst_38 = arith.constant 5.000000e-01 : f32
    %49 = vector.broadcast %cst_38 : f32 to vector<128x32xf32>
    %50 = arith.addf %48, %49 : vector<128x32xf32>
    %51 = vector.extract_strided_slice %34 {offsets = [0, 64], sizes = [128, 32], strides = [1, 1]} : vector<128x128xf32> to vector<128x32xf32>
    %52 = math.tanh %51 : vector<128x32xf32>
    %53 = vector.extract_strided_slice %34 {offsets = [0, 96], sizes = [128, 32], strides = [1, 1]} : vector<128x128xf32> to vector<128x32xf32>
    %cst_39 = arith.constant 5.000000e-01 : f32
    %54 = vector.broadcast %cst_39 : f32 to vector<128x32xf32>
    %55 = arith.mulf %54, %53 : vector<128x32xf32>
    %56 = math.tanh %55 : vector<128x32xf32>
    %cst_40 = arith.constant 5.000000e-01 : f32
    %57 = vector.broadcast %cst_40 : f32 to vector<128x32xf32>
    %58 = arith.mulf %57, %56 : vector<128x32xf32>
    %cst_41 = arith.constant 5.000000e-01 : f32
    %59 = vector.broadcast %cst_41 : f32 to vector<128x32xf32>
    %60 = arith.addf %58, %59 : vector<128x32xf32>
    %61 = arith.mulf %50, %32 : vector<128x32xf32>
    %62 = arith.mulf %42, %52 : vector<128x32xf32>
    %63 = arith.addf %61, %62 : vector<128x32xf32>
    %64 = math.tanh %63 : vector<128x32xf32>
    %65 = arith.mulf %60, %64 : vector<128x32xf32>
    %66 = tpu.concatenate %65, %32 in 1 : vector<128x32xf32>, vector<128x32xf32> -> vector<128x64xf32>
    %cst_42 = arith.constant dense<0.000000e+00> : vector<128x256xf32>
    %67 = tpu.matmul %66, %30, %cst_42 {dimension_numbers = #tpu.dot_dimension_numbers<[1], [0], [0], [1], [0, 0, 1, 1], [], []>} : vector<128x64xf32>, vector<64x256xf32>, vector<128x256xf32> -> vector<128x256xf32>
    %68 = vector.extract_strided_slice %67 {offsets = [0, 128], sizes = [128, 128], strides = [1, 1]} : vector<128x256xf32> to vector<128x128xf32>
    %69 = vector.broadcast %31 : vector<1x128xf32> to vector<128x128xf32>
    %70 = arith.addf %68, %69 : vector<128x128xf32>
    %71 = vector.extract_strided_slice %70 {offsets = [0, 0], sizes = [128, 32], strides = [1, 1]} : vector<128x128xf32> to vector<128x32xf32>
    %cst_43 = arith.constant 5.000000e-01 : f32
    %72 = vector.broadcast %cst_43 : f32 to vector<128x32xf32>
    %73 = arith.mulf %72, %71 : vector<128x32xf32>
    %74 = math.tanh %73 : vector<128x32xf32>
    %cst_44 = arith.constant 5.000000e-01 : f32
    %75 = vector.broadcast %cst_44 : f32 to vector<128x32xf32>
    %76 = arith.mulf %75, %74 : vector<128x32xf32>
    %cst_45 = arith.constant 5.000000e-01 : f32
    %77 = vector.broadcast %cst_45 : f32 to vector<128x32xf32>
    %78 = arith.addf %76, %77 : vector<128x32xf32>
    %79 = vector.extract_strided_slice %70 {offsets = [0, 32], sizes = [128, 32], strides = [1, 1]} : vector<128x128xf32> to vector<128x32xf32>
    %cst_46 = arith.constant 5.000000e-01 : f32
    %80 = vector.broadcast %cst_46 : f32 to vector<128x32xf32>
    %81 = arith.mulf %80, %79 : vector<128x32xf32>
    %82 = math.tanh %81 : vector<128x32xf32>
    %cst_47 = arith.constant 5.000000e-01 : f32
    %83 = vector.broadcast %cst_47 : f32 to vector<128x32xf32>
    %84 = arith.mulf %83, %82 : vector<128x32xf32>
    %cst_48 = arith.constant 5.000000e-01 : f32
    %85 = vector.broadcast %cst_48 : f32 to vector<128x32xf32>
    %86 = arith.addf %84, %85 : vector<128x32xf32>
    %87 = vector.extract_strided_slice %70 {offsets = [0, 64], sizes = [128, 32], strides = [1, 1]} : vector<128x128xf32> to vector<128x32xf32>
    %88 = math.tanh %87 : vector<128x32xf32>
    %89 = vector.extract_strided_slice %70 {offsets = [0, 96], sizes = [128, 32], strides = [1, 1]} : vector<128x128xf32> to vector<128x32xf32>
    %cst_49 = arith.constant 5.000000e-01 : f32
    %90 = vector.broadcast %cst_49 : f32 to vector<128x32xf32>
    %91 = arith.mulf %90, %89 : vector<128x32xf32>
    %92 = math.tanh %91 : vector<128x32xf32>
    %cst_50 = arith.constant 5.000000e-01 : f32
    %93 = vector.broadcast %cst_50 : f32 to vector<128x32xf32>
    %94 = arith.mulf %93, %92 : vector<128x32xf32>
    %cst_51 = arith.constant 5.000000e-01 : f32
    %95 = vector.broadcast %cst_51 : f32 to vector<128x32xf32>
    %96 = arith.addf %94, %95 : vector<128x32xf32>
    %97 = arith.mulf %86, %32 : vector<128x32xf32>
    %98 = arith.mulf %78, %88 : vector<128x32xf32>
    %99 = arith.addf %97, %98 : vector<128x32xf32>
    %100 = math.tanh %99 : vector<128x32xf32>
    %101 = arith.mulf %96, %100 : vector<128x32xf32>
    %102 = vector.extract_strided_slice %67 {offsets = [0, 0], sizes = [128, 128], strides = [1, 1]} : vector<128x256xf32> to vector<128x128xf32>
    %c1 = arith.constant 1 : index
    %c0_52 = arith.constant 0 : index
    %c0_53 = arith.constant 0 : index
    %103 = vector.load %arg17[%c1, %c0_52, %c0_53] : memref<8x128x128xf32, #tpu.memory_space<vmem>>, vector<1x128x128xf32>
    %104 = vector.shape_cast %103 : vector<1x128x128xf32> to vector<128x128xf32>
    %105 = arith.addf %102, %104 : vector<128x128xf32>
    %106 = vector.extract_strided_slice %105 {offsets = [0, 0], sizes = [128, 32], strides = [1, 1]} : vector<128x128xf32> to vector<128x32xf32>
    %cst_54 = arith.constant 5.000000e-01 : f32
    %107 = vector.broadcast %cst_54 : f32 to vector<128x32xf32>
    %108 = arith.mulf %107, %106 : vector<128x32xf32>
    %109 = math.tanh %108 : vector<128x32xf32>
    %cst_55 = arith.constant 5.000000e-01 : f32
    %110 = vector.broadcast %cst_55 : f32 to vector<128x32xf32>
    %111 = arith.mulf %110, %109 : vector<128x32xf32>
    %cst_56 = arith.constant 5.000000e-01 : f32
    %112 = vector.broadcast %cst_56 : f32 to vector<128x32xf32>
    %113 = arith.addf %111, %112 : vector<128x32xf32>
    %114 = vector.extract_strided_slice %105 {offsets = [0, 32], sizes = [128, 32], strides = [1, 1]} : vector<128x128xf32> to vector<128x32xf32>
    %cst_57 = arith.constant 5.000000e-01 : f32
    %115 = vector.broadcast %cst_57 : f32 to vector<128x32xf32>
    %116 = arith.mulf %115, %114 : vector<128x32xf32>
    %117 = math.tanh %116 : vector<128x32xf32>
    %cst_58 = arith.constant 5.000000e-01 : f32
    %118 = vector.broadcast %cst_58 : f32 to vector<128x32xf32>
    %119 = arith.mulf %118, %117 : vector<128x32xf32>
    %cst_59 = arith.constant 5.000000e-01 : f32
    %120 = vector.broadcast %cst_59 : f32 to vector<128x32xf32>
    %121 = arith.addf %119, %120 : vector<128x32xf32>
    %122 = vector.extract_strided_slice %105 {offsets = [0, 64], sizes = [128, 32], strides = [1, 1]} : vector<128x128xf32> to vector<128x32xf32>
    %123 = math.tanh %122 : vector<128x32xf32>
    %124 = vector.extract_strided_slice %105 {offsets = [0, 96], sizes = [128, 32], strides = [1, 1]} : vector<128x128xf32> to vector<128x32xf32>
    %cst_60 = arith.constant 5.000000e-01 : f32
    %125 = vector.broadcast %cst_60 : f32 to vector<128x32xf32>
    %126 = arith.mulf %125, %124 : vector<128x32xf32>
    %127 = math.tanh %126 : vector<128x32xf32>
    %cst_61 = arith.constant 5.000000e-01 : f32
    %128 = vector.broadcast %cst_61 : f32 to vector<128x32xf32>
    %129 = arith.mulf %128, %127 : vector<128x32xf32>
    %cst_62 = arith.constant 5.000000e-01 : f32
    %130 = vector.broadcast %cst_62 : f32 to vector<128x32xf32>
    %131 = arith.addf %129, %130 : vector<128x32xf32>
    %132 = arith.mulf %121, %63 : vector<128x32xf32>
    %133 = arith.mulf %113, %123 : vector<128x32xf32>
    %134 = arith.addf %132, %133 : vector<128x32xf32>
    %135 = math.tanh %134 : vector<128x32xf32>
    %136 = arith.mulf %131, %135 : vector<128x32xf32>
    %137 = tpu.concatenate %136, %101 in 1 : vector<128x32xf32>, vector<128x32xf32> -> vector<128x64xf32>
    %cst_63 = arith.constant dense<0.000000e+00> : vector<128x256xf32>
    %138 = tpu.matmul %137, %30, %cst_63 {dimension_numbers = #tpu.dot_dimension_numbers<[1], [0], [0], [1], [0, 0, 1, 1], [], []>} : vector<128x64xf32>, vector<64x256xf32>, vector<128x256xf32> -> vector<128x256xf32>
    %139 = vector.extract_strided_slice %138 {offsets = [0, 128], sizes = [128, 128], strides = [1, 1]} : vector<128x256xf32> to vector<128x128xf32>
    %140 = vector.broadcast %31 : vector<1x128xf32> to vector<128x128xf32>
    %141 = arith.addf %139, %140 : vector<128x128xf32>
    %142 = vector.extract_strided_slice %141 {offsets = [0, 0], sizes = [128, 32], strides = [1, 1]} : vector<128x128xf32> to vector<128x32xf32>
    %cst_64 = arith.constant 5.000000e-01 : f32
    %143 = vector.broadcast %cst_64 : f32 to vector<128x32xf32>
    %144 = arith.mulf %143, %142 : vector<128x32xf32>
    %145 = math.tanh %144 : vector<128x32xf32>
    %cst_65 = arith.constant 5.000000e-01 : f32
    %146 = vector.broadcast %cst_65 : f32 to vector<128x32xf32>
    %147 = arith.mulf %146, %145 : vector<128x32xf32>
    %cst_66 = arith.constant 5.000000e-01 : f32
    %148 = vector.broadcast %cst_66 : f32 to vector<128x32xf32>
    %149 = arith.addf %147, %148 : vector<128x32xf32>
    %150 = vector.extract_strided_slice %141 {offsets = [0, 32], sizes = [128, 32], strides = [1, 1]} : vector<128x128xf32> to vector<128x32xf32>
    %cst_67 = arith.constant 5.000000e-01 : f32
    %151 = vector.broadcast %cst_67 : f32 to vector<128x32xf32>
    %152 = arith.mulf %151, %150 : vector<128x32xf32>
    %153 = math.tanh %152 : vector<128x32xf32>
    %cst_68 = arith.constant 5.000000e-01 : f32
    %154 = vector.broadcast %cst_68 : f32 to vector<128x32xf32>
    %155 = arith.mulf %154, %153 : vector<128x32xf32>
    %cst_69 = arith.constant 5.000000e-01 : f32
    %156 = vector.broadcast %cst_69 : f32 to vector<128x32xf32>
    %157 = arith.addf %155, %156 : vector<128x32xf32>
    %158 = vector.extract_strided_slice %141 {offsets = [0, 64], sizes = [128, 32], strides = [1, 1]} : vector<128x128xf32> to vector<128x32xf32>
    %159 = math.tanh %158 : vector<128x32xf32>
    %160 = vector.extract_strided_slice %141 {offsets = [0, 96], sizes = [128, 32], strides = [1, 1]} : vector<128x128xf32> to vector<128x32xf32>
    %cst_70 = arith.constant 5.000000e-01 : f32
    %161 = vector.broadcast %cst_70 : f32 to vector<128x32xf32>
    %162 = arith.mulf %161, %160 : vector<128x32xf32>
    %163 = math.tanh %162 : vector<128x32xf32>
    %cst_71 = arith.constant 5.000000e-01 : f32
    %164 = vector.broadcast %cst_71 : f32 to vector<128x32xf32>
    %165 = arith.mulf %164, %163 : vector<128x32xf32>
    %cst_72 = arith.constant 5.000000e-01 : f32
    %166 = vector.broadcast %cst_72 : f32 to vector<128x32xf32>
    %167 = arith.addf %165, %166 : vector<128x32xf32>
    %168 = arith.mulf %157, %99 : vector<128x32xf32>
    %169 = arith.mulf %149, %159 : vector<128x32xf32>
    %170 = arith.addf %168, %169 : vector<128x32xf32>
    %171 = math.tanh %170 : vector<128x32xf32>
    %172 = arith.mulf %167, %171 : vector<128x32xf32>
    %173 = vector.extract_strided_slice %138 {offsets = [0, 0], sizes = [128, 128], strides = [1, 1]} : vector<128x256xf32> to vector<128x128xf32>
    %c2 = arith.constant 2 : index
    %c0_73 = arith.constant 0 : index
    %c0_74 = arith.constant 0 : index
    %174 = vector.load %arg17[%c2, %c0_73, %c0_74] : memref<8x128x128xf32, #tpu.memory_space<vmem>>, vector<1x128x128xf32>
    %175 = vector.shape_cast %174 : vector<1x128x128xf32> to vector<128x128xf32>
    %176 = arith.addf %173, %175 : vector<128x128xf32>
    %177 = vector.extract_strided_slice %176 {offsets = [0, 0], sizes = [128, 32], strides = [1, 1]} : vector<128x128xf32> to vector<128x32xf32>
    %cst_75 = arith.constant 5.000000e-01 : f32
    %178 = vector.broadcast %cst_75 : f32 to vector<128x32xf32>
    %179 = arith.mulf %178, %177 : vector<128x32xf32>
    %180 = math.tanh %179 : vector<128x32xf32>
    %cst_76 = arith.constant 5.000000e-01 : f32
    %181 = vector.broadcast %cst_76 : f32 to vector<128x32xf32>
    %182 = arith.mulf %181, %180 : vector<128x32xf32>
    %cst_77 = arith.constant 5.000000e-01 : f32
    %183 = vector.broadcast %cst_77 : f32 to vector<128x32xf32>
    %184 = arith.addf %182, %183 : vector<128x32xf32>
    %185 = vector.extract_strided_slice %176 {offsets = [0, 32], sizes = [128, 32], strides = [1, 1]} : vector<128x128xf32> to vector<128x32xf32>
    %cst_78 = arith.constant 5.000000e-01 : f32
    %186 = vector.broadcast %cst_78 : f32 to vector<128x32xf32>
    %187 = arith.mulf %186, %185 : vector<128x32xf32>
    %188 = math.tanh %187 : vector<128x32xf32>
    %cst_79 = arith.constant 5.000000e-01 : f32
    %189 = vector.broadcast %cst_79 : f32 to vector<128x32xf32>
    %190 = arith.mulf %189, %188 : vector<128x32xf32>
    %cst_80 = arith.constant 5.000000e-01 : f32
    %191 = vector.broadcast %cst_80 : f32 to vector<128x32xf32>
    %192 = arith.addf %190, %191 : vector<128x32xf32>
    %193 = vector.extract_strided_slice %176 {offsets = [0, 64], sizes = [128, 32], strides = [1, 1]} : vector<128x128xf32> to vector<128x32xf32>
    %194 = math.tanh %193 : vector<128x32xf32>
    %195 = vector.extract_strided_slice %176 {offsets = [0, 96], sizes = [128, 32], strides = [1, 1]} : vector<128x128xf32> to vector<128x32xf32>
    %cst_81 = arith.constant 5.000000e-01 : f32
    %196 = vector.broadcast %cst_81 : f32 to vector<128x32xf32>
    %197 = arith.mulf %196, %195 : vector<128x32xf32>
    %198 = math.tanh %197 : vector<128x32xf32>
    %cst_82 = arith.constant 5.000000e-01 : f32
    %199 = vector.broadcast %cst_82 : f32 to vector<128x32xf32>
    %200 = arith.mulf %199, %198 : vector<128x32xf32>
    %cst_83 = arith.constant 5.000000e-01 : f32
    %201 = vector.broadcast %cst_83 : f32 to vector<128x32xf32>
    %202 = arith.addf %200, %201 : vector<128x32xf32>
    %203 = arith.mulf %192, %134 : vector<128x32xf32>
    %204 = arith.mulf %184, %194 : vector<128x32xf32>
    %205 = arith.addf %203, %204 : vector<128x32xf32>
    %206 = math.tanh %205 : vector<128x32xf32>
    %207 = arith.mulf %202, %206 : vector<128x32xf32>
    %208 = tpu.concatenate %207, %172 in 1 : vector<128x32xf32>, vector<128x32xf32> -> vector<128x64xf32>
    %cst_84 = arith.constant dense<0.000000e+00> : vector<128x256xf32>
    %209 = tpu.matmul %208, %30, %cst_84 {dimension_numbers = #tpu.dot_dimension_numbers<[1], [0], [0], [1], [0, 0, 1, 1], [], []>} : vector<128x64xf32>, vector<64x256xf32>, vector<128x256xf32> -> vector<128x256xf32>
    %210 = vector.extract_strided_slice %209 {offsets = [0, 128], sizes = [128, 128], strides = [1, 1]} : vector<128x256xf32> to vector<128x128xf32>
    %211 = vector.broadcast %31 : vector<1x128xf32> to vector<128x128xf32>
    %212 = arith.addf %210, %211 : vector<128x128xf32>
    %213 = vector.extract_strided_slice %212 {offsets = [0, 0], sizes = [128, 32], strides = [1, 1]} : vector<128x128xf32> to vector<128x32xf32>
    %cst_85 = arith.constant 5.000000e-01 : f32
    %214 = vector.broadcast %cst_85 : f32 to vector<128x32xf32>
    %215 = arith.mulf %214, %213 : vector<128x32xf32>
    %216 = math.tanh %215 : vector<128x32xf32>
    %cst_86 = arith.constant 5.000000e-01 : f32
    %217 = vector.broadcast %cst_86 : f32 to vector<128x32xf32>
    %218 = arith.mulf %217, %216 : vector<128x32xf32>
    %cst_87 = arith.constant 5.000000e-01 : f32
    %219 = vector.broadcast %cst_87 : f32 to vector<128x32xf32>
    %220 = arith.addf %218, %219 : vector<128x32xf32>
    %221 = vector.extract_strided_slice %212 {offsets = [0, 32], sizes = [128, 32], strides = [1, 1]} : vector<128x128xf32> to vector<128x32xf32>
    %cst_88 = arith.constant 5.000000e-01 : f32
    %222 = vector.broadcast %cst_88 : f32 to vector<128x32xf32>
    %223 = arith.mulf %222, %221 : vector<128x32xf32>
    %224 = math.tanh %223 : vector<128x32xf32>
    %cst_89 = arith.constant 5.000000e-01 : f32
    %225 = vector.broadcast %cst_89 : f32 to vector<128x32xf32>
    %226 = arith.mulf %225, %224 : vector<128x32xf32>
    %cst_90 = arith.constant 5.000000e-01 : f32
    %227 = vector.broadcast %cst_90 : f32 to vector<128x32xf32>
    %228 = arith.addf %226, %227 : vector<128x32xf32>
    %229 = vector.extract_strided_slice %212 {offsets = [0, 64], sizes = [128, 32], strides = [1, 1]} : vector<128x128xf32> to vector<128x32xf32>
    %230 = math.tanh %229 : vector<128x32xf32>
    %231 = vector.extract_strided_slice %212 {offsets = [0, 96], sizes = [128, 32], strides = [1, 1]} : vector<128x128xf32> to vector<128x32xf32>
    %cst_91 = arith.constant 5.000000e-01 : f32
    %232 = vector.broadcast %cst_91 : f32 to vector<128x32xf32>
    %233 = arith.mulf %232, %231 : vector<128x32xf32>
    %234 = math.tanh %233 : vector<128x32xf32>
    %cst_92 = arith.constant 5.000000e-01 : f32
    %235 = vector.broadcast %cst_92 : f32 to vector<128x32xf32>
    %236 = arith.mulf %235, %234 : vector<128x32xf32>
    %cst_93 = arith.constant 5.000000e-01 : f32
    %237 = vector.broadcast %cst_93 : f32 to vector<128x32xf32>
    %238 = arith.addf %236, %237 : vector<128x32xf32>
    %239 = arith.mulf %228, %170 : vector<128x32xf32>
    %240 = arith.mulf %220, %230 : vector<128x32xf32>
    %241 = arith.addf %239, %240 : vector<128x32xf32>
    %242 = math.tanh %241 : vector<128x32xf32>
    %243 = arith.mulf %238, %242 : vector<128x32xf32>
    %244 = vector.extract_strided_slice %209 {offsets = [0, 0], sizes = [128, 128], strides = [1, 1]} : vector<128x256xf32> to vector<128x128xf32>
    %c3 = arith.constant 3 : index
    %c0_94 = arith.constant 0 : index
    %c0_95 = arith.constant 0 : index
    %245 = vector.load %arg17[%c3, %c0_94, %c0_95] : memref<8x128x128xf32, #tpu.memory_space<vmem>>, vector<1x128x128xf32>
    %246 = vector.shape_cast %245 : vector<1x128x128xf32> to vector<128x128xf32>
    %247 = arith.addf %244, %246 : vector<128x128xf32>
    %248 = vector.extract_strided_slice %247 {offsets = [0, 0], sizes = [128, 32], strides = [1, 1]} : vector<128x128xf32> to vector<128x32xf32>
    %cst_96 = arith.constant 5.000000e-01 : f32
    %249 = vector.broadcast %cst_96 : f32 to vector<128x32xf32>
    %250 = arith.mulf %249, %248 : vector<128x32xf32>
    %251 = math.tanh %250 : vector<128x32xf32>
    %cst_97 = arith.constant 5.000000e-01 : f32
    %252 = vector.broadcast %cst_97 : f32 to vector<128x32xf32>
    %253 = arith.mulf %252, %251 : vector<128x32xf32>
    %cst_98 = arith.constant 5.000000e-01 : f32
    %254 = vector.broadcast %cst_98 : f32 to vector<128x32xf32>
    %255 = arith.addf %253, %254 : vector<128x32xf32>
    %256 = vector.extract_strided_slice %247 {offsets = [0, 32], sizes = [128, 32], strides = [1, 1]} : vector<128x128xf32> to vector<128x32xf32>
    %cst_99 = arith.constant 5.000000e-01 : f32
    %257 = vector.broadcast %cst_99 : f32 to vector<128x32xf32>
    %258 = arith.mulf %257, %256 : vector<128x32xf32>
    %259 = math.tanh %258 : vector<128x32xf32>
    %cst_100 = arith.constant 5.000000e-01 : f32
    %260 = vector.broadcast %cst_100 : f32 to vector<128x32xf32>
    %261 = arith.mulf %260, %259 : vector<128x32xf32>
    %cst_101 = arith.constant 5.000000e-01 : f32
    %262 = vector.broadcast %cst_101 : f32 to vector<128x32xf32>
    %263 = arith.addf %261, %262 : vector<128x32xf32>
    %264 = vector.extract_strided_slice %247 {offsets = [0, 64], sizes = [128, 32], strides = [1, 1]} : vector<128x128xf32> to vector<128x32xf32>
    %265 = math.tanh %264 : vector<128x32xf32>
    %266 = vector.extract_strided_slice %247 {offsets = [0, 96], sizes = [128, 32], strides = [1, 1]} : vector<128x128xf32> to vector<128x32xf32>
    %cst_102 = arith.constant 5.000000e-01 : f32
    %267 = vector.broadcast %cst_102 : f32 to vector<128x32xf32>
    %268 = arith.mulf %267, %266 : vector<128x32xf32>
    %269 = math.tanh %268 : vector<128x32xf32>
    %cst_103 = arith.constant 5.000000e-01 : f32
    %270 = vector.broadcast %cst_103 : f32 to vector<128x32xf32>
    %271 = arith.mulf %270, %269 : vector<128x32xf32>
    %cst_104 = arith.constant 5.000000e-01 : f32
    %272 = vector.broadcast %cst_104 : f32 to vector<128x32xf32>
    %273 = arith.addf %271, %272 : vector<128x32xf32>
    %274 = arith.mulf %263, %205 : vector<128x32xf32>
    %275 = arith.mulf %255, %265 : vector<128x32xf32>
    %276 = arith.addf %274, %275 : vector<128x32xf32>
    %277 = math.tanh %276 : vector<128x32xf32>
    %278 = arith.mulf %273, %277 : vector<128x32xf32>
    %279 = tpu.concatenate %278, %243 in 1 : vector<128x32xf32>, vector<128x32xf32> -> vector<128x64xf32>
    %cst_105 = arith.constant dense<0.000000e+00> : vector<128x256xf32>
    %280 = tpu.matmul %279, %30, %cst_105 {dimension_numbers = #tpu.dot_dimension_numbers<[1], [0], [0], [1], [0, 0, 1, 1], [], []>} : vector<128x64xf32>, vector<64x256xf32>, vector<128x256xf32> -> vector<128x256xf32>
    %281 = vector.extract_strided_slice %280 {offsets = [0, 128], sizes = [128, 128], strides = [1, 1]} : vector<128x256xf32> to vector<128x128xf32>
    %282 = vector.broadcast %31 : vector<1x128xf32> to vector<128x128xf32>
    %283 = arith.addf %281, %282 : vector<128x128xf32>
    %284 = vector.extract_strided_slice %283 {offsets = [0, 0], sizes = [128, 32], strides = [1, 1]} : vector<128x128xf32> to vector<128x32xf32>
    %cst_106 = arith.constant 5.000000e-01 : f32
    %285 = vector.broadcast %cst_106 : f32 to vector<128x32xf32>
    %286 = arith.mulf %285, %284 : vector<128x32xf32>
    %287 = math.tanh %286 : vector<128x32xf32>
    %cst_107 = arith.constant 5.000000e-01 : f32
    %288 = vector.broadcast %cst_107 : f32 to vector<128x32xf32>
    %289 = arith.mulf %288, %287 : vector<128x32xf32>
    %cst_108 = arith.constant 5.000000e-01 : f32
    %290 = vector.broadcast %cst_108 : f32 to vector<128x32xf32>
    %291 = arith.addf %289, %290 : vector<128x32xf32>
    %292 = vector.extract_strided_slice %283 {offsets = [0, 32], sizes = [128, 32], strides = [1, 1]} : vector<128x128xf32> to vector<128x32xf32>
    %cst_109 = arith.constant 5.000000e-01 : f32
    %293 = vector.broadcast %cst_109 : f32 to vector<128x32xf32>
    %294 = arith.mulf %293, %292 : vector<128x32xf32>
    %295 = math.tanh %294 : vector<128x32xf32>
    %cst_110 = arith.constant 5.000000e-01 : f32
    %296 = vector.broadcast %cst_110 : f32 to vector<128x32xf32>
    %297 = arith.mulf %296, %295 : vector<128x32xf32>
    %cst_111 = arith.constant 5.000000e-01 : f32
    %298 = vector.broadcast %cst_111 : f32 to vector<128x32xf32>
    %299 = arith.addf %297, %298 : vector<128x32xf32>
    %300 = vector.extract_strided_slice %283 {offsets = [0, 64], sizes = [128, 32], strides = [1, 1]} : vector<128x128xf32> to vector<128x32xf32>
    %301 = math.tanh %300 : vector<128x32xf32>
    %302 = vector.extract_strided_slice %283 {offsets = [0, 96], sizes = [128, 32], strides = [1, 1]} : vector<128x128xf32> to vector<128x32xf32>
    %cst_112 = arith.constant 5.000000e-01 : f32
    %303 = vector.broadcast %cst_112 : f32 to vector<128x32xf32>
    %304 = arith.mulf %303, %302 : vector<128x32xf32>
    %305 = math.tanh %304 : vector<128x32xf32>
    %cst_113 = arith.constant 5.000000e-01 : f32
    %306 = vector.broadcast %cst_113 : f32 to vector<128x32xf32>
    %307 = arith.mulf %306, %305 : vector<128x32xf32>
    %cst_114 = arith.constant 5.000000e-01 : f32
    %308 = vector.broadcast %cst_114 : f32 to vector<128x32xf32>
    %309 = arith.addf %307, %308 : vector<128x32xf32>
    %310 = arith.mulf %299, %241 : vector<128x32xf32>
    %311 = arith.mulf %291, %301 : vector<128x32xf32>
    %312 = arith.addf %310, %311 : vector<128x32xf32>
    %313 = math.tanh %312 : vector<128x32xf32>
    %314 = arith.mulf %309, %313 : vector<128x32xf32>
    %315 = vector.extract_strided_slice %280 {offsets = [0, 0], sizes = [128, 128], strides = [1, 1]} : vector<128x256xf32> to vector<128x128xf32>
    %c4 = arith.constant 4 : index
    %c0_115 = arith.constant 0 : index
    %c0_116 = arith.constant 0 : index
    %316 = vector.load %arg17[%c4, %c0_115, %c0_116] : memref<8x128x128xf32, #tpu.memory_space<vmem>>, vector<1x128x128xf32>
    %317 = vector.shape_cast %316 : vector<1x128x128xf32> to vector<128x128xf32>
    %318 = arith.addf %315, %317 : vector<128x128xf32>
    %319 = vector.extract_strided_slice %318 {offsets = [0, 0], sizes = [128, 32], strides = [1, 1]} : vector<128x128xf32> to vector<128x32xf32>
    %cst_117 = arith.constant 5.000000e-01 : f32
    %320 = vector.broadcast %cst_117 : f32 to vector<128x32xf32>
    %321 = arith.mulf %320, %319 : vector<128x32xf32>
    %322 = math.tanh %321 : vector<128x32xf32>
    %cst_118 = arith.constant 5.000000e-01 : f32
    %323 = vector.broadcast %cst_118 : f32 to vector<128x32xf32>
    %324 = arith.mulf %323, %322 : vector<128x32xf32>
    %cst_119 = arith.constant 5.000000e-01 : f32
    %325 = vector.broadcast %cst_119 : f32 to vector<128x32xf32>
    %326 = arith.addf %324, %325 : vector<128x32xf32>
    %327 = vector.extract_strided_slice %318 {offsets = [0, 32], sizes = [128, 32], strides = [1, 1]} : vector<128x128xf32> to vector<128x32xf32>
    %cst_120 = arith.constant 5.000000e-01 : f32
    %328 = vector.broadcast %cst_120 : f32 to vector<128x32xf32>
    %329 = arith.mulf %328, %327 : vector<128x32xf32>
    %330 = math.tanh %329 : vector<128x32xf32>
    %cst_121 = arith.constant 5.000000e-01 : f32
    %331 = vector.broadcast %cst_121 : f32 to vector<128x32xf32>
    %332 = arith.mulf %331, %330 : vector<128x32xf32>
    %cst_122 = arith.constant 5.000000e-01 : f32
    %333 = vector.broadcast %cst_122 : f32 to vector<128x32xf32>
    %334 = arith.addf %332, %333 : vector<128x32xf32>
    %335 = vector.extract_strided_slice %318 {offsets = [0, 64], sizes = [128, 32], strides = [1, 1]} : vector<128x128xf32> to vector<128x32xf32>
    %336 = math.tanh %335 : vector<128x32xf32>
    %337 = vector.extract_strided_slice %318 {offsets = [0, 96], sizes = [128, 32], strides = [1, 1]} : vector<128x128xf32> to vector<128x32xf32>
    %cst_123 = arith.constant 5.000000e-01 : f32
    %338 = vector.broadcast %cst_123 : f32 to vector<128x32xf32>
    %339 = arith.mulf %338, %337 : vector<128x32xf32>
    %340 = math.tanh %339 : vector<128x32xf32>
    %cst_124 = arith.constant 5.000000e-01 : f32
    %341 = vector.broadcast %cst_124 : f32 to vector<128x32xf32>
    %342 = arith.mulf %341, %340 : vector<128x32xf32>
    %cst_125 = arith.constant 5.000000e-01 : f32
    %343 = vector.broadcast %cst_125 : f32 to vector<128x32xf32>
    %344 = arith.addf %342, %343 : vector<128x32xf32>
    %345 = arith.mulf %334, %276 : vector<128x32xf32>
    %346 = arith.mulf %326, %336 : vector<128x32xf32>
    %347 = arith.addf %345, %346 : vector<128x32xf32>
    %348 = math.tanh %347 : vector<128x32xf32>
    %349 = arith.mulf %344, %348 : vector<128x32xf32>
    %350 = tpu.concatenate %349, %314 in 1 : vector<128x32xf32>, vector<128x32xf32> -> vector<128x64xf32>
    %cst_126 = arith.constant dense<0.000000e+00> : vector<128x256xf32>
    %351 = tpu.matmul %350, %30, %cst_126 {dimension_numbers = #tpu.dot_dimension_numbers<[1], [0], [0], [1], [0, 0, 1, 1], [], []>} : vector<128x64xf32>, vector<64x256xf32>, vector<128x256xf32> -> vector<128x256xf32>
    %352 = vector.extract_strided_slice %351 {offsets = [0, 128], sizes = [128, 128], strides = [1, 1]} : vector<128x256xf32> to vector<128x128xf32>
    %353 = vector.broadcast %31 : vector<1x128xf32> to vector<128x128xf32>
    %354 = arith.addf %352, %353 : vector<128x128xf32>
    %355 = vector.extract_strided_slice %354 {offsets = [0, 0], sizes = [128, 32], strides = [1, 1]} : vector<128x128xf32> to vector<128x32xf32>
    %cst_127 = arith.constant 5.000000e-01 : f32
    %356 = vector.broadcast %cst_127 : f32 to vector<128x32xf32>
    %357 = arith.mulf %356, %355 : vector<128x32xf32>
    %358 = math.tanh %357 : vector<128x32xf32>
    %cst_128 = arith.constant 5.000000e-01 : f32
    %359 = vector.broadcast %cst_128 : f32 to vector<128x32xf32>
    %360 = arith.mulf %359, %358 : vector<128x32xf32>
    %cst_129 = arith.constant 5.000000e-01 : f32
    %361 = vector.broadcast %cst_129 : f32 to vector<128x32xf32>
    %362 = arith.addf %360, %361 : vector<128x32xf32>
    %363 = vector.extract_strided_slice %354 {offsets = [0, 32], sizes = [128, 32], strides = [1, 1]} : vector<128x128xf32> to vector<128x32xf32>
    %cst_130 = arith.constant 5.000000e-01 : f32
    %364 = vector.broadcast %cst_130 : f32 to vector<128x32xf32>
    %365 = arith.mulf %364, %363 : vector<128x32xf32>
    %366 = math.tanh %365 : vector<128x32xf32>
    %cst_131 = arith.constant 5.000000e-01 : f32
    %367 = vector.broadcast %cst_131 : f32 to vector<128x32xf32>
    %368 = arith.mulf %367, %366 : vector<128x32xf32>
    %cst_132 = arith.constant 5.000000e-01 : f32
    %369 = vector.broadcast %cst_132 : f32 to vector<128x32xf32>
    %370 = arith.addf %368, %369 : vector<128x32xf32>
    %371 = vector.extract_strided_slice %354 {offsets = [0, 64], sizes = [128, 32], strides = [1, 1]} : vector<128x128xf32> to vector<128x32xf32>
    %372 = math.tanh %371 : vector<128x32xf32>
    %373 = vector.extract_strided_slice %354 {offsets = [0, 96], sizes = [128, 32], strides = [1, 1]} : vector<128x128xf32> to vector<128x32xf32>
    %cst_133 = arith.constant 5.000000e-01 : f32
    %374 = vector.broadcast %cst_133 : f32 to vector<128x32xf32>
    %375 = arith.mulf %374, %373 : vector<128x32xf32>
    %376 = math.tanh %375 : vector<128x32xf32>
    %cst_134 = arith.constant 5.000000e-01 : f32
    %377 = vector.broadcast %cst_134 : f32 to vector<128x32xf32>
    %378 = arith.mulf %377, %376 : vector<128x32xf32>
    %cst_135 = arith.constant 5.000000e-01 : f32
    %379 = vector.broadcast %cst_135 : f32 to vector<128x32xf32>
    %380 = arith.addf %378, %379 : vector<128x32xf32>
    %381 = arith.mulf %370, %312 : vector<128x32xf32>
    %382 = arith.mulf %362, %372 : vector<128x32xf32>
    %383 = arith.addf %381, %382 : vector<128x32xf32>
    %384 = math.tanh %383 : vector<128x32xf32>
    %385 = arith.mulf %380, %384 : vector<128x32xf32>
    %386 = vector.extract_strided_slice %351 {offsets = [0, 0], sizes = [128, 128], strides = [1, 1]} : vector<128x256xf32> to vector<128x128xf32>
    %c5 = arith.constant 5 : index
    %c0_136 = arith.constant 0 : index
    %c0_137 = arith.constant 0 : index
    %387 = vector.load %arg17[%c5, %c0_136, %c0_137] : memref<8x128x128xf32, #tpu.memory_space<vmem>>, vector<1x128x128xf32>
    %388 = vector.shape_cast %387 : vector<1x128x128xf32> to vector<128x128xf32>
    %389 = arith.addf %386, %388 : vector<128x128xf32>
    %390 = vector.extract_strided_slice %389 {offsets = [0, 0], sizes = [128, 32], strides = [1, 1]} : vector<128x128xf32> to vector<128x32xf32>
    %cst_138 = arith.constant 5.000000e-01 : f32
    %391 = vector.broadcast %cst_138 : f32 to vector<128x32xf32>
    %392 = arith.mulf %391, %390 : vector<128x32xf32>
    %393 = math.tanh %392 : vector<128x32xf32>
    %cst_139 = arith.constant 5.000000e-01 : f32
    %394 = vector.broadcast %cst_139 : f32 to vector<128x32xf32>
    %395 = arith.mulf %394, %393 : vector<128x32xf32>
    %cst_140 = arith.constant 5.000000e-01 : f32
    %396 = vector.broadcast %cst_140 : f32 to vector<128x32xf32>
    %397 = arith.addf %395, %396 : vector<128x32xf32>
    %398 = vector.extract_strided_slice %389 {offsets = [0, 32], sizes = [128, 32], strides = [1, 1]} : vector<128x128xf32> to vector<128x32xf32>
    %cst_141 = arith.constant 5.000000e-01 : f32
    %399 = vector.broadcast %cst_141 : f32 to vector<128x32xf32>
    %400 = arith.mulf %399, %398 : vector<128x32xf32>
    %401 = math.tanh %400 : vector<128x32xf32>
    %cst_142 = arith.constant 5.000000e-01 : f32
    %402 = vector.broadcast %cst_142 : f32 to vector<128x32xf32>
    %403 = arith.mulf %402, %401 : vector<128x32xf32>
    %cst_143 = arith.constant 5.000000e-01 : f32
    %404 = vector.broadcast %cst_143 : f32 to vector<128x32xf32>
    %405 = arith.addf %403, %404 : vector<128x32xf32>
    %406 = vector.extract_strided_slice %389 {offsets = [0, 64], sizes = [128, 32], strides = [1, 1]} : vector<128x128xf32> to vector<128x32xf32>
    %407 = math.tanh %406 : vector<128x32xf32>
    %408 = vector.extract_strided_slice %389 {offsets = [0, 96], sizes = [128, 32], strides = [1, 1]} : vector<128x128xf32> to vector<128x32xf32>
    %cst_144 = arith.constant 5.000000e-01 : f32
    %409 = vector.broadcast %cst_144 : f32 to vector<128x32xf32>
    %410 = arith.mulf %409, %408 : vector<128x32xf32>
    %411 = math.tanh %410 : vector<128x32xf32>
    %cst_145 = arith.constant 5.000000e-01 : f32
    %412 = vector.broadcast %cst_145 : f32 to vector<128x32xf32>
    %413 = arith.mulf %412, %411 : vector<128x32xf32>
    %cst_146 = arith.constant 5.000000e-01 : f32
    %414 = vector.broadcast %cst_146 : f32 to vector<128x32xf32>
    %415 = arith.addf %413, %414 : vector<128x32xf32>
    %416 = arith.mulf %405, %347 : vector<128x32xf32>
    %417 = arith.mulf %397, %407 : vector<128x32xf32>
    %418 = arith.addf %416, %417 : vector<128x32xf32>
    %419 = math.tanh %418 : vector<128x32xf32>
    %420 = arith.mulf %415, %419 : vector<128x32xf32>
    %421 = tpu.concatenate %420, %385 in 1 : vector<128x32xf32>, vector<128x32xf32> -> vector<128x64xf32>
    %cst_147 = arith.constant dense<0.000000e+00> : vector<128x256xf32>
    %422 = tpu.matmul %421, %30, %cst_147 {dimension_numbers = #tpu.dot_dimension_numbers<[1], [0], [0], [1], [0, 0, 1, 1], [], []>} : vector<128x64xf32>, vector<64x256xf32>, vector<128x256xf32> -> vector<128x256xf32>
    %423 = vector.extract_strided_slice %422 {offsets = [0, 128], sizes = [128, 128], strides = [1, 1]} : vector<128x256xf32> to vector<128x128xf32>
    %424 = vector.broadcast %31 : vector<1x128xf32> to vector<128x128xf32>
    %425 = arith.addf %423, %424 : vector<128x128xf32>
    %426 = vector.extract_strided_slice %425 {offsets = [0, 0], sizes = [128, 32], strides = [1, 1]} : vector<128x128xf32> to vector<128x32xf32>
    %cst_148 = arith.constant 5.000000e-01 : f32
    %427 = vector.broadcast %cst_148 : f32 to vector<128x32xf32>
    %428 = arith.mulf %427, %426 : vector<128x32xf32>
    %429 = math.tanh %428 : vector<128x32xf32>
    %cst_149 = arith.constant 5.000000e-01 : f32
    %430 = vector.broadcast %cst_149 : f32 to vector<128x32xf32>
    %431 = arith.mulf %430, %429 : vector<128x32xf32>
    %cst_150 = arith.constant 5.000000e-01 : f32
    %432 = vector.broadcast %cst_150 : f32 to vector<128x32xf32>
    %433 = arith.addf %431, %432 : vector<128x32xf32>
    %434 = vector.extract_strided_slice %425 {offsets = [0, 32], sizes = [128, 32], strides = [1, 1]} : vector<128x128xf32> to vector<128x32xf32>
    %cst_151 = arith.constant 5.000000e-01 : f32
    %435 = vector.broadcast %cst_151 : f32 to vector<128x32xf32>
    %436 = arith.mulf %435, %434 : vector<128x32xf32>
    %437 = math.tanh %436 : vector<128x32xf32>
    %cst_152 = arith.constant 5.000000e-01 : f32
    %438 = vector.broadcast %cst_152 : f32 to vector<128x32xf32>
    %439 = arith.mulf %438, %437 : vector<128x32xf32>
    %cst_153 = arith.constant 5.000000e-01 : f32
    %440 = vector.broadcast %cst_153 : f32 to vector<128x32xf32>
    %441 = arith.addf %439, %440 : vector<128x32xf32>
    %442 = vector.extract_strided_slice %425 {offsets = [0, 64], sizes = [128, 32], strides = [1, 1]} : vector<128x128xf32> to vector<128x32xf32>
    %443 = math.tanh %442 : vector<128x32xf32>
    %444 = vector.extract_strided_slice %425 {offsets = [0, 96], sizes = [128, 32], strides = [1, 1]} : vector<128x128xf32> to vector<128x32xf32>
    %cst_154 = arith.constant 5.000000e-01 : f32
    %445 = vector.broadcast %cst_154 : f32 to vector<128x32xf32>
    %446 = arith.mulf %445, %444 : vector<128x32xf32>
    %447 = math.tanh %446 : vector<128x32xf32>
    %cst_155 = arith.constant 5.000000e-01 : f32
    %448 = vector.broadcast %cst_155 : f32 to vector<128x32xf32>
    %449 = arith.mulf %448, %447 : vector<128x32xf32>
    %cst_156 = arith.constant 5.000000e-01 : f32
    %450 = vector.broadcast %cst_156 : f32 to vector<128x32xf32>
    %451 = arith.addf %449, %450 : vector<128x32xf32>
    %452 = arith.mulf %441, %383 : vector<128x32xf32>
    %453 = arith.mulf %433, %443 : vector<128x32xf32>
    %454 = arith.addf %452, %453 : vector<128x32xf32>
    %455 = math.tanh %454 : vector<128x32xf32>
    %456 = arith.mulf %451, %455 : vector<128x32xf32>
    %457 = vector.extract_strided_slice %422 {offsets = [0, 0], sizes = [128, 128], strides = [1, 1]} : vector<128x256xf32> to vector<128x128xf32>
    %c6 = arith.constant 6 : index
    %c0_157 = arith.constant 0 : index
    %c0_158 = arith.constant 0 : index
    %458 = vector.load %arg17[%c6, %c0_157, %c0_158] : memref<8x128x128xf32, #tpu.memory_space<vmem>>, vector<1x128x128xf32>
    %459 = vector.shape_cast %458 : vector<1x128x128xf32> to vector<128x128xf32>
    %460 = arith.addf %457, %459 : vector<128x128xf32>
    %461 = vector.extract_strided_slice %460 {offsets = [0, 0], sizes = [128, 32], strides = [1, 1]} : vector<128x128xf32> to vector<128x32xf32>
    %cst_159 = arith.constant 5.000000e-01 : f32
    %462 = vector.broadcast %cst_159 : f32 to vector<128x32xf32>
    %463 = arith.mulf %462, %461 : vector<128x32xf32>
    %464 = math.tanh %463 : vector<128x32xf32>
    %cst_160 = arith.constant 5.000000e-01 : f32
    %465 = vector.broadcast %cst_160 : f32 to vector<128x32xf32>
    %466 = arith.mulf %465, %464 : vector<128x32xf32>
    %cst_161 = arith.constant 5.000000e-01 : f32
    %467 = vector.broadcast %cst_161 : f32 to vector<128x32xf32>
    %468 = arith.addf %466, %467 : vector<128x32xf32>
    %469 = vector.extract_strided_slice %460 {offsets = [0, 32], sizes = [128, 32], strides = [1, 1]} : vector<128x128xf32> to vector<128x32xf32>
    %cst_162 = arith.constant 5.000000e-01 : f32
    %470 = vector.broadcast %cst_162 : f32 to vector<128x32xf32>
    %471 = arith.mulf %470, %469 : vector<128x32xf32>
    %472 = math.tanh %471 : vector<128x32xf32>
    %cst_163 = arith.constant 5.000000e-01 : f32
    %473 = vector.broadcast %cst_163 : f32 to vector<128x32xf32>
    %474 = arith.mulf %473, %472 : vector<128x32xf32>
    %cst_164 = arith.constant 5.000000e-01 : f32
    %475 = vector.broadcast %cst_164 : f32 to vector<128x32xf32>
    %476 = arith.addf %474, %475 : vector<128x32xf32>
    %477 = vector.extract_strided_slice %460 {offsets = [0, 64], sizes = [128, 32], strides = [1, 1]} : vector<128x128xf32> to vector<128x32xf32>
    %478 = math.tanh %477 : vector<128x32xf32>
    %479 = vector.extract_strided_slice %460 {offsets = [0, 96], sizes = [128, 32], strides = [1, 1]} : vector<128x128xf32> to vector<128x32xf32>
    %cst_165 = arith.constant 5.000000e-01 : f32
    %480 = vector.broadcast %cst_165 : f32 to vector<128x32xf32>
    %481 = arith.mulf %480, %479 : vector<128x32xf32>
    %482 = math.tanh %481 : vector<128x32xf32>
    %cst_166 = arith.constant 5.000000e-01 : f32
    %483 = vector.broadcast %cst_166 : f32 to vector<128x32xf32>
    %484 = arith.mulf %483, %482 : vector<128x32xf32>
    %cst_167 = arith.constant 5.000000e-01 : f32
    %485 = vector.broadcast %cst_167 : f32 to vector<128x32xf32>
    %486 = arith.addf %484, %485 : vector<128x32xf32>
    %487 = arith.mulf %476, %418 : vector<128x32xf32>
    %488 = arith.mulf %468, %478 : vector<128x32xf32>
    %489 = arith.addf %487, %488 : vector<128x32xf32>
    %490 = math.tanh %489 : vector<128x32xf32>
    %491 = arith.mulf %486, %490 : vector<128x32xf32>
    %492 = tpu.concatenate %491, %456 in 1 : vector<128x32xf32>, vector<128x32xf32> -> vector<128x64xf32>
    %cst_168 = arith.constant dense<0.000000e+00> : vector<128x256xf32>
    %493 = tpu.matmul %492, %30, %cst_168 {dimension_numbers = #tpu.dot_dimension_numbers<[1], [0], [0], [1], [0, 0, 1, 1], [], []>} : vector<128x64xf32>, vector<64x256xf32>, vector<128x256xf32> -> vector<128x256xf32>
    %494 = vector.extract_strided_slice %493 {offsets = [0, 128], sizes = [128, 128], strides = [1, 1]} : vector<128x256xf32> to vector<128x128xf32>
    %495 = vector.broadcast %31 : vector<1x128xf32> to vector<128x128xf32>
    %496 = arith.addf %494, %495 : vector<128x128xf32>
    %497 = vector.extract_strided_slice %496 {offsets = [0, 0], sizes = [128, 32], strides = [1, 1]} : vector<128x128xf32> to vector<128x32xf32>
    %cst_169 = arith.constant 5.000000e-01 : f32
    %498 = vector.broadcast %cst_169 : f32 to vector<128x32xf32>
    %499 = arith.mulf %498, %497 : vector<128x32xf32>
    %500 = math.tanh %499 : vector<128x32xf32>
    %cst_170 = arith.constant 5.000000e-01 : f32
    %501 = vector.broadcast %cst_170 : f32 to vector<128x32xf32>
    %502 = arith.mulf %501, %500 : vector<128x32xf32>
    %cst_171 = arith.constant 5.000000e-01 : f32
    %503 = vector.broadcast %cst_171 : f32 to vector<128x32xf32>
    %504 = arith.addf %502, %503 : vector<128x32xf32>
    %505 = vector.extract_strided_slice %496 {offsets = [0, 32], sizes = [128, 32], strides = [1, 1]} : vector<128x128xf32> to vector<128x32xf32>
    %cst_172 = arith.constant 5.000000e-01 : f32
    %506 = vector.broadcast %cst_172 : f32 to vector<128x32xf32>
    %507 = arith.mulf %506, %505 : vector<128x32xf32>
    %508 = math.tanh %507 : vector<128x32xf32>
    %cst_173 = arith.constant 5.000000e-01 : f32
    %509 = vector.broadcast %cst_173 : f32 to vector<128x32xf32>
    %510 = arith.mulf %509, %508 : vector<128x32xf32>
    %cst_174 = arith.constant 5.000000e-01 : f32
    %511 = vector.broadcast %cst_174 : f32 to vector<128x32xf32>
    %512 = arith.addf %510, %511 : vector<128x32xf32>
    %513 = vector.extract_strided_slice %496 {offsets = [0, 64], sizes = [128, 32], strides = [1, 1]} : vector<128x128xf32> to vector<128x32xf32>
    %514 = math.tanh %513 : vector<128x32xf32>
    %515 = vector.extract_strided_slice %496 {offsets = [0, 96], sizes = [128, 32], strides = [1, 1]} : vector<128x128xf32> to vector<128x32xf32>
    %cst_175 = arith.constant 5.000000e-01 : f32
    %516 = vector.broadcast %cst_175 : f32 to vector<128x32xf32>
    %517 = arith.mulf %516, %515 : vector<128x32xf32>
    %518 = math.tanh %517 : vector<128x32xf32>
    %cst_176 = arith.constant 5.000000e-01 : f32
    %519 = vector.broadcast %cst_176 : f32 to vector<128x32xf32>
    %520 = arith.mulf %519, %518 : vector<128x32xf32>
    %cst_177 = arith.constant 5.000000e-01 : f32
    %521 = vector.broadcast %cst_177 : f32 to vector<128x32xf32>
    %522 = arith.addf %520, %521 : vector<128x32xf32>
    %523 = arith.mulf %512, %454 : vector<128x32xf32>
    %524 = arith.mulf %504, %514 : vector<128x32xf32>
    %525 = arith.addf %523, %524 : vector<128x32xf32>
    %526 = math.tanh %525 : vector<128x32xf32>
    %527 = arith.mulf %522, %526 : vector<128x32xf32>
    %528 = vector.extract_strided_slice %493 {offsets = [0, 0], sizes = [128, 128], strides = [1, 1]} : vector<128x256xf32> to vector<128x128xf32>
    %c7 = arith.constant 7 : index
    %c0_178 = arith.constant 0 : index
    %c0_179 = arith.constant 0 : index
    %529 = vector.load %arg17[%c7, %c0_178, %c0_179] : memref<8x128x128xf32, #tpu.memory_space<vmem>>, vector<1x128x128xf32>
    %530 = vector.shape_cast %529 : vector<1x128x128xf32> to vector<128x128xf32>
    %531 = arith.addf %528, %530 : vector<128x128xf32>
    %532 = vector.extract_strided_slice %531 {offsets = [0, 0], sizes = [128, 32], strides = [1, 1]} : vector<128x128xf32> to vector<128x32xf32>
    %cst_180 = arith.constant 5.000000e-01 : f32
    %533 = vector.broadcast %cst_180 : f32 to vector<128x32xf32>
    %534 = arith.mulf %533, %532 : vector<128x32xf32>
    %535 = math.tanh %534 : vector<128x32xf32>
    %cst_181 = arith.constant 5.000000e-01 : f32
    %536 = vector.broadcast %cst_181 : f32 to vector<128x32xf32>
    %537 = arith.mulf %536, %535 : vector<128x32xf32>
    %cst_182 = arith.constant 5.000000e-01 : f32
    %538 = vector.broadcast %cst_182 : f32 to vector<128x32xf32>
    %539 = arith.addf %537, %538 : vector<128x32xf32>
    %540 = vector.extract_strided_slice %531 {offsets = [0, 32], sizes = [128, 32], strides = [1, 1]} : vector<128x128xf32> to vector<128x32xf32>
    %cst_183 = arith.constant 5.000000e-01 : f32
    %541 = vector.broadcast %cst_183 : f32 to vector<128x32xf32>
    %542 = arith.mulf %541, %540 : vector<128x32xf32>
    %543 = math.tanh %542 : vector<128x32xf32>
    %cst_184 = arith.constant 5.000000e-01 : f32
    %544 = vector.broadcast %cst_184 : f32 to vector<128x32xf32>
    %545 = arith.mulf %544, %543 : vector<128x32xf32>
    %cst_185 = arith.constant 5.000000e-01 : f32
    %546 = vector.broadcast %cst_185 : f32 to vector<128x32xf32>
    %547 = arith.addf %545, %546 : vector<128x32xf32>
    %548 = vector.extract_strided_slice %531 {offsets = [0, 64], sizes = [128, 32], strides = [1, 1]} : vector<128x128xf32> to vector<128x32xf32>
    %549 = math.tanh %548 : vector<128x32xf32>
    %550 = vector.extract_strided_slice %531 {offsets = [0, 96], sizes = [128, 32], strides = [1, 1]} : vector<128x128xf32> to vector<128x32xf32>
    %cst_186 = arith.constant 5.000000e-01 : f32
    %551 = vector.broadcast %cst_186 : f32 to vector<128x32xf32>
    %552 = arith.mulf %551, %550 : vector<128x32xf32>
    %553 = math.tanh %552 : vector<128x32xf32>
    %cst_187 = arith.constant 5.000000e-01 : f32
    %554 = vector.broadcast %cst_187 : f32 to vector<128x32xf32>
    %555 = arith.mulf %554, %553 : vector<128x32xf32>
    %cst_188 = arith.constant 5.000000e-01 : f32
    %556 = vector.broadcast %cst_188 : f32 to vector<128x32xf32>
    %557 = arith.addf %555, %556 : vector<128x32xf32>
    %558 = arith.mulf %547, %489 : vector<128x32xf32>
    %559 = arith.mulf %539, %549 : vector<128x32xf32>
    %560 = arith.addf %558, %559 : vector<128x32xf32>
    %561 = math.tanh %560 : vector<128x32xf32>
    %562 = arith.mulf %557, %561 : vector<128x32xf32>
    %563 = tpu.concatenate %562, %527 in 1 : vector<128x32xf32>, vector<128x32xf32> -> vector<128x64xf32>
    %cst_189 = arith.constant dense<0.000000e+00> : vector<128x256xf32>
    %564 = tpu.matmul %563, %30, %cst_189 {dimension_numbers = #tpu.dot_dimension_numbers<[1], [0], [0], [1], [0, 0, 1, 1], [], []>} : vector<128x64xf32>, vector<64x256xf32>, vector<128x256xf32> -> vector<128x256xf32>
    %565 = vector.extract_strided_slice %564 {offsets = [0, 128], sizes = [128, 128], strides = [1, 1]} : vector<128x256xf32> to vector<128x128xf32>
    %566 = vector.broadcast %31 : vector<1x128xf32> to vector<128x128xf32>
    %567 = arith.addf %565, %566 : vector<128x128xf32>
    %568 = vector.extract_strided_slice %567 {offsets = [0, 0], sizes = [128, 32], strides = [1, 1]} : vector<128x128xf32> to vector<128x32xf32>
    %cst_190 = arith.constant 5.000000e-01 : f32
    %569 = vector.broadcast %cst_190 : f32 to vector<128x32xf32>
    %570 = arith.mulf %569, %568 : vector<128x32xf32>
    %571 = math.tanh %570 : vector<128x32xf32>
    %cst_191 = arith.constant 5.000000e-01 : f32
    %572 = vector.broadcast %cst_191 : f32 to vector<128x32xf32>
    %573 = arith.mulf %572, %571 : vector<128x32xf32>
    %cst_192 = arith.constant 5.000000e-01 : f32
    %574 = vector.broadcast %cst_192 : f32 to vector<128x32xf32>
    %575 = arith.addf %573, %574 : vector<128x32xf32>
    %576 = vector.extract_strided_slice %567 {offsets = [0, 32], sizes = [128, 32], strides = [1, 1]} : vector<128x128xf32> to vector<128x32xf32>
    %cst_193 = arith.constant 5.000000e-01 : f32
    %577 = vector.broadcast %cst_193 : f32 to vector<128x32xf32>
    %578 = arith.mulf %577, %576 : vector<128x32xf32>
    %579 = math.tanh %578 : vector<128x32xf32>
    %cst_194 = arith.constant 5.000000e-01 : f32
    %580 = vector.broadcast %cst_194 : f32 to vector<128x32xf32>
    %581 = arith.mulf %580, %579 : vector<128x32xf32>
    %cst_195 = arith.constant 5.000000e-01 : f32
    %582 = vector.broadcast %cst_195 : f32 to vector<128x32xf32>
    %583 = arith.addf %581, %582 : vector<128x32xf32>
    %584 = vector.extract_strided_slice %567 {offsets = [0, 64], sizes = [128, 32], strides = [1, 1]} : vector<128x128xf32> to vector<128x32xf32>
    %585 = math.tanh %584 : vector<128x32xf32>
    %586 = vector.extract_strided_slice %567 {offsets = [0, 96], sizes = [128, 32], strides = [1, 1]} : vector<128x128xf32> to vector<128x32xf32>
    %cst_196 = arith.constant 5.000000e-01 : f32
    %587 = vector.broadcast %cst_196 : f32 to vector<128x32xf32>
    %588 = arith.mulf %587, %586 : vector<128x32xf32>
    %589 = math.tanh %588 : vector<128x32xf32>
    %cst_197 = arith.constant 5.000000e-01 : f32
    %590 = vector.broadcast %cst_197 : f32 to vector<128x32xf32>
    %591 = arith.mulf %590, %589 : vector<128x32xf32>
    %cst_198 = arith.constant 5.000000e-01 : f32
    %592 = vector.broadcast %cst_198 : f32 to vector<128x32xf32>
    %593 = arith.addf %591, %592 : vector<128x32xf32>
    %594 = arith.mulf %583, %525 : vector<128x32xf32>
    %595 = arith.mulf %575, %585 : vector<128x32xf32>
    %596 = arith.addf %594, %595 : vector<128x32xf32>
    %597 = math.tanh %596 : vector<128x32xf32>
    %598 = arith.mulf %593, %597 : vector<128x32xf32>
    %cst_199 = arith.constant 0.000000e+00 : f32
    %599 = vector.broadcast %cst_199 : f32 to vector<128x24xf32>
    %600 = arith.cmpf oge, %20, %599 : vector<128x24xf32>
    %cst_200 = arith.constant 0.00999999977 : f32
    %601 = vector.broadcast %cst_200 : f32 to vector<128x24xf32>
    %602 = arith.mulf %601, %20 : vector<128x24xf32>
    %603 = arith.select %600, %20, %602 : vector<128x24xi1>, vector<128x24xf32>
    %c0_201 = arith.constant 0 : index
    %c0_202 = arith.constant 0 : index
    %604 = vector.load %arg11[%c0_201, %c0_202] : memref<24x32xf32, #tpu.memory_space<vmem>>, vector<24x32xf32>
    %cst_203 = arith.constant dense<0.000000e+00> : vector<128x32xf32>
    %605 = tpu.matmul %603, %604, %cst_203 {dimension_numbers = #tpu.dot_dimension_numbers<[1], [0], [0], [1], [0, 0, 1, 1], [], []>} : vector<128x24xf32>, vector<24x32xf32>, vector<128x32xf32> -> vector<128x32xf32>
    %cst_204 = arith.constant 0.000000e+00 : f32
    %606 = vector.broadcast %cst_204 : f32 to vector<128x32xf32>
    %607 = arith.cmpf oge, %598, %606 : vector<128x32xf32>
    %cst_205 = arith.constant 0.00999999977 : f32
    %608 = vector.broadcast %cst_205 : f32 to vector<128x32xf32>
    %609 = arith.mulf %608, %598 : vector<128x32xf32>
    %610 = arith.select %607, %598, %609 : vector<128x32xi1>, vector<128x32xf32>
    %c0_206 = arith.constant 0 : index
    %c0_207 = arith.constant 0 : index
    %611 = vector.load %arg12[%c0_206, %c0_207] : memref<32x32xf32, #tpu.memory_space<vmem>>, vector<32x32xf32>
    %cst_208 = arith.constant dense<0.000000e+00> : vector<128x32xf32>
    %612 = tpu.matmul %610, %611, %cst_208 {dimension_numbers = #tpu.dot_dimension_numbers<[1], [0], [0], [1], [0, 0, 1, 1], [], []>} : vector<128x32xf32>, vector<32x32xf32>, vector<128x32xf32> -> vector<128x32xf32>
    %613 = arith.addf %605, %612 : vector<128x32xf32>
    %c0_209 = arith.constant 0 : index
    %c0_210 = arith.constant 0 : index
    %614 = vector.load %arg13[%c0_209, %c0_210] : memref<1x32xf32, #tpu.memory_space<vmem>>, vector<1x32xf32>
    %615 = vector.broadcast %614 : vector<1x32xf32> to vector<128x32xf32>
    %616 = arith.addf %613, %615 : vector<128x32xf32>
    %cst_211 = arith.constant 0.000000e+00 : f32
    %617 = vector.broadcast %cst_211 : f32 to vector<128x32xf32>
    %618 = arith.cmpf oge, %616, %617 : vector<128x32xf32>
    %cst_212 = arith.constant 0.00999999977 : f32
    %619 = vector.broadcast %cst_212 : f32 to vector<128x32xf32>
    %620 = arith.mulf %619, %616 : vector<128x32xf32>
    %621 = arith.select %618, %616, %620 : vector<128x32xi1>, vector<128x32xf32>
    %c0_213 = arith.constant 0 : index
    %c0_214 = arith.constant 0 : index
    %622 = vector.load %arg14[%c0_213, %c0_214] : memref<32x4xf32, #tpu.memory_space<vmem>>, vector<32x4xf32>
    %cst_215 = arith.constant dense<0.000000e+00> : vector<128x4xf32>
    %623 = tpu.matmul %621, %622, %cst_215 {dimension_numbers = #tpu.dot_dimension_numbers<[1], [0], [0], [1], [0, 0, 1, 1], [], []>} : vector<128x32xf32>, vector<32x4xf32>, vector<128x4xf32> -> vector<128x4xf32>
    %c0_216 = arith.constant 0 : index
    %c0_217 = arith.constant 0 : index
    %624 = vector.load %arg15[%c0_216, %c0_217] : memref<1x4xf32, #tpu.memory_space<vmem>>, vector<1x4xf32>
    %625 = vector.broadcast %624 : vector<1x4xf32> to vector<128x4xf32>
    %626 = arith.addf %623, %625 : vector<128x4xf32>
    %cst_218 = arith.constant dense<0xFF800000> : vector<128xf32>
    %627 = vector.multi_reduction <maximumf>, %626, %cst_218 [1] : vector<128x4xf32> to vector<128xf32>
    %628 = vector.shape_cast %627 : vector<128xf32> to vector<128x1xf32>
    %629 = vector.broadcast %628 : vector<128x1xf32> to vector<128x4xf32>
    %630 = arith.subf %626, %629 : vector<128x4xf32>
    %631 = math.exp %630 : vector<128x4xf32>
    %cst_219 = arith.constant dense<0.000000e+00> : vector<128xf32>
    %632 = vector.multi_reduction <add>, %631, %cst_219 [1] : vector<128x4xf32> to vector<128xf32>
    %633 = vector.shape_cast %632 : vector<128xf32> to vector<128x1xf32>
    %634 = vector.broadcast %633 : vector<128x1xf32> to vector<128x4xf32>
    %635 = arith.divf %631, %634 : vector<128x4xf32>
    %c0_220 = arith.constant 0 : index
    %c0_221 = arith.constant 0 : index
    %636 = vector.load %arg16[%c0_220, %c0_221] : memref<128x4xf32, #tpu.memory_space<vmem>>, vector<128x4xf32>
    tpu.vector_store %arg16[%c0_220, %c0_221], %635 {strides = array<i32>} : memref<128x4xf32, #tpu.memory_space<vmem>>, vector<128x4xf32>,
    return
  }
  func.func @transform_0(%arg0: i32) -> (i32, i32) {
    %c0_i32 = arith.constant 0 : i32
    %c0_i32_0 = arith.constant 0 : i32
    return %arg0, %c0_i32 : i32, i32
  }
  func.func @transform_1(%arg0: i32) -> (i32, i32, i32) {
    %c0_i32 = arith.constant 0 : i32
    %c0_i32_0 = arith.constant 0 : i32
    %c0_i32_1 = arith.constant 0 : i32
    return %c0_i32, %arg0, %c0_i32_0 : i32, i32, i32
  }
  func.func @transform_2(%arg0: i32) -> (i32, i32) {
    %c0_i32 = arith.constant 0 : i32
    %c0_i32_0 = arith.constant 0 : i32
    %c0_i32_1 = arith.constant 0 : i32
    return %c0_i32, %c0_i32_0 : i32, i32
  }
  func.func @transform_3(%arg0: i32) -> (i32, i32) {
    %c0_i32 = arith.constant 0 : i32
    %c0_i32_0 = arith.constant 0 : i32
    %c0_i32_1 = arith.constant 0 : i32
    return %c0_i32, %c0_i32_0 : i32, i32
  }
  func.func @transform_4(%arg0: i32) -> (i32, i32) {
    %c0_i32 = arith.constant 0 : i32
    %c0_i32_0 = arith.constant 0 : i32
    %c0_i32_1 = arith.constant 0 : i32
    return %c0_i32, %c0_i32_0 : i32, i32
  }
  func.func @transform_5(%arg0: i32) -> (i32, i32) {
    %c0_i32 = arith.constant 0 : i32
    %c0_i32_0 = arith.constant 0 : i32
    %c0_i32_1 = arith.constant 0 : i32
    return %c0_i32, %c0_i32_0 : i32, i32
  }
  func.func @transform_6(%arg0: i32) -> (i32, i32) {
    %c0_i32 = arith.constant 0 : i32
    %c0_i32_0 = arith.constant 0 : i32
    %c0_i32_1 = arith.constant 0 : i32
    return %c0_i32, %c0_i32_0 : i32, i32
  }
  func.func @transform_7(%arg0: i32) -> (i32, i32) {
    %c0_i32 = arith.constant 0 : i32
    %c0_i32_0 = arith.constant 0 : i32
    %c0_i32_1 = arith.constant 0 : i32
    return %c0_i32, %c0_i32_0 : i32, i32
  }
  func.func @transform_8(%arg0: i32) -> (i32, i32) {
    %c0_i32 = arith.constant 0 : i32
    %c0_i32_0 = arith.constant 0 : i32
    %c0_i32_1 = arith.constant 0 : i32
    return %c0_i32, %c0_i32_0 : i32, i32
  }
  func.func @transform_9(%arg0: i32) -> (i32, i32) {
    %c0_i32 = arith.constant 0 : i32
    %c0_i32_0 = arith.constant 0 : i32
    %c0_i32_1 = arith.constant 0 : i32
    return %c0_i32, %c0_i32_0 : i32, i32
  }
  func.func @transform_10(%arg0: i32) -> (i32, i32) {
    %c0_i32 = arith.constant 0 : i32
    %c0_i32_0 = arith.constant 0 : i32
    %c0_i32_1 = arith.constant 0 : i32
    return %c0_i32, %c0_i32_0 : i32, i32
  }
  func.func @transform_11(%arg0: i32) -> (i32, i32) {
    %c0_i32 = arith.constant 0 : i32
    %c0_i32_0 = arith.constant 0 : i32
    %c0_i32_1 = arith.constant 0 : i32
    return %c0_i32, %c0_i32_0 : i32, i32
  }
  func.func @transform_12(%arg0: i32) -> (i32, i32) {
    %c0_i32 = arith.constant 0 : i32
    %c0_i32_0 = arith.constant 0 : i32
    %c0_i32_1 = arith.constant 0 : i32
    return %c0_i32, %c0_i32_0 : i32, i32
  }
  func.func @transform_13(%arg0: i32) -> (i32, i32) {
    %c0_i32 = arith.constant 0 : i32
    %c0_i32_0 = arith.constant 0 : i32
    %c0_i32_1 = arith.constant 0 : i32
    return %c0_i32, %c0_i32_0 : i32, i32
  }
  func.func @transform_14(%arg0: i32) -> (i32, i32) {
    %c0_i32 = arith.constant 0 : i32
    %c0_i32_0 = arith.constant 0 : i32
    %c0_i32_1 = arith.constant 0 : i32
    return %c0_i32, %c0_i32_0 : i32, i32
  }
  func.func @transform_15(%arg0: i32) -> (i32, i32) {
    %c0_i32 = arith.constant 0 : i32
    %c0_i32_0 = arith.constant 0 : i32
    return %arg0, %c0_i32 : i32, i32
  }
}

</mosaic_0001>

<llo_original>
// kernel: tpu_custom_call.1
$region0: #{tpu_custom_call.1}
  #allocation0 [shape = 'u32[]', space=smem, size = 0x4, offset = 0x4, fixed_abs, tag = 'smem constant byte address 0x4 - core index']
  #allocation1 [shape = 'u32[72,128]{1,0:T(1,128)}', space=vmem, size = 0x9000, scoped, tag = 'internal scratch']
  #allocation2 [shape = 'f32[8,128,128]{2,1,0:T(8,128)}', space=vmem, size = 0x80000, scoped, tag = 'scratch operand']
  %s0 = inlined_call_operand.vmem [shape: f32[128,16], index: 0, kind: input, shape index: {}]
  %s1 = inlined_call_operand.vmem [shape: f32[8,128,8], index: 1, kind: input, shape index: {}]
  %s2 = inlined_call_operand.vmem [shape: f32[16,64], index: 2, kind: input, shape index: {}]
  %s3 = inlined_call_operand.vmem [shape: f32[1,64], index: 3, kind: input, shape index: {}]
  %s4 = inlined_call_operand.vmem [shape: f32[64,24], index: 4, kind: input, shape index: {}]
  %s5 = inlined_call_operand.vmem [shape: f32[1,24], index: 5, kind: input, shape index: {}]
  %s6 = inlined_call_operand.vmem [shape: f32[8,128], index: 6, kind: input, shape index: {}]
  %s7 = inlined_call_operand.vmem [shape: f32[1,128], index: 7, kind: input, shape index: {}]
  %s8 = inlined_call_operand.vmem [shape: f32[64,256], index: 8, kind: input, shape index: {}]
  %s9 = inlined_call_operand.vmem [shape: f32[1,128], index: 9, kind: input, shape index: {}]
  %s10 = inlined_call_operand.vmem [shape: f32[24,32], index: 10, kind: input, shape index: {}]
  %s11 = inlined_call_operand.vmem [shape: f32[32,32], index: 11, kind: input, shape index: {}]
  %s12 = inlined_call_operand.vmem [shape: f32[1,32], index: 12, kind: input, shape index: {}]
  %s13 = inlined_call_operand.vmem [shape: f32[32,4], index: 13, kind: input, shape index: {}]
  %s14 = inlined_call_operand.vmem [shape: f32[1,4], index: 14, kind: input, shape index: {}]
  %s15 = inlined_call_operand.vmem [shape: f32[128,4], index: 15, kind: output, shape index: {}]
  %s16 = sld [smem:[#allocation0]]
  $region70: #{tpu_custom_call.1} parent=0
    _
  %s18 = ssub.s32 1, %s16
  %s19 = scalar_select 0, %s18, %s16
  // Predicated region
  $region2: #{tpu_custom_call.1} parent=0 // pred_check
    _
  $region3: #{tpu_custom_call.1} parent=0 // pred_check_branch
    %21 = sbr.rel (0) target = $region5
  $region4: #{tpu_custom_call.1} parent=0 // pred_region
    _
  $region5: #{tpu_custom_call.1} parent=0 // pred_fallthru
    _
  // Predicated region
  $region6: #{tpu_custom_call.1} parent=0 // pred_check
    _
  $region7: #{tpu_custom_call.1} parent=0 // pred_check_branch
    %23 = sbr.rel (0) target = $region9
  $region8: #{tpu_custom_call.1} parent=0 // pred_region
    _
  $region9: #{tpu_custom_call.1} parent=0 // pred_fallthru
    _
  // Predicated region
  $region10: #{tpu_custom_call.1} parent=0 // pred_check
    _
  $region11: #{tpu_custom_call.1} parent=0 // pred_check_branch
    %25 = sbr.rel (0) target = $region13
  $region12: #{tpu_custom_call.1} parent=0 // pred_region
    _
  $region13: #{tpu_custom_call.1} parent=0 // pred_fallthru
    _
  // Predicated region
  $region14: #{tpu_custom_call.1} parent=0 // pred_check
    _
  $region15: #{tpu_custom_call.1} parent=0 // pred_check_branch
    %27 = sbr.rel (0) target = $region17
  $region16: #{tpu_custom_call.1} parent=0 // pred_region
    _
  $region17: #{tpu_custom_call.1} parent=0 // pred_fallthru
    _
  // Predicated region
  $region18: #{tpu_custom_call.1} parent=0 // pred_check
    _
  $region19: #{tpu_custom_call.1} parent=0 // pred_check_branch
    %29 = sbr.rel (0) target = $region21
  $region20: #{tpu_custom_call.1} parent=0 // pred_region
    _
  $region21: #{tpu_custom_call.1} parent=0 // pred_fallthru
    _
  // Predicated region
  $region22: #{tpu_custom_call.1} parent=0 // pred_check
    _
  $region23: #{tpu_custom_call.1} parent=0 // pred_check_branch
    %31 = sbr.rel (0) target = $region25
  $region24: #{tpu_custom_call.1} parent=0 // pred_region
    _
  $region25: #{tpu_custom_call.1} parent=0 // pred_fallthru
    _
  // Predicated region
  $region26: #{tpu_custom_call.1} parent=0 // pred_check
    _
  $region27: #{tpu_custom_call.1} parent=0 // pred_check_branch
    %33 = sbr.rel (0) target = $region29
  $region28: #{tpu_custom_call.1} parent=0 // pred_region
    _
  $region29: #{tpu_custom_call.1} parent=0 // pred_fallthru
    _
  // Predicated region
  $region30: #{tpu_custom_call.1} parent=0 // pred_check
    _
  $region31: #{tpu_custom_call.1} parent=0 // pred_check_branch
    %35 = sbr.rel (0) target = $region33
  $region32: #{tpu_custom_call.1} parent=0 // pred_region
    _
  $region33: #{tpu_custom_call.1} parent=0 // pred_fallthru
    _
  // Predicated region
  $region34: #{tpu_custom_call.1} parent=0 // pred_check
    _
  $region35: #{tpu_custom_call.1} parent=0 // pred_check_branch
    %37 = sbr.rel (0) target = $region37
  $region36: #{tpu_custom_call.1} parent=0 // pred_region
    _
  $region37: #{tpu_custom_call.1} parent=0 // pred_fallthru
    _
  // Predicated region
  $region38: #{tpu_custom_call.1} parent=0 // pred_check
    _
  $region39: #{tpu_custom_call.1} parent=0 // pred_check_branch
    %39 = sbr.rel (0) target = $region41
  $region40: #{tpu_custom_call.1} parent=0 // pred_region
    _
  $region41: #{tpu_custom_call.1} parent=0 // pred_fallthru
    _
  // Predicated region
  $region42: #{tpu_custom_call.1} parent=0 // pred_check
    _
  $region43: #{tpu_custom_call.1} parent=0 // pred_check_branch
    %41 = sbr.rel (0) target = $region45
  $region44: #{tpu_custom_call.1} parent=0 // pred_region
    _
  $region45: #{tpu_custom_call.1} parent=0 // pred_fallthru
    _
  // Predicated region
  $region46: #{tpu_custom_call.1} parent=0 // pred_check
    _
  $region47: #{tpu_custom_call.1} parent=0 // pred_check_branch
    %43 = sbr.rel (0) target = $region49
  $region48: #{tpu_custom_call.1} parent=0 // pred_region
    _
  $region49: #{tpu_custom_call.1} parent=0 // pred_fallthru
    _
  // Predicated region
  $region50: #{tpu_custom_call.1} parent=0 // pred_check
    _
  $region51: #{tpu_custom_call.1} parent=0 // pred_check_branch
    %45 = sbr.rel (0) target = $region53
  $region52: #{tpu_custom_call.1} parent=0 // pred_region
    _
  $region53: #{tpu_custom_call.1} parent=0 // pred_fallthru
    _
  // Predicated region
  $region54: #{tpu_custom_call.1} parent=0 // pred_check
    _
  $region55: #{tpu_custom_call.1} parent=0 // pred_check_branch
    %47 = sbr.rel (0) target = $region57
  $region56: #{tpu_custom_call.1} parent=0 // pred_region
    _
  $region57: #{tpu_custom_call.1} parent=0 // pred_fallthru
    _
  // Predicated region
  $region58: #{tpu_custom_call.1} parent=0 // pred_check
    _
  $region59: #{tpu_custom_call.1} parent=0 // pred_check_branch
    %49 = sbr.rel (0) target = $region61
  $region60: #{tpu_custom_call.1} parent=0 // pred_region
    _
  $region61: #{tpu_custom_call.1} parent=0 // pred_fallthru
    _
  %v50 = vld [vmem:[%s0] sm:$0xff]
  %v51 = vld [vmem:[%s0 + $0x8] sm:$0xff]
  %v52 = vld [vmem:[%s0 + $0x10] sm:$0xff]
  %v53 = vld [vmem:[%s0 + $0x18] sm:$0xff]
  %v54 = vld [vmem:[%s0 + $0x20] sm:$0xff]
  %v55 = vld [vmem:[%s0 + $0x28] sm:$0xff]
  %v56 = vld [vmem:[%s0 + $0x30] sm:$0xff]
  %v57 = vld [vmem:[%s0 + $0x38] sm:$0xff]
  %v58 = vld [vmem:[%s0 + $0x40] sm:$0xff]
  %v59 = vld [vmem:[%s0 + $0x48] sm:$0xff]
  %v60 = vld [vmem:[%s0 + $0x50] sm:$0xff]
  %v61 = vld [vmem:[%s0 + $0x58] sm:$0xff]
  %v62 = vld [vmem:[%s0 + $0x60] sm:$0xff]
  %v63 = vld [vmem:[%s0 + $0x68] sm:$0xff]
  %v64 = vld [vmem:[%s0 + $0x70] sm:$0xff]
  %v65 = vld [vmem:[%s0 + $0x78] sm:$0xff]
  %v66 = vld [vmem:[%s2] sm:$0xff]
  %v67 = vld [vmem:[%s2 + $0x8] sm:$0xff]
  %v68 = vld [vmem:[%s3] sm:$0x1]
  %v70 = vperm.slane %v68, 0
  %vm72 = vcmask 130048
  %v74 = vsel %vm72, %v50, 0
  %v77 = vsel %vm72, %v51, 0
  %v80 = vsel %vm72, %v52, 0
  %v83 = vsel %vm72, %v53, 0
  %v86 = vsel %vm72, %v54, 0
  %v89 = vsel %vm72, %v55, 0
  %v92 = vsel %vm72, %v56, 0
  %v95 = vsel %vm72, %v57, 0
  %v98 = vsel %vm72, %v58, 0
  %v101 = vsel %vm72, %v59, 0
  %v104 = vsel %vm72, %v60, 0
  %v107 = vsel %vm72, %v61, 0
  %v110 = vsel %vm72, %v62, 0
  %v113 = vsel %vm72, %v63, 0
  %v116 = vsel %vm72, %v64, 0
  %v119 = vsel %vm72, %v65, 0
  %121 = vmatpush.msra.mxu0 0.0
  %122 = vmatpush.msra.mxu0 0.0
  %123 = vmatpush.msra.mxu0 0.0
  %124 = vmatpush.msra.mxu0 0.0
  %125 = vmatpush.msra.mxu0 0.0
  %126 = vmatpush.msra.mxu0 0.0
  %127 = vmatpush.msra.mxu0 0.0
  %128 = vmatpush.msra.mxu0 0.0
  %129 = vmatpush.msra.mxu0 0.0
  %130 = vmatpush.msra.mxu0 0.0
  %131 = vmatpush.msra.mxu0 0.0
  %132 = vmatpush.msra.mxu0 0.0
  %133 = vmatpush.msra.mxu0 0.0
  %134 = vmatpush.msra.mxu0 0.0
  %135 = vmatpush.msra.mxu0 %v67
  %136 = vmatpush.msra.mxu0 %v66
  %137 = vmatmul.f32.gmra.mxu0 %v74
  %v138 = vpop.f32.mrf.mxu0
  %v139 = vadd.f32 %v70, %v138
  %140 = vmatmul.f32.gmra.mxu0 %v77
  %v141 = vpop.f32.mrf.mxu0
  %v142 = vadd.f32 %v70, %v141
  %143 = vmatmul.f32.gmra.mxu0 %v80
  %v144 = vpop.f32.mrf.mxu0
  %v145 = vadd.f32 %v70, %v144
  %146 = vmatmul.f32.gmra.mxu0 %v83
  %v147 = vpop.f32.mrf.mxu0
  %v148 = vadd.f32 %v70, %v147
  %149 = vmatmul.f32.gmra.mxu0 %v86
  %v150 = vpop.f32.mrf.mxu0
  %v151 = vadd.f32 %v70, %v150
  %152 = vmatmul.f32.gmra.mxu0 %v89
  %v153 = vpop.f32.mrf.mxu0
  %v154 = vadd.f32 %v70, %v153
  %155 = vmatmul.f32.gmra.mxu0 %v92
  %v156 = vpop.f32.mrf.mxu0
  %v157 = vadd.f32 %v70, %v156
  %158 = vmatmul.f32.gmra.mxu0 %v95
  %v159 = vpop.f32.mrf.mxu0
  %v160 = vadd.f32 %v70, %v159
  %161 = vmatmul.f32.gmra.mxu0 %v98
  %v162 = vpop.f32.mrf.mxu0
  %v163 = vadd.f32 %v70, %v162
  %164 = vmatmul.f32.gmra.mxu0 %v101
  %v165 = vpop.f32.mrf.mxu0
  %v166 = vadd.f32 %v70, %v165
  %167 = vmatmul.f32.gmra.mxu0 %v104
  %v168 = vpop.f32.mrf.mxu0
  %v169 = vadd.f32 %v70, %v168
  %170 = vmatmul.f32.gmra.mxu0 %v107
  %v171 = vpop.f32.mrf.mxu0
  %v172 = vadd.f32 %v70, %v171
  %173 = vmatmul.f32.gmra.mxu0 %v110
  %v174 = vpop.f32.mrf.mxu0
  %v175 = vadd.f32 %v70, %v174
  %176 = vmatmul.f32.gmra.mxu0 %v113
  %v177 = vpop.f32.mrf.mxu0
  %v178 = vadd.f32 %v70, %v177
  %179 = vmatmul.f32.gmra.mxu0 %v116
  %v180 = vpop.f32.mrf.mxu0
  %v181 = vadd.f32 %v70, %v180
  %182 = vmatmul.f32.gmra.mxu0 %v119
  %v183 = vpop.f32.mrf.mxu0
  %v184 = vadd.f32 %v70, %v183
  %185 = vdwg.mxu0
  %vm186 = vcmp.ge.f32.partialorder %v139, 0.0
  %vm187 = vcmp.ge.f32.partialorder %v142, 0.0
  %vm188 = vcmp.ge.f32.partialorder %v145, 0.0
  %vm189 = vcmp.ge.f32.partialorder %v148, 0.0
  %vm190 = vcmp.ge.f32.partialorder %v151, 0.0
  %vm191 = vcmp.ge.f32.partialorder %v154, 0.0
  %vm192 = vcmp.ge.f32.partialorder %v157, 0.0
  %vm193 = vcmp.ge.f32.partialorder %v160, 0.0
  %vm194 = vcmp.ge.f32.partialorder %v163, 0.0
  %vm195 = vcmp.ge.f32.partialorder %v166, 0.0
  %vm196 = vcmp.ge.f32.partialorder %v169, 0.0
  %vm197 = vcmp.ge.f32.partialorder %v172, 0.0
  %vm198 = vcmp.ge.f32.partialorder %v175, 0.0
  %vm199 = vcmp.ge.f32.partialorder %v178, 0.0
  %vm200 = vcmp.ge.f32.partialorder %v181, 0.0
  %vm201 = vcmp.ge.f32.partialorder %v184, 0.0
  %v202 = vmul.f32 %v139, 0.01
  %v203 = vmul.f32 %v142, 0.01
  %v204 = vmul.f32 %v145, 0.01
  %v205 = vmul.f32 %v148, 0.01
  %v206 = vmul.f32 %v151, 0.01
  %v207 = vmul.f32 %v154, 0.01
  %v208 = vmul.f32 %v157, 0.01
  %v209 = vmul.f32 %v160, 0.01
  %v210 = vmul.f32 %v163, 0.01
  %v211 = vmul.f32 %v166, 0.01
  %v212 = vmul.f32 %v169, 0.01
  %v213 = vmul.f32 %v172, 0.01
  %v214 = vmul.f32 %v175, 0.01
  %v215 = vmul.f32 %v178, 0.01
  %v216 = vmul.f32 %v181, 0.01
  %v217 = vmul.f32 %v184, 0.01
  %v218 = vsel %vm186, %v139, %v202
  %v219 = vsel %vm187, %v142, %v203
  %v220 = vsel %vm188, %v145, %v204
  %v221 = vsel %vm189, %v148, %v205
  %v222 = vsel %vm190, %v151, %v206
  %v223 = vsel %vm191, %v154, %v207
  %v224 = vsel %vm192, %v157, %v208
  %v225 = vsel %vm193, %v160, %v209
  %v226 = vsel %vm194, %v163, %v210
  %v227 = vsel %vm195, %v166, %v211
  %v228 = vsel %vm196, %v169, %v212
  %v229 = vsel %vm197, %v172, %v213
  %v230 = vsel %vm198, %v175, %v214
  %v231 = vsel %vm199, %v178, %v215
  %v232 = vsel %vm200, %v181, %v216
  %v233 = vsel %vm201, %v184, %v217
  %v234 = vld [vmem:[%s4] sm:$0xff]
  %v235 = vld [vmem:[%s4 + $0x8] sm:$0xff]
  %v236 = vld [vmem:[%s4 + $0x10] sm:$0xff]
  %v237 = vld [vmem:[%s4 + $0x18] sm:$0xff]
  %v238 = vld [vmem:[%s4 + $0x20] sm:$0xff]
  %v239 = vld [vmem:[%s4 + $0x28] sm:$0xff]
  %v240 = vld [vmem:[%s4 + $0x30] sm:$0xff]
  %v241 = vld [vmem:[%s4 + $0x38] sm:$0xff]
  %v242 = vld [vmem:[%s5] sm:$0x1]
  %v244 = vperm.slane %v242, 0
  %vm246 = vcmask 523264
  %v248 = vsel %vm246, %v218, 0
  %v251 = vsel %vm246, %v219, 0
  %v254 = vsel %vm246, %v220, 0
  %v257 = vsel %vm246, %v221, 0
  %v260 = vsel %vm246, %v222, 0
  %v263 = vsel %vm246, %v223, 0
  %v266 = vsel %vm246, %v224, 0
  %v269 = vsel %vm246, %v225, 0
  %v272 = vsel %vm246, %v226, 0
  %v275 = vsel %vm246, %v227, 0
  %v278 = vsel %vm246, %v228, 0
  %v281 = vsel %vm246, %v229, 0
  %v284 = vsel %vm246, %v230, 0
  %v287 = vsel %vm246, %v231, 0
  %v290 = vsel %vm246, %v232, 0
  %v293 = vsel %vm246, %v233, 0
  %295 = vmatpush.msra.mxu0 0.0
  %296 = vmatpush.msra.mxu0 0.0
  %297 = vmatpush.msra.mxu0 0.0
  %298 = vmatpush.msra.mxu0 0.0
  %299 = vmatpush.msra.mxu0 0.0
  %300 = vmatpush.msra.mxu0 0.0
  %301 = vmatpush.msra.mxu0 0.0
  %302 = vmatpush.msra.mxu0 0.0
  %303 = vmatpush.msra.mxu0 %v241
  %304 = vmatpush.msra.mxu0 %v240
  %305 = vmatpush.msra.mxu0 %v239
  %306 = vmatpush.msra.mxu0 %v238
  %307 = vmatpush.msra.mxu0 %v237
  %308 = vmatpush.msra.mxu0 %v236
  %309 = vmatpush.msra.mxu0 %v235
  %310 = vmatpush.msra.mxu0 %v234
  %311 = vmatmul.f32.gmra.mxu0 %v248
  %v312 = vpop.f32.mrf.mxu0
  %v313 = vadd.f32 %v244, %v312
  %314 = vmatmul.f32.gmra.mxu0 %v251
  %v315 = vpop.f32.mrf.mxu0
  %v316 = vadd.f32 %v244, %v315
  %317 = vmatmul.f32.gmra.mxu0 %v254
  %v318 = vpop.f32.mrf.mxu0
  %v319 = vadd.f32 %v244, %v318
  %320 = vmatmul.f32.gmra.mxu0 %v257
  %v321 = vpop.f32.mrf.mxu0
  %v322 = vadd.f32 %v244, %v321
  %323 = vmatmul.f32.gmra.mxu0 %v260
  %v324 = vpop.f32.mrf.mxu0
  %v325 = vadd.f32 %v244, %v324
  %326 = vmatmul.f32.gmra.mxu0 %v263
  %v327 = vpop.f32.mrf.mxu0
  %v328 = vadd.f32 %v244, %v327
  %329 = vmatmul.f32.gmra.mxu0 %v266
  %v330 = vpop.f32.mrf.mxu0
  %v331 = vadd.f32 %v244, %v330
  %332 = vmatmul.f32.gmra.mxu0 %v269
  %v333 = vpop.f32.mrf.mxu0
  %v334 = vadd.f32 %v244, %v333
  %335 = vmatmul.f32.gmra.mxu0 %v272
  %v336 = vpop.f32.mrf.mxu0
  %v337 = vadd.f32 %v244, %v336
  %338 = vmatmul.f32.gmra.mxu0 %v275
  %v339 = vpop.f32.mrf.mxu0
  %v340 = vadd.f32 %v244, %v339
  %341 = vmatmul.f32.gmra.mxu0 %v278
  %v342 = vpop.f32.mrf.mxu0
  %v343 = vadd.f32 %v244, %v342
  %344 = vmatmul.f32.gmra.mxu0 %v281
  %v345 = vpop.f32.mrf.mxu0
  %v346 = vadd.f32 %v244, %v345
  %347 = vmatmul.f32.gmra.mxu0 %v284
  %v348 = vpop.f32.mrf.mxu0
  %v349 = vadd.f32 %v244, %v348
  %350 = vmatmul.f32.gmra.mxu0 %v287
  %v351 = vpop.f32.mrf.mxu0
  %v352 = vadd.f32 %v244, %v351
  %353 = vmatmul.f32.gmra.mxu0 %v290
  %v354 = vpop.f32.mrf.mxu0
  %v355 = vadd.f32 %v244, %v354
  %356 = vmatmul.f32.gmra.mxu0 %v293
  %v357 = vpop.f32.mrf.mxu0
  %v358 = vadd.f32 %v244, %v357
  %359 = vdwg.mxu0
  %vm360 = vcmp.ge.f32.partialorder %v313, 0.0
  %vm361 = vcmp.ge.f32.partialorder %v316, 0.0
  %vm362 = vcmp.ge.f32.partialorder %v319, 0.0
  %vm363 = vcmp.ge.f32.partialorder %v322, 0.0
  %vm364 = vcmp.ge.f32.partialorder %v325, 0.0
  %vm365 = vcmp.ge.f32.partialorder %v328, 0.0
  %vm366 = vcmp.ge.f32.partialorder %v331, 0.0
  %vm367 = vcmp.ge.f32.partialorder %v334, 0.0
  %vm368 = vcmp.ge.f32.partialorder %v337, 0.0
  %vm369 = vcmp.ge.f32.partialorder %v340, 0.0
  %vm370 = vcmp.ge.f32.partialorder %v343, 0.0
  %vm371 = vcmp.ge.f32.partialorder %v346, 0.0
  %vm372 = vcmp.ge.f32.partialorder %v349, 0.0
  %vm373 = vcmp.ge.f32.partialorder %v352, 0.0
  %vm374 = vcmp.ge.f32.partialorder %v355, 0.0
  %vm375 = vcmp.ge.f32.partialorder %v358, 0.0
  %v376 = vmul.f32 %v313, 0.01
  %v377 = vmul.f32 %v316, 0.01
  %v378 = vmul.f32 %v319, 0.01
  %v379 = vmul.f32 %v322, 0.01
  %v380 = vmul.f32 %v325, 0.01
  %v381 = vmul.f32 %v328, 0.01
  %v382 = vmul.f32 %v331, 0.01
  %v383 = vmul.f32 %v334, 0.01
  %v384 = vmul.f32 %v337, 0.01
  %v385 = vmul.f32 %v340, 0.01
  %v386 = vmul.f32 %v343, 0.01
  %v387 = vmul.f32 %v346, 0.01
  %v388 = vmul.f32 %v349, 0.01
  %v389 = vmul.f32 %v352, 0.01
  %v390 = vmul.f32 %v355, 0.01
  %v391 = vmul.f32 %v358, 0.01
  %v392 = vsel %vm360, %v313, %v376
  %v393 = vsel %vm361, %v316, %v377
  %v394 = vsel %vm362, %v319, %v378
  %v395 = vsel %vm363, %v322, %v379
  %v396 = vsel %vm364, %v325, %v380
  %v397 = vsel %vm365, %v328, %v381
  %v398 = vsel %vm366, %v331, %v382
  %v399 = vsel %vm367, %v334, %v383
  %v400 = vsel %vm368, %v337, %v384
  %v401 = vsel %vm369, %v340, %v385
  %v402 = vsel %vm370, %v343, %v386
  %v403 = vsel %vm371, %v346, %v387
  %v404 = vsel %vm372, %v349, %v388
  %v405 = vsel %vm373, %v352, %v389
  %v406 = vsel %vm374, %v355, %v390
  %v407 = vsel %vm375, %v358, %v391
  %v408 = vld [vmem:[%s1] sm:$0xff]
  %v409 = vld [vmem:[%s1 + $0x8] sm:$0xff]
  %v410 = vld [vmem:[%s1 + $0x10] sm:$0xff]
  %v411 = vld [vmem:[%s1 + $0x18] sm:$0xff]
  %v412 = vld [vmem:[%s1 + $0x20] sm:$0xff]
  %v413 = vld [vmem:[%s1 + $0x28] sm:$0xff]
  %v414 = vld [vmem:[%s1 + $0x30] sm:$0xff]
  %v415 = vld [vmem:[%s1 + $0x38] sm:$0xff]
  %v416 = vld [vmem:[%s1 + $0x40] sm:$0xff]
  %v417 = vld [vmem:[%s1 + $0x48] sm:$0xff]
  %v418 = vld [vmem:[%s1 + $0x50] sm:$0xff]
  %v419 = vld [vmem:[%s1 + $0x58] sm:$0xff]
  %v420 = vld [vmem:[%s1 + $0x60] sm:$0xff]
  %v421 = vld [vmem:[%s1 + $0x68] sm:$0xff]
  %v422 = vld [vmem:[%s1 + $0x70] sm:$0xff]
  %v423 = vld [vmem:[%s1 + $0x78] sm:$0xff]
  %v424 = vld [vmem:[%s1 + $0x80] sm:$0xff]
  %v425 = vld [vmem:[%s1 + $0x88] sm:$0xff]
  %v426 = vld [vmem:[%s1 + $0x90] sm:$0xff]
  %v427 = vld [vmem:[%s1 + $0x98] sm:$0xff]
  %v428 = vld [vmem:[%s1 + $0xa0] sm:$0xff]
  %v429 = vld [vmem:[%s1 + $0xa8] sm:$0xff]
  %v430 = vld [vmem:[%s1 + $0xb0] sm:$0xff]
  %v431 = vld [vmem:[%s1 + $0xb8] sm:$0xff]
  %v432 = vld [vmem:[%s1 + $0xc0] sm:$0xff]
  %v433 = vld [vmem:[%s1 + $0xc8] sm:$0xff]
  %v434 = vld [vmem:[%s1 + $0xd0] sm:$0xff]
  %v435 = vld [vmem:[%s1 + $0xd8] sm:$0xff]
  %v436 = vld [vmem:[%s1 + $0xe0] sm:$0xff]
  %v437 = vld [vmem:[%s1 + $0xe8] sm:$0xff]
  %v438 = vld [vmem:[%s1 + $0xf0] sm:$0xff]
  %v439 = vld [vmem:[%s1 + $0xf8] sm:$0xff]
  %v440 = vld [vmem:[%s1 + $0x100] sm:$0xff]
  %v441 = vld [vmem:[%s1 + $0x108] sm:$0xff]
  %v442 = vld [vmem:[%s1 + $0x110] sm:$0xff]
  %v443 = vld [vmem:[%s1 + $0x118] sm:$0xff]
  %v444 = vld [vmem:[%s1 + $0x120] sm:$0xff]
  %v445 = vld [vmem:[%s1 + $0x128] sm:$0xff]
  %v446 = vld [vmem:[%s1 + $0x130] sm:$0xff]
  %v447 = vld [vmem:[%s1 + $0x138] sm:$0xff]
  %v448 = vld [vmem:[%s1 + $0x140] sm:$0xff]
  %v449 = vld [vmem:[%s1 + $0x148] sm:$0xff]
  %v450 = vld [vmem:[%s1 + $0x150] sm:$0xff]
  %v451 = vld [vmem:[%s1 + $0x158] sm:$0xff]
  %v452 = vld [vmem:[%s1 + $0x160] sm:$0xff]
  %v453 = vld [vmem:[%s1 + $0x168] sm:$0xff]
  %v454 = vld [vmem:[%s1 + $0x170] sm:$0xff]
  %v455 = vld [vmem:[%s1 + $0x178] sm:$0xff]
  %v456 = vld [vmem:[%s1 + $0x180] sm:$0xff]
  %v457 = vld [vmem:[%s1 + $0x188] sm:$0xff]
  %v458 = vld [vmem:[%s1 + $0x190] sm:$0xff]
  %v459 = vld [vmem:[%s1 + $0x198] sm:$0xff]
  %v460 = vld [vmem:[%s1 + $0x1a0] sm:$0xff]
  %v461 = vld [vmem:[%s1 + $0x1a8] sm:$0xff]
  %v462 = vld [vmem:[%s1 + $0x1b0] sm:$0xff]
  %v463 = vld [vmem:[%s1 + $0x1b8] sm:$0xff]
  %v464 = vld [vmem:[%s1 + $0x1c0] sm:$0xff]
  %v465 = vld [vmem:[%s1 + $0x1c8] sm:$0xff]
  %v466 = vld [vmem:[%s1 + $0x1d0] sm:$0xff]
  %v467 = vld [vmem:[%s1 + $0x1d8] sm:$0xff]
  %v468 = vld [vmem:[%s1 + $0x1e0] sm:$0xff]
  %v469 = vld [vmem:[%s1 + $0x1e8] sm:$0xff]
  %v470 = vld [vmem:[%s1 + $0x1f0] sm:$0xff]
  %v471 = vld [vmem:[%s1 + $0x1f8] sm:$0xff]
  %v472 = vld [vmem:[%s1 + $0x200] sm:$0xff]
  %v473 = vld [vmem:[%s1 + $0x208] sm:$0xff]
  %v474 = vld [vmem:[%s1 + $0x210] sm:$0xff]
  %v475 = vld [vmem:[%s1 + $0x218] sm:$0xff]
  %v476 = vld [vmem:[%s1 + $0x220] sm:$0xff]
  %v477 = vld [vmem:[%s1 + $0x228] sm:$0xff]
  %v478 = vld [vmem:[%s1 + $0x230] sm:$0xff]
  %v479 = vld [vmem:[%s1 + $0x238] sm:$0xff]
  %v480 = vld [vmem:[%s1 + $0x240] sm:$0xff]
  %v481 = vld [vmem:[%s1 + $0x248] sm:$0xff]
  %v482 = vld [vmem:[%s1 + $0x250] sm:$0xff]
  %v483 = vld [vmem:[%s1 + $0x258] sm:$0xff]
  %v484 = vld [vmem:[%s1 + $0x260] sm:$0xff]
  %v485 = vld [vmem:[%s1 + $0x268] sm:$0xff]
  %v486 = vld [vmem:[%s1 + $0x270] sm:$0xff]
  %v487 = vld [vmem:[%s1 + $0x278] sm:$0xff]
  %v488 = vld [vmem:[%s1 + $0x280] sm:$0xff]
  %v489 = vld [vmem:[%s1 + $0x288] sm:$0xff]
  %v490 = vld [vmem:[%s1 + $0x290] sm:$0xff]
  %v491 = vld [vmem:[%s1 + $0x298] sm:$0xff]
  %v492 = vld [vmem:[%s1 + $0x2a0] sm:$0xff]
  %v493 = vld [vmem:[%s1 + $0x2a8] sm:$0xff]
  %v494 = vld [vmem:[%s1 + $0x2b0] sm:$0xff]
  %v495 = vld [vmem:[%s1 + $0x2b8] sm:$0xff]
  %v496 = vld [vmem:[%s1 + $0x2c0] sm:$0xff]
  %v497 = vld [vmem:[%s1 + $0x2c8] sm:$0xff]
  %v498 = vld [vmem:[%s1 + $0x2d0] sm:$0xff]
  %v499 = vld [vmem:[%s1 + $0x2d8] sm:$0xff]
  %v500 = vld [vmem:[%s1 + $0x2e0] sm:$0xff]
  %v501 = vld [vmem:[%s1 + $0x2e8] sm:$0xff]
  %v502 = vld [vmem:[%s1 + $0x2f0] sm:$0xff]
  %v503 = vld [vmem:[%s1 + $0x2f8] sm:$0xff]
  %v504 = vld [vmem:[%s1 + $0x300] sm:$0xff]
  %v505 = vld [vmem:[%s1 + $0x308] sm:$0xff]
  %v506 = vld [vmem:[%s1 + $0x310] sm:$0xff]
  %v507 = vld [vmem:[%s1 + $0x318] sm:$0xff]
  %v508 = vld [vmem:[%s1 + $0x320] sm:$0xff]
  %v509 = vld [vmem:[%s1 + $0x328] sm:$0xff]
  %v510 = vld [vmem:[%s1 + $0x330] sm:$0xff]
  %v511 = vld [vmem:[%s1 + $0x338] sm:$0xff]
  %v512 = vld [vmem:[%s1 + $0x340] sm:$0xff]
  %v513 = vld [vmem:[%s1 + $0x348] sm:$0xff]
  %v514 = vld [vmem:[%s1 + $0x350] sm:$0xff]
  %v515 = vld [vmem:[%s1 + $0x358] sm:$0xff]
  %v516 = vld [vmem:[%s1 + $0x360] sm:$0xff]
  %v517 = vld [vmem:[%s1 + $0x368] sm:$0xff]
  %v518 = vld [vmem:[%s1 + $0x370] sm:$0xff]
  %v519 = vld [vmem:[%s1 + $0x378] sm:$0xff]
  %v520 = vld [vmem:[%s1 + $0x380] sm:$0xff]
  %v521 = vld [vmem:[%s1 + $0x388] sm:$0xff]
  %v522 = vld [vmem:[%s1 + $0x390] sm:$0xff]
  %v523 = vld [vmem:[%s1 + $0x398] sm:$0xff]
  %v524 = vld [vmem:[%s1 + $0x3a0] sm:$0xff]
  %v525 = vld [vmem:[%s1 + $0x3a8] sm:$0xff]
  %v526 = vld [vmem:[%s1 + $0x3b0] sm:$0xff]
  %v527 = vld [vmem:[%s1 + $0x3b8] sm:$0xff]
  %v528 = vld [vmem:[%s1 + $0x3c0] sm:$0xff]
  %v529 = vld [vmem:[%s1 + $0x3c8] sm:$0xff]
  %v530 = vld [vmem:[%s1 + $0x3d0] sm:$0xff]
  %v531 = vld [vmem:[%s1 + $0x3d8] sm:$0xff]
  %v532 = vld [vmem:[%s1 + $0x3e0] sm:$0xff]
  %v533 = vld [vmem:[%s1 + $0x3e8] sm:$0xff]
  %v534 = vld [vmem:[%s1 + $0x3f0] sm:$0xff]
  %v535 = vld [vmem:[%s1 + $0x3f8] sm:$0xff]
  %v536 = vld [vmem:[%s6] sm:$0xff]
  %v537 = vld [vmem:[%s7] sm:$0x1]
  %v539 = vperm.slane %v537, 0
  %vm541 = vcmask 64512
  %v543 = vsel %vm541, %v408, 0
  %v546 = vsel %vm541, %v409, 0
  %v549 = vsel %vm541, %v410, 0
  %v552 = vsel %vm541, %v411, 0
  %v555 = vsel %vm541, %v412, 0
  %v558 = vsel %vm541, %v413, 0
  %v561 = vsel %vm541, %v414, 0
  %v564 = vsel %vm541, %v415, 0
  %v567 = vsel %vm541, %v416, 0
  %v570 = vsel %vm541, %v417, 0
  %v573 = vsel %vm541, %v418, 0
  %v576 = vsel %vm541, %v419, 0
  %v579 = vsel %vm541, %v420, 0
  %v582 = vsel %vm541, %v421, 0
  %v585 = vsel %vm541, %v422, 0
  %v588 = vsel %vm541, %v423, 0
  %v591 = vsel %vm541, %v424, 0
  %v594 = vsel %vm541, %v425, 0
  %v597 = vsel %vm541, %v426, 0
  %v600 = vsel %vm541, %v427, 0
  %v603 = vsel %vm541, %v428, 0
  %v606 = vsel %vm541, %v429, 0
  %v609 = vsel %vm541, %v430, 0
  %v612 = vsel %vm541, %v431, 0
  %v615 = vsel %vm541, %v432, 0
  %v618 = vsel %vm541, %v433, 0
  %v621 = vsel %vm541, %v434, 0
  %v624 = vsel %vm541, %v435, 0
  %v627 = vsel %vm541, %v436, 0
  %v630 = vsel %vm541, %v437, 0
  %v633 = vsel %vm541, %v438, 0
  %v636 = vsel %vm541, %v439, 0
  %v639 = vsel %vm541, %v440, 0
  %v642 = vsel %vm541, %v441, 0
  %v645 = vsel %vm541, %v442, 0
  %v648 = vsel %vm541, %v443, 0
  %v651 = vsel %vm541, %v444, 0
  %v654 = vsel %vm541, %v445, 0
  %v657 = vsel %vm541, %v446, 0
  %v660 = vsel %vm541, %v447, 0
  %v663 = vsel %vm541, %v448, 0
  %v666 = vsel %vm541, %v449, 0
  %v669 = vsel %vm541, %v450, 0
  %v672 = vsel %vm541, %v451, 0
  %v675 = vsel %vm541, %v452, 0
  %v678 = vsel %vm541, %v453, 0
  %v681 = vsel %vm541, %v454, 0
  %v684 = vsel %vm541, %v455, 0
  %v687 = vsel %vm541, %v456, 0
  %v690 = vsel %vm541, %v457, 0
  %v693 = vsel %vm541, %v458, 0
  %v696 = vsel %vm541, %v459, 0
  %v699 = vsel %vm541, %v460, 0
  %v702 = vsel %vm541, %v461, 0
  %v705 = vsel %vm541, %v462, 0
  %v708 = vsel %vm541, %v463, 0
  %v711 = vsel %vm541, %v464, 0
  %v714 = vsel %vm541, %v465, 0
  %v717 = vsel %vm541, %v466, 0
  %v720 = vsel %vm541, %v467, 0
  %v723 = vsel %vm541, %v468, 0
  %v726 = vsel %vm541, %v469, 0
  %v729 = vsel %vm541, %v470, 0
  %v732 = vsel %vm541, %v471, 0
  %v735 = vsel %vm541, %v472, 0
  %v738 = vsel %vm541, %v473, 0
  %v741 = vsel %vm541, %v474, 0
  %v744 = vsel %vm541, %v475, 0
  %v747 = vsel %vm541, %v476, 0
  %v750 = vsel %vm541, %v477, 0
  %v753 = vsel %vm541, %v478, 0
  %v756 = vsel %vm541, %v479, 0
  %v759 = vsel %vm541, %v480, 0
  %v762 = vsel %vm541, %v481, 0
  %v765 = vsel %vm541, %v482, 0
  %v768 = vsel %vm541, %v483, 0
  %v771 = vsel %vm541, %v484, 0
  %v774 = vsel %vm541, %v485, 0
  %v777 = vsel %vm541, %v486, 0
  %v780 = vsel %vm541, %v487, 0
  %v783 = vsel %vm541, %v488, 0
  %v786 = vsel %vm541, %v489, 0
  %v789 = vsel %vm541, %v490, 0
  %v792 = vsel %vm541, %v491, 0
  %v795 = vsel %vm541, %v492, 0
  %v798 = vsel %vm541, %v493, 0
  %v801 = vsel %vm541, %v494, 0
  %v804 = vsel %vm541, %v495, 0
  %v807 = vsel %vm541, %v496, 0
  %v810 = vsel %vm541, %v497, 0
  %v813 = vsel %vm541, %v498, 0
  %v816 = vsel %vm541, %v499, 0
  %v819 = vsel %vm541, %v500, 0
  %v822 = vsel %vm541, %v501, 0
  %v825 = vsel %vm541, %v502, 0
  %v828 = vsel %vm541, %v503, 0
  %v831 = vsel %vm541, %v504, 0
  %v834 = vsel %vm541, %v505, 0
  %v837 = vsel %vm541, %v506, 0
  %v840 = vsel %vm541, %v507, 0
  %v843 = vsel %vm541, %v508, 0
  %v846 = vsel %vm541, %v509, 0
  %v849 = vsel %vm541, %v510, 0
  %v852 = vsel %vm541, %v511, 0
  %v855 = vsel %vm541, %v512, 0
  %v858 = vsel %vm541, %v513, 0
  %v861 = vsel %vm541, %v514, 0
  %v864 = vsel %vm541, %v515, 0
  %v867 = vsel %vm541, %v516, 0
  %v870 = vsel %vm541, %v517, 0
  %v873 = vsel %vm541, %v518, 0
  %v876 = vsel %vm541, %v519, 0
  %v879 = vsel %vm541, %v520, 0
  %v882 = vsel %vm541, %v521, 0
  %v885 = vsel %vm541, %v522, 0
  %v888 = vsel %vm541, %v523, 0
  %v891 = vsel %vm541, %v524, 0
  %v894 = vsel %vm541, %v525, 0
  %v897 = vsel %vm541, %v526, 0
  %v900 = vsel %vm541, %v527, 0
  %v903 = vsel %vm541, %v528, 0
  %v906 = vsel %vm541, %v529, 0
  %v909 = vsel %vm541, %v530, 0
  %v912 = vsel %vm541, %v531, 0
  %v915 = vsel %vm541, %v532, 0
  %v918 = vsel %vm541, %v533, 0
  %v921 = vsel %vm541, %v534, 0
  %v924 = vsel %vm541, %v535, 0
  %926 = vmatpush.msra.mxu0 0.0
  %927 = vmatpush.msra.mxu0 0.0
  %928 = vmatpush.msra.mxu0 0.0
  %929 = vmatpush.msra.mxu0 0.0
  %930 = vmatpush.msra.mxu0 0.0
  %931 = vmatpush.msra.mxu0 0.0
  %932 = vmatpush.msra.mxu0 0.0
  %933 = vmatpush.msra.mxu0 0.0
  %934 = vmatpush.msra.mxu0 0.0
  %935 = vmatpush.msra.mxu0 0.0
  %936 = vmatpush.msra.mxu0 0.0
  %937 = vmatpush.msra.mxu0 0.0
  %938 = vmatpush.msra.mxu0 0.0
  %939 = vmatpush.msra.mxu0 0.0
  %940 = vmatpush.msra.mxu0 0.0
  %941 = vmatpush.msra.mxu0 %v536
  %942 = vmatmul.f32.gmra.mxu0 %v543
  %v943 = vpop.f32.mrf.mxu0
  %v944 = vadd.f32 %v539, %v943
  %945 = vmatmul.f32.gmra.mxu0 %v546
  %v946 = vpop.f32.mrf.mxu0
  %v947 = vadd.f32 %v539, %v946
  %948 = vmatmul.f32.gmra.mxu0 %v549
  %v949 = vpop.f32.mrf.mxu0
  %v950 = vadd.f32 %v539, %v949
  %951 = vmatmul.f32.gmra.mxu0 %v552
  %v952 = vpop.f32.mrf.mxu0
  %v953 = vadd.f32 %v539, %v952
  %954 = vmatmul.f32.gmra.mxu0 %v555
  %v955 = vpop.f32.mrf.mxu0
  %v956 = vadd.f32 %v539, %v955
  %957 = vmatmul.f32.gmra.mxu0 %v558
  %v958 = vpop.f32.mrf.mxu0
  %v959 = vadd.f32 %v539, %v958
  %960 = vmatmul.f32.gmra.mxu0 %v561
  %v961 = vpop.f32.mrf.mxu0
  %v962 = vadd.f32 %v539, %v961
  %963 = vmatmul.f32.gmra.mxu0 %v564
  %v964 = vpop.f32.mrf.mxu0
  %v965 = vadd.f32 %v539, %v964
  %966 = vmatmul.f32.gmra.mxu0 %v567
  %v967 = vpop.f32.mrf.mxu0
  %v968 = vadd.f32 %v539, %v967
  %969 = vmatmul.f32.gmra.mxu0 %v570
  %v970 = vpop.f32.mrf.mxu0
  %v971 = vadd.f32 %v539, %v970
  %972 = vmatmul.f32.gmra.mxu0 %v573
  %v973 = vpop.f32.mrf.mxu0
  %v974 = vadd.f32 %v539, %v973
  %975 = vmatmul.f32.gmra.mxu0 %v576
  %v976 = vpop.f32.mrf.mxu0
  %v977 = vadd.f32 %v539, %v976
  %978 = vmatmul.f32.gmra.mxu0 %v579
  %v979 = vpop.f32.mrf.mxu0
  %v980 = vadd.f32 %v539, %v979
  %981 = vmatmul.f32.gmra.mxu0 %v582
  %v982 = vpop.f32.mrf.mxu0
  %v983 = vadd.f32 %v539, %v982
  %984 = vmatmul.f32.gmra.mxu0 %v585
  %v985 = vpop.f32.mrf.mxu0
  %v986 = vadd.f32 %v539, %v985
  %987 = vmatmul.f32.gmra.mxu0 %v588
  %v988 = vpop.f32.mrf.mxu0
  %v989 = vadd.f32 %v539, %v988
  %990 = vmatmul.f32.gmra.mxu0 %v591
  %v991 = vpop.f32.mrf.mxu0
  %v992 = vadd.f32 %v539, %v991
  %993 = vmatmul.f32.gmra.mxu0 %v594
  %v994 = vpop.f32.mrf.mxu0
  %v995 = vadd.f32 %v539, %v994
  %996 = vmatmul.f32.gmra.mxu0 %v597
  %v997 = vpop.f32.mrf.mxu0
  %v998 = vadd.f32 %v539, %v997
  %999 = vmatmul.f32.gmra.mxu0 %v600
  %v1000 = vpop.f32.mrf.mxu0
  %v1001 = vadd.f32 %v539, %v1000
  %1002 = vmatmul.f32.gmra.mxu0 %v603
  %v1003 = vpop.f32.mrf.mxu0
  %v1004 = vadd.f32 %v539, %v1003
  %1005 = vmatmul.f32.gmra.mxu0 %v606
  %v1006 = vpop.f32.mrf.mxu0
  %v1007 = vadd.f32 %v539, %v1006
  %1008 = vmatmul.f32.gmra.mxu0 %v609
  %v1009 = vpop.f32.mrf.mxu0
  %v1010 = vadd.f32 %v539, %v1009
  %1011 = vmatmul.f32.gmra.mxu0 %v612
  %v1012 = vpop.f32.mrf.mxu0
  %v1013 = vadd.f32 %v539, %v1012
  %1014 = vmatmul.f32.gmra.mxu0 %v615
  %v1015 = vpop.f32.mrf.mxu0
  %v1016 = vadd.f32 %v539, %v1015
  %1017 = vmatmul.f32.gmra.mxu0 %v618
  %v1018 = vpop.f32.mrf.mxu0
  %v1019 = vadd.f32 %v539, %v1018
  %1020 = vmatmul.f32.gmra.mxu0 %v621
  %v1021 = vpop.f32.mrf.mxu0
  %v1022 = vadd.f32 %v539, %v1021
  %1023 = vmatmul.f32.gmra.mxu0 %v624
  %v1024 = vpop.f32.mrf.mxu0
  %v1025 = vadd.f32 %v539, %v1024
  %1026 = vmatmul.f32.gmra.mxu0 %v627
  %v1027 = vpop.f32.mrf.mxu0
  %v1028 = vadd.f32 %v539, %v1027
  %1029 = vmatmul.f32.gmra.mxu0 %v630
  %v1030 = vpop.f32.mrf.mxu0
  %v1031 = vadd.f32 %v539, %v1030
  %1032 = vmatmul.f32.gmra.mxu0 %v633
  %v1033 = vpop.f32.mrf.mxu0
  %v1034 = vadd.f32 %v539, %v1033
  %1035 = vmatmul.f32.gmra.mxu0 %v636
  %v1036 = vpop.f32.mrf.mxu0
  %v1037 = vadd.f32 %v539, %v1036
  %1038 = vmatmul.f32.gmra.mxu0 %v639
  %v1039 = vpop.f32.mrf.mxu0
  %v1040 = vadd.f32 %v539, %v1039
  %1041 = vmatmul.f32.gmra.mxu0 %v642
  %v1042 = vpop.f32.mrf.mxu0
  %v1043 = vadd.f32 %v539, %v1042
  %1044 = vmatmul.f32.gmra.mxu0 %v645
  %v1045 = vpop.f32.mrf.mxu0
  %v1046 = vadd.f32 %v539, %v1045
  %1047 = vmatmul.f32.gmra.mxu0 %v648
  %v1048 = vpop.f32.mrf.mxu0
  %v1049 = vadd.f32 %v539, %v1048
  %1050 = vmatmul.f32.gmra.mxu0 %v651
  %v1051 = vpop.f32.mrf.mxu0
  %v1052 = vadd.f32 %v539, %v1051
  %1053 = vmatmul.f32.gmra.mxu0 %v654
  %v1054 = vpop.f32.mrf.mxu0
  %v1055 = vadd.f32 %v539, %v1054
  %1056 = vmatmul.f32.gmra.mxu0 %v657
  %v1057 = vpop.f32.mrf.mxu0
  %v1058 = vadd.f32 %v539, %v1057
  %1059 = vmatmul.f32.gmra.mxu0 %v660
  %v1060 = vpop.f32.mrf.mxu0
  %v1061 = vadd.f32 %v539, %v1060
  %1062 = vmatmul.f32.gmra.mxu0 %v663
  %v1063 = vpop.f32.mrf.mxu0
  %v1064 = vadd.f32 %v539, %v1063
  %1065 = vmatmul.f32.gmra.mxu0 %v666
  %v1066 = vpop.f32.mrf.mxu0
  %v1067 = vadd.f32 %v539, %v1066
  %1068 = vmatmul.f32.gmra.mxu0 %v669
  %v1069 = vpop.f32.mrf.mxu0
  %v1070 = vadd.f32 %v539, %v1069
  %1071 = vmatmul.f32.gmra.mxu0 %v672
  %v1072 = vpop.f32.mrf.mxu0
  %v1073 = vadd.f32 %v539, %v1072
  %1074 = vmatmul.f32.gmra.mxu0 %v675
  %v1075 = vpop.f32.mrf.mxu0
  %v1076 = vadd.f32 %v539, %v1075
  %1077 = vmatmul.f32.gmra.mxu0 %v678
  %v1078 = vpop.f32.mrf.mxu0
  %v1079 = vadd.f32 %v539, %v1078
  %1080 = vmatmul.f32.gmra.mxu0 %v681
  %v1081 = vpop.f32.mrf.mxu0
  %v1082 = vadd.f32 %v539, %v1081
  %1083 = vmatmul.f32.gmra.mxu0 %v684
  %v1084 = vpop.f32.mrf.mxu0
  %v1085 = vadd.f32 %v539, %v1084
  %1086 = vmatmul.f32.gmra.mxu0 %v687
  %v1087 = vpop.f32.mrf.mxu0
  %v1088 = vadd.f32 %v539, %v1087
  %1089 = vmatmul.f32.gmra.mxu0 %v690
  %v1090 = vpop.f32.mrf.mxu0
  %v1091 = vadd.f32 %v539, %v1090
  %1092 = vmatmul.f32.gmra.mxu0 %v693
  %v1093 = vpop.f32.mrf.mxu0
  %v1094 = vadd.f32 %v539, %v1093
  %1095 = vmatmul.f32.gmra.mxu0 %v696
  %v1096 = vpop.f32.mrf.mxu0
  %v1097 = vadd.f32 %v539, %v1096
  %1098 = vmatmul.f32.gmra.mxu0 %v699
  %v1099 = vpop.f32.mrf.mxu0
  %v1100 = vadd.f32 %v539, %v1099
  %1101 = vmatmul.f32.gmra.mxu0 %v702
  %v1102 = vpop.f32.mrf.mxu0
  %v1103 = vadd.f32 %v539, %v1102
  %1104 = vmatmul.f32.gmra.mxu0 %v705
  %v1105 = vpop.f32.mrf.mxu0
  %v1106 = vadd.f32 %v539, %v1105
  %1107 = vmatmul.f32.gmra.mxu0 %v708
  %v1108 = vpop.f32.mrf.mxu0
  %v1109 = vadd.f32 %v539, %v1108
  %1110 = vmatmul.f32.gmra.mxu0 %v711
  %v1111 = vpop.f32.mrf.mxu0
  %v1112 = vadd.f32 %v539, %v1111
  %1113 = vmatmul.f32.gmra.mxu0 %v714
  %v1114 = vpop.f32.mrf.mxu0
  %v1115 = vadd.f32 %v539, %v1114
  %1116 = vmatmul.f32.gmra.mxu0 %v717
  %v1117 = vpop.f32.mrf.mxu0
  %v1118 = vadd.f32 %v539, %v1117
  %1119 = vmatmul.f32.gmra.mxu0 %v720
  %v1120 = vpop.f32.mrf.mxu0
  %v1121 = vadd.f32 %v539, %v1120
  %1122 = vmatmul.f32.gmra.mxu0 %v723
  %v1123 = vpop.f32.mrf.mxu0
  %v1124 = vadd.f32 %v539, %v1123
  %1125 = vmatmul.f32.gmra.mxu0 %v726
  %v1126 = vpop.f32.mrf.mxu0
  %v1127 = vadd.f32 %v539, %v1126
  %1128 = vmatmul.f32.gmra.mxu0 %v729
  %v1129 = vpop.f32.mrf.mxu0
  %v1130 = vadd.f32 %v539, %v1129
  %1131 = vmatmul.f32.gmra.mxu0 %v732
  %v1132 = vpop.f32.mrf.mxu0
  %v1133 = vadd.f32 %v539, %v1132
  %1134 = vmatmul.f32.gmra.mxu0 %v735
  %v1135 = vpop.f32.mrf.mxu0
  %v1136 = vadd.f32 %v539, %v1135
  %1137 = vmatmul.f32.gmra.mxu0 %v738
  %v1138 = vpop.f32.mrf.mxu0
  %v1139 = vadd.f32 %v539, %v1138
  %1140 = vmatmul.f32.gmra.mxu0 %v741
  %v1141 = vpop.f32.mrf.mxu0
  %v1142 = vadd.f32 %v539, %v1141
  %1143 = vmatmul.f32.gmra.mxu0 %v744
  %v1144 = vpop.f32.mrf.mxu0
  %v1145 = vadd.f32 %v539, %v1144
  %1146 = vmatmul.f32.gmra.mxu0 %v747
  %v1147 = vpop.f32.mrf.mxu0
  %v1148 = vadd.f32 %v539, %v1147
  %1149 = vmatmul.f32.gmra.mxu0 %v750
  %v1150 = vpop.f32.mrf.mxu0
  %v1151 = vadd.f32 %v539, %v1150
  %1152 = vmatmul.f32.gmra.mxu0 %v753
  %v1153 = vpop.f32.mrf.mxu0
  %v1154 = vadd.f32 %v539, %v1153
  %1155 = vmatmul.f32.gmra.mxu0 %v756
  %v1156 = vpop.f32.mrf.mxu0
  %v1157 = vadd.f32 %v539, %v1156
  %1158 = vmatmul.f32.gmra.mxu0 %v759
  %v1159 = vpop.f32.mrf.mxu0
  %v1160 = vadd.f32 %v539, %v1159
  %1161 = vmatmul.f32.gmra.mxu0 %v762
  %v1162 = vpop.f32.mrf.mxu0
  %v1163 = vadd.f32 %v539, %v1162
  %1164 = vmatmul.f32.gmra.mxu0 %v765
  %v1165 = vpop.f32.mrf.mxu0
  %v1166 = vadd.f32 %v539, %v1165
  %1167 = vmatmul.f32.gmra.mxu0 %v768
  %v1168 = vpop.f32.mrf.mxu0
  %v1169 = vadd.f32 %v539, %v1168
  %1170 = vmatmul.f32.gmra.mxu0 %v771
  %v1171 = vpop.f32.mrf.mxu0
  %v1172 = vadd.f32 %v539, %v1171
  %1173 = vmatmul.f32.gmra.mxu0 %v774
  %v1174 = vpop.f32.mrf.mxu0
  %v1175 = vadd.f32 %v539, %v1174
  %1176 = vmatmul.f32.gmra.mxu0 %v777
  %v1177 = vpop.f32.mrf.mxu0
  %v1178 = vadd.f32 %v539, %v1177
  %1179 = vmatmul.f32.gmra.mxu0 %v780
  %v1180 = vpop.f32.mrf.mxu0
  %v1181 = vadd.f32 %v539, %v1180
  %1182 = vmatmul.f32.gmra.mxu0 %v783
  %v1183 = vpop.f32.mrf.mxu0
  %v1184 = vadd.f32 %v539, %v1183
  %1185 = vmatmul.f32.gmra.mxu0 %v786
  %v1186 = vpop.f32.mrf.mxu0
  %v1187 = vadd.f32 %v539, %v1186
  %1188 = vmatmul.f32.gmra.mxu0 %v789
  %v1189 = vpop.f32.mrf.mxu0
  %v1190 = vadd.f32 %v539, %v1189
  %1191 = vmatmul.f32.gmra.mxu0 %v792
  %v1192 = vpop.f32.mrf.mxu0
  %v1193 = vadd.f32 %v539, %v1192
  %1194 = vmatmul.f32.gmra.mxu0 %v795
  %v1195 = vpop.f32.mrf.mxu0
  %v1196 = vadd.f32 %v539, %v1195
  %1197 = vmatmul.f32.gmra.mxu0 %v798
  %v1198 = vpop.f32.mrf.mxu0
  %v1199 = vadd.f32 %v539, %v1198
  %1200 = vmatmul.f32.gmra.mxu0 %v801
  %v1201 = vpop.f32.mrf.mxu0
  %v1202 = vadd.f32 %v539, %v1201
  %1203 = vmatmul.f32.gmra.mxu0 %v804
  %v1204 = vpop.f32.mrf.mxu0
  %v1205 = vadd.f32 %v539, %v1204
  %1206 = vmatmul.f32.gmra.mxu0 %v807
  %v1207 = vpop.f32.mrf.mxu0
  %v1208 = vadd.f32 %v539, %v1207
  %1209 = vmatmul.f32.gmra.mxu0 %v810
  %v1210 = vpop.f32.mrf.mxu0
  %v1211 = vadd.f32 %v539, %v1210
  %1212 = vmatmul.f32.gmra.mxu0 %v813
  %v1213 = vpop.f32.mrf.mxu0
  %v1214 = vadd.f32 %v539, %v1213
  %1215 = vmatmul.f32.gmra.mxu0 %v816
  %v1216 = vpop.f32.mrf.mxu0
  %v1217 = vadd.f32 %v539, %v1216
  %1218 = vmatmul.f32.gmra.mxu0 %v819
  %v1219 = vpop.f32.mrf.mxu0
  %v1220 = vadd.f32 %v539, %v1219
  %1221 = vmatmul.f32.gmra.mxu0 %v822
  %v1222 = vpop.f32.mrf.mxu0
  %v1223 = vadd.f32 %v539, %v1222
  %1224 = vmatmul.f32.gmra.mxu0 %v825
  %v1225 = vpop.f32.mrf.mxu0
  %v1226 = vadd.f32 %v539, %v1225
  %1227 = vmatmul.f32.gmra.mxu0 %v828
  %v1228 = vpop.f32.mrf.mxu0
  %v1229 = vadd.f32 %v539, %v1228
  %1230 = vmatmul.f32.gmra.mxu0 %v831
  %v1231 = vpop.f32.mrf.mxu0
  %v1232 = vadd.f32 %v539, %v1231
  %1233 = vmatmul.f32.gmra.mxu0 %v834
  %v1234 = vpop.f32.mrf.mxu0
  %v1235 = vadd.f32 %v539, %v1234
  %1236 = vmatmul.f32.gmra.mxu0 %v837
  %v1237 = vpop.f32.mrf.mxu0
  %v1238 = vadd.f32 %v539, %v1237
  %1239 = vmatmul.f32.gmra.mxu0 %v840
  %v1240 = vpop.f32.mrf.mxu0
  %v1241 = vadd.f32 %v539, %v1240
  %1242 = vmatmul.f32.gmra.mxu0 %v843
  %v1243 = vpop.f32.mrf.mxu0
  %v1244 = vadd.f32 %v539, %v1243
  %1245 = vmatmul.f32.gmra.mxu0 %v846
  %v1246 = vpop.f32.mrf.mxu0
  %v1247 = vadd.f32 %v539, %v1246
  %1248 = vmatmul.f32.gmra.mxu0 %v849
  %v1249 = vpop.f32.mrf.mxu0
  %v1250 = vadd.f32 %v539, %v1249
  %1251 = vmatmul.f32.gmra.mxu0 %v852
  %v1252 = vpop.f32.mrf.mxu0
  %v1253 = vadd.f32 %v539, %v1252
  %1254 = vmatmul.f32.gmra.mxu0 %v855
  %v1255 = vpop.f32.mrf.mxu0
  %v1256 = vadd.f32 %v539, %v1255
  %1257 = vmatmul.f32.gmra.mxu0 %v858
  %v1258 = vpop.f32.mrf.mxu0
  %v1259 = vadd.f32 %v539, %v1258
  %1260 = vmatmul.f32.gmra.mxu0 %v861
  %v1261 = vpop.f32.mrf.mxu0
  %v1262 = vadd.f32 %v539, %v1261
  %1263 = vmatmul.f32.gmra.mxu0 %v864
  %v1264 = vpop.f32.mrf.mxu0
  %v1265 = vadd.f32 %v539, %v1264
  %1266 = vmatmul.f32.gmra.mxu0 %v867
  %v1267 = vpop.f32.mrf.mxu0
  %v1268 = vadd.f32 %v539, %v1267
  %1269 = vmatmul.f32.gmra.mxu0 %v870
  %v1270 = vpop.f32.mrf.mxu0
  %v1271 = vadd.f32 %v539, %v1270
  %1272 = vmatmul.f32.gmra.mxu0 %v873
  %v1273 = vpop.f32.mrf.mxu0
  %v1274 = vadd.f32 %v539, %v1273
  %1275 = vmatmul.f32.gmra.mxu0 %v876
  %v1276 = vpop.f32.mrf.mxu0
  %v1277 = vadd.f32 %v539, %v1276
  %1278 = vmatmul.f32.gmra.mxu0 %v879
  %v1279 = vpop.f32.mrf.mxu0
  %v1280 = vadd.f32 %v539, %v1279
  %1281 = vmatmul.f32.gmra.mxu0 %v882
  %v1282 = vpop.f32.mrf.mxu0
  %v1283 = vadd.f32 %v539, %v1282
  %1284 = vmatmul.f32.gmra.mxu0 %v885
  %v1285 = vpop.f32.mrf.mxu0
  %v1286 = vadd.f32 %v539, %v1285
  %1287 = vmatmul.f32.gmra.mxu0 %v888
  %v1288 = vpop.f32.mrf.mxu0
  %v1289 = vadd.f32 %v539, %v1288
  %1290 = vmatmul.f32.gmra.mxu0 %v891
  %v1291 = vpop.f32.mrf.mxu0
  %v1292 = vadd.f32 %v539, %v1291
  %1293 = vmatmul.f32.gmra.mxu0 %v894
  %v1294 = vpop.f32.mrf.mxu0
  %v1295 = vadd.f32 %v539, %v1294
  %1296 = vmatmul.f32.gmra.mxu0 %v897
  %v1297 = vpop.f32.mrf.mxu0
  %v1298 = vadd.f32 %v539, %v1297
  %1299 = vmatmul.f32.gmra.mxu0 %v900
  %v1300 = vpop.f32.mrf.mxu0
  %v1301 = vadd.f32 %v539, %v1300
  %1302 = vmatmul.f32.gmra.mxu0 %v903
  %v1303 = vpop.f32.mrf.mxu0
  %v1304 = vadd.f32 %v539, %v1303
  %1305 = vmatmul.f32.gmra.mxu0 %v906
  %v1306 = vpop.f32.mrf.mxu0
  %v1307 = vadd.f32 %v539, %v1306
  %1308 = vmatmul.f32.gmra.mxu0 %v909
  %v1309 = vpop.f32.mrf.mxu0
  %v1310 = vadd.f32 %v539, %v1309
  %1311 = vmatmul.f32.gmra.mxu0 %v912
  %v1312 = vpop.f32.mrf.mxu0
  %v1313 = vadd.f32 %v539, %v1312
  %1314 = vmatmul.f32.gmra.mxu0 %v915
  %v1315 = vpop.f32.mrf.mxu0
  %v1316 = vadd.f32 %v539, %v1315
  %1317 = vmatmul.f32.gmra.mxu0 %v918
  %v1318 = vpop.f32.mrf.mxu0
  %v1319 = vadd.f32 %v539, %v1318
  %1320 = vmatmul.f32.gmra.mxu0 %v921
  %v1321 = vpop.f32.mrf.mxu0
  %v1322 = vadd.f32 %v539, %v1321
  %1323 = vmatmul.f32.gmra.mxu0 %v924
  %v1324 = vpop.f32.mrf.mxu0
  %v1325 = vadd.f32 %v539, %v1324
  %1326 = vdwg.mxu0
  %1327 = vst [vmem:[#allocation2] sm:$0xff] %v944
  %1328 = vst [vmem:[#allocation2 + $0x8] sm:$0xff] %v947
  %1329 = vst [vmem:[#allocation2 + $0x10] sm:$0xff] %v950
  %1330 = vst [vmem:[#allocation2 + $0x18] sm:$0xff] %v953
  %1331 = vst [vmem:[#allocation2 + $0x20] sm:$0xff] %v956
  %1332 = vst [vmem:[#allocation2 + $0x28] sm:$0xff] %v959
  %1333 = vst [vmem:[#allocation2 + $0x30] sm:$0xff] %v962
  %1334 = vst [vmem:[#allocation2 + $0x38] sm:$0xff] %v965
  %1335 = vst [vmem:[#allocation2 + $0x40] sm:$0xff] %v968
  %1336 = vst [vmem:[#allocation2 + $0x48] sm:$0xff] %v971
  %1337 = vst [vmem:[#allocation2 + $0x50] sm:$0xff] %v974
  %1338 = vst [vmem:[#allocation2 + $0x58] sm:$0xff] %v977
  %1339 = vst [vmem:[#allocation2 + $0x60] sm:$0xff] %v980
  %1340 = vst [vmem:[#allocation2 + $0x68] sm:$0xff] %v983
  %1341 = vst [vmem:[#allocation2 + $0x70] sm:$0xff] %v986
  %1342 = vst [vmem:[#allocation2 + $0x78] sm:$0xff] %v989
  %1343 = vst [vmem:[#allocation2 + $0x80] sm:$0xff] %v992
  %1344 = vst [vmem:[#allocation2 + $0x88] sm:$0xff] %v995
  %1345 = vst [vmem:[#allocation2 + $0x90] sm:$0xff] %v998
  %1346 = vst [vmem:[#allocation2 + $0x98] sm:$0xff] %v1001
  %1347 = vst [vmem:[#allocation2 + $0xa0] sm:$0xff] %v1004
  %1348 = vst [vmem:[#allocation2 + $0xa8] sm:$0xff] %v1007
  %1349 = vst [vmem:[#allocation2 + $0xb0] sm:$0xff] %v1010
  %1350 = vst [vmem:[#allocation2 + $0xb8] sm:$0xff] %v1013
  %1351 = vst [vmem:[#allocation2 + $0xc0] sm:$0xff] %v1016
  %1352 = vst [vmem:[#allocation2 + $0xc8] sm:$0xff] %v1019
  %1353 = vst [vmem:[#allocation2 + $0xd0] sm:$0xff] %v1022
  %1354 = vst [vmem:[#allocation2 + $0xd8] sm:$0xff] %v1025
  %1355 = vst [vmem:[#allocation2 + $0xe0] sm:$0xff] %v1028
  %1356 = vst [vmem:[#allocation2 + $0xe8] sm:$0xff] %v1031
  %1357 = vst [vmem:[#allocation2 + $0xf0] sm:$0xff] %v1034
  %1358 = vst [vmem:[#allocation2 + $0xf8] sm:$0xff] %v1037
  %1359 = vst [vmem:[#allocation2 + $0x100] sm:$0xff] %v1040
  %1360 = vst [vmem:[#allocation2 + $0x108] sm:$0xff] %v1043
  %1361 = vst [vmem:[#allocation2 + $0x110] sm:$0xff] %v1046
  %1362 = vst [vmem:[#allocation2 + $0x118] sm:$0xff] %v1049
  %1363 = vst [vmem:[#allocation2 + $0x120] sm:$0xff] %v1052
  %1364 = vst [vmem:[#allocation2 + $0x128] sm:$0xff] %v1055
  %1365 = vst [vmem:[#allocation2 + $0x130] sm:$0xff] %v1058
  %1366 = vst [vmem:[#allocation2 + $0x138] sm:$0xff] %v1061
  %1367 = vst [vmem:[#allocation2 + $0x140] sm:$0xff] %v1064
  %1368 = vst [vmem:[#allocation2 + $0x148] sm:$0xff] %v1067
  %1369 = vst [vmem:[#allocation2 + $0x150] sm:$0xff] %v1070
  %1370 = vst [vmem:[#allocation2 + $0x158] sm:$0xff] %v1073
  %1371 = vst [vmem:[#allocation2 + $0x160] sm:$0xff] %v1076
  %1372 = vst [vmem:[#allocation2 + $0x168] sm:$0xff] %v1079
  %1373 = vst [vmem:[#allocation2 + $0x170] sm:$0xff] %v1082
  %1374 = vst [vmem:[#allocation2 + $0x178] sm:$0xff] %v1085
  %1375 = vst [vmem:[#allocation2 + $0x180] sm:$0xff] %v1088
  %1376 = vst [vmem:[#allocation2 + $0x188] sm:$0xff] %v1091
  %1377 = vst [vmem:[#allocation2 + $0x190] sm:$0xff] %v1094
  %1378 = vst [vmem:[#allocation2 + $0x198] sm:$0xff] %v1097
  %1379 = vst [vmem:[#allocation2 + $0x1a0] sm:$0xff] %v1100
  %1380 = vst [vmem:[#allocation2 + $0x1a8] sm:$0xff] %v1103
  %1381 = vst [vmem:[#allocation2 + $0x1b0] sm:$0xff] %v1106
  %1382 = vst [vmem:[#allocation2 + $0x1b8] sm:$0xff] %v1109
  %1383 = vst [vmem:[#allocation2 + $0x1c0] sm:$0xff] %v1112
  %1384 = vst [vmem:[#allocation2 + $0x1c8] sm:$0xff] %v1115
  %1385 = vst [vmem:[#allocation2 + $0x1d0] sm:$0xff] %v1118
  %1386 = vst [vmem:[#allocation2 + $0x1d8] sm:$0xff] %v1121
  %1387 = vst [vmem:[#allocation2 + $0x1e0] sm:$0xff] %v1124
  %1388 = vst [vmem:[#allocation2 + $0x1e8] sm:$0xff] %v1127
  %1389 = vst [vmem:[#allocation2 + $0x1f0] sm:$0xff] %v1130
  %1390 = vst [vmem:[#allocation2 + $0x1f8] sm:$0xff] %v1133
  %1391 = vst [vmem:[#allocation2 + $0x200] sm:$0xff] %v1136
  %1392 = vst [vmem:[#allocation2 + $0x208] sm:$0xff] %v1139
  %1393 = vst [vmem:[#allocation2 + $0x210] sm:$0xff] %v1142
  %1394 = vst [vmem:[#allocation2 + $0x218] sm:$0xff] %v1145
  %1395 = vst [vmem:[#allocation2 + $0x220] sm:$0xff] %v1148
  %1396 = vst [vmem:[#allocation2 + $0x228] sm:$0xff] %v1151
  %1397 = vst [vmem:[#allocation2 + $0x230] sm:$0xff] %v1154
  %1398 = vst [vmem:[#allocation2 + $0x238] sm:$0xff] %v1157
  %1399 = vst [vmem:[#allocation2 + $0x240] sm:$0xff] %v1160
  %1400 = vst [vmem:[#allocation2 + $0x248] sm:$0xff] %v1163
  %1401 = vst [vmem:[#allocation2 + $0x250] sm:$0xff] %v1166
  %1402 = vst [vmem:[#allocation2 + $0x258] sm:$0xff] %v1169
  %1403 = vst [vmem:[#allocation2 + $0x260] sm:$0xff] %v1172
  %1404 = vst [vmem:[#allocation2 + $0x268] sm:$0xff] %v1175
  %1405 = vst [vmem:[#allocation2 + $0x270] sm:$0xff] %v1178
  %1406 = vst [vmem:[#allocation2 + $0x278] sm:$0xff] %v1181
  %1407 = vst [vmem:[#allocation2 + $0x280] sm:$0xff] %v1184
  %1408 = vst [vmem:[#allocation2 + $0x288] sm:$0xff] %v1187
  %1409 = vst [vmem:[#allocation2 + $0x290] sm:$0xff] %v1190
  %1410 = vst [vmem:[#allocation2 + $0x298] sm:$0xff] %v1193
  %1411 = vst [vmem:[#allocation2 + $0x2a0] sm:$0xff] %v1196
  %1412 = vst [vmem:[#allocation2 + $0x2a8] sm:$0xff] %v1199
  %1413 = vst [vmem:[#allocation2 + $0x2b0] sm:$0xff] %v1202
  %1414 = vst [vmem:[#allocation2 + $0x2b8] sm:$0xff] %v1205
  %1415 = vst [vmem:[#allocation2 + $0x2c0] sm:$0xff] %v1208
  %1416 = vst [vmem:[#allocation2 + $0x2c8] sm:$0xff] %v1211
  %1417 = vst [vmem:[#allocation2 + $0x2d0] sm:$0xff] %v1214
  %1418 = vst [vmem:[#allocation2 + $0x2d8] sm:$0xff] %v1217
  %1419 = vst [vmem:[#allocation2 + $0x2e0] sm:$0xff] %v1220
  %1420 = vst [vmem:[#allocation2 + $0x2e8] sm:$0xff] %v1223
  %1421 = vst [vmem:[#allocation2 + $0x2f0] sm:$0xff] %v1226
  %1422 = vst [vmem:[#allocation2 + $0x2f8] sm:$0xff] %v1229
  %1423 = vst [vmem:[#allocation2 + $0x300] sm:$0xff] %v1232
  %1424 = vst [vmem:[#allocation2 + $0x308] sm:$0xff] %v1235
  %1425 = vst [vmem:[#allocation2 + $0x310] sm:$0xff] %v1238
  %1426 = vst [vmem:[#allocation2 + $0x318] sm:$0xff] %v1241
  %1427 = vst [vmem:[#allocation2 + $0x320] sm:$0xff] %v1244
  %1428 = vst [vmem:[#allocation2 + $0x328] sm:$0xff] %v1247
  %1429 = vst [vmem:[#allocation2 + $0x330] sm:$0xff] %v1250
  %1430 = vst [vmem:[#allocation2 + $0x338] sm:$0xff] %v1253
  %1431 = vst [vmem:[#allocation2 + $0x340] sm:$0xff] %v1256
  %1432 = vst [vmem:[#allocation2 + $0x348] sm:$0xff] %v1259
  %1433 = vst [vmem:[#allocation2 + $0x350] sm:$0xff] %v1262
  %1434 = vst [vmem:[#allocation2 + $0x358] sm:$0xff] %v1265
  %1435 = vst [vmem:[#allocation2 + $0x360] sm:$0xff] %v1268
  %1436 = vst [vmem:[#allocation2 + $0x368] sm:$0xff] %v1271
  %1437 = vst [vmem:[#allocation2 + $0x370] sm:$0xff] %v1274
  %1438 = vst [vmem:[#allocation2 + $0x378] sm:$0xff] %v1277
  %1439 = vst [vmem:[#allocation2 + $0x380] sm:$0xff] %v1280
  %1440 = vst [vmem:[#allocation2 + $0x388] sm:$0xff] %v1283
  %1441 = vst [vmem:[#allocation2 + $0x390] sm:$0xff] %v1286
  %1442 = vst [vmem:[#allocation2 + $0x398] sm:$0xff] %v1289
  %1443 = vst [vmem:[#allocation2 + $0x3a0] sm:$0xff] %v1292
  %1444 = vst [vmem:[#allocation2 + $0x3a8] sm:$0xff] %v1295
  %1445 = vst [vmem:[#allocation2 + $0x3b0] sm:$0xff] %v1298
  %1446 = vst [vmem:[#allocation2 + $0x3b8] sm:$0xff] %v1301
  %1447 = vst [vmem:[#allocation2 + $0x3c0] sm:$0xff] %v1304
  %1448 = vst [vmem:[#allocation2 + $0x3c8] sm:$0xff] %v1307
  %1449 = vst [vmem:[#allocation2 + $0x3d0] sm:$0xff] %v1310
  %1450 = vst [vmem:[#allocation2 + $0x3d8] sm:$0xff] %v1313
  %1451 = vst [vmem:[#allocation2 + $0x3e0] sm:$0xff] %v1316
  %1452 = vst [vmem:[#allocation2 + $0x3e8] sm:$0xff] %v1319
  %1453 = vst [vmem:[#allocation2 + $0x3f0] sm:$0xff] %v1322
  %1454 = vst [vmem:[#allocation2 + $0x3f8] sm:$0xff] %v1325
  %v1455 = vld [vmem:[%s8] sm:$0xff]
  %v1456 = vld [vmem:[%s8 + $0x8] sm:$0xff]
  %v1457 = vld [vmem:[%s8 + $0x10] sm:$0xff]
  %v1458 = vld [vmem:[%s8 + $0x18] sm:$0xff]
  %v1459 = vld [vmem:[%s8 + $0x20] sm:$0xff]
  %v1460 = vld [vmem:[%s8 + $0x28] sm:$0xff]
  %v1461 = vld [vmem:[%s8 + $0x30] sm:$0xff]
  %v1462 = vld [vmem:[%s8 + $0x38] sm:$0xff]
  %v1463 = vld [vmem:[%s8 + $0x40] sm:$0xff]
  %v1464 = vld [vmem:[%s8 + $0x48] sm:$0xff]
  %v1465 = vld [vmem:[%s8 + $0x50] sm:$0xff]
  %v1466 = vld [vmem:[%s8 + $0x58] sm:$0xff]
  %v1467 = vld [vmem:[%s8 + $0x60] sm:$0xff]
  %v1468 = vld [vmem:[%s8 + $0x68] sm:$0xff]
  %v1469 = vld [vmem:[%s8 + $0x70] sm:$0xff]
  %v1470 = vld [vmem:[%s8 + $0x78] sm:$0xff]
  %v1471 = vld [vmem:[%s9] sm:$0x1]
  %v1472 = vld [vmem:[#allocation2] sm:$0xff]
  %v1473 = vld [vmem:[#allocation2 + $0x8] sm:$0xff]
  %v1474 = vld [vmem:[#allocation2 + $0x10] sm:$0xff]
  %v1475 = vld [vmem:[#allocation2 + $0x18] sm:$0xff]
  %v1476 = vld [vmem:[#allocation2 + $0x20] sm:$0xff]
  %v1477 = vld [vmem:[#allocation2 + $0x28] sm:$0xff]
  %v1478 = vld [vmem:[#allocation2 + $0x30] sm:$0xff]
  %v1479 = vld [vmem:[#allocation2 + $0x38] sm:$0xff]
  %v1480 = vld [vmem:[#allocation2 + $0x40] sm:$0xff]
  %v1481 = vld [vmem:[#allocation2 + $0x48] sm:$0xff]
  %v1482 = vld [vmem:[#allocation2 + $0x50] sm:$0xff]
  %v1483 = vld [vmem:[#allocation2 + $0x58] sm:$0xff]
  %v1484 = vld [vmem:[#allocation2 + $0x60] sm:$0xff]
  %v1485 = vld [vmem:[#allocation2 + $0x68] sm:$0xff]
  %v1486 = vld [vmem:[#allocation2 + $0x70] sm:$0xff]
  %v1487 = vld [vmem:[#allocation2 + $0x78] sm:$0xff]
  %v1488 = vmul.f32 %v1472, 0.5
  %v1489 = vmul.f32 %v1473, 0.5
  %v1490 = vmul.f32 %v1474, 0.5
  %v1491 = vmul.f32 %v1475, 0.5
  %v1492 = vmul.f32 %v1476, 0.5
  %v1493 = vmul.f32 %v1477, 0.5
  %v1494 = vmul.f32 %v1478, 0.5
  %v1495 = vmul.f32 %v1479, 0.5
  %v1496 = vmul.f32 %v1480, 0.5
  %v1497 = vmul.f32 %v1481, 0.5
  %v1498 = vmul.f32 %v1482, 0.5
  %v1499 = vmul.f32 %v1483, 0.5
  %v1500 = vmul.f32 %v1484, 0.5
  %v1501 = vmul.f32 %v1485, 0.5
  %v1502 = vmul.f32 %v1486, 0.5
  %v1503 = vmul.f32 %v1487, 0.5
  %v1504 = vtanh.pop %v1488
  %v1505 = vtanh.pop %v1489
  %v1506 = vtanh.pop %v1490
  %v1507 = vtanh.pop %v1491
  %v1508 = vtanh.pop %v1492
  %v1509 = vtanh.pop %v1493
  %v1510 = vtanh.pop %v1494
  %v1511 = vtanh.pop %v1495
  %v1512 = vtanh.pop %v1496
  %v1513 = vtanh.pop %v1497
  %v1514 = vtanh.pop %v1498
  %v1515 = vtanh.pop %v1499
  %v1516 = vtanh.pop %v1500
  %v1517 = vtanh.pop %v1501
  %v1518 = vtanh.pop %v1502
  %v1519 = vtanh.pop %v1503
  %v1520 = vmul.f32 %v1504, 0.5
  %v1521 = vmul.f32 %v1505, 0.5
  %v1522 = vmul.f32 %v1506, 0.5
  %v1523 = vmul.f32 %v1507, 0.5
  %v1524 = vmul.f32 %v1508, 0.5
  %v1525 = vmul.f32 %v1509, 0.5
  %v1526 = vmul.f32 %v1510, 0.5
  %v1527 = vmul.f32 %v1511, 0.5
  %v1528 = vmul.f32 %v1512, 0.5
  %v1529 = vmul.f32 %v1513, 0.5
  %v1530 = vmul.f32 %v1514, 0.5
  %v1531 = vmul.f32 %v1515, 0.5
  %v1532 = vmul.f32 %v1516, 0.5
  %v1533 = vmul.f32 %v1517, 0.5
  %v1534 = vmul.f32 %v1518, 0.5
  %v1535 = vmul.f32 %v1519, 0.5
  %v1536 = vadd.f32 %v1520, 0.5
  %v1537 = vadd.f32 %v1521, 0.5
  %v1538 = vadd.f32 %v1522, 0.5
  %v1539 = vadd.f32 %v1523, 0.5
  %v1540 = vadd.f32 %v1524, 0.5
  %v1541 = vadd.f32 %v1525, 0.5
  %v1542 = vadd.f32 %v1526, 0.5
  %v1543 = vadd.f32 %v1527, 0.5
  %v1544 = vadd.f32 %v1528, 0.5
  %v1545 = vadd.f32 %v1529, 0.5
  %v1546 = vadd.f32 %v1530, 0.5
  %v1547 = vadd.f32 %v1531, 0.5
  %v1548 = vadd.f32 %v1532, 0.5
  %v1549 = vadd.f32 %v1533, 0.5
  %v1550 = vadd.f32 %v1534, 0.5
  %v1551 = vadd.f32 %v1535, 0.5
  %v1552 = vtanh.pop %v1472
  %v1553 = vtanh.pop %v1473
  %v1554 = vtanh.pop %v1474
  %v1555 = vtanh.pop %v1475
  %v1556 = vtanh.pop %v1476
  %v1557 = vtanh.pop %v1477
  %v1558 = vtanh.pop %v1478
  %v1559 = vtanh.pop %v1479
  %v1560 = vtanh.pop %v1480
  %v1561 = vtanh.pop %v1481
  %v1562 = vtanh.pop %v1482
  %v1563 = vtanh.pop %v1483
  %v1564 = vtanh.pop %v1484
  %v1565 = vtanh.pop %v1485
  %v1566 = vtanh.pop %v1486
  %v1567 = vtanh.pop %v1487
  %v1568 = vmul.f32 %v1536, 0.0
  %v1569 = vmul.f32 %v1537, 0.0
  %v1570 = vmul.f32 %v1538, 0.0
  %v1571 = vmul.f32 %v1539, 0.0
  %v1572 = vmul.f32 %v1540, 0.0
  %v1573 = vmul.f32 %v1541, 0.0
  %v1574 = vmul.f32 %v1542, 0.0
  %v1575 = vmul.f32 %v1543, 0.0
  %v1576 = vmul.f32 %v1544, 0.0
  %v1577 = vmul.f32 %v1545, 0.0
  %v1578 = vmul.f32 %v1546, 0.0
  %v1579 = vmul.f32 %v1547, 0.0
  %v1580 = vmul.f32 %v1548, 0.0
  %v1581 = vmul.f32 %v1549, 0.0
  %v1582 = vmul.f32 %v1550, 0.0
  %v1583 = vmul.f32 %v1551, 0.0
  %1600 = vrot.lane.b32.xlu0 %v1552, 64
  %v1601 = vpop.permute.xlu0 %1600
  %1602 = vrot.lane.b32.xlu0 %v1553, 64
  %v1603 = vpop.permute.xlu0 %1602
  %1604 = vrot.lane.b32.xlu0 %v1554, 64
  %v1605 = vpop.permute.xlu0 %1604
  %1606 = vrot.lane.b32.xlu0 %v1555, 64
  %v1607 = vpop.permute.xlu0 %1606
  %1608 = vrot.lane.b32.xlu0 %v1556, 64
  %v1609 = vpop.permute.xlu0 %1608
  %1610 = vrot.lane.b32.xlu0 %v1557, 64
  %v1611 = vpop.permute.xlu0 %1610
  %1612 = vrot.lane.b32.xlu0 %v1558, 64
  %v1613 = vpop.permute.xlu0 %1612
  %1614 = vrot.lane.b32.xlu0 %v1559, 64
  %v1615 = vpop.permute.xlu0 %1614
  %1616 = vrot.lane.b32.xlu0 %v1560, 64
  %v1617 = vpop.permute.xlu0 %1616
  %1618 = vrot.lane.b32.xlu0 %v1561, 64
  %v1619 = vpop.permute.xlu0 %1618
  %1620 = vrot.lane.b32.xlu0 %v1562, 64
  %v1621 = vpop.permute.xlu0 %1620
  %1622 = vrot.lane.b32.xlu0 %v1563, 64
  %v1623 = vpop.permute.xlu0 %1622
  %1624 = vrot.lane.b32.xlu0 %v1564, 64
  %v1625 = vpop.permute.xlu0 %1624
  %1626 = vrot.lane.b32.xlu0 %v1565, 64
  %v1627 = vpop.permute.xlu0 %1626
  %1628 = vrot.lane.b32.xlu0 %v1566, 64
  %v1629 = vpop.permute.xlu0 %1628
  %1630 = vrot.lane.b32.xlu0 %v1567, 64
  %v1631 = vpop.permute.xlu0 %1630
  %v1648 = vmul.f32 %v1536, %v1601
  %v1649 = vmul.f32 %v1537, %v1603
  %v1650 = vmul.f32 %v1538, %v1605
  %v1651 = vmul.f32 %v1539, %v1607
  %v1652 = vmul.f32 %v1540, %v1609
  %v1653 = vmul.f32 %v1541, %v1611
  %v1654 = vmul.f32 %v1542, %v1613
  %v1655 = vmul.f32 %v1543, %v1615
  %v1656 = vmul.f32 %v1544, %v1617
  %v1657 = vmul.f32 %v1545, %v1619
  %v1658 = vmul.f32 %v1546, %v1621
  %v1659 = vmul.f32 %v1547, %v1623
  %v1660 = vmul.f32 %v1548, %v1625
  %v1661 = vmul.f32 %v1549, %v1627
  %v1662 = vmul.f32 %v1550, %v1629
  %v1663 = vmul.f32 %v1551, %v1631
  %1680 = vrot.lane.b32.xlu0 %v1648, 32
  %v1681 = vpop.permute.xlu0 %1680
  %1682 = vrot.lane.b32.xlu0 %v1649, 32
  %v1683 = vpop.permute.xlu0 %1682
  %1684 = vrot.lane.b32.xlu0 %v1650, 32
  %v1685 = vpop.permute.xlu0 %1684
  %1686 = vrot.lane.b32.xlu0 %v1651, 32
  %v1687 = vpop.permute.xlu0 %1686
  %1688 = vrot.lane.b32.xlu0 %v1652, 32
  %v1689 = vpop.permute.xlu0 %1688
  %1690 = vrot.lane.b32.xlu0 %v1653, 32
  %v1691 = vpop.permute.xlu0 %1690
  %1692 = vrot.lane.b32.xlu0 %v1654, 32
  %v1693 = vpop.permute.xlu0 %1692
  %1694 = vrot.lane.b32.xlu0 %v1655, 32
  %v1695 = vpop.permute.xlu0 %1694
  %1696 = vrot.lane.b32.xlu0 %v1656, 32
  %v1697 = vpop.permute.xlu0 %1696
  %1698 = vrot.lane.b32.xlu0 %v1657, 32
  %v1699 = vpop.permute.xlu0 %1698
  %1700 = vrot.lane.b32.xlu0 %v1658, 32
  %v1701 = vpop.permute.xlu0 %1700
  %1702 = vrot.lane.b32.xlu0 %v1659, 32
  %v1703 = vpop.permute.xlu0 %1702
  %1704 = vrot.lane.b32.xlu0 %v1660, 32
  %v1705 = vpop.permute.xlu0 %1704
  %1706 = vrot.lane.b32.xlu0 %v1661, 32
  %v1707 = vpop.permute.xlu0 %1706
  %1708 = vrot.lane.b32.xlu0 %v1662, 32
  %v1709 = vpop.permute.xlu0 %1708
  %1710 = vrot.lane.b32.xlu0 %v1663, 32
  %v1711 = vpop.permute.xlu0 %1710
  %v1728 = vadd.f32 %v1568, %v1681
  %v1729 = vadd.f32 %v1569, %v1683
  %v1730 = vadd.f32 %v1570, %v1685
  %v1731 = vadd.f32 %v1571, %v1687
  %v1732 = vadd.f32 %v1572, %v1689
  %v1733 = vadd.f32 %v1573, %v1691
  %v1734 = vadd.f32 %v1574, %v1693
  %v1735 = vadd.f32 %v1575, %v1695
  %v1736 = vadd.f32 %v1576, %v1697
  %v1737 = vadd.f32 %v1577, %v1699
  %v1738 = vadd.f32 %v1578, %v1701
  %v1739 = vadd.f32 %v1579, %v1703
  %v1740 = vadd.f32 %v1580, %v1705
  %v1741 = vadd.f32 %v1581, %v1707
  %v1742 = vadd.f32 %v1582, %v1709
  %v1743 = vadd.f32 %v1583, %v1711
  %v1744 = vtanh.pop %v1728
  %v1745 = vtanh.pop %v1729
  %v1746 = vtanh.pop %v1730
  %v1747 = vtanh.pop %v1731
  %v1748 = vtanh.pop %v1732
  %v1749 = vtanh.pop %v1733
  %v1750 = vtanh.pop %v1734
  %v1751 = vtanh.pop %v1735
  %v1752 = vtanh.pop %v1736
  %v1753 = vtanh.pop %v1737
  %v1754 = vtanh.pop %v1738
  %v1755 = vtanh.pop %v1739
  %v1756 = vtanh.pop %v1740
  %v1757 = vtanh.pop %v1741
  %v1758 = vtanh.pop %v1742
  %v1759 = vtanh.pop %v1743
  %1776 = vrot.lane.b32.xlu0 %v1744, 64
  %v1777 = vpop.permute.xlu0 %1776
  %1778 = vrot.lane.b32.xlu0 %v1745, 64
  %v1779 = vpop.permute.xlu0 %1778
  %1780 = vrot.lane.b32.xlu0 %v1746, 64
  %v1781 = vpop.permute.xlu0 %1780
  %1782 = vrot.lane.b32.xlu0 %v1747, 64
  %v1783 = vpop.permute.xlu0 %1782
  %1784 = vrot.lane.b32.xlu0 %v1748, 64
  %v1785 = vpop.permute.xlu0 %1784
  %1786 = vrot.lane.b32.xlu0 %v1749, 64
  %v1787 = vpop.permute.xlu0 %1786
  %1788 = vrot.lane.b32.xlu0 %v1750, 64
  %v1789 = vpop.permute.xlu0 %1788
  %1790 = vrot.lane.b32.xlu0 %v1751, 64
  %v1791 = vpop.permute.xlu0 %1790
  %1792 = vrot.lane.b32.xlu0 %v1752, 64
  %v1793 = vpop.permute.xlu0 %1792
  %1794 = vrot.lane.b32.xlu0 %v1753, 64
  %v1795 = vpop.permute.xlu0 %1794
  %1796 = vrot.lane.b32.xlu0 %v1754, 64
  %v1797 = vpop.permute.xlu0 %1796
  %1798 = vrot.lane.b32.xlu0 %v1755, 64
  %v1799 = vpop.permute.xlu0 %1798
  %1800 = vrot.lane.b32.xlu0 %v1756, 64
  %v1801 = vpop.permute.xlu0 %1800
  %1802 = vrot.lane.b32.xlu0 %v1757, 64
  %v1803 = vpop.permute.xlu0 %1802
  %1804 = vrot.lane.b32.xlu0 %v1758, 64
  %v1805 = vpop.permute.xlu0 %1804
  %1806 = vrot.lane.b32.xlu0 %v1759, 64
  %v1807 = vpop.permute.xlu0 %1806
  %v1824 = vmul.f32 %v1536, %v1777
  %v1825 = vmul.f32 %v1537, %v1779
  %v1826 = vmul.f32 %v1538, %v1781
  %v1827 = vmul.f32 %v1539, %v1783
  %v1828 = vmul.f32 %v1540, %v1785
  %v1829 = vmul.f32 %v1541, %v1787
  %v1830 = vmul.f32 %v1542, %v1789
  %v1831 = vmul.f32 %v1543, %v1791
  %v1832 = vmul.f32 %v1544, %v1793
  %v1833 = vmul.f32 %v1545, %v1795
  %v1834 = vmul.f32 %v1546, %v1797
  %v1835 = vmul.f32 %v1547, %v1799
  %v1836 = vmul.f32 %v1548, %v1801
  %v1837 = vmul.f32 %v1549, %v1803
  %v1838 = vmul.f32 %v1550, %v1805
  %v1839 = vmul.f32 %v1551, %v1807
  %1856 = vrot.lane.b32.xlu0 %v1824, 32
  %v1857 = vpop.permute.xlu0 %1856
  %1858 = vrot.lane.b32.xlu0 %v1825, 32
  %v1859 = vpop.permute.xlu0 %1858
  %1860 = vrot.lane.b32.xlu0 %v1826, 32
  %v1861 = vpop.permute.xlu0 %1860
  %1862 = vrot.lane.b32.xlu0 %v1827, 32
  %v1863 = vpop.permute.xlu0 %1862
  %1864 = vrot.lane.b32.xlu0 %v1828, 32
  %v1865 = vpop.permute.xlu0 %1864
  %1866 = vrot.lane.b32.xlu0 %v1829, 32
  %v1867 = vpop.permute.xlu0 %1866
  %1868 = vrot.lane.b32.xlu0 %v1830, 32
  %v1869 = vpop.permute.xlu0 %1868
  %1870 = vrot.lane.b32.xlu0 %v1831, 32
  %v1871 = vpop.permute.xlu0 %1870
  %1872 = vrot.lane.b32.xlu0 %v1832, 32
  %v1873 = vpop.permute.xlu0 %1872
  %1874 = vrot.lane.b32.xlu0 %v1833, 32
  %v1875 = vpop.permute.xlu0 %1874
  %1876 = vrot.lane.b32.xlu0 %v1834, 32
  %v1877 = vpop.permute.xlu0 %1876
  %1878 = vrot.lane.b32.xlu0 %v1835, 32
  %v1879 = vpop.permute.xlu0 %1878
  %1880 = vrot.lane.b32.xlu0 %v1836, 32
  %v1881 = vpop.permute.xlu0 %1880
  %1882 = vrot.lane.b32.xlu0 %v1837, 32
  %v1883 = vpop.permute.xlu0 %1882
  %1884 = vrot.lane.b32.xlu0 %v1838, 32
  %v1885 = vpop.permute.xlu0 %1884
  %1886 = vrot.lane.b32.xlu0 %v1839, 32
  %v1887 = vpop.permute.xlu0 %1886
  %vm1904 = vcmask 261120
  %v1905 = vsel %vm1904, %v1857, 0.0
  %v1906 = vsel %vm1904, %v1859, 0.0
  %v1907 = vsel %vm1904, %v1861, 0.0
  %v1908 = vsel %vm1904, %v1863, 0.0
  %v1909 = vsel %vm1904, %v1865, 0.0
  %v1910 = vsel %vm1904, %v1867, 0.0
  %v1911 = vsel %vm1904, %v1869, 0.0
  %v1912 = vsel %vm1904, %v1871, 0.0
  %v1913 = vsel %vm1904, %v1873, 0.0
  %v1914 = vsel %vm1904, %v1875, 0.0
  %v1915 = vsel %vm1904, %v1877, 0.0
  %v1916 = vsel %vm1904, %v1879, 0.0
  %v1917 = vsel %vm1904, %v1881, 0.0
  %v1918 = vsel %vm1904, %v1883, 0.0
  %v1919 = vsel %vm1904, %v1885, 0.0
  %v1920 = vsel %vm1904, %v1887, 0.0
  %v1922 = vsel %vm246, %v1905, 0
  %v1925 = vsel %vm246, %v1906, 0
  %v1928 = vsel %vm246, %v1907, 0
  %v1931 = vsel %vm246, %v1908, 0
  %v1934 = vsel %vm246, %v1909, 0
  %v1937 = vsel %vm246, %v1910, 0
  %v1940 = vsel %vm246, %v1911, 0
  %v1943 = vsel %vm246, %v1912, 0
  %v1946 = vsel %vm246, %v1913, 0
  %v1949 = vsel %vm246, %v1914, 0
  %v1952 = vsel %vm246, %v1915, 0
  %v1955 = vsel %vm246, %v1916, 0
  %v1958 = vsel %vm246, %v1917, 0
  %v1961 = vsel %vm246, %v1918, 0
  %v1964 = vsel %vm246, %v1919, 0
  %v1967 = vsel %vm246, %v1920, 0
  %1969 = vmatpush.msra.mxu0 0.0
  %1970 = vmatpush.msra.mxu0 0.0
  %1971 = vmatpush.msra.mxu0 0.0
  %1972 = vmatpush.msra.mxu0 0.0
  %1973 = vmatpush.msra.mxu0 0.0
  %1974 = vmatpush.msra.mxu0 0.0
  %1975 = vmatpush.msra.mxu0 0.0
  %1976 = vmatpush.msra.mxu0 0.0
  %1977 = vmatpush.msra.mxu0 %v1469
  %1978 = vmatpush.msra.mxu0 %v1467
  %1979 = vmatpush.msra.mxu0 %v1465
  %1980 = vmatpush.msra.mxu0 %v1463
  %1981 = vmatpush.msra.mxu0 %v1461
  %1982 = vmatpush.msra.mxu0 %v1459
  %1983 = vmatpush.msra.mxu0 %v1457
  %1984 = vmatpush.msra.mxu0 %v1455
  %1985 = vmatmul.f32.gmra.mxu0 %v1922
  %v1986 = vpop.f32.mrf.mxu0
  %v1987 = vadd.f32 0.0, %v1986
  %1988 = vmatmul.f32.gmra.mxu0 %v1925
  %v1989 = vpop.f32.mrf.mxu0
  %v1990 = vadd.f32 0.0, %v1989
  %1991 = vmatmul.f32.gmra.mxu0 %v1928
  %v1992 = vpop.f32.mrf.mxu0
  %v1993 = vadd.f32 0.0, %v1992
  %1994 = vmatmul.f32.gmra.mxu0 %v1931
  %v1995 = vpop.f32.mrf.mxu0
  %v1996 = vadd.f32 0.0, %v1995
  %1997 = vmatmul.f32.gmra.mxu0 %v1934
  %v1998 = vpop.f32.mrf.mxu0
  %v1999 = vadd.f32 0.0, %v1998
  %2000 = vmatmul.f32.gmra.mxu0 %v1937
  %v2001 = vpop.f32.mrf.mxu0
  %v2002 = vadd.f32 0.0, %v2001
  %2003 = vmatmul.f32.gmra.mxu0 %v1940
  %v2004 = vpop.f32.mrf.mxu0
  %v2005 = vadd.f32 0.0, %v2004
  %2006 = vmatmul.f32.gmra.mxu0 %v1943
  %v2007 = vpop.f32.mrf.mxu0
  %v2008 = vadd.f32 0.0, %v2007
  %2009 = vmatmul.f32.gmra.mxu0 %v1946
  %v2010 = vpop.f32.mrf.mxu0
  %v2011 = vadd.f32 0.0, %v2010
  %2012 = vmatmul.f32.gmra.mxu0 %v1949
  %v2013 = vpop.f32.mrf.mxu0
  %v2014 = vadd.f32 0.0, %v2013
  %2015 = vmatmul.f32.gmra.mxu0 %v1952
  %v2016 = vpop.f32.mrf.mxu0
  %v2017 = vadd.f32 0.0, %v2016
  %2018 = vmatmul.f32.gmra.mxu0 %v1955
  %v2019 = vpop.f32.mrf.mxu0
  %v2020 = vadd.f32 0.0, %v2019
  %2021 = vmatmul.f32.gmra.mxu0 %v1958
  %v2022 = vpop.f32.mrf.mxu0
  %v2023 = vadd.f32 0.0, %v2022
  %2024 = vmatmul.f32.gmra.mxu0 %v1961
  %v2025 = vpop.f32.mrf.mxu0
  %v2026 = vadd.f32 0.0, %v2025
  %2027 = vmatmul.f32.gmra.mxu0 %v1964
  %v2028 = vpop.f32.mrf.mxu0
  %v2029 = vadd.f32 0.0, %v2028
  %2030 = vmatmul.f32.gmra.mxu0 %v1967
  %v2031 = vpop.f32.mrf.mxu0
  %v2032 = vadd.f32 0.0, %v2031
  %2033 = vdwg.mxu0
  %2034 = vmatpush.msra.mxu0 0.0
  %2035 = vmatpush.msra.mxu0 0.0
  %2036 = vmatpush.msra.mxu0 0.0
  %2037 = vmatpush.msra.mxu0 0.0
  %2038 = vmatpush.msra.mxu0 0.0
  %2039 = vmatpush.msra.mxu0 0.0
  %2040 = vmatpush.msra.mxu0 0.0
  %2041 = vmatpush.msra.mxu0 0.0
  %2042 = vmatpush.msra.mxu0 %v1470
  %2043 = vmatpush.msra.mxu0 %v1468
  %2044 = vmatpush.msra.mxu0 %v1466
  %2045 = vmatpush.msra.mxu0 %v1464
  %2046 = vmatpush.msra.mxu0 %v1462
  %2047 = vmatpush.msra.mxu0 %v1460
  %2048 = vmatpush.msra.mxu0 %v1458
  %2049 = vmatpush.msra.mxu0 %v1456
  %2050 = vmatmul.f32.gmra.mxu0 %v1922
  %v2051 = vpop.f32.mrf.mxu0
  %v2052 = vadd.f32 0.0, %v2051
  %2053 = vmatmul.f32.gmra.mxu0 %v1925
  %v2054 = vpop.f32.mrf.mxu0
  %v2055 = vadd.f32 0.0, %v2054
  %2056 = vmatmul.f32.gmra.mxu0 %v1928
  %v2057 = vpop.f32.mrf.mxu0
  %v2058 = vadd.f32 0.0, %v2057
  %2059 = vmatmul.f32.gmra.mxu0 %v1931
  %v2060 = vpop.f32.mrf.mxu0
  %v2061 = vadd.f32 0.0, %v2060
  %2062 = vmatmul.f32.gmra.mxu0 %v1934
  %v2063 = vpop.f32.mrf.mxu0
  %v2064 = vadd.f32 0.0, %v2063
  %2065 = vmatmul.f32.gmra.mxu0 %v1937
  %v2066 = vpop.f32.mrf.mxu0
  %v2067 = vadd.f32 0.0, %v2066
  %2068 = vmatmul.f32.gmra.mxu0 %v1940
  %v2069 = vpop.f32.mrf.mxu0
  %v2070 = vadd.f32 0.0, %v2069
  %2071 = vmatmul.f32.gmra.mxu0 %v1943
  %v2072 = vpop.f32.mrf.mxu0
  %v2073 = vadd.f32 0.0, %v2072
  %2074 = vmatmul.f32.gmra.mxu0 %v1946
  %v2075 = vpop.f32.mrf.mxu0
  %v2076 = vadd.f32 0.0, %v2075
  %2077 = vmatmul.f32.gmra.mxu0 %v1949
  %v2078 = vpop.f32.mrf.mxu0
  %v2079 = vadd.f32 0.0, %v2078
  %2080 = vmatmul.f32.gmra.mxu0 %v1952
  %v2081 = vpop.f32.mrf.mxu0
  %v2082 = vadd.f32 0.0, %v2081
  %2083 = vmatmul.f32.gmra.mxu0 %v1955
  %v2084 = vpop.f32.mrf.mxu0
  %v2085 = vadd.f32 0.0, %v2084
  %2086 = vmatmul.f32.gmra.mxu0 %v1958
  %v2087 = vpop.f32.mrf.mxu0
  %v2088 = vadd.f32 0.0, %v2087
  %2089 = vmatmul.f32.gmra.mxu0 %v1961
  %v2090 = vpop.f32.mrf.mxu0
  %v2091 = vadd.f32 0.0, %v2090
  %2092 = vmatmul.f32.gmra.mxu0 %v1964
  %v2093 = vpop.f32.mrf.mxu0
  %v2094 = vadd.f32 0.0, %v2093
  %2095 = vmatmul.f32.gmra.mxu0 %v1967
  %v2096 = vpop.f32.mrf.mxu0
  %v2097 = vadd.f32 0.0, %v2096
  %2098 = vdwg.mxu0
  %v2100 = vperm.slane %v1471, 0
  %v2102 = vadd.f32 %v2052, %v2100
  %v2103 = vadd.f32 %v2055, %v2100
  %v2104 = vadd.f32 %v2058, %v2100
  %v2105 = vadd.f32 %v2061, %v2100
  %v2106 = vadd.f32 %v2064, %v2100
  %v2107 = vadd.f32 %v2067, %v2100
  %v2108 = vadd.f32 %v2070, %v2100
  %v2109 = vadd.f32 %v2073, %v2100
  %v2110 = vadd.f32 %v2076, %v2100
  %v2111 = vadd.f32 %v2079, %v2100
  %v2112 = vadd.f32 %v2082, %v2100
  %v2113 = vadd.f32 %v2085, %v2100
  %v2114 = vadd.f32 %v2088, %v2100
  %v2115 = vadd.f32 %v2091, %v2100
  %v2116 = vadd.f32 %v2094, %v2100
  %v2117 = vadd.f32 %v2097, %v2100
  %v2118 = vmul.f32 %v2102, 0.5
  %v2119 = vmul.f32 %v2103, 0.5
  %v2120 = vmul.f32 %v2104, 0.5
  %v2121 = vmul.f32 %v2105, 0.5
  %v2122 = vmul.f32 %v2106, 0.5
  %v2123 = vmul.f32 %v2107, 0.5
  %v2124 = vmul.f32 %v2108, 0.5
  %v2125 = vmul.f32 %v2109, 0.5
  %v2126 = vmul.f32 %v2110, 0.5
  %v2127 = vmul.f32 %v2111, 0.5
  %v2128 = vmul.f32 %v2112, 0.5
  %v2129 = vmul.f32 %v2113, 0.5
  %v2130 = vmul.f32 %v2114, 0.5
  %v2131 = vmul.f32 %v2115, 0.5
  %v2132 = vmul.f32 %v2116, 0.5
  %v2133 = vmul.f32 %v2117, 0.5
  %v2134 = vtanh.pop %v2118
  %v2135 = vtanh.pop %v2119
  %v2136 = vtanh.pop %v2120
  %v2137 = vtanh.pop %v2121
  %v2138 = vtanh.pop %v2122
  %v2139 = vtanh.pop %v2123
  %v2140 = vtanh.pop %v2124
  %v2141 = vtanh.pop %v2125
  %v2142 = vtanh.pop %v2126
  %v2143 = vtanh.pop %v2127
  %v2144 = vtanh.pop %v2128
  %v2145 = vtanh.pop %v2129
  %v2146 = vtanh.pop %v2130
  %v2147 = vtanh.pop %v2131
  %v2148 = vtanh.pop %v2132
  %v2149 = vtanh.pop %v2133
  %v2150 = vmul.f32 %v2134, 0.5
  %v2151 = vmul.f32 %v2135, 0.5
  %v2152 = vmul.f32 %v2136, 0.5
  %v2153 = vmul.f32 %v2137, 0.5
  %v2154 = vmul.f32 %v2138, 0.5
  %v2155 = vmul.f32 %v2139, 0.5
  %v2156 = vmul.f32 %v2140, 0.5
  %v2157 = vmul.f32 %v2141, 0.5
  %v2158 = vmul.f32 %v2142, 0.5
  %v2159 = vmul.f32 %v2143, 0.5
  %v2160 = vmul.f32 %v2144, 0.5
  %v2161 = vmul.f32 %v2145, 0.5
  %v2162 = vmul.f32 %v2146, 0.5
  %v2163 = vmul.f32 %v2147, 0.5
  %v2164 = vmul.f32 %v2148, 0.5
  %v2165 = vmul.f32 %v2149, 0.5
  %v2166 = vadd.f32 %v2150, 0.5
  %v2167 = vadd.f32 %v2151, 0.5
  %v2168 = vadd.f32 %v2152, 0.5
  %v2169 = vadd.f32 %v2153, 0.5
  %v2170 = vadd.f32 %v2154, 0.5
  %v2171 = vadd.f32 %v2155, 0.5
  %v2172 = vadd.f32 %v2156, 0.5
  %v2173 = vadd.f32 %v2157, 0.5
  %v2174 = vadd.f32 %v2158, 0.5
  %v2175 = vadd.f32 %v2159, 0.5
  %v2176 = vadd.f32 %v2160, 0.5
  %v2177 = vadd.f32 %v2161, 0.5
  %v2178 = vadd.f32 %v2162, 0.5
  %v2179 = vadd.f32 %v2163, 0.5
  %v2180 = vadd.f32 %v2164, 0.5
  %v2181 = vadd.f32 %v2165, 0.5
  %v2182 = vtanh.pop %v2102
  %v2183 = vtanh.pop %v2103
  %v2184 = vtanh.pop %v2104
  %v2185 = vtanh.pop %v2105
  %v2186 = vtanh.pop %v2106
  %v2187 = vtanh.pop %v2107
  %v2188 = vtanh.pop %v2108
  %v2189 = vtanh.pop %v2109
  %v2190 = vtanh.pop %v2110
  %v2191 = vtanh.pop %v2111
  %v2192 = vtanh.pop %v2112
  %v2193 = vtanh.pop %v2113
  %v2194 = vtanh.pop %v2114
  %v2195 = vtanh.pop %v2115
  %v2196 = vtanh.pop %v2116
  %v2197 = vtanh.pop %v2117
  %v2198 = vmul.f32 %v2166, 0.0
  %v2199 = vmul.f32 %v2167, 0.0
  %v2200 = vmul.f32 %v2168, 0.0
  %v2201 = vmul.f32 %v2169, 0.0
  %v2202 = vmul.f32 %v2170, 0.0
  %v2203 = vmul.f32 %v2171, 0.0
  %v2204 = vmul.f32 %v2172, 0.0
  %v2205 = vmul.f32 %v2173, 0.0
  %v2206 = vmul.f32 %v2174, 0.0
  %v2207 = vmul.f32 %v2175, 0.0
  %v2208 = vmul.f32 %v2176, 0.0
  %v2209 = vmul.f32 %v2177, 0.0
  %v2210 = vmul.f32 %v2178, 0.0
  %v2211 = vmul.f32 %v2179, 0.0
  %v2212 = vmul.f32 %v2180, 0.0
  %v2213 = vmul.f32 %v2181, 0.0
  %2230 = vrot.lane.b32.xlu0 %v2182, 64
  %v2231 = vpop.permute.xlu0 %2230
  %2232 = vrot.lane.b32.xlu0 %v2183, 64
  %v2233 = vpop.permute.xlu0 %2232
  %2234 = vrot.lane.b32.xlu0 %v2184, 64
  %v2235 = vpop.permute.xlu0 %2234
  %2236 = vrot.lane.b32.xlu0 %v2185, 64
  %v2237 = vpop.permute.xlu0 %2236
  %2238 = vrot.lane.b32.xlu0 %v2186, 64
  %v2239 = vpop.permute.xlu0 %2238
  %2240 = vrot.lane.b32.xlu0 %v2187, 64
  %v2241 = vpop.permute.xlu0 %2240
  %2242 = vrot.lane.b32.xlu0 %v2188, 64
  %v2243 = vpop.permute.xlu0 %2242
  %2244 = vrot.lane.b32.xlu0 %v2189, 64
  %v2245 = vpop.permute.xlu0 %2244
  %2246 = vrot.lane.b32.xlu0 %v2190, 64
  %v2247 = vpop.permute.xlu0 %2246
  %2248 = vrot.lane.b32.xlu0 %v2191, 64
  %v2249 = vpop.permute.xlu0 %2248
  %2250 = vrot.lane.b32.xlu0 %v2192, 64
  %v2251 = vpop.permute.xlu0 %2250
  %2252 = vrot.lane.b32.xlu0 %v2193, 64
  %v2253 = vpop.permute.xlu0 %2252
  %2254 = vrot.lane.b32.xlu0 %v2194, 64
  %v2255 = vpop.permute.xlu0 %2254
  %2256 = vrot.lane.b32.xlu0 %v2195, 64
  %v2257 = vpop.permute.xlu0 %2256
  %2258 = vrot.lane.b32.xlu0 %v2196, 64
  %v2259 = vpop.permute.xlu0 %2258
  %2260 = vrot.lane.b32.xlu0 %v2197, 64
  %v2261 = vpop.permute.xlu0 %2260
  %v2278 = vmul.f32 %v2166, %v2231
  %v2279 = vmul.f32 %v2167, %v2233
  %v2280 = vmul.f32 %v2168, %v2235
  %v2281 = vmul.f32 %v2169, %v2237
  %v2282 = vmul.f32 %v2170, %v2239
  %v2283 = vmul.f32 %v2171, %v2241
  %v2284 = vmul.f32 %v2172, %v2243
  %v2285 = vmul.f32 %v2173, %v2245
  %v2286 = vmul.f32 %v2174, %v2247
  %v2287 = vmul.f32 %v2175, %v2249
  %v2288 = vmul.f32 %v2176, %v2251
  %v2289 = vmul.f32 %v2177, %v2253
  %v2290 = vmul.f32 %v2178, %v2255
  %v2291 = vmul.f32 %v2179, %v2257
  %v2292 = vmul.f32 %v2180, %v2259
  %v2293 = vmul.f32 %v2181, %v2261
  %2310 = vrot.lane.b32.xlu0 %v2278, 32
  %v2311 = vpop.permute.xlu0 %2310
  %2312 = vrot.lane.b32.xlu0 %v2279, 32
  %v2313 = vpop.permute.xlu0 %2312
  %2314 = vrot.lane.b32.xlu0 %v2280, 32
  %v2315 = vpop.permute.xlu0 %2314
  %2316 = vrot.lane.b32.xlu0 %v2281, 32
  %v2317 = vpop.permute.xlu0 %2316
  %2318 = vrot.lane.b32.xlu0 %v2282, 32
  %v2319 = vpop.permute.xlu0 %2318
  %2320 = vrot.lane.b32.xlu0 %v2283, 32
  %v2321 = vpop.permute.xlu0 %2320
  %2322 = vrot.lane.b32.xlu0 %v2284, 32
  %v2323 = vpop.permute.xlu0 %2322
  %2324 = vrot.lane.b32.xlu0 %v2285, 32
  %v2325 = vpop.permute.xlu0 %2324
  %2326 = vrot.lane.b32.xlu0 %v2286, 32
  %v2327 = vpop.permute.xlu0 %2326
  %2328 = vrot.lane.b32.xlu0 %v2287, 32
  %v2329 = vpop.permute.xlu0 %2328
  %2330 = vrot.lane.b32.xlu0 %v2288, 32
  %v2331 = vpop.permute.xlu0 %2330
  %2332 = vrot.lane.b32.xlu0 %v2289, 32
  %v2333 = vpop.permute.xlu0 %2332
  %2334 = vrot.lane.b32.xlu0 %v2290, 32
  %v2335 = vpop.permute.xlu0 %2334
  %2336 = vrot.lane.b32.xlu0 %v2291, 32
  %v2337 = vpop.permute.xlu0 %2336
  %2338 = vrot.lane.b32.xlu0 %v2292, 32
  %v2339 = vpop.permute.xlu0 %2338
  %2340 = vrot.lane.b32.xlu0 %v2293, 32
  %v2341 = vpop.permute.xlu0 %2340
  %v2358 = vadd.f32 %v2198, %v2311
  %v2359 = vadd.f32 %v2199, %v2313
  %v2360 = vadd.f32 %v2200, %v2315
  %v2361 = vadd.f32 %v2201, %v2317
  %v2362 = vadd.f32 %v2202, %v2319
  %v2363 = vadd.f32 %v2203, %v2321
  %v2364 = vadd.f32 %v2204, %v2323
  %v2365 = vadd.f32 %v2205, %v2325
  %v2366 = vadd.f32 %v2206, %v2327
  %v2367 = vadd.f32 %v2207, %v2329
  %v2368 = vadd.f32 %v2208, %v2331
  %v2369 = vadd.f32 %v2209, %v2333
  %v2370 = vadd.f32 %v2210, %v2335
  %v2371 = vadd.f32 %v2211, %v2337
  %v2372 = vadd.f32 %v2212, %v2339
  %v2373 = vadd.f32 %v2213, %v2341
  %v2374 = vtanh.pop %v2358
  %v2375 = vtanh.pop %v2359
  %v2376 = vtanh.pop %v2360
  %v2377 = vtanh.pop %v2361
  %v2378 = vtanh.pop %v2362
  %v2379 = vtanh.pop %v2363
  %v2380 = vtanh.pop %v2364
  %v2381 = vtanh.pop %v2365
  %v2382 = vtanh.pop %v2366
  %v2383 = vtanh.pop %v2367
  %v2384 = vtanh.pop %v2368
  %v2385 = vtanh.pop %v2369
  %v2386 = vtanh.pop %v2370
  %v2387 = vtanh.pop %v2371
  %v2388 = vtanh.pop %v2372
  %v2389 = vtanh.pop %v2373
  %2406 = vrot.lane.b32.xlu0 %v2374, 64
  %v2407 = vpop.permute.xlu0 %2406
  %2408 = vrot.lane.b32.xlu0 %v2375, 64
  %v2409 = vpop.permute.xlu0 %2408
  %2410 = vrot.lane.b32.xlu0 %v2376, 64
  %v2411 = vpop.permute.xlu0 %2410
  %2412 = vrot.lane.b32.xlu0 %v2377, 64
  %v2413 = vpop.permute.xlu0 %2412
  %2414 = vrot.lane.b32.xlu0 %v2378, 64
  %v2415 = vpop.permute.xlu0 %2414
  %2416 = vrot.lane.b32.xlu0 %v2379, 64
  %v2417 = vpop.permute.xlu0 %2416
  %2418 = vrot.lane.b32.xlu0 %v2380, 64
  %v2419 = vpop.permute.xlu0 %2418
  %2420 = vrot.lane.b32.xlu0 %v2381, 64
  %v2421 = vpop.permute.xlu0 %2420
  %2422 = vrot.lane.b32.xlu0 %v2382, 64
  %v2423 = vpop.permute.xlu0 %2422
  %2424 = vrot.lane.b32.xlu0 %v2383, 64
  %v2425 = vpop.permute.xlu0 %2424
  %2426 = vrot.lane.b32.xlu0 %v2384, 64
  %v2427 = vpop.permute.xlu0 %2426
  %2428 = vrot.lane.b32.xlu0 %v2385, 64
  %v2429 = vpop.permute.xlu0 %2428
  %2430 = vrot.lane.b32.xlu0 %v2386, 64
  %v2431 = vpop.permute.xlu0 %2430
  %2432 = vrot.lane.b32.xlu0 %v2387, 64
  %v2433 = vpop.permute.xlu0 %2432
  %2434 = vrot.lane.b32.xlu0 %v2388, 64
  %v2435 = vpop.permute.xlu0 %2434
  %2436 = vrot.lane.b32.xlu0 %v2389, 64
  %v2437 = vpop.permute.xlu0 %2436
  %v2454 = vmul.f32 %v2166, %v2407
  %v2455 = vmul.f32 %v2167, %v2409
  %v2456 = vmul.f32 %v2168, %v2411
  %v2457 = vmul.f32 %v2169, %v2413
  %v2458 = vmul.f32 %v2170, %v2415
  %v2459 = vmul.f32 %v2171, %v2417
  %v2460 = vmul.f32 %v2172, %v2419
  %v2461 = vmul.f32 %v2173, %v2421
  %v2462 = vmul.f32 %v2174, %v2423
  %v2463 = vmul.f32 %v2175, %v2425
  %v2464 = vmul.f32 %v2176, %v2427
  %v2465 = vmul.f32 %v2177, %v2429
  %v2466 = vmul.f32 %v2178, %v2431
  %v2467 = vmul.f32 %v2179, %v2433
  %v2468 = vmul.f32 %v2180, %v2435
  %v2469 = vmul.f32 %v2181, %v2437
  %s2470 = scalar_lea.vmem [#allocation2], 128
  %v2471 = vld [vmem:[%s2470] sm:$0xff]
  %v2472 = vld [vmem:[%s2470 + $0x8] sm:$0xff]
  %v2473 = vld [vmem:[%s2470 + $0x10] sm:$0xff]
  %v2474 = vld [vmem:[%s2470 + $0x18] sm:$0xff]
  %v2475 = vld [vmem:[%s2470 + $0x20] sm:$0xff]
  %v2476 = vld [vmem:[%s2470 + $0x28] sm:$0xff]
  %v2477 = vld [vmem:[%s2470 + $0x30] sm:$0xff]
  %v2478 = vld [vmem:[%s2470 + $0x38] sm:$0xff]
  %v2479 = vld [vmem:[%s2470 + $0x40] sm:$0xff]
  %v2480 = vld [vmem:[%s2470 + $0x48] sm:$0xff]
  %v2481 = vld [vmem:[%s2470 + $0x50] sm:$0xff]
  %v2482 = vld [vmem:[%s2470 + $0x58] sm:$0xff]
  %v2483 = vld [vmem:[%s2470 + $0x60] sm:$0xff]
  %v2484 = vld [vmem:[%s2470 + $0x68] sm:$0xff]
  %v2485 = vld [vmem:[%s2470 + $0x70] sm:$0xff]
  %v2486 = vld [vmem:[%s2470 + $0x78] sm:$0xff]
  %v2487 = vadd.f32 %v1987, %v2471
  %v2488 = vadd.f32 %v1990, %v2472
  %v2489 = vadd.f32 %v1993, %v2473
  %v2490 = vadd.f32 %v1996, %v2474
  %v2491 = vadd.f32 %v1999, %v2475
  %v2492 = vadd.f32 %v2002, %v2476
  %v2493 = vadd.f32 %v2005, %v2477
  %v2494 = vadd.f32 %v2008, %v2478
  %v2495 = vadd.f32 %v2011, %v2479
  %v2496 = vadd.f32 %v2014, %v2480
  %v2497 = vadd.f32 %v2017, %v2481
  %v2498 = vadd.f32 %v2020, %v2482
  %v2499 = vadd.f32 %v2023, %v2483
  %v2500 = vadd.f32 %v2026, %v2484
  %v2501 = vadd.f32 %v2029, %v2485
  %v2502 = vadd.f32 %v2032, %v2486
  %v2503 = vmul.f32 %v2487, 0.5
  %v2504 = vmul.f32 %v2488, 0.5
  %v2505 = vmul.f32 %v2489, 0.5
  %v2506 = vmul.f32 %v2490, 0.5
  %v2507 = vmul.f32 %v2491, 0.5
  %v2508 = vmul.f32 %v2492, 0.5
  %v2509 = vmul.f32 %v2493, 0.5
  %v2510 = vmul.f32 %v2494, 0.5
  %v2511 = vmul.f32 %v2495, 0.5
  %v2512 = vmul.f32 %v2496, 0.5
  %v2513 = vmul.f32 %v2497, 0.5
  %v2514 = vmul.f32 %v2498, 0.5
  %v2515 = vmul.f32 %v2499, 0.5
  %v2516 = vmul.f32 %v2500, 0.5
  %v2517 = vmul.f32 %v2501, 0.5
  %v2518 = vmul.f32 %v2502, 0.5
  %v2519 = vtanh.pop %v2503
  %v2520 = vtanh.pop %v2504
  %v2521 = vtanh.pop %v2505
  %v2522 = vtanh.pop %v2506
  %v2523 = vtanh.pop %v2507
  %v2524 = vtanh.pop %v2508
  %v2525 = vtanh.pop %v2509
  %v2526 = vtanh.pop %v2510
  %v2527 = vtanh.pop %v2511
  %v2528 = vtanh.pop %v2512
  %v2529 = vtanh.pop %v2513
  %v2530 = vtanh.pop %v2514
  %v2531 = vtanh.pop %v2515
  %v2532 = vtanh.pop %v2516
  %v2533 = vtanh.pop %v2517
  %v2534 = vtanh.pop %v2518
  %v2535 = vmul.f32 %v2519, 0.5
  %v2536 = vmul.f32 %v2520, 0.5
  %v2537 = vmul.f32 %v2521, 0.5
  %v2538 = vmul.f32 %v2522, 0.5
  %v2539 = vmul.f32 %v2523, 0.5
  %v2540 = vmul.f32 %v2524, 0.5
  %v2541 = vmul.f32 %v2525, 0.5
  %v2542 = vmul.f32 %v2526, 0.5
  %v2543 = vmul.f32 %v2527, 0.5
  %v2544 = vmul.f32 %v2528, 0.5
  %v2545 = vmul.f32 %v2529, 0.5
  %v2546 = vmul.f32 %v2530, 0.5
  %v2547 = vmul.f32 %v2531, 0.5
  %v2548 = vmul.f32 %v2532, 0.5
  %v2549 = vmul.f32 %v2533, 0.5
  %v2550 = vmul.f32 %v2534, 0.5
  %v2551 = vadd.f32 %v2535, 0.5
  %v2552 = vadd.f32 %v2536, 0.5
  %v2553 = vadd.f32 %v2537, 0.5
  %v2554 = vadd.f32 %v2538, 0.5
  %v2555 = vadd.f32 %v2539, 0.5
  %v2556 = vadd.f32 %v2540, 0.5
  %v2557 = vadd.f32 %v2541, 0.5
  %v2558 = vadd.f32 %v2542, 0.5
  %v2559 = vadd.f32 %v2543, 0.5
  %v2560 = vadd.f32 %v2544, 0.5
  %v2561 = vadd.f32 %v2545, 0.5
  %v2562 = vadd.f32 %v2546, 0.5
  %v2563 = vadd.f32 %v2547, 0.5
  %v2564 = vadd.f32 %v2548, 0.5
  %v2565 = vadd.f32 %v2549, 0.5
  %v2566 = vadd.f32 %v2550, 0.5
  %v2567 = vtanh.pop %v2487
  %v2568 = vtanh.pop %v2488
  %v2569 = vtanh.pop %v2489
  %v2570 = vtanh.pop %v2490
  %v2571 = vtanh.pop %v2491
  %v2572 = vtanh.pop %v2492
  %v2573 = vtanh.pop %v2493
  %v2574 = vtanh.pop %v2494
  %v2575 = vtanh.pop %v2495
  %v2576 = vtanh.pop %v2496
  %v2577 = vtanh.pop %v2497
  %v2578 = vtanh.pop %v2498
  %v2579 = vtanh.pop %v2499
  %v2580 = vtanh.pop %v2500
  %v2581 = vtanh.pop %v2501
  %v2582 = vtanh.pop %v2502
  %v2583 = vmul.f32 %v2551, %v1728
  %v2584 = vmul.f32 %v2552, %v1729
  %v2585 = vmul.f32 %v2553, %v1730
  %v2586 = vmul.f32 %v2554, %v1731
  %v2587 = vmul.f32 %v2555, %v1732
  %v2588 = vmul.f32 %v2556, %v1733
  %v2589 = vmul.f32 %v2557, %v1734
  %v2590 = vmul.f32 %v2558, %v1735
  %v2591 = vmul.f32 %v2559, %v1736
  %v2592 = vmul.f32 %v2560, %v1737
  %v2593 = vmul.f32 %v2561, %v1738
  %v2594 = vmul.f32 %v2562, %v1739
  %v2595 = vmul.f32 %v2563, %v1740
  %v2596 = vmul.f32 %v2564, %v1741
  %v2597 = vmul.f32 %v2565, %v1742
  %v2598 = vmul.f32 %v2566, %v1743
  %2615 = vrot.lane.b32.xlu0 %v2567, 64
  %v2616 = vpop.permute.xlu0 %2615
  %2617 = vrot.lane.b32.xlu0 %v2568, 64
  %v2618 = vpop.permute.xlu0 %2617
  %2619 = vrot.lane.b32.xlu0 %v2569, 64
  %v2620 = vpop.permute.xlu0 %2619
  %2621 = vrot.lane.b32.xlu0 %v2570, 64
  %v2622 = vpop.permute.xlu0 %2621
  %2623 = vrot.lane.b32.xlu0 %v2571, 64
  %v2624 = vpop.permute.xlu0 %2623
  %2625 = vrot.lane.b32.xlu0 %v2572, 64
  %v2626 = vpop.permute.xlu0 %2625
  %2627 = vrot.lane.b32.xlu0 %v2573, 64
  %v2628 = vpop.permute.xlu0 %2627
  %2629 = vrot.lane.b32.xlu0 %v2574, 64
  %v2630 = vpop.permute.xlu0 %2629
  %2631 = vrot.lane.b32.xlu0 %v2575, 64
  %v2632 = vpop.permute.xlu0 %2631
  %2633 = vrot.lane.b32.xlu0 %v2576, 64
  %v2634 = vpop.permute.xlu0 %2633
  %2635 = vrot.lane.b32.xlu0 %v2577, 64
  %v2636 = vpop.permute.xlu0 %2635
  %2637 = vrot.lane.b32.xlu0 %v2578, 64
  %v2638 = vpop.permute.xlu0 %2637
  %2639 = vrot.lane.b32.xlu0 %v2579, 64
  %v2640 = vpop.permute.xlu0 %2639
  %2641 = vrot.lane.b32.xlu0 %v2580, 64
  %v2642 = vpop.permute.xlu0 %2641
  %2643 = vrot.lane.b32.xlu0 %v2581, 64
  %v2644 = vpop.permute.xlu0 %2643
  %2645 = vrot.lane.b32.xlu0 %v2582, 64
  %v2646 = vpop.permute.xlu0 %2645
  %v2663 = vmul.f32 %v2551, %v2616
  %v2664 = vmul.f32 %v2552, %v2618
  %v2665 = vmul.f32 %v2553, %v2620
  %v2666 = vmul.f32 %v2554, %v2622
  %v2667 = vmul.f32 %v2555, %v2624
  %v2668 = vmul.f32 %v2556, %v2626
  %v2669 = vmul.f32 %v2557, %v2628
  %v2670 = vmul.f32 %v2558, %v2630
  %v2671 = vmul.f32 %v2559, %v2632
  %v2672 = vmul.f32 %v2560, %v2634
  %v2673 = vmul.f32 %v2561, %v2636
  %v2674 = vmul.f32 %v2562, %v2638
  %v2675 = vmul.f32 %v2563, %v2640
  %v2676 = vmul.f32 %v2564, %v2642
  %v2677 = vmul.f32 %v2565, %v2644
  %v2678 = vmul.f32 %v2566, %v2646
  %2695 = vrot.lane.b32.xlu0 %v2663, 32
  %v2696 = vpop.permute.xlu0 %2695
  %2697 = vrot.lane.b32.xlu0 %v2664, 32
  %v2698 = vpop.permute.xlu0 %2697
  %2699 = vrot.lane.b32.xlu0 %v2665, 32
  %v2700 = vpop.permute.xlu0 %2699
  %2701 = vrot.lane.b32.xlu0 %v2666, 32
  %v2702 = vpop.permute.xlu0 %2701
  %2703 = vrot.lane.b32.xlu0 %v2667, 32
  %v2704 = vpop.permute.xlu0 %2703
  %2705 = vrot.lane.b32.xlu0 %v2668, 32
  %v2706 = vpop.permute.xlu0 %2705
  %2707 = vrot.lane.b32.xlu0 %v2669, 32
  %v2708 = vpop.permute.xlu0 %2707
  %2709 = vrot.lane.b32.xlu0 %v2670, 32
  %v2710 = vpop.permute.xlu0 %2709
  %2711 = vrot.lane.b32.xlu0 %v2671, 32
  %v2712 = vpop.permute.xlu0 %2711
  %2713 = vrot.lane.b32.xlu0 %v2672, 32
  %v2714 = vpop.permute.xlu0 %2713
  %2715 = vrot.lane.b32.xlu0 %v2673, 32
  %v2716 = vpop.permute.xlu0 %2715
  %2717 = vrot.lane.b32.xlu0 %v2674, 32
  %v2718 = vpop.permute.xlu0 %2717
  %2719 = vrot.lane.b32.xlu0 %v2675, 32
  %v2720 = vpop.permute.xlu0 %2719
  %2721 = vrot.lane.b32.xlu0 %v2676, 32
  %v2722 = vpop.permute.xlu0 %2721
  %2723 = vrot.lane.b32.xlu0 %v2677, 32
  %v2724 = vpop.permute.xlu0 %2723
  %2725 = vrot.lane.b32.xlu0 %v2678, 32
  %v2726 = vpop.permute.xlu0 %2725
  %v2743 = vadd.f32 %v2583, %v2696
  %v2744 = vadd.f32 %v2584, %v2698
  %v2745 = vadd.f32 %v2585, %v2700
  %v2746 = vadd.f32 %v2586, %v2702
  %v2747 = vadd.f32 %v2587, %v2704
  %v2748 = vadd.f32 %v2588, %v2706
  %v2749 = vadd.f32 %v2589, %v2708
  %v2750 = vadd.f32 %v2590, %v2710
  %v2751 = vadd.f32 %v2591, %v2712
  %v2752 = vadd.f32 %v2592, %v2714
  %v2753 = vadd.f32 %v2593, %v2716
  %v2754 = vadd.f32 %v2594, %v2718
  %v2755 = vadd.f32 %v2595, %v2720
  %v2756 = vadd.f32 %v2596, %v2722
  %v2757 = vadd.f32 %v2597, %v2724
  %v2758 = vadd.f32 %v2598, %v2726
  %v2759 = vtanh.pop %v2743
  %v2760 = vtanh.pop %v2744
  %v2761 = vtanh.pop %v2745
  %v2762 = vtanh.pop %v2746
  %v2763 = vtanh.pop %v2747
  %v2764 = vtanh.pop %v2748
  %v2765 = vtanh.pop %v2749
  %v2766 = vtanh.pop %v2750
  %v2767 = vtanh.pop %v2751
  %v2768 = vtanh.pop %v2752
  %v2769 = vtanh.pop %v2753
  %v2770 = vtanh.pop %v2754
  %v2771 = vtanh.pop %v2755
  %v2772 = vtanh.pop %v2756
  %v2773 = vtanh.pop %v2757
  %v2774 = vtanh.pop %v2758
  %2791 = vrot.lane.b32.xlu0 %v2759, 64
  %v2792 = vpop.permute.xlu0 %2791
  %2793 = vrot.lane.b32.xlu0 %v2760, 64
  %v2794 = vpop.permute.xlu0 %2793
  %2795 = vrot.lane.b32.xlu0 %v2761, 64
  %v2796 = vpop.permute.xlu0 %2795
  %2797 = vrot.lane.b32.xlu0 %v2762, 64
  %v2798 = vpop.permute.xlu0 %2797
  %2799 = vrot.lane.b32.xlu0 %v2763, 64
  %v2800 = vpop.permute.xlu0 %2799
  %2801 = vrot.lane.b32.xlu0 %v2764, 64
  %v2802 = vpop.permute.xlu0 %2801
  %2803 = vrot.lane.b32.xlu0 %v2765, 64
  %v2804 = vpop.permute.xlu0 %2803
  %2805 = vrot.lane.b32.xlu0 %v2766, 64
  %v2806 = vpop.permute.xlu0 %2805
  %2807 = vrot.lane.b32.xlu0 %v2767, 64
  %v2808 = vpop.permute.xlu0 %2807
  %2809 = vrot.lane.b32.xlu0 %v2768, 64
  %v2810 = vpop.permute.xlu0 %2809
  %2811 = vrot.lane.b32.xlu0 %v2769, 64
  %v2812 = vpop.permute.xlu0 %2811
  %2813 = vrot.lane.b32.xlu0 %v2770, 64
  %v2814 = vpop.permute.xlu0 %2813
  %2815 = vrot.lane.b32.xlu0 %v2771, 64
  %v2816 = vpop.permute.xlu0 %2815
  %2817 = vrot.lane.b32.xlu0 %v2772, 64
  %v2818 = vpop.permute.xlu0 %2817
  %2819 = vrot.lane.b32.xlu0 %v2773, 64
  %v2820 = vpop.permute.xlu0 %2819
  %2821 = vrot.lane.b32.xlu0 %v2774, 64
  %v2822 = vpop.permute.xlu0 %2821
  %v2839 = vmul.f32 %v2551, %v2792
  %v2840 = vmul.f32 %v2552, %v2794
  %v2841 = vmul.f32 %v2553, %v2796
  %v2842 = vmul.f32 %v2554, %v2798
  %v2843 = vmul.f32 %v2555, %v2800
  %v2844 = vmul.f32 %v2556, %v2802
  %v2845 = vmul.f32 %v2557, %v2804
  %v2846 = vmul.f32 %v2558, %v2806
  %v2847 = vmul.f32 %v2559, %v2808
  %v2848 = vmul.f32 %v2560, %v2810
  %v2849 = vmul.f32 %v2561, %v2812
  %v2850 = vmul.f32 %v2562, %v2814
  %v2851 = vmul.f32 %v2563, %v2816
  %v2852 = vmul.f32 %v2564, %v2818
  %v2853 = vmul.f32 %v2565, %v2820
  %v2854 = vmul.f32 %v2566, %v2822
  %2871 = vrot.lane.b32.xlu0 %v2839, 32
  %v2872 = vpop.permute.xlu0 %2871
  %2873 = vrot.lane.b32.xlu0 %v2840, 32
  %v2874 = vpop.permute.xlu0 %2873
  %2875 = vrot.lane.b32.xlu0 %v2841, 32
  %v2876 = vpop.permute.xlu0 %2875
  %2877 = vrot.lane.b32.xlu0 %v2842, 32
  %v2878 = vpop.permute.xlu0 %2877
  %2879 = vrot.lane.b32.xlu0 %v2843, 32
  %v2880 = vpop.permute.xlu0 %2879
  %2881 = vrot.lane.b32.xlu0 %v2844, 32
  %v2882 = vpop.permute.xlu0 %2881
  %2883 = vrot.lane.b32.xlu0 %v2845, 32
  %v2884 = vpop.permute.xlu0 %2883
  %2885 = vrot.lane.b32.xlu0 %v2846, 32
  %v2886 = vpop.permute.xlu0 %2885
  %2887 = vrot.lane.b32.xlu0 %v2847, 32
  %v2888 = vpop.permute.xlu0 %2887
  %2889 = vrot.lane.b32.xlu0 %v2848, 32
  %v2890 = vpop.permute.xlu0 %2889
  %2891 = vrot.lane.b32.xlu0 %v2849, 32
  %v2892 = vpop.permute.xlu0 %2891
  %2893 = vrot.lane.b32.xlu0 %v2850, 32
  %v2894 = vpop.permute.xlu0 %2893
  %2895 = vrot.lane.b32.xlu0 %v2851, 32
  %v2896 = vpop.permute.xlu0 %2895
  %2897 = vrot.lane.b32.xlu0 %v2852, 32
  %v2898 = vpop.permute.xlu0 %2897
  %2899 = vrot.lane.b32.xlu0 %v2853, 32
  %v2900 = vpop.permute.xlu0 %2899
  %2901 = vrot.lane.b32.xlu0 %v2854, 32
  %v2902 = vpop.permute.xlu0 %2901
  %2935 = vrot.lane.b32.xlu0 %v2454, 64
  %v2936 = vpop.permute.xlu0 %2935
  %2937 = vrot.lane.b32.xlu0 %v2455, 64
  %v2938 = vpop.permute.xlu0 %2937
  %2939 = vrot.lane.b32.xlu0 %v2456, 64
  %v2940 = vpop.permute.xlu0 %2939
  %2941 = vrot.lane.b32.xlu0 %v2457, 64
  %v2942 = vpop.permute.xlu0 %2941
  %2943 = vrot.lane.b32.xlu0 %v2458, 64
  %v2944 = vpop.permute.xlu0 %2943
  %2945 = vrot.lane.b32.xlu0 %v2459, 64
  %v2946 = vpop.permute.xlu0 %2945
  %2947 = vrot.lane.b32.xlu0 %v2460, 64
  %v2948 = vpop.permute.xlu0 %2947
  %2949 = vrot.lane.b32.xlu0 %v2461, 64
  %v2950 = vpop.permute.xlu0 %2949
  %2951 = vrot.lane.b32.xlu0 %v2462, 64
  %v2952 = vpop.permute.xlu0 %2951
  %2953 = vrot.lane.b32.xlu0 %v2463, 64
  %v2954 = vpop.permute.xlu0 %2953
  %2955 = vrot.lane.b32.xlu0 %v2464, 64
  %v2956 = vpop.permute.xlu0 %2955
  %2957 = vrot.lane.b32.xlu0 %v2465, 64
  %v2958 = vpop.permute.xlu0 %2957
  %2959 = vrot.lane.b32.xlu0 %v2466, 64
  %v2960 = vpop.permute.xlu0 %2959
  %2961 = vrot.lane.b32.xlu0 %v2467, 64
  %v2962 = vpop.permute.xlu0 %2961
  %2963 = vrot.lane.b32.xlu0 %v2468, 64
  %v2964 = vpop.permute.xlu0 %2963
  %2965 = vrot.lane.b32.xlu0 %v2469, 64
  %v2966 = vpop.permute.xlu0 %2965
  %v2983 = vsel %vm1904, %v2872, %v2936
  %v2984 = vsel %vm1904, %v2874, %v2938
  %v2985 = vsel %vm1904, %v2876, %v2940
  %v2986 = vsel %vm1904, %v2878, %v2942
  %v2987 = vsel %vm1904, %v2880, %v2944
  %v2988 = vsel %vm1904, %v2882, %v2946
  %v2989 = vsel %vm1904, %v2884, %v2948
  %v2990 = vsel %vm1904, %v2886, %v2950
  %v2991 = vsel %vm1904, %v2888, %v2952
  %v2992 = vsel %vm1904, %v2890, %v2954
  %v2993 = vsel %vm1904, %v2892, %v2956
  %v2994 = vsel %vm1904, %v2894, %v2958
  %v2995 = vsel %vm1904, %v2896, %v2960
  %v2996 = vsel %vm1904, %v2898, %v2962
  %v2997 = vsel %vm1904, %v2900, %v2964
  %v2998 = vsel %vm1904, %v2902, %v2966
  %v3000 = vsel %vm246, %v2983, 0
  %v3003 = vsel %vm246, %v2984, 0
  %v3006 = vsel %vm246, %v2985, 0
  %v3009 = vsel %vm246, %v2986, 0
  %v3012 = vsel %vm246, %v2987, 0
  %v3015 = vsel %vm246, %v2988, 0
  %v3018 = vsel %vm246, %v2989, 0
  %v3021 = vsel %vm246, %v2990, 0
  %v3024 = vsel %vm246, %v2991, 0
  %v3027 = vsel %vm246, %v2992, 0
  %v3030 = vsel %vm246, %v2993, 0
  %v3033 = vsel %vm246, %v2994, 0
  %v3036 = vsel %vm246, %v2995, 0
  %v3039 = vsel %vm246, %v2996, 0
  %v3042 = vsel %vm246, %v2997, 0
  %v3045 = vsel %vm246, %v2998, 0
  %3047 = vmatpush.msra.mxu0 0.0
  %3048 = vmatpush.msra.mxu0 0.0
  %3049 = vmatpush.msra.mxu0 0.0
  %3050 = vmatpush.msra.mxu0 0.0
  %3051 = vmatpush.msra.mxu0 0.0
  %3052 = vmatpush.msra.mxu0 0.0
  %3053 = vmatpush.msra.mxu0 0.0
  %3054 = vmatpush.msra.mxu0 0.0
  %3055 = vmatpush.msra.mxu0 %v1469
  %3056 = vmatpush.msra.mxu0 %v1467
  %3057 = vmatpush.msra.mxu0 %v1465
  %3058 = vmatpush.msra.mxu0 %v1463
  %3059 = vmatpush.msra.mxu0 %v1461
  %3060 = vmatpush.msra.mxu0 %v1459
  %3061 = vmatpush.msra.mxu0 %v1457
  %3062 = vmatpush.msra.mxu0 %v1455
  %3063 = vmatmul.f32.gmra.mxu0 %v3000
  %v3064 = vpop.f32.mrf.mxu0
  %v3065 = vadd.f32 0.0, %v3064
  %3066 = vmatmul.f32.gmra.mxu0 %v3003
  %v3067 = vpop.f32.mrf.mxu0
  %v3068 = vadd.f32 0.0, %v3067
  %3069 = vmatmul.f32.gmra.mxu0 %v3006
  %v3070 = vpop.f32.mrf.mxu0
  %v3071 = vadd.f32 0.0, %v3070
  %3072 = vmatmul.f32.gmra.mxu0 %v3009
  %v3073 = vpop.f32.mrf.mxu0
  %v3074 = vadd.f32 0.0, %v3073
  %3075 = vmatmul.f32.gmra.mxu0 %v3012
  %v3076 = vpop.f32.mrf.mxu0
  %v3077 = vadd.f32 0.0, %v3076
  %3078 = vmatmul.f32.gmra.mxu0 %v3015
  %v3079 = vpop.f32.mrf.mxu0
  %v3080 = vadd.f32 0.0, %v3079
  %3081 = vmatmul.f32.gmra.mxu0 %v3018
  %v3082 = vpop.f32.mrf.mxu0
  %v3083 = vadd.f32 0.0, %v3082
  %3084 = vmatmul.f32.gmra.mxu0 %v3021
  %v3085 = vpop.f32.mrf.mxu0
  %v3086 = vadd.f32 0.0, %v3085
  %3087 = vmatmul.f32.gmra.mxu0 %v3024
  %v3088 = vpop.f32.mrf.mxu0
  %v3089 = vadd.f32 0.0, %v3088
  %3090 = vmatmul.f32.gmra.mxu0 %v3027
  %v3091 = vpop.f32.mrf.mxu0
  %v3092 = vadd.f32 0.0, %v3091
  %3093 = vmatmul.f32.gmra.mxu0 %v3030
  %v3094 = vpop.f32.mrf.mxu0
  %v3095 = vadd.f32 0.0, %v3094
  %3096 = vmatmul.f32.gmra.mxu0 %v3033
  %v3097 = vpop.f32.mrf.mxu0
  %v3098 = vadd.f32 0.0, %v3097
  %3099 = vmatmul.f32.gmra.mxu0 %v3036
  %v3100 = vpop.f32.mrf.mxu0
  %v3101 = vadd.f32 0.0, %v3100
  %3102 = vmatmul.f32.gmra.mxu0 %v3039
  %v3103 = vpop.f32.mrf.mxu0
  %v3104 = vadd.f32 0.0, %v3103
  %3105 = vmatmul.f32.gmra.mxu0 %v3042
  %v3106 = vpop.f32.mrf.mxu0
  %v3107 = vadd.f32 0.0, %v3106
  %3108 = vmatmul.f32.gmra.mxu0 %v3045
  %v3109 = vpop.f32.mrf.mxu0
  %v3110 = vadd.f32 0.0, %v3109
  %3111 = vdwg.mxu0
  %3112 = vmatpush.msra.mxu0 0.0
  %3113 = vmatpush.msra.mxu0 0.0
  %3114 = vmatpush.msra.mxu0 0.0
  %3115 = vmatpush.msra.mxu0 0.0
  %3116 = vmatpush.msra.mxu0 0.0
  %3117 = vmatpush.msra.mxu0 0.0
  %3118 = vmatpush.msra.mxu0 0.0
  %3119 = vmatpush.msra.mxu0 0.0
  %3120 = vmatpush.msra.mxu0 %v1470
  %3121 = vmatpush.msra.mxu0 %v1468
  %3122 = vmatpush.msra.mxu0 %v1466
  %3123 = vmatpush.msra.mxu0 %v1464
  %3124 = vmatpush.msra.mxu0 %v1462
  %3125 = vmatpush.msra.mxu0 %v1460
  %3126 = vmatpush.msra.mxu0 %v1458
  %3127 = vmatpush.msra.mxu0 %v1456
  %3128 = vmatmul.f32.gmra.mxu0 %v3000
  %v3129 = vpop.f32.mrf.mxu0
  %v3130 = vadd.f32 0.0, %v3129
  %3131 = vmatmul.f32.gmra.mxu0 %v3003
  %v3132 = vpop.f32.mrf.mxu0
  %v3133 = vadd.f32 0.0, %v3132
  %3134 = vmatmul.f32.gmra.mxu0 %v3006
  %v3135 = vpop.f32.mrf.mxu0
  %v3136 = vadd.f32 0.0, %v3135
  %3137 = vmatmul.f32.gmra.mxu0 %v3009
  %v3138 = vpop.f32.mrf.mxu0
  %v3139 = vadd.f32 0.0, %v3138
  %3140 = vmatmul.f32.gmra.mxu0 %v3012
  %v3141 = vpop.f32.mrf.mxu0
  %v3142 = vadd.f32 0.0, %v3141
  %3143 = vmatmul.f32.gmra.mxu0 %v3015
  %v3144 = vpop.f32.mrf.mxu0
  %v3145 = vadd.f32 0.0, %v3144
  %3146 = vmatmul.f32.gmra.mxu0 %v3018
  %v3147 = vpop.f32.mrf.mxu0
  %v3148 = vadd.f32 0.0, %v3147
  %3149 = vmatmul.f32.gmra.mxu0 %v3021
  %v3150 = vpop.f32.mrf.mxu0
  %v3151 = vadd.f32 0.0, %v3150
  %3152 = vmatmul.f32.gmra.mxu0 %v3024
  %v3153 = vpop.f32.mrf.mxu0
  %v3154 = vadd.f32 0.0, %v3153
  %3155 = vmatmul.f32.gmra.mxu0 %v3027
  %v3156 = vpop.f32.mrf.mxu0
  %v3157 = vadd.f32 0.0, %v3156
  %3158 = vmatmul.f32.gmra.mxu0 %v3030
  %v3159 = vpop.f32.mrf.mxu0
  %v3160 = vadd.f32 0.0, %v3159
  %3161 = vmatmul.f32.gmra.mxu0 %v3033
  %v3162 = vpop.f32.mrf.mxu0
  %v3163 = vadd.f32 0.0, %v3162
  %3164 = vmatmul.f32.gmra.mxu0 %v3036
  %v3165 = vpop.f32.mrf.mxu0
  %v3166 = vadd.f32 0.0, %v3165
  %3167 = vmatmul.f32.gmra.mxu0 %v3039
  %v3168 = vpop.f32.mrf.mxu0
  %v3169 = vadd.f32 0.0, %v3168
  %3170 = vmatmul.f32.gmra.mxu0 %v3042
  %v3171 = vpop.f32.mrf.mxu0
  %v3172 = vadd.f32 0.0, %v3171
  %3173 = vmatmul.f32.gmra.mxu0 %v3045
  %v3174 = vpop.f32.mrf.mxu0
  %v3175 = vadd.f32 0.0, %v3174
  %3176 = vdwg.mxu0
  %v3177 = vadd.f32 %v3130, %v2100
  %v3178 = vadd.f32 %v3133, %v2100
  %v3179 = vadd.f32 %v3136, %v2100
  %v3180 = vadd.f32 %v3139, %v2100
  %v3181 = vadd.f32 %v3142, %v2100
  %v3182 = vadd.f32 %v3145, %v2100
  %v3183 = vadd.f32 %v3148, %v2100
  %v3184 = vadd.f32 %v3151, %v2100
  %v3185 = vadd.f32 %v3154, %v2100
  %v3186 = vadd.f32 %v3157, %v2100
  %v3187 = vadd.f32 %v3160, %v2100
  %v3188 = vadd.f32 %v3163, %v2100
  %v3189 = vadd.f32 %v3166, %v2100
  %v3190 = vadd.f32 %v3169, %v2100
  %v3191 = vadd.f32 %v3172, %v2100
  %v3192 = vadd.f32 %v3175, %v2100
  %v3193 = vmul.f32 %v3177, 0.5
  %v3194 = vmul.f32 %v3178, 0.5
  %v3195 = vmul.f32 %v3179, 0.5
  %v3196 = vmul.f32 %v3180, 0.5
  %v3197 = vmul.f32 %v3181, 0.5
  %v3198 = vmul.f32 %v3182, 0.5
  %v3199 = vmul.f32 %v3183, 0.5
  %v3200 = vmul.f32 %v3184, 0.5
  %v3201 = vmul.f32 %v3185, 0.5
  %v3202 = vmul.f32 %v3186, 0.5
  %v3203 = vmul.f32 %v3187, 0.5
  %v3204 = vmul.f32 %v3188, 0.5
  %v3205 = vmul.f32 %v3189, 0.5
  %v3206 = vmul.f32 %v3190, 0.5
  %v3207 = vmul.f32 %v3191, 0.5
  %v3208 = vmul.f32 %v3192, 0.5
  %v3209 = vtanh.pop %v3193
  %v3210 = vtanh.pop %v3194
  %v3211 = vtanh.pop %v3195
  %v3212 = vtanh.pop %v3196
  %v3213 = vtanh.pop %v3197
  %v3214 = vtanh.pop %v3198
  %v3215 = vtanh.pop %v3199
  %v3216 = vtanh.pop %v3200
  %v3217 = vtanh.pop %v3201
  %v3218 = vtanh.pop %v3202
  %v3219 = vtanh.pop %v3203
  %v3220 = vtanh.pop %v3204
  %v3221 = vtanh.pop %v3205
  %v3222 = vtanh.pop %v3206
  %v3223 = vtanh.pop %v3207
  %v3224 = vtanh.pop %v3208
  %v3225 = vmul.f32 %v3209, 0.5
  %v3226 = vmul.f32 %v3210, 0.5
  %v3227 = vmul.f32 %v3211, 0.5
  %v3228 = vmul.f32 %v3212, 0.5
  %v3229 = vmul.f32 %v3213, 0.5
  %v3230 = vmul.f32 %v3214, 0.5
  %v3231 = vmul.f32 %v3215, 0.5
  %v3232 = vmul.f32 %v3216, 0.5
  %v3233 = vmul.f32 %v3217, 0.5
  %v3234 = vmul.f32 %v3218, 0.5
  %v3235 = vmul.f32 %v3219, 0.5
  %v3236 = vmul.f32 %v3220, 0.5
  %v3237 = vmul.f32 %v3221, 0.5
  %v3238 = vmul.f32 %v3222, 0.5
  %v3239 = vmul.f32 %v3223, 0.5
  %v3240 = vmul.f32 %v3224, 0.5
  %v3241 = vadd.f32 %v3225, 0.5
  %v3242 = vadd.f32 %v3226, 0.5
  %v3243 = vadd.f32 %v3227, 0.5
  %v3244 = vadd.f32 %v3228, 0.5
  %v3245 = vadd.f32 %v3229, 0.5
  %v3246 = vadd.f32 %v3230, 0.5
  %v3247 = vadd.f32 %v3231, 0.5
  %v3248 = vadd.f32 %v3232, 0.5
  %v3249 = vadd.f32 %v3233, 0.5
  %v3250 = vadd.f32 %v3234, 0.5
  %v3251 = vadd.f32 %v3235, 0.5
  %v3252 = vadd.f32 %v3236, 0.5
  %v3253 = vadd.f32 %v3237, 0.5
  %v3254 = vadd.f32 %v3238, 0.5
  %v3255 = vadd.f32 %v3239, 0.5
  %v3256 = vadd.f32 %v3240, 0.5
  %v3257 = vtanh.pop %v3177
  %v3258 = vtanh.pop %v3178
  %v3259 = vtanh.pop %v3179
  %v3260 = vtanh.pop %v3180
  %v3261 = vtanh.pop %v3181
  %v3262 = vtanh.pop %v3182
  %v3263 = vtanh.pop %v3183
  %v3264 = vtanh.pop %v3184
  %v3265 = vtanh.pop %v3185
  %v3266 = vtanh.pop %v3186
  %v3267 = vtanh.pop %v3187
  %v3268 = vtanh.pop %v3188
  %v3269 = vtanh.pop %v3189
  %v3270 = vtanh.pop %v3190
  %v3271 = vtanh.pop %v3191
  %v3272 = vtanh.pop %v3192
  %v3273 = vmul.f32 %v3241, %v2358
  %v3274 = vmul.f32 %v3242, %v2359
  %v3275 = vmul.f32 %v3243, %v2360
  %v3276 = vmul.f32 %v3244, %v2361
  %v3277 = vmul.f32 %v3245, %v2362
  %v3278 = vmul.f32 %v3246, %v2363
  %v3279 = vmul.f32 %v3247, %v2364
  %v3280 = vmul.f32 %v3248, %v2365
  %v3281 = vmul.f32 %v3249, %v2366
  %v3282 = vmul.f32 %v3250, %v2367
  %v3283 = vmul.f32 %v3251, %v2368
  %v3284 = vmul.f32 %v3252, %v2369
  %v3285 = vmul.f32 %v3253, %v2370
  %v3286 = vmul.f32 %v3254, %v2371
  %v3287 = vmul.f32 %v3255, %v2372
  %v3288 = vmul.f32 %v3256, %v2373
  %3305 = vrot.lane.b32.xlu0 %v3257, 64
  %v3306 = vpop.permute.xlu0 %3305
  %3307 = vrot.lane.b32.xlu0 %v3258, 64
  %v3308 = vpop.permute.xlu0 %3307
  %3309 = vrot.lane.b32.xlu0 %v3259, 64
  %v3310 = vpop.permute.xlu0 %3309
  %3311 = vrot.lane.b32.xlu0 %v3260, 64
  %v3312 = vpop.permute.xlu0 %3311
  %3313 = vrot.lane.b32.xlu0 %v3261, 64
  %v3314 = vpop.permute.xlu0 %3313
  %3315 = vrot.lane.b32.xlu0 %v3262, 64
  %v3316 = vpop.permute.xlu0 %3315
  %3317 = vrot.lane.b32.xlu0 %v3263, 64
  %v3318 = vpop.permute.xlu0 %3317
  %3319 = vrot.lane.b32.xlu0 %v3264, 64
  %v3320 = vpop.permute.xlu0 %3319
  %3321 = vrot.lane.b32.xlu0 %v3265, 64
  %v3322 = vpop.permute.xlu0 %3321
  %3323 = vrot.lane.b32.xlu0 %v3266, 64
  %v3324 = vpop.permute.xlu0 %3323
  %3325 = vrot.lane.b32.xlu0 %v3267, 64
  %v3326 = vpop.permute.xlu0 %3325
  %3327 = vrot.lane.b32.xlu0 %v3268, 64
  %v3328 = vpop.permute.xlu0 %3327
  %3329 = vrot.lane.b32.xlu0 %v3269, 64
  %v3330 = vpop.permute.xlu0 %3329
  %3331 = vrot.lane.b32.xlu0 %v3270, 64
  %v3332 = vpop.permute.xlu0 %3331
  %3333 = vrot.lane.b32.xlu0 %v3271, 64
  %v3334 = vpop.permute.xlu0 %3333
  %3335 = vrot.lane.b32.xlu0 %v3272, 64
  %v3336 = vpop.permute.xlu0 %3335
  %v3353 = vmul.f32 %v3241, %v3306
  %v3354 = vmul.f32 %v3242, %v3308
  %v3355 = vmul.f32 %v3243, %v3310
  %v3356 = vmul.f32 %v3244, %v3312
  %v3357 = vmul.f32 %v3245, %v3314
  %v3358 = vmul.f32 %v3246, %v3316
  %v3359 = vmul.f32 %v3247, %v3318
  %v3360 = vmul.f32 %v3248, %v3320
  %v3361 = vmul.f32 %v3249, %v3322
  %v3362 = vmul.f32 %v3250, %v3324
  %v3363 = vmul.f32 %v3251, %v3326
  %v3364 = vmul.f32 %v3252, %v3328
  %v3365 = vmul.f32 %v3253, %v3330
  %v3366 = vmul.f32 %v3254, %v3332
  %v3367 = vmul.f32 %v3255, %v3334
  %v3368 = vmul.f32 %v3256, %v3336
  %3385 = vrot.lane.b32.xlu0 %v3353, 32
  %v3386 = vpop.permute.xlu0 %3385
  %3387 = vrot.lane.b32.xlu0 %v3354, 32
  %v3388 = vpop.permute.xlu0 %3387
  %3389 = vrot.lane.b32.xlu0 %v3355, 32
  %v3390 = vpop.permute.xlu0 %3389
  %3391 = vrot.lane.b32.xlu0 %v3356, 32
  %v3392 = vpop.permute.xlu0 %3391
  %3393 = vrot.lane.b32.xlu0 %v3357, 32
  %v3394 = vpop.permute.xlu0 %3393
  %3395 = vrot.lane.b32.xlu0 %v3358, 32
  %v3396 = vpop.permute.xlu0 %3395
  %3397 = vrot.lane.b32.xlu0 %v3359, 32
  %v3398 = vpop.permute.xlu0 %3397
  %3399 = vrot.lane.b32.xlu0 %v3360, 32
  %v3400 = vpop.permute.xlu0 %3399
  %3401 = vrot.lane.b32.xlu0 %v3361, 32
  %v3402 = vpop.permute.xlu0 %3401
  %3403 = vrot.lane.b32.xlu0 %v3362, 32
  %v3404 = vpop.permute.xlu0 %3403
  %3405 = vrot.lane.b32.xlu0 %v3363, 32
  %v3406 = vpop.permute.xlu0 %3405
  %3407 = vrot.lane.b32.xlu0 %v3364, 32
  %v3408 = vpop.permute.xlu0 %3407
  %3409 = vrot.lane.b32.xlu0 %v3365, 32
  %v3410 = vpop.permute.xlu0 %3409
  %3411 = vrot.lane.b32.xlu0 %v3366, 32
  %v3412 = vpop.permute.xlu0 %3411
  %3413 = vrot.lane.b32.xlu0 %v3367, 32
  %v3414 = vpop.permute.xlu0 %3413
  %3415 = vrot.lane.b32.xlu0 %v3368, 32
  %v3416 = vpop.permute.xlu0 %3415
  %v3433 = vadd.f32 %v3273, %v3386
  %v3434 = vadd.f32 %v3274, %v3388
  %v3435 = vadd.f32 %v3275, %v3390
  %v3436 = vadd.f32 %v3276, %v3392
  %v3437 = vadd.f32 %v3277, %v3394
  %v3438 = vadd.f32 %v3278, %v3396
  %v3439 = vadd.f32 %v3279, %v3398
  %v3440 = vadd.f32 %v3280, %v3400
  %v3441 = vadd.f32 %v3281, %v3402
  %v3442 = vadd.f32 %v3282, %v3404
  %v3443 = vadd.f32 %v3283, %v3406
  %v3444 = vadd.f32 %v3284, %v3408
  %v3445 = vadd.f32 %v3285, %v3410
  %v3446 = vadd.f32 %v3286, %v3412
  %v3447 = vadd.f32 %v3287, %v3414
  %v3448 = vadd.f32 %v3288, %v3416
  %v3449 = vtanh.pop %v3433
  %v3450 = vtanh.pop %v3434
  %v3451 = vtanh.pop %v3435
  %v3452 = vtanh.pop %v3436
  %v3453 = vtanh.pop %v3437
  %v3454 = vtanh.pop %v3438
  %v3455 = vtanh.pop %v3439
  %v3456 = vtanh.pop %v3440
  %v3457 = vtanh.pop %v3441
  %v3458 = vtanh.pop %v3442
  %v3459 = vtanh.pop %v3443
  %v3460 = vtanh.pop %v3444
  %v3461 = vtanh.pop %v3445
  %v3462 = vtanh.pop %v3446
  %v3463 = vtanh.pop %v3447
  %v3464 = vtanh.pop %v3448
  %3481 = vrot.lane.b32.xlu0 %v3449, 64
  %v3482 = vpop.permute.xlu0 %3481
  %3483 = vrot.lane.b32.xlu0 %v3450, 64
  %v3484 = vpop.permute.xlu0 %3483
  %3485 = vrot.lane.b32.xlu0 %v3451, 64
  %v3486 = vpop.permute.xlu0 %3485
  %3487 = vrot.lane.b32.xlu0 %v3452, 64
  %v3488 = vpop.permute.xlu0 %3487
  %3489 = vrot.lane.b32.xlu0 %v3453, 64
  %v3490 = vpop.permute.xlu0 %3489
  %3491 = vrot.lane.b32.xlu0 %v3454, 64
  %v3492 = vpop.permute.xlu0 %3491
  %3493 = vrot.lane.b32.xlu0 %v3455, 64
  %v3494 = vpop.permute.xlu0 %3493
  %3495 = vrot.lane.b32.xlu0 %v3456, 64
  %v3496 = vpop.permute.xlu0 %3495
  %3497 = vrot.lane.b32.xlu0 %v3457, 64
  %v3498 = vpop.permute.xlu0 %3497
  %3499 = vrot.lane.b32.xlu0 %v3458, 64
  %v3500 = vpop.permute.xlu0 %3499
  %3501 = vrot.lane.b32.xlu0 %v3459, 64
  %v3502 = vpop.permute.xlu0 %3501
  %3503 = vrot.lane.b32.xlu0 %v3460, 64
  %v3504 = vpop.permute.xlu0 %3503
  %3505 = vrot.lane.b32.xlu0 %v3461, 64
  %v3506 = vpop.permute.xlu0 %3505
  %3507 = vrot.lane.b32.xlu0 %v3462, 64
  %v3508 = vpop.permute.xlu0 %3507
  %3509 = vrot.lane.b32.xlu0 %v3463, 64
  %v3510 = vpop.permute.xlu0 %3509
  %3511 = vrot.lane.b32.xlu0 %v3464, 64
  %v3512 = vpop.permute.xlu0 %3511
  %v3529 = vmul.f32 %v3241, %v3482
  %v3530 = vmul.f32 %v3242, %v3484
  %v3531 = vmul.f32 %v3243, %v3486
  %v3532 = vmul.f32 %v3244, %v3488
  %v3533 = vmul.f32 %v3245, %v3490
  %v3534 = vmul.f32 %v3246, %v3492
  %v3535 = vmul.f32 %v3247, %v3494
  %v3536 = vmul.f32 %v3248, %v3496
  %v3537 = vmul.f32 %v3249, %v3498
  %v3538 = vmul.f32 %v3250, %v3500
  %v3539 = vmul.f32 %v3251, %v3502
  %v3540 = vmul.f32 %v3252, %v3504
  %v3541 = vmul.f32 %v3253, %v3506
  %v3542 = vmul.f32 %v3254, %v3508
  %v3543 = vmul.f32 %v3255, %v3510
  %v3544 = vmul.f32 %v3256, %v3512
  %s3545 = scalar_lea.vmem [#allocation2], 256
  %v3546 = vld [vmem:[%s3545] sm:$0xff]
  %v3547 = vld [vmem:[%s3545 + $0x8] sm:$0xff]
  %v3548 = vld [vmem:[%s3545 + $0x10] sm:$0xff]
  %v3549 = vld [vmem:[%s3545 + $0x18] sm:$0xff]
  %v3550 = vld [vmem:[%s3545 + $0x20] sm:$0xff]
  %v3551 = vld [vmem:[%s3545 + $0x28] sm:$0xff]
  %v3552 = vld [vmem:[%s3545 + $0x30] sm:$0xff]
  %v3553 = vld [vmem:[%s3545 + $0x38] sm:$0xff]
  %v3554 = vld [vmem:[%s3545 + $0x40] sm:$0xff]
  %v3555 = vld [vmem:[%s3545 + $0x48] sm:$0xff]
  %v3556 = vld [vmem:[%s3545 + $0x50] sm:$0xff]
  %v3557 = vld [vmem:[%s3545 + $0x58] sm:$0xff]
  %v3558 = vld [vmem:[%s3545 + $0x60] sm:$0xff]
  %v3559 = vld [vmem:[%s3545 + $0x68] sm:$0xff]
  %v3560 = vld [vmem:[%s3545 + $0x70] sm:$0xff]
  %v3561 = vld [vmem:[%s3545 + $0x78] sm:$0xff]
  %v3562 = vadd.f32 %v3065, %v3546
  %v3563 = vadd.f32 %v3068, %v3547
  %v3564 = vadd.f32 %v3071, %v3548
  %v3565 = vadd.f32 %v3074, %v3549
  %v3566 = vadd.f32 %v3077, %v3550
  %v3567 = vadd.f32 %v3080, %v3551
  %v3568 = vadd.f32 %v3083, %v3552
  %v3569 = vadd.f32 %v3086, %v3553
  %v3570 = vadd.f32 %v3089, %v3554
  %v3571 = vadd.f32 %v3092, %v3555
  %v3572 = vadd.f32 %v3095, %v3556
  %v3573 = vadd.f32 %v3098, %v3557
  %v3574 = vadd.f32 %v3101, %v3558
  %v3575 = vadd.f32 %v3104, %v3559
  %v3576 = vadd.f32 %v3107, %v3560
  %v3577 = vadd.f32 %v3110, %v3561
  %v3578 = vmul.f32 %v3562, 0.5
  %v3579 = vmul.f32 %v3563, 0.5
  %v3580 = vmul.f32 %v3564, 0.5
  %v3581 = vmul.f32 %v3565, 0.5
  %v3582 = vmul.f32 %v3566, 0.5
  %v3583 = vmul.f32 %v3567, 0.5
  %v3584 = vmul.f32 %v3568, 0.5
  %v3585 = vmul.f32 %v3569, 0.5
  %v3586 = vmul.f32 %v3570, 0.5
  %v3587 = vmul.f32 %v3571, 0.5
  %v3588 = vmul.f32 %v3572, 0.5
  %v3589 = vmul.f32 %v3573, 0.5
  %v3590 = vmul.f32 %v3574, 0.5
  %v3591 = vmul.f32 %v3575, 0.5
  %v3592 = vmul.f32 %v3576, 0.5
  %v3593 = vmul.f32 %v3577, 0.5
  %v3594 = vtanh.pop %v3578
  %v3595 = vtanh.pop %v3579
  %v3596 = vtanh.pop %v3580
  %v3597 = vtanh.pop %v3581
  %v3598 = vtanh.pop %v3582
  %v3599 = vtanh.pop %v3583
  %v3600 = vtanh.pop %v3584
  %v3601 = vtanh.pop %v3585
  %v3602 = vtanh.pop %v3586
  %v3603 = vtanh.pop %v3587
  %v3604 = vtanh.pop %v3588
  %v3605 = vtanh.pop %v3589
  %v3606 = vtanh.pop %v3590
  %v3607 = vtanh.pop %v3591
  %v3608 = vtanh.pop %v3592
  %v3609 = vtanh.pop %v3593
  %v3610 = vmul.f32 %v3594, 0.5
  %v3611 = vmul.f32 %v3595, 0.5
  %v3612 = vmul.f32 %v3596, 0.5
  %v3613 = vmul.f32 %v3597, 0.5
  %v3614 = vmul.f32 %v3598, 0.5
  %v3615 = vmul.f32 %v3599, 0.5
  %v3616 = vmul.f32 %v3600, 0.5
  %v3617 = vmul.f32 %v3601, 0.5
  %v3618 = vmul.f32 %v3602, 0.5
  %v3619 = vmul.f32 %v3603, 0.5
  %v3620 = vmul.f32 %v3604, 0.5
  %v3621 = vmul.f32 %v3605, 0.5
  %v3622 = vmul.f32 %v3606, 0.5
  %v3623 = vmul.f32 %v3607, 0.5
  %v3624 = vmul.f32 %v3608, 0.5
  %v3625 = vmul.f32 %v3609, 0.5
  %v3626 = vadd.f32 %v3610, 0.5
  %v3627 = vadd.f32 %v3611, 0.5
  %v3628 = vadd.f32 %v3612, 0.5
  %v3629 = vadd.f32 %v3613, 0.5
  %v3630 = vadd.f32 %v3614, 0.5
  %v3631 = vadd.f32 %v3615, 0.5
  %v3632 = vadd.f32 %v3616, 0.5
  %v3633 = vadd.f32 %v3617, 0.5
  %v3634 = vadd.f32 %v3618, 0.5
  %v3635 = vadd.f32 %v3619, 0.5
  %v3636 = vadd.f32 %v3620, 0.5
  %v3637 = vadd.f32 %v3621, 0.5
  %v3638 = vadd.f32 %v3622, 0.5
  %v3639 = vadd.f32 %v3623, 0.5
  %v3640 = vadd.f32 %v3624, 0.5
  %v3641 = vadd.f32 %v3625, 0.5
  %v3642 = vtanh.pop %v3562
  %v3643 = vtanh.pop %v3563
  %v3644 = vtanh.pop %v3564
  %v3645 = vtanh.pop %v3565
  %v3646 = vtanh.pop %v3566
  %v3647 = vtanh.pop %v3567
  %v3648 = vtanh.pop %v3568
  %v3649 = vtanh.pop %v3569
  %v3650 = vtanh.pop %v3570
  %v3651 = vtanh.pop %v3571
  %v3652 = vtanh.pop %v3572
  %v3653 = vtanh.pop %v3573
  %v3654 = vtanh.pop %v3574
  %v3655 = vtanh.pop %v3575
  %v3656 = vtanh.pop %v3576
  %v3657 = vtanh.pop %v3577
  %v3658 = vmul.f32 %v3626, %v2743
  %v3659 = vmul.f32 %v3627, %v2744
  %v3660 = vmul.f32 %v3628, %v2745
  %v3661 = vmul.f32 %v3629, %v2746
  %v3662 = vmul.f32 %v3630, %v2747
  %v3663 = vmul.f32 %v3631, %v2748
  %v3664 = vmul.f32 %v3632, %v2749
  %v3665 = vmul.f32 %v3633, %v2750
  %v3666 = vmul.f32 %v3634, %v2751
  %v3667 = vmul.f32 %v3635, %v2752
  %v3668 = vmul.f32 %v3636, %v2753
  %v3669 = vmul.f32 %v3637, %v2754
  %v3670 = vmul.f32 %v3638, %v2755
  %v3671 = vmul.f32 %v3639, %v2756
  %v3672 = vmul.f32 %v3640, %v2757
  %v3673 = vmul.f32 %v3641, %v2758
  %3690 = vrot.lane.b32.xlu0 %v3642, 64
  %v3691 = vpop.permute.xlu0 %3690
  %3692 = vrot.lane.b32.xlu0 %v3643, 64
  %v3693 = vpop.permute.xlu0 %3692
  %3694 = vrot.lane.b32.xlu0 %v3644, 64
  %v3695 = vpop.permute.xlu0 %3694
  %3696 = vrot.lane.b32.xlu0 %v3645, 64
  %v3697 = vpop.permute.xlu0 %3696
  %3698 = vrot.lane.b32.xlu0 %v3646, 64
  %v3699 = vpop.permute.xlu0 %3698
  %3700 = vrot.lane.b32.xlu0 %v3647, 64
  %v3701 = vpop.permute.xlu0 %3700
  %3702 = vrot.lane.b32.xlu0 %v3648, 64
  %v3703 = vpop.permute.xlu0 %3702
  %3704 = vrot.lane.b32.xlu0 %v3649, 64
  %v3705 = vpop.permute.xlu0 %3704
  %3706 = vrot.lane.b32.xlu0 %v3650, 64
  %v3707 = vpop.permute.xlu0 %3706
  %3708 = vrot.lane.b32.xlu0 %v3651, 64
  %v3709 = vpop.permute.xlu0 %3708
  %3710 = vrot.lane.b32.xlu0 %v3652, 64
  %v3711 = vpop.permute.xlu0 %3710
  %3712 = vrot.lane.b32.xlu0 %v3653, 64
  %v3713 = vpop.permute.xlu0 %3712
  %3714 = vrot.lane.b32.xlu0 %v3654, 64
  %v3715 = vpop.permute.xlu0 %3714
  %3716 = vrot.lane.b32.xlu0 %v3655, 64
  %v3717 = vpop.permute.xlu0 %3716
  %3718 = vrot.lane.b32.xlu0 %v3656, 64
  %v3719 = vpop.permute.xlu0 %3718
  %3720 = vrot.lane.b32.xlu0 %v3657, 64
  %v3721 = vpop.permute.xlu0 %3720
  %v3738 = vmul.f32 %v3626, %v3691
  %v3739 = vmul.f32 %v3627, %v3693
  %v3740 = vmul.f32 %v3628, %v3695
  %v3741 = vmul.f32 %v3629, %v3697
  %v3742 = vmul.f32 %v3630, %v3699
  %v3743 = vmul.f32 %v3631, %v3701
  %v3744 = vmul.f32 %v3632, %v3703
  %v3745 = vmul.f32 %v3633, %v3705
  %v3746 = vmul.f32 %v3634, %v3707
  %v3747 = vmul.f32 %v3635, %v3709
  %v3748 = vmul.f32 %v3636, %v3711
  %v3749 = vmul.f32 %v3637, %v3713
  %v3750 = vmul.f32 %v3638, %v3715
  %v3751 = vmul.f32 %v3639, %v3717
  %v3752 = vmul.f32 %v3640, %v3719
  %v3753 = vmul.f32 %v3641, %v3721
  %3770 = vrot.lane.b32.xlu0 %v3738, 32
  %v3771 = vpop.permute.xlu0 %3770
  %3772 = vrot.lane.b32.xlu0 %v3739, 32
  %v3773 = vpop.permute.xlu0 %3772
  %3774 = vrot.lane.b32.xlu0 %v3740, 32
  %v3775 = vpop.permute.xlu0 %3774
  %3776 = vrot.lane.b32.xlu0 %v3741, 32
  %v3777 = vpop.permute.xlu0 %3776
  %3778 = vrot.lane.b32.xlu0 %v3742, 32
  %v3779 = vpop.permute.xlu0 %3778
  %3780 = vrot.lane.b32.xlu0 %v3743, 32
  %v3781 = vpop.permute.xlu0 %3780
  %3782 = vrot.lane.b32.xlu0 %v3744, 32
  %v3783 = vpop.permute.xlu0 %3782
  %3784 = vrot.lane.b32.xlu0 %v3745, 32
  %v3785 = vpop.permute.xlu0 %3784
  %3786 = vrot.lane.b32.xlu0 %v3746, 32
  %v3787 = vpop.permute.xlu0 %3786
  %3788 = vrot.lane.b32.xlu0 %v3747, 32
  %v3789 = vpop.permute.xlu0 %3788
  %3790 = vrot.lane.b32.xlu0 %v3748, 32
  %v3791 = vpop.permute.xlu0 %3790
  %3792 = vrot.lane.b32.xlu0 %v3749, 32
  %v3793 = vpop.permute.xlu0 %3792
  %3794 = vrot.lane.b32.xlu0 %v3750, 32
  %v3795 = vpop.permute.xlu0 %3794
  %3796 = vrot.lane.b32.xlu0 %v3751, 32
  %v3797 = vpop.permute.xlu0 %3796
  %3798 = vrot.lane.b32.xlu0 %v3752, 32
  %v3799 = vpop.permute.xlu0 %3798
  %3800 = vrot.lane.b32.xlu0 %v3753, 32
  %v3801 = vpop.permute.xlu0 %3800
  %v3818 = vadd.f32 %v3658, %v3771
  %v3819 = vadd.f32 %v3659, %v3773
  %v3820 = vadd.f32 %v3660, %v3775
  %v3821 = vadd.f32 %v3661, %v3777
  %v3822 = vadd.f32 %v3662, %v3779
  %v3823 = vadd.f32 %v3663, %v3781
  %v3824 = vadd.f32 %v3664, %v3783
  %v3825 = vadd.f32 %v3665, %v3785
  %v3826 = vadd.f32 %v3666, %v3787
  %v3827 = vadd.f32 %v3667, %v3789
  %v3828 = vadd.f32 %v3668, %v3791
  %v3829 = vadd.f32 %v3669, %v3793
  %v3830 = vadd.f32 %v3670, %v3795
  %v3831 = vadd.f32 %v3671, %v3797
  %v3832 = vadd.f32 %v3672, %v3799
  %v3833 = vadd.f32 %v3673, %v3801
  %v3834 = vtanh.pop %v3818
  %v3835 = vtanh.pop %v3819
  %v3836 = vtanh.pop %v3820
  %v3837 = vtanh.pop %v3821
  %v3838 = vtanh.pop %v3822
  %v3839 = vtanh.pop %v3823
  %v3840 = vtanh.pop %v3824
  %v3841 = vtanh.pop %v3825
  %v3842 = vtanh.pop %v3826
  %v3843 = vtanh.pop %v3827
  %v3844 = vtanh.pop %v3828
  %v3845 = vtanh.pop %v3829
  %v3846 = vtanh.pop %v3830
  %v3847 = vtanh.pop %v3831
  %v3848 = vtanh.pop %v3832
  %v3849 = vtanh.pop %v3833
  %3866 = vrot.lane.b32.xlu0 %v3834, 64
  %v3867 = vpop.permute.xlu0 %3866
  %3868 = vrot.lane.b32.xlu0 %v3835, 64
  %v3869 = vpop.permute.xlu0 %3868
  %3870 = vrot.lane.b32.xlu0 %v3836, 64
  %v3871 = vpop.permute.xlu0 %3870
  %3872 = vrot.lane.b32.xlu0 %v3837, 64
  %v3873 = vpop.permute.xlu0 %3872
  %3874 = vrot.lane.b32.xlu0 %v3838, 64
  %v3875 = vpop.permute.xlu0 %3874
  %3876 = vrot.lane.b32.xlu0 %v3839, 64
  %v3877 = vpop.permute.xlu0 %3876
  %3878 = vrot.lane.b32.xlu0 %v3840, 64
  %v3879 = vpop.permute.xlu0 %3878
  %3880 = vrot.lane.b32.xlu0 %v3841, 64
  %v3881 = vpop.permute.xlu0 %3880
  %3882 = vrot.lane.b32.xlu0 %v3842, 64
  %v3883 = vpop.permute.xlu0 %3882
  %3884 = vrot.lane.b32.xlu0 %v3843, 64
  %v3885 = vpop.permute.xlu0 %3884
  %3886 = vrot.lane.b32.xlu0 %v3844, 64
  %v3887 = vpop.permute.xlu0 %3886
  %3888 = vrot.lane.b32.xlu0 %v3845, 64
  %v3889 = vpop.permute.xlu0 %3888
  %3890 = vrot.lane.b32.xlu0 %v3846, 64
  %v3891 = vpop.permute.xlu0 %3890
  %3892 = vrot.lane.b32.xlu0 %v3847, 64
  %v3893 = vpop.permute.xlu0 %3892
  %3894 = vrot.lane.b32.xlu0 %v3848, 64
  %v3895 = vpop.permute.xlu0 %3894
  %3896 = vrot.lane.b32.xlu0 %v3849, 64
  %v3897 = vpop.permute.xlu0 %3896
  %v3914 = vmul.f32 %v3626, %v3867
  %v3915 = vmul.f32 %v3627, %v3869
  %v3916 = vmul.f32 %v3628, %v3871
  %v3917 = vmul.f32 %v3629, %v3873
  %v3918 = vmul.f32 %v3630, %v3875
  %v3919 = vmul.f32 %v3631, %v3877
  %v3920 = vmul.f32 %v3632, %v3879
  %v3921 = vmul.f32 %v3633, %v3881
  %v3922 = vmul.f32 %v3634, %v3883
  %v3923 = vmul.f32 %v3635, %v3885
  %v3924 = vmul.f32 %v3636, %v3887
  %v3925 = vmul.f32 %v3637, %v3889
  %v3926 = vmul.f32 %v3638, %v3891
  %v3927 = vmul.f32 %v3639, %v3893
  %v3928 = vmul.f32 %v3640, %v3895
  %v3929 = vmul.f32 %v3641, %v3897
  %3946 = vrot.lane.b32.xlu0 %v3914, 32
  %v3947 = vpop.permute.xlu0 %3946
  %3948 = vrot.lane.b32.xlu0 %v3915, 32
  %v3949 = vpop.permute.xlu0 %3948
  %3950 = vrot.lane.b32.xlu0 %v3916, 32
  %v3951 = vpop.permute.xlu0 %3950
  %3952 = vrot.lane.b32.xlu0 %v3917, 32
  %v3953 = vpop.permute.xlu0 %3952
  %3954 = vrot.lane.b32.xlu0 %v3918, 32
  %v3955 = vpop.permute.xlu0 %3954
  %3956 = vrot.lane.b32.xlu0 %v3919, 32
  %v3957 = vpop.permute.xlu0 %3956
  %3958 = vrot.lane.b32.xlu0 %v3920, 32
  %v3959 = vpop.permute.xlu0 %3958
  %3960 = vrot.lane.b32.xlu0 %v3921, 32
  %v3961 = vpop.permute.xlu0 %3960
  %3962 = vrot.lane.b32.xlu0 %v3922, 32
  %v3963 = vpop.permute.xlu0 %3962
  %3964 = vrot.lane.b32.xlu0 %v3923, 32
  %v3965 = vpop.permute.xlu0 %3964
  %3966 = vrot.lane.b32.xlu0 %v3924, 32
  %v3967 = vpop.permute.xlu0 %3966
  %3968 = vrot.lane.b32.xlu0 %v3925, 32
  %v3969 = vpop.permute.xlu0 %3968
  %3970 = vrot.lane.b32.xlu0 %v3926, 32
  %v3971 = vpop.permute.xlu0 %3970
  %3972 = vrot.lane.b32.xlu0 %v3927, 32
  %v3973 = vpop.permute.xlu0 %3972
  %3974 = vrot.lane.b32.xlu0 %v3928, 32
  %v3975 = vpop.permute.xlu0 %3974
  %3976 = vrot.lane.b32.xlu0 %v3929, 32
  %v3977 = vpop.permute.xlu0 %3976
  %4010 = vrot.lane.b32.xlu0 %v3529, 64
  %v4011 = vpop.permute.xlu0 %4010
  %4012 = vrot.lane.b32.xlu0 %v3530, 64
  %v4013 = vpop.permute.xlu0 %4012
  %4014 = vrot.lane.b32.xlu0 %v3531, 64
  %v4015 = vpop.permute.xlu0 %4014
  %4016 = vrot.lane.b32.xlu0 %v3532, 64
  %v4017 = vpop.permute.xlu0 %4016
  %4018 = vrot.lane.b32.xlu0 %v3533, 64
  %v4019 = vpop.permute.xlu0 %4018
  %4020 = vrot.lane.b32.xlu0 %v3534, 64
  %v4021 = vpop.permute.xlu0 %4020
  %4022 = vrot.lane.b32.xlu0 %v3535, 64
  %v4023 = vpop.permute.xlu0 %4022
  %4024 = vrot.lane.b32.xlu0 %v3536, 64
  %v4025 = vpop.permute.xlu0 %4024
  %4026 = vrot.lane.b32.xlu0 %v3537, 64
  %v4027 = vpop.permute.xlu0 %4026
  %4028 = vrot.lane.b32.xlu0 %v3538, 64
  %v4029 = vpop.permute.xlu0 %4028
  %4030 = vrot.lane.b32.xlu0 %v3539, 64
  %v4031 = vpop.permute.xlu0 %4030
  %4032 = vrot.lane.b32.xlu0 %v3540, 64
  %v4033 = vpop.permute.xlu0 %4032
  %4034 = vrot.lane.b32.xlu0 %v3541, 64
  %v4035 = vpop.permute.xlu0 %4034
  %4036 = vrot.lane.b32.xlu0 %v3542, 64
  %v4037 = vpop.permute.xlu0 %4036
  %4038 = vrot.lane.b32.xlu0 %v3543, 64
  %v4039 = vpop.permute.xlu0 %4038
  %4040 = vrot.lane.b32.xlu0 %v3544, 64
  %v4041 = vpop.permute.xlu0 %4040
  %v4058 = vsel %vm1904, %v3947, %v4011
  %v4059 = vsel %vm1904, %v3949, %v4013
  %v4060 = vsel %vm1904, %v3951, %v4015
  %v4061 = vsel %vm1904, %v3953, %v4017
  %v4062 = vsel %vm1904, %v3955, %v4019
  %v4063 = vsel %vm1904, %v3957, %v4021
  %v4064 = vsel %vm1904, %v3959, %v4023
  %v4065 = vsel %vm1904, %v3961, %v4025
  %v4066 = vsel %vm1904, %v3963, %v4027
  %v4067 = vsel %vm1904, %v3965, %v4029
  %v4068 = vsel %vm1904, %v3967, %v4031
  %v4069 = vsel %vm1904, %v3969, %v4033
  %v4070 = vsel %vm1904, %v3971, %v4035
  %v4071 = vsel %vm1904, %v3973, %v4037
  %v4072 = vsel %vm1904, %v3975, %v4039
  %v4073 = vsel %vm1904, %v3977, %v4041
  %v4075 = vsel %vm246, %v4058, 0
  %v4078 = vsel %vm246, %v4059, 0
  %v4081 = vsel %vm246, %v4060, 0
  %v4084 = vsel %vm246, %v4061, 0
  %v4087 = vsel %vm246, %v4062, 0
  %v4090 = vsel %vm246, %v4063, 0
  %v4093 = vsel %vm246, %v4064, 0
  %v4096 = vsel %vm246, %v4065, 0
  %v4099 = vsel %vm246, %v4066, 0
  %v4102 = vsel %vm246, %v4067, 0
  %v4105 = vsel %vm246, %v4068, 0
  %v4108 = vsel %vm246, %v4069, 0
  %v4111 = vsel %vm246, %v4070, 0
  %v4114 = vsel %vm246, %v4071, 0
  %v4117 = vsel %vm246, %v4072, 0
  %v4120 = vsel %vm246, %v4073, 0
  %4122 = vmatpush.msra.mxu0 0.0
  %4123 = vmatpush.msra.mxu0 0.0
  %4124 = vmatpush.msra.mxu0 0.0
  %4125 = vmatpush.msra.mxu0 0.0
  %4126 = vmatpush.msra.mxu0 0.0
  %4127 = vmatpush.msra.mxu0 0.0
  %4128 = vmatpush.msra.mxu0 0.0
  %4129 = vmatpush.msra.mxu0 0.0
  %4130 = vmatpush.msra.mxu0 %v1469
  %4131 = vmatpush.msra.mxu0 %v1467
  %4132 = vmatpush.msra.mxu0 %v1465
  %4133 = vmatpush.msra.mxu0 %v1463
  %4134 = vmatpush.msra.mxu0 %v1461
  %4135 = vmatpush.msra.mxu0 %v1459
  %4136 = vmatpush.msra.mxu0 %v1457
  %4137 = vmatpush.msra.mxu0 %v1455
  %4138 = vmatmul.f32.gmra.mxu0 %v4075
  %v4139 = vpop.f32.mrf.mxu0
  %v4140 = vadd.f32 0.0, %v4139
  %4141 = vmatmul.f32.gmra.mxu0 %v4078
  %v4142 = vpop.f32.mrf.mxu0
  %v4143 = vadd.f32 0.0, %v4142
  %4144 = vmatmul.f32.gmra.mxu0 %v4081
  %v4145 = vpop.f32.mrf.mxu0
  %v4146 = vadd.f32 0.0, %v4145
  %4147 = vmatmul.f32.gmra.mxu0 %v4084
  %v4148 = vpop.f32.mrf.mxu0
  %v4149 = vadd.f32 0.0, %v4148
  %4150 = vmatmul.f32.gmra.mxu0 %v4087
  %v4151 = vpop.f32.mrf.mxu0
  %v4152 = vadd.f32 0.0, %v4151
  %4153 = vmatmul.f32.gmra.mxu0 %v4090
  %v4154 = vpop.f32.mrf.mxu0
  %v4155 = vadd.f32 0.0, %v4154
  %4156 = vmatmul.f32.gmra.mxu0 %v4093
  %v4157 = vpop.f32.mrf.mxu0
  %v4158 = vadd.f32 0.0, %v4157
  %4159 = vmatmul.f32.gmra.mxu0 %v4096
  %v4160 = vpop.f32.mrf.mxu0
  %v4161 = vadd.f32 0.0, %v4160
  %4162 = vmatmul.f32.gmra.mxu0 %v4099
  %v4163 = vpop.f32.mrf.mxu0
  %v4164 = vadd.f32 0.0, %v4163
  %4165 = vmatmul.f32.gmra.mxu0 %v4102
  %v4166 = vpop.f32.mrf.mxu0
  %v4167 = vadd.f32 0.0, %v4166
  %4168 = vmatmul.f32.gmra.mxu0 %v4105
  %v4169 = vpop.f32.mrf.mxu0
  %v4170 = vadd.f32 0.0, %v4169
  %4171 = vmatmul.f32.gmra.mxu0 %v4108
  %v4172 = vpop.f32.mrf.mxu0
  %v4173 = vadd.f32 0.0, %v4172
  %4174 = vmatmul.f32.gmra.mxu0 %v4111
  %v4175 = vpop.f32.mrf.mxu0
  %v4176 = vadd.f32 0.0, %v4175
  %4177 = vmatmul.f32.gmra.mxu0 %v4114
  %v4178 = vpop.f32.mrf.mxu0
  %v4179 = vadd.f32 0.0, %v4178
  %4180 = vmatmul.f32.gmra.mxu0 %v4117
  %v4181 = vpop.f32.mrf.mxu0
  %v4182 = vadd.f32 0.0, %v4181
  %4183 = vmatmul.f32.gmra.mxu0 %v4120
  %v4184 = vpop.f32.mrf.mxu0
  %v4185 = vadd.f32 0.0, %v4184
  %4186 = vdwg.mxu0
  %4187 = vmatpush.msra.mxu0 0.0
  %4188 = vmatpush.msra.mxu0 0.0
  %4189 = vmatpush.msra.mxu0 0.0
  %4190 = vmatpush.msra.mxu0 0.0
  %4191 = vmatpush.msra.mxu0 0.0
  %4192 = vmatpush.msra.mxu0 0.0
  %4193 = vmatpush.msra.mxu0 0.0
  %4194 = vmatpush.msra.mxu0 0.0
  %4195 = vmatpush.msra.mxu0 %v1470
  %4196 = vmatpush.msra.mxu0 %v1468
  %4197 = vmatpush.msra.mxu0 %v1466
  %4198 = vmatpush.msra.mxu0 %v1464
  %4199 = vmatpush.msra.mxu0 %v1462
  %4200 = vmatpush.msra.mxu0 %v1460
  %4201 = vmatpush.msra.mxu0 %v1458
  %4202 = vmatpush.msra.mxu0 %v1456
  %4203 = vmatmul.f32.gmra.mxu0 %v4075
  %v4204 = vpop.f32.mrf.mxu0
  %v4205 = vadd.f32 0.0, %v4204
  %4206 = vmatmul.f32.gmra.mxu0 %v4078
  %v4207 = vpop.f32.mrf.mxu0
  %v4208 = vadd.f32 0.0, %v4207
  %4209 = vmatmul.f32.gmra.mxu0 %v4081
  %v4210 = vpop.f32.mrf.mxu0
  %v4211 = vadd.f32 0.0, %v4210
  %4212 = vmatmul.f32.gmra.mxu0 %v4084
  %v4213 = vpop.f32.mrf.mxu0
  %v4214 = vadd.f32 0.0, %v4213
  %4215 = vmatmul.f32.gmra.mxu0 %v4087
  %v4216 = vpop.f32.mrf.mxu0
  %v4217 = vadd.f32 0.0, %v4216
  %4218 = vmatmul.f32.gmra.mxu0 %v4090
  %v4219 = vpop.f32.mrf.mxu0
  %v4220 = vadd.f32 0.0, %v4219
  %4221 = vmatmul.f32.gmra.mxu0 %v4093
  %v4222 = vpop.f32.mrf.mxu0
  %v4223 = vadd.f32 0.0, %v4222
  %4224 = vmatmul.f32.gmra.mxu0 %v4096
  %v4225 = vpop.f32.mrf.mxu0
  %v4226 = vadd.f32 0.0, %v4225
  %4227 = vmatmul.f32.gmra.mxu0 %v4099
  %v4228 = vpop.f32.mrf.mxu0
  %v4229 = vadd.f32 0.0, %v4228
  %4230 = vmatmul.f32.gmra.mxu0 %v4102
  %v4231 = vpop.f32.mrf.mxu0
  %v4232 = vadd.f32 0.0, %v4231
  %4233 = vmatmul.f32.gmra.mxu0 %v4105
  %v4234 = vpop.f32.mrf.mxu0
  %v4235 = vadd.f32 0.0, %v4234
  %4236 = vmatmul.f32.gmra.mxu0 %v4108
  %v4237 = vpop.f32.mrf.mxu0
  %v4238 = vadd.f32 0.0, %v4237
  %4239 = vmatmul.f32.gmra.mxu0 %v4111
  %v4240 = vpop.f32.mrf.mxu0
  %v4241 = vadd.f32 0.0, %v4240
  %4242 = vmatmul.f32.gmra.mxu0 %v4114
  %v4243 = vpop.f32.mrf.mxu0
  %v4244 = vadd.f32 0.0, %v4243
  %4245 = vmatmul.f32.gmra.mxu0 %v4117
  %v4246 = vpop.f32.mrf.mxu0
  %v4247 = vadd.f32 0.0, %v4246
  %4248 = vmatmul.f32.gmra.mxu0 %v4120
  %v4249 = vpop.f32.mrf.mxu0
  %v4250 = vadd.f32 0.0, %v4249
  %4251 = vdwg.mxu0
  %v4252 = vadd.f32 %v4205, %v2100
  %v4253 = vadd.f32 %v4208, %v2100
  %v4254 = vadd.f32 %v4211, %v2100
  %v4255 = vadd.f32 %v4214, %v2100
  %v4256 = vadd.f32 %v4217, %v2100
  %v4257 = vadd.f32 %v4220, %v2100
  %v4258 = vadd.f32 %v4223, %v2100
  %v4259 = vadd.f32 %v4226, %v2100
  %v4260 = vadd.f32 %v4229, %v2100
  %v4261 = vadd.f32 %v4232, %v2100
  %v4262 = vadd.f32 %v4235, %v2100
  %v4263 = vadd.f32 %v4238, %v2100
  %v4264 = vadd.f32 %v4241, %v2100
  %v4265 = vadd.f32 %v4244, %v2100
  %v4266 = vadd.f32 %v4247, %v2100
  %v4267 = vadd.f32 %v4250, %v2100
  %v4268 = vmul.f32 %v4252, 0.5
  %v4269 = vmul.f32 %v4253, 0.5
  %v4270 = vmul.f32 %v4254, 0.5
  %v4271 = vmul.f32 %v4255, 0.5
  %v4272 = vmul.f32 %v4256, 0.5
  %v4273 = vmul.f32 %v4257, 0.5
  %v4274 = vmul.f32 %v4258, 0.5
  %v4275 = vmul.f32 %v4259, 0.5
  %v4276 = vmul.f32 %v4260, 0.5
  %v4277 = vmul.f32 %v4261, 0.5
  %v4278 = vmul.f32 %v4262, 0.5
  %v4279 = vmul.f32 %v4263, 0.5
  %v4280 = vmul.f32 %v4264, 0.5
  %v4281 = vmul.f32 %v4265, 0.5
  %v4282 = vmul.f32 %v4266, 0.5
  %v4283 = vmul.f32 %v4267, 0.5
  %v4284 = vtanh.pop %v4268
  %v4285 = vtanh.pop %v4269
  %v4286 = vtanh.pop %v4270
  %v4287 = vtanh.pop %v4271
  %v4288 = vtanh.pop %v4272
  %v4289 = vtanh.pop %v4273
  %v4290 = vtanh.pop %v4274
  %v4291 = vtanh.pop %v4275
  %v4292 = vtanh.pop %v4276
  %v4293 = vtanh.pop %v4277
  %v4294 = vtanh.pop %v4278
  %v4295 = vtanh.pop %v4279
  %v4296 = vtanh.pop %v4280
  %v4297 = vtanh.pop %v4281
  %v4298 = vtanh.pop %v4282
  %v4299 = vtanh.pop %v4283
  %v4300 = vmul.f32 %v4284, 0.5
  %v4301 = vmul.f32 %v4285, 0.5
  %v4302 = vmul.f32 %v4286, 0.5
  %v4303 = vmul.f32 %v4287, 0.5
  %v4304 = vmul.f32 %v4288, 0.5
  %v4305 = vmul.f32 %v4289, 0.5
  %v4306 = vmul.f32 %v4290, 0.5
  %v4307 = vmul.f32 %v4291, 0.5
  %v4308 = vmul.f32 %v4292, 0.5
  %v4309 = vmul.f32 %v4293, 0.5
  %v4310 = vmul.f32 %v4294, 0.5
  %v4311 = vmul.f32 %v4295, 0.5
  %v4312 = vmul.f32 %v4296, 0.5
  %v4313 = vmul.f32 %v4297, 0.5
  %v4314 = vmul.f32 %v4298, 0.5
  %v4315 = vmul.f32 %v4299, 0.5
  %v4316 = vadd.f32 %v4300, 0.5
  %v4317 = vadd.f32 %v4301, 0.5
  %v4318 = vadd.f32 %v4302, 0.5
  %v4319 = vadd.f32 %v4303, 0.5
  %v4320 = vadd.f32 %v4304, 0.5
  %v4321 = vadd.f32 %v4305, 0.5
  %v4322 = vadd.f32 %v4306, 0.5
  %v4323 = vadd.f32 %v4307, 0.5
  %v4324 = vadd.f32 %v4308, 0.5
  %v4325 = vadd.f32 %v4309, 0.5
  %v4326 = vadd.f32 %v4310, 0.5
  %v4327 = vadd.f32 %v4311, 0.5
  %v4328 = vadd.f32 %v4312, 0.5
  %v4329 = vadd.f32 %v4313, 0.5
  %v4330 = vadd.f32 %v4314, 0.5
  %v4331 = vadd.f32 %v4315, 0.5
  %v4332 = vtanh.pop %v4252
  %v4333 = vtanh.pop %v4253
  %v4334 = vtanh.pop %v4254
  %v4335 = vtanh.pop %v4255
  %v4336 = vtanh.pop %v4256
  %v4337 = vtanh.pop %v4257
  %v4338 = vtanh.pop %v4258
  %v4339 = vtanh.pop %v4259
  %v4340 = vtanh.pop %v4260
  %v4341 = vtanh.pop %v4261
  %v4342 = vtanh.pop %v4262
  %v4343 = vtanh.pop %v4263
  %v4344 = vtanh.pop %v4264
  %v4345 = vtanh.pop %v4265
  %v4346 = vtanh.pop %v4266
  %v4347 = vtanh.pop %v4267
  %v4348 = vmul.f32 %v4316, %v3433
  %v4349 = vmul.f32 %v4317, %v3434
  %v4350 = vmul.f32 %v4318, %v3435
  %v4351 = vmul.f32 %v4319, %v3436
  %v4352 = vmul.f32 %v4320, %v3437
  %v4353 = vmul.f32 %v4321, %v3438
  %v4354 = vmul.f32 %v4322, %v3439
  %v4355 = vmul.f32 %v4323, %v3440
  %v4356 = vmul.f32 %v4324, %v3441
  %v4357 = vmul.f32 %v4325, %v3442
  %v4358 = vmul.f32 %v4326, %v3443
  %v4359 = vmul.f32 %v4327, %v3444
  %v4360 = vmul.f32 %v4328, %v3445
  %v4361 = vmul.f32 %v4329, %v3446
  %v4362 = vmul.f32 %v4330, %v3447
  %v4363 = vmul.f32 %v4331, %v3448
  %4380 = vrot.lane.b32.xlu0 %v4332, 64
  %v4381 = vpop.permute.xlu0 %4380
  %4382 = vrot.lane.b32.xlu0 %v4333, 64
  %v4383 = vpop.permute.xlu0 %4382
  %4384 = vrot.lane.b32.xlu0 %v4334, 64
  %v4385 = vpop.permute.xlu0 %4384
  %4386 = vrot.lane.b32.xlu0 %v4335, 64
  %v4387 = vpop.permute.xlu0 %4386
  %4388 = vrot.lane.b32.xlu0 %v4336, 64
  %v4389 = vpop.permute.xlu0 %4388
  %4390 = vrot.lane.b32.xlu0 %v4337, 64
  %v4391 = vpop.permute.xlu0 %4390
  %4392 = vrot.lane.b32.xlu0 %v4338, 64
  %v4393 = vpop.permute.xlu0 %4392
  %4394 = vrot.lane.b32.xlu0 %v4339, 64
  %v4395 = vpop.permute.xlu0 %4394
  %4396 = vrot.lane.b32.xlu0 %v4340, 64
  %v4397 = vpop.permute.xlu0 %4396
  %4398 = vrot.lane.b32.xlu0 %v4341, 64
  %v4399 = vpop.permute.xlu0 %4398
  %4400 = vrot.lane.b32.xlu0 %v4342, 64
  %v4401 = vpop.permute.xlu0 %4400
  %4402 = vrot.lane.b32.xlu0 %v4343, 64
  %v4403 = vpop.permute.xlu0 %4402
  %4404 = vrot.lane.b32.xlu0 %v4344, 64
  %v4405 = vpop.permute.xlu0 %4404
  %4406 = vrot.lane.b32.xlu0 %v4345, 64
  %v4407 = vpop.permute.xlu0 %4406
  %4408 = vrot.lane.b32.xlu0 %v4346, 64
  %v4409 = vpop.permute.xlu0 %4408
  %4410 = vrot.lane.b32.xlu0 %v4347, 64
  %v4411 = vpop.permute.xlu0 %4410
  %v4428 = vmul.f32 %v4316, %v4381
  %v4429 = vmul.f32 %v4317, %v4383
  %v4430 = vmul.f32 %v4318, %v4385
  %v4431 = vmul.f32 %v4319, %v4387
  %v4432 = vmul.f32 %v4320, %v4389
  %v4433 = vmul.f32 %v4321, %v4391
  %v4434 = vmul.f32 %v4322, %v4393
  %v4435 = vmul.f32 %v4323, %v4395
  %v4436 = vmul.f32 %v4324, %v4397
  %v4437 = vmul.f32 %v4325, %v4399
  %v4438 = vmul.f32 %v4326, %v4401
  %v4439 = vmul.f32 %v4327, %v4403
  %v4440 = vmul.f32 %v4328, %v4405
  %v4441 = vmul.f32 %v4329, %v4407
  %v4442 = vmul.f32 %v4330, %v4409
  %v4443 = vmul.f32 %v4331, %v4411
  %4460 = vrot.lane.b32.xlu0 %v4428, 32
  %v4461 = vpop.permute.xlu0 %4460
  %4462 = vrot.lane.b32.xlu0 %v4429, 32
  %v4463 = vpop.permute.xlu0 %4462
  %4464 = vrot.lane.b32.xlu0 %v4430, 32
  %v4465 = vpop.permute.xlu0 %4464
  %4466 = vrot.lane.b32.xlu0 %v4431, 32
  %v4467 = vpop.permute.xlu0 %4466
  %4468 = vrot.lane.b32.xlu0 %v4432, 32
  %v4469 = vpop.permute.xlu0 %4468
  %4470 = vrot.lane.b32.xlu0 %v4433, 32
  %v4471 = vpop.permute.xlu0 %4470
  %4472 = vrot.lane.b32.xlu0 %v4434, 32
  %v4473 = vpop.permute.xlu0 %4472
  %4474 = vrot.lane.b32.xlu0 %v4435, 32
  %v4475 = vpop.permute.xlu0 %4474
  %4476 = vrot.lane.b32.xlu0 %v4436, 32
  %v4477 = vpop.permute.xlu0 %4476
  %4478 = vrot.lane.b32.xlu0 %v4437, 32
  %v4479 = vpop.permute.xlu0 %4478
  %4480 = vrot.lane.b32.xlu0 %v4438, 32
  %v4481 = vpop.permute.xlu0 %4480
  %4482 = vrot.lane.b32.xlu0 %v4439, 32
  %v4483 = vpop.permute.xlu0 %4482
  %4484 = vrot.lane.b32.xlu0 %v4440, 32
  %v4485 = vpop.permute.xlu0 %4484
  %4486 = vrot.lane.b32.xlu0 %v4441, 32
  %v4487 = vpop.permute.xlu0 %4486
  %4488 = vrot.lane.b32.xlu0 %v4442, 32
  %v4489 = vpop.permute.xlu0 %4488
  %4490 = vrot.lane.b32.xlu0 %v4443, 32
  %v4491 = vpop.permute.xlu0 %4490
  %v4508 = vadd.f32 %v4348, %v4461
  %v4509 = vadd.f32 %v4349, %v4463
  %v4510 = vadd.f32 %v4350, %v4465
  %v4511 = vadd.f32 %v4351, %v4467
  %v4512 = vadd.f32 %v4352, %v4469
  %v4513 = vadd.f32 %v4353, %v4471
  %v4514 = vadd.f32 %v4354, %v4473
  %v4515 = vadd.f32 %v4355, %v4475
  %v4516 = vadd.f32 %v4356, %v4477
  %v4517 = vadd.f32 %v4357, %v4479
  %v4518 = vadd.f32 %v4358, %v4481
  %v4519 = vadd.f32 %v4359, %v4483
  %v4520 = vadd.f32 %v4360, %v4485
  %v4521 = vadd.f32 %v4361, %v4487
  %v4522 = vadd.f32 %v4362, %v4489
  %v4523 = vadd.f32 %v4363, %v4491
  %v4524 = vtanh.pop %v4508
  %v4525 = vtanh.pop %v4509
  %v4526 = vtanh.pop %v4510
  %v4527 = vtanh.pop %v4511
  %v4528 = vtanh.pop %v4512
  %v4529 = vtanh.pop %v4513
  %v4530 = vtanh.pop %v4514
  %v4531 = vtanh.pop %v4515
  %v4532 = vtanh.pop %v4516
  %v4533 = vtanh.pop %v4517
  %v4534 = vtanh.pop %v4518
  %v4535 = vtanh.pop %v4519
  %v4536 = vtanh.pop %v4520
  %v4537 = vtanh.pop %v4521
  %v4538 = vtanh.pop %v4522
  %v4539 = vtanh.pop %v4523
  %4556 = vrot.lane.b32.xlu0 %v4524, 64
  %v4557 = vpop.permute.xlu0 %4556
  %4558 = vrot.lane.b32.xlu0 %v4525, 64
  %v4559 = vpop.permute.xlu0 %4558
  %4560 = vrot.lane.b32.xlu0 %v4526, 64
  %v4561 = vpop.permute.xlu0 %4560
  %4562 = vrot.lane.b32.xlu0 %v4527, 64
  %v4563 = vpop.permute.xlu0 %4562
  %4564 = vrot.lane.b32.xlu0 %v4528, 64
  %v4565 = vpop.permute.xlu0 %4564
  %4566 = vrot.lane.b32.xlu0 %v4529, 64
  %v4567 = vpop.permute.xlu0 %4566
  %4568 = vrot.lane.b32.xlu0 %v4530, 64
  %v4569 = vpop.permute.xlu0 %4568
  %4570 = vrot.lane.b32.xlu0 %v4531, 64
  %v4571 = vpop.permute.xlu0 %4570
  %4572 = vrot.lane.b32.xlu0 %v4532, 64
  %v4573 = vpop.permute.xlu0 %4572
  %4574 = vrot.lane.b32.xlu0 %v4533, 64
  %v4575 = vpop.permute.xlu0 %4574
  %4576 = vrot.lane.b32.xlu0 %v4534, 64
  %v4577 = vpop.permute.xlu0 %4576
  %4578 = vrot.lane.b32.xlu0 %v4535, 64
  %v4579 = vpop.permute.xlu0 %4578
  %4580 = vrot.lane.b32.xlu0 %v4536, 64
  %v4581 = vpop.permute.xlu0 %4580
  %4582 = vrot.lane.b32.xlu0 %v4537, 64
  %v4583 = vpop.permute.xlu0 %4582
  %4584 = vrot.lane.b32.xlu0 %v4538, 64
  %v4585 = vpop.permute.xlu0 %4584
  %4586 = vrot.lane.b32.xlu0 %v4539, 64
  %v4587 = vpop.permute.xlu0 %4586
  %v4604 = vmul.f32 %v4316, %v4557
  %v4605 = vmul.f32 %v4317, %v4559
  %v4606 = vmul.f32 %v4318, %v4561
  %v4607 = vmul.f32 %v4319, %v4563
  %v4608 = vmul.f32 %v4320, %v4565
  %v4609 = vmul.f32 %v4321, %v4567
  %v4610 = vmul.f32 %v4322, %v4569
  %v4611 = vmul.f32 %v4323, %v4571
  %v4612 = vmul.f32 %v4324, %v4573
  %v4613 = vmul.f32 %v4325, %v4575
  %v4614 = vmul.f32 %v4326, %v4577
  %v4615 = vmul.f32 %v4327, %v4579
  %v4616 = vmul.f32 %v4328, %v4581
  %v4617 = vmul.f32 %v4329, %v4583
  %v4618 = vmul.f32 %v4330, %v4585
  %v4619 = vmul.f32 %v4331, %v4587
  %s4620 = scalar_lea.vmem [#allocation2], 384
  %v4621 = vld [vmem:[%s4620] sm:$0xff]
  %v4622 = vld [vmem:[%s4620 + $0x8] sm:$0xff]
  %v4623 = vld [vmem:[%s4620 + $0x10] sm:$0xff]
  %v4624 = vld [vmem:[%s4620 + $0x18] sm:$0xff]
  %v4625 = vld [vmem:[%s4620 + $0x20] sm:$0xff]
  %v4626 = vld [vmem:[%s4620 + $0x28] sm:$0xff]
  %v4627 = vld [vmem:[%s4620 + $0x30] sm:$0xff]
  %v4628 = vld [vmem:[%s4620 + $0x38] sm:$0xff]
  %v4629 = vld [vmem:[%s4620 + $0x40] sm:$0xff]
  %v4630 = vld [vmem:[%s4620 + $0x48] sm:$0xff]
  %v4631 = vld [vmem:[%s4620 + $0x50] sm:$0xff]
  %v4632 = vld [vmem:[%s4620 + $0x58] sm:$0xff]
  %v4633 = vld [vmem:[%s4620 + $0x60] sm:$0xff]
  %v4634 = vld [vmem:[%s4620 + $0x68] sm:$0xff]
  %v4635 = vld [vmem:[%s4620 + $0x70] sm:$0xff]
  %v4636 = vld [vmem:[%s4620 + $0x78] sm:$0xff]
  %v4637 = vadd.f32 %v4140, %v4621
  %v4638 = vadd.f32 %v4143, %v4622
  %v4639 = vadd.f32 %v4146, %v4623
  %v4640 = vadd.f32 %v4149, %v4624
  %v4641 = vadd.f32 %v4152, %v4625
  %v4642 = vadd.f32 %v4155, %v4626
  %v4643 = vadd.f32 %v4158, %v4627
  %v4644 = vadd.f32 %v4161, %v4628
  %v4645 = vadd.f32 %v4164, %v4629
  %v4646 = vadd.f32 %v4167, %v4630
  %v4647 = vadd.f32 %v4170, %v4631
  %v4648 = vadd.f32 %v4173, %v4632
  %v4649 = vadd.f32 %v4176, %v4633
  %v4650 = vadd.f32 %v4179, %v4634
  %v4651 = vadd.f32 %v4182, %v4635
  %v4652 = vadd.f32 %v4185, %v4636
  %v4653 = vmul.f32 %v4637, 0.5
  %v4654 = vmul.f32 %v4638, 0.5
  %v4655 = vmul.f32 %v4639, 0.5
  %v4656 = vmul.f32 %v4640, 0.5
  %v4657 = vmul.f32 %v4641, 0.5
  %v4658 = vmul.f32 %v4642, 0.5
  %v4659 = vmul.f32 %v4643, 0.5
  %v4660 = vmul.f32 %v4644, 0.5
  %v4661 = vmul.f32 %v4645, 0.5
  %v4662 = vmul.f32 %v4646, 0.5
  %v4663 = vmul.f32 %v4647, 0.5
  %v4664 = vmul.f32 %v4648, 0.5
  %v4665 = vmul.f32 %v4649, 0.5
  %v4666 = vmul.f32 %v4650, 0.5
  %v4667 = vmul.f32 %v4651, 0.5
  %v4668 = vmul.f32 %v4652, 0.5
  %v4669 = vtanh.pop %v4653
  %v4670 = vtanh.pop %v4654
  %v4671 = vtanh.pop %v4655
  %v4672 = vtanh.pop %v4656
  %v4673 = vtanh.pop %v4657
  %v4674 = vtanh.pop %v4658
  %v4675 = vtanh.pop %v4659
  %v4676 = vtanh.pop %v4660
  %v4677 = vtanh.pop %v4661
  %v4678 = vtanh.pop %v4662
  %v4679 = vtanh.pop %v4663
  %v4680 = vtanh.pop %v4664
  %v4681 = vtanh.pop %v4665
  %v4682 = vtanh.pop %v4666
  %v4683 = vtanh.pop %v4667
  %v4684 = vtanh.pop %v4668
  %v4685 = vmul.f32 %v4669, 0.5
  %v4686 = vmul.f32 %v4670, 0.5
  %v4687 = vmul.f32 %v4671, 0.5
  %v4688 = vmul.f32 %v4672, 0.5
  %v4689 = vmul.f32 %v4673, 0.5
  %v4690 = vmul.f32 %v4674, 0.5
  %v4691 = vmul.f32 %v4675, 0.5
  %v4692 = vmul.f32 %v4676, 0.5
  %v4693 = vmul.f32 %v4677, 0.5
  %v4694 = vmul.f32 %v4678, 0.5
  %v4695 = vmul.f32 %v4679, 0.5
  %v4696 = vmul.f32 %v4680, 0.5
  %v4697 = vmul.f32 %v4681, 0.5
  %v4698 = vmul.f32 %v4682, 0.5
  %v4699 = vmul.f32 %v4683, 0.5
  %v4700 = vmul.f32 %v4684, 0.5
  %v4701 = vadd.f32 %v4685, 0.5
  %v4702 = vadd.f32 %v4686, 0.5
  %v4703 = vadd.f32 %v4687, 0.5
  %v4704 = vadd.f32 %v4688, 0.5
  %v4705 = vadd.f32 %v4689, 0.5
  %v4706 = vadd.f32 %v4690, 0.5
  %v4707 = vadd.f32 %v4691, 0.5
  %v4708 = vadd.f32 %v4692, 0.5
  %v4709 = vadd.f32 %v4693, 0.5
  %v4710 = vadd.f32 %v4694, 0.5
  %v4711 = vadd.f32 %v4695, 0.5
  %v4712 = vadd.f32 %v4696, 0.5
  %v4713 = vadd.f32 %v4697, 0.5
  %v4714 = vadd.f32 %v4698, 0.5
  %v4715 = vadd.f32 %v4699, 0.5
  %v4716 = vadd.f32 %v4700, 0.5
  %v4717 = vtanh.pop %v4637
  %v4718 = vtanh.pop %v4638
  %v4719 = vtanh.pop %v4639
  %v4720 = vtanh.pop %v4640
  %v4721 = vtanh.pop %v4641
  %v4722 = vtanh.pop %v4642
  %v4723 = vtanh.pop %v4643
  %v4724 = vtanh.pop %v4644
  %v4725 = vtanh.pop %v4645
  %v4726 = vtanh.pop %v4646
  %v4727 = vtanh.pop %v4647
  %v4728 = vtanh.pop %v4648
  %v4729 = vtanh.pop %v4649
  %v4730 = vtanh.pop %v4650
  %v4731 = vtanh.pop %v4651
  %v4732 = vtanh.pop %v4652
  %v4733 = vmul.f32 %v4701, %v3818
  %v4734 = vmul.f32 %v4702, %v3819
  %v4735 = vmul.f32 %v4703, %v3820
  %v4736 = vmul.f32 %v4704, %v3821
  %v4737 = vmul.f32 %v4705, %v3822
  %v4738 = vmul.f32 %v4706, %v3823
  %v4739 = vmul.f32 %v4707, %v3824
  %v4740 = vmul.f32 %v4708, %v3825
  %v4741 = vmul.f32 %v4709, %v3826
  %v4742 = vmul.f32 %v4710, %v3827
  %v4743 = vmul.f32 %v4711, %v3828
  %v4744 = vmul.f32 %v4712, %v3829
  %v4745 = vmul.f32 %v4713, %v3830
  %v4746 = vmul.f32 %v4714, %v3831
  %v4747 = vmul.f32 %v4715, %v3832
  %v4748 = vmul.f32 %v4716, %v3833
  %4765 = vrot.lane.b32.xlu0 %v4717, 64
  %v4766 = vpop.permute.xlu0 %4765
  %4767 = vrot.lane.b32.xlu0 %v4718, 64
  %v4768 = vpop.permute.xlu0 %4767
  %4769 = vrot.lane.b32.xlu0 %v4719, 64
  %v4770 = vpop.permute.xlu0 %4769
  %4771 = vrot.lane.b32.xlu0 %v4720, 64
  %v4772 = vpop.permute.xlu0 %4771
  %4773 = vrot.lane.b32.xlu0 %v4721, 64
  %v4774 = vpop.permute.xlu0 %4773
  %4775 = vrot.lane.b32.xlu0 %v4722, 64
  %v4776 = vpop.permute.xlu0 %4775
  %4777 = vrot.lane.b32.xlu0 %v4723, 64
  %v4778 = vpop.permute.xlu0 %4777
  %4779 = vrot.lane.b32.xlu0 %v4724, 64
  %v4780 = vpop.permute.xlu0 %4779
  %4781 = vrot.lane.b32.xlu0 %v4725, 64
  %v4782 = vpop.permute.xlu0 %4781
  %4783 = vrot.lane.b32.xlu0 %v4726, 64
  %v4784 = vpop.permute.xlu0 %4783
  %4785 = vrot.lane.b32.xlu0 %v4727, 64
  %v4786 = vpop.permute.xlu0 %4785
  %4787 = vrot.lane.b32.xlu0 %v4728, 64
  %v4788 = vpop.permute.xlu0 %4787
  %4789 = vrot.lane.b32.xlu0 %v4729, 64
  %v4790 = vpop.permute.xlu0 %4789
  %4791 = vrot.lane.b32.xlu0 %v4730, 64
  %v4792 = vpop.permute.xlu0 %4791
  %4793 = vrot.lane.b32.xlu0 %v4731, 64
  %v4794 = vpop.permute.xlu0 %4793
  %4795 = vrot.lane.b32.xlu0 %v4732, 64
  %v4796 = vpop.permute.xlu0 %4795
  %v4813 = vmul.f32 %v4701, %v4766
  %v4814 = vmul.f32 %v4702, %v4768
  %v4815 = vmul.f32 %v4703, %v4770
  %v4816 = vmul.f32 %v4704, %v4772
  %v4817 = vmul.f32 %v4705, %v4774
  %v4818 = vmul.f32 %v4706, %v4776
  %v4819 = vmul.f32 %v4707, %v4778
  %v4820 = vmul.f32 %v4708, %v4780
  %v4821 = vmul.f32 %v4709, %v4782
  %v4822 = vmul.f32 %v4710, %v4784
  %v4823 = vmul.f32 %v4711, %v4786
  %v4824 = vmul.f32 %v4712, %v4788
  %v4825 = vmul.f32 %v4713, %v4790
  %v4826 = vmul.f32 %v4714, %v4792
  %v4827 = vmul.f32 %v4715, %v4794
  %v4828 = vmul.f32 %v4716, %v4796
  %4845 = vrot.lane.b32.xlu0 %v4813, 32
  %v4846 = vpop.permute.xlu0 %4845
  %4847 = vrot.lane.b32.xlu0 %v4814, 32
  %v4848 = vpop.permute.xlu0 %4847
  %4849 = vrot.lane.b32.xlu0 %v4815, 32
  %v4850 = vpop.permute.xlu0 %4849
  %4851 = vrot.lane.b32.xlu0 %v4816, 32
  %v4852 = vpop.permute.xlu0 %4851
  %4853 = vrot.lane.b32.xlu0 %v4817, 32
  %v4854 = vpop.permute.xlu0 %4853
  %4855 = vrot.lane.b32.xlu0 %v4818, 32
  %v4856 = vpop.permute.xlu0 %4855
  %4857 = vrot.lane.b32.xlu0 %v4819, 32
  %v4858 = vpop.permute.xlu0 %4857
  %4859 = vrot.lane.b32.xlu0 %v4820, 32
  %v4860 = vpop.permute.xlu0 %4859
  %4861 = vrot.lane.b32.xlu0 %v4821, 32
  %v4862 = vpop.permute.xlu0 %4861
  %4863 = vrot.lane.b32.xlu0 %v4822, 32
  %v4864 = vpop.permute.xlu0 %4863
  %4865 = vrot.lane.b32.xlu0 %v4823, 32
  %v4866 = vpop.permute.xlu0 %4865
  %4867 = vrot.lane.b32.xlu0 %v4824, 32
  %v4868 = vpop.permute.xlu0 %4867
  %4869 = vrot.lane.b32.xlu0 %v4825, 32
  %v4870 = vpop.permute.xlu0 %4869
  %4871 = vrot.lane.b32.xlu0 %v4826, 32
  %v4872 = vpop.permute.xlu0 %4871
  %4873 = vrot.lane.b32.xlu0 %v4827, 32
  %v4874 = vpop.permute.xlu0 %4873
  %4875 = vrot.lane.b32.xlu0 %v4828, 32
  %v4876 = vpop.permute.xlu0 %4875
  %v4893 = vadd.f32 %v4733, %v4846
  %v4894 = vadd.f32 %v4734, %v4848
  %v4895 = vadd.f32 %v4735, %v4850
  %v4896 = vadd.f32 %v4736, %v4852
  %v4897 = vadd.f32 %v4737, %v4854
  %v4898 = vadd.f32 %v4738, %v4856
  %v4899 = vadd.f32 %v4739, %v4858
  %v4900 = vadd.f32 %v4740, %v4860
  %v4901 = vadd.f32 %v4741, %v4862
  %v4902 = vadd.f32 %v4742, %v4864
  %v4903 = vadd.f32 %v4743, %v4866
  %v4904 = vadd.f32 %v4744, %v4868
  %v4905 = vadd.f32 %v4745, %v4870
  %v4906 = vadd.f32 %v4746, %v4872
  %v4907 = vadd.f32 %v4747, %v4874
  %v4908 = vadd.f32 %v4748, %v4876
  %v4909 = vtanh.pop %v4893
  %v4910 = vtanh.pop %v4894
  %v4911 = vtanh.pop %v4895
  %v4912 = vtanh.pop %v4896
  %v4913 = vtanh.pop %v4897
  %v4914 = vtanh.pop %v4898
  %v4915 = vtanh.pop %v4899
  %v4916 = vtanh.pop %v4900
  %v4917 = vtanh.pop %v4901
  %v4918 = vtanh.pop %v4902
  %v4919 = vtanh.pop %v4903
  %v4920 = vtanh.pop %v4904
  %v4921 = vtanh.pop %v4905
  %v4922 = vtanh.pop %v4906
  %v4923 = vtanh.pop %v4907
  %v4924 = vtanh.pop %v4908
  %4941 = vrot.lane.b32.xlu0 %v4909, 64
  %v4942 = vpop.permute.xlu0 %4941
  %4943 = vrot.lane.b32.xlu0 %v4910, 64
  %v4944 = vpop.permute.xlu0 %4943
  %4945 = vrot.lane.b32.xlu0 %v4911, 64
  %v4946 = vpop.permute.xlu0 %4945
  %4947 = vrot.lane.b32.xlu0 %v4912, 64
  %v4948 = vpop.permute.xlu0 %4947
  %4949 = vrot.lane.b32.xlu0 %v4913, 64
  %v4950 = vpop.permute.xlu0 %4949
  %4951 = vrot.lane.b32.xlu0 %v4914, 64
  %v4952 = vpop.permute.xlu0 %4951
  %4953 = vrot.lane.b32.xlu0 %v4915, 64
  %v4954 = vpop.permute.xlu0 %4953
  %4955 = vrot.lane.b32.xlu0 %v4916, 64
  %v4956 = vpop.permute.xlu0 %4955
  %4957 = vrot.lane.b32.xlu0 %v4917, 64
  %v4958 = vpop.permute.xlu0 %4957
  %4959 = vrot.lane.b32.xlu0 %v4918, 64
  %v4960 = vpop.permute.xlu0 %4959
  %4961 = vrot.lane.b32.xlu0 %v4919, 64
  %v4962 = vpop.permute.xlu0 %4961
  %4963 = vrot.lane.b32.xlu0 %v4920, 64
  %v4964 = vpop.permute.xlu0 %4963
  %4965 = vrot.lane.b32.xlu0 %v4921, 64
  %v4966 = vpop.permute.xlu0 %4965
  %4967 = vrot.lane.b32.xlu0 %v4922, 64
  %v4968 = vpop.permute.xlu0 %4967
  %4969 = vrot.lane.b32.xlu0 %v4923, 64
  %v4970 = vpop.permute.xlu0 %4969
  %4971 = vrot.lane.b32.xlu0 %v4924, 64
  %v4972 = vpop.permute.xlu0 %4971
  %v4989 = vmul.f32 %v4701, %v4942
  %v4990 = vmul.f32 %v4702, %v4944
  %v4991 = vmul.f32 %v4703, %v4946
  %v4992 = vmul.f32 %v4704, %v4948
  %v4993 = vmul.f32 %v4705, %v4950
  %v4994 = vmul.f32 %v4706, %v4952
  %v4995 = vmul.f32 %v4707, %v4954
  %v4996 = vmul.f32 %v4708, %v4956
  %v4997 = vmul.f32 %v4709, %v4958
  %v4998 = vmul.f32 %v4710, %v4960
  %v4999 = vmul.f32 %v4711, %v4962
  %v5000 = vmul.f32 %v4712, %v4964
  %v5001 = vmul.f32 %v4713, %v4966
  %v5002 = vmul.f32 %v4714, %v4968
  %v5003 = vmul.f32 %v4715, %v4970
  %v5004 = vmul.f32 %v4716, %v4972
  %5021 = vrot.lane.b32.xlu0 %v4989, 32
  %v5022 = vpop.permute.xlu0 %5021
  %5023 = vrot.lane.b32.xlu0 %v4990, 32
  %v5024 = vpop.permute.xlu0 %5023
  %5025 = vrot.lane.b32.xlu0 %v4991, 32
  %v5026 = vpop.permute.xlu0 %5025
  %5027 = vrot.lane.b32.xlu0 %v4992, 32
  %v5028 = vpop.permute.xlu0 %5027
  %5029 = vrot.lane.b32.xlu0 %v4993, 32
  %v5030 = vpop.permute.xlu0 %5029
  %5031 = vrot.lane.b32.xlu0 %v4994, 32
  %v5032 = vpop.permute.xlu0 %5031
  %5033 = vrot.lane.b32.xlu0 %v4995, 32
  %v5034 = vpop.permute.xlu0 %5033
  %5035 = vrot.lane.b32.xlu0 %v4996, 32
  %v5036 = vpop.permute.xlu0 %5035
  %5037 = vrot.lane.b32.xlu0 %v4997, 32
  %v5038 = vpop.permute.xlu0 %5037
  %5039 = vrot.lane.b32.xlu0 %v4998, 32
  %v5040 = vpop.permute.xlu0 %5039
  %5041 = vrot.lane.b32.xlu0 %v4999, 32
  %v5042 = vpop.permute.xlu0 %5041
  %5043 = vrot.lane.b32.xlu0 %v5000, 32
  %v5044 = vpop.permute.xlu0 %5043
  %5045 = vrot.lane.b32.xlu0 %v5001, 32
  %v5046 = vpop.permute.xlu0 %5045
  %5047 = vrot.lane.b32.xlu0 %v5002, 32
  %v5048 = vpop.permute.xlu0 %5047
  %5049 = vrot.lane.b32.xlu0 %v5003, 32
  %v5050 = vpop.permute.xlu0 %5049
  %5051 = vrot.lane.b32.xlu0 %v5004, 32
  %v5052 = vpop.permute.xlu0 %5051
  %5085 = vrot.lane.b32.xlu0 %v4604, 64
  %v5086 = vpop.permute.xlu0 %5085
  %5087 = vrot.lane.b32.xlu0 %v4605, 64
  %v5088 = vpop.permute.xlu0 %5087
  %5089 = vrot.lane.b32.xlu0 %v4606, 64
  %v5090 = vpop.permute.xlu0 %5089
  %5091 = vrot.lane.b32.xlu0 %v4607, 64
  %v5092 = vpop.permute.xlu0 %5091
  %5093 = vrot.lane.b32.xlu0 %v4608, 64
  %v5094 = vpop.permute.xlu0 %5093
  %5095 = vrot.lane.b32.xlu0 %v4609, 64
  %v5096 = vpop.permute.xlu0 %5095
  %5097 = vrot.lane.b32.xlu0 %v4610, 64
  %v5098 = vpop.permute.xlu0 %5097
  %5099 = vrot.lane.b32.xlu0 %v4611, 64
  %v5100 = vpop.permute.xlu0 %5099
  %5101 = vrot.lane.b32.xlu0 %v4612, 64
  %v5102 = vpop.permute.xlu0 %5101
  %5103 = vrot.lane.b32.xlu0 %v4613, 64
  %v5104 = vpop.permute.xlu0 %5103
  %5105 = vrot.lane.b32.xlu0 %v4614, 64
  %v5106 = vpop.permute.xlu0 %5105
  %5107 = vrot.lane.b32.xlu0 %v4615, 64
  %v5108 = vpop.permute.xlu0 %5107
  %5109 = vrot.lane.b32.xlu0 %v4616, 64
  %v5110 = vpop.permute.xlu0 %5109
  %5111 = vrot.lane.b32.xlu0 %v4617, 64
  %v5112 = vpop.permute.xlu0 %5111
  %5113 = vrot.lane.b32.xlu0 %v4618, 64
  %v5114 = vpop.permute.xlu0 %5113
  %5115 = vrot.lane.b32.xlu0 %v4619, 64
  %v5116 = vpop.permute.xlu0 %5115
  %v5133 = vsel %vm1904, %v5022, %v5086
  %v5134 = vsel %vm1904, %v5024, %v5088
  %v5135 = vsel %vm1904, %v5026, %v5090
  %v5136 = vsel %vm1904, %v5028, %v5092
  %v5137 = vsel %vm1904, %v5030, %v5094
  %v5138 = vsel %vm1904, %v5032, %v5096
  %v5139 = vsel %vm1904, %v5034, %v5098
  %v5140 = vsel %vm1904, %v5036, %v5100
  %v5141 = vsel %vm1904, %v5038, %v5102
  %v5142 = vsel %vm1904, %v5040, %v5104
  %v5143 = vsel %vm1904, %v5042, %v5106
  %v5144 = vsel %vm1904, %v5044, %v5108
  %v5145 = vsel %vm1904, %v5046, %v5110
  %v5146 = vsel %vm1904, %v5048, %v5112
  %v5147 = vsel %vm1904, %v5050, %v5114
  %v5148 = vsel %vm1904, %v5052, %v5116
  %v5150 = vsel %vm246, %v5133, 0
  %v5153 = vsel %vm246, %v5134, 0
  %v5156 = vsel %vm246, %v5135, 0
  %v5159 = vsel %vm246, %v5136, 0
  %v5162 = vsel %vm246, %v5137, 0
  %v5165 = vsel %vm246, %v5138, 0
  %v5168 = vsel %vm246, %v5139, 0
  %v5171 = vsel %vm246, %v5140, 0
  %v5174 = vsel %vm246, %v5141, 0
  %v5177 = vsel %vm246, %v5142, 0
  %v5180 = vsel %vm246, %v5143, 0
  %v5183 = vsel %vm246, %v5144, 0
  %v5186 = vsel %vm246, %v5145, 0
  %v5189 = vsel %vm246, %v5146, 0
  %v5192 = vsel %vm246, %v5147, 0
  %v5195 = vsel %vm246, %v5148, 0
  %5197 = vmatpush.msra.mxu0 0.0
  %5198 = vmatpush.msra.mxu0 0.0
  %5199 = vmatpush.msra.mxu0 0.0
  %5200 = vmatpush.msra.mxu0 0.0
  %5201 = vmatpush.msra.mxu0 0.0
  %5202 = vmatpush.msra.mxu0 0.0
  %5203 = vmatpush.msra.mxu0 0.0
  %5204 = vmatpush.msra.mxu0 0.0
  %5205 = vmatpush.msra.mxu0 %v1469
  %5206 = vmatpush.msra.mxu0 %v1467
  %5207 = vmatpush.msra.mxu0 %v1465
  %5208 = vmatpush.msra.mxu0 %v1463
  %5209 = vmatpush.msra.mxu0 %v1461
  %5210 = vmatpush.msra.mxu0 %v1459
  %5211 = vmatpush.msra.mxu0 %v1457
  %5212 = vmatpush.msra.mxu0 %v1455
  %5213 = vmatmul.f32.gmra.mxu0 %v5150
  %v5214 = vpop.f32.mrf.mxu0
  %v5215 = vadd.f32 0.0, %v5214
  %5216 = vmatmul.f32.gmra.mxu0 %v5153
  %v5217 = vpop.f32.mrf.mxu0
  %v5218 = vadd.f32 0.0, %v5217
  %5219 = vmatmul.f32.gmra.mxu0 %v5156
  %v5220 = vpop.f32.mrf.mxu0
  %v5221 = vadd.f32 0.0, %v5220
  %5222 = vmatmul.f32.gmra.mxu0 %v5159
  %v5223 = vpop.f32.mrf.mxu0
  %v5224 = vadd.f32 0.0, %v5223
  %5225 = vmatmul.f32.gmra.mxu0 %v5162
  %v5226 = vpop.f32.mrf.mxu0
  %v5227 = vadd.f32 0.0, %v5226
  %5228 = vmatmul.f32.gmra.mxu0 %v5165
  %v5229 = vpop.f32.mrf.mxu0
  %v5230 = vadd.f32 0.0, %v5229
  %5231 = vmatmul.f32.gmra.mxu0 %v5168
  %v5232 = vpop.f32.mrf.mxu0
  %v5233 = vadd.f32 0.0, %v5232
  %5234 = vmatmul.f32.gmra.mxu0 %v5171
  %v5235 = vpop.f32.mrf.mxu0
  %v5236 = vadd.f32 0.0, %v5235
  %5237 = vmatmul.f32.gmra.mxu0 %v5174
  %v5238 = vpop.f32.mrf.mxu0
  %v5239 = vadd.f32 0.0, %v5238
  %5240 = vmatmul.f32.gmra.mxu0 %v5177
  %v5241 = vpop.f32.mrf.mxu0
  %v5242 = vadd.f32 0.0, %v5241
  %5243 = vmatmul.f32.gmra.mxu0 %v5180
  %v5244 = vpop.f32.mrf.mxu0
  %v5245 = vadd.f32 0.0, %v5244
  %5246 = vmatmul.f32.gmra.mxu0 %v5183
  %v5247 = vpop.f32.mrf.mxu0
  %v5248 = vadd.f32 0.0, %v5247
  %5249 = vmatmul.f32.gmra.mxu0 %v5186
  %v5250 = vpop.f32.mrf.mxu0
  %v5251 = vadd.f32 0.0, %v5250
  %5252 = vmatmul.f32.gmra.mxu0 %v5189
  %v5253 = vpop.f32.mrf.mxu0
  %v5254 = vadd.f32 0.0, %v5253
  %5255 = vmatmul.f32.gmra.mxu0 %v5192
  %v5256 = vpop.f32.mrf.mxu0
  %v5257 = vadd.f32 0.0, %v5256
  %5258 = vmatmul.f32.gmra.mxu0 %v5195
  %v5259 = vpop.f32.mrf.mxu0
  %v5260 = vadd.f32 0.0, %v5259
  %5261 = vdwg.mxu0
  %5262 = vmatpush.msra.mxu0 0.0
  %5263 = vmatpush.msra.mxu0 0.0
  %5264 = vmatpush.msra.mxu0 0.0
  %5265 = vmatpush.msra.mxu0 0.0
  %5266 = vmatpush.msra.mxu0 0.0
  %5267 = vmatpush.msra.mxu0 0.0
  %5268 = vmatpush.msra.mxu0 0.0
  %5269 = vmatpush.msra.mxu0 0.0
  %5270 = vmatpush.msra.mxu0 %v1470
  %5271 = vmatpush.msra.mxu0 %v1468
  %5272 = vmatpush.msra.mxu0 %v1466
  %5273 = vmatpush.msra.mxu0 %v1464
  %5274 = vmatpush.msra.mxu0 %v1462
  %5275 = vmatpush.msra.mxu0 %v1460
  %5276 = vmatpush.msra.mxu0 %v1458
  %5277 = vmatpush.msra.mxu0 %v1456
  %5278 = vmatmul.f32.gmra.mxu0 %v5150
  %v5279 = vpop.f32.mrf.mxu0
  %v5280 = vadd.f32 0.0, %v5279
  %5281 = vmatmul.f32.gmra.mxu0 %v5153
  %v5282 = vpop.f32.mrf.mxu0
  %v5283 = vadd.f32 0.0, %v5282
  %5284 = vmatmul.f32.gmra.mxu0 %v5156
  %v5285 = vpop.f32.mrf.mxu0
  %v5286 = vadd.f32 0.0, %v5285
  %5287 = vmatmul.f32.gmra.mxu0 %v5159
  %v5288 = vpop.f32.mrf.mxu0
  %v5289 = vadd.f32 0.0, %v5288
  %5290 = vmatmul.f32.gmra.mxu0 %v5162
  %v5291 = vpop.f32.mrf.mxu0
  %v5292 = vadd.f32 0.0, %v5291
  %5293 = vmatmul.f32.gmra.mxu0 %v5165
  %v5294 = vpop.f32.mrf.mxu0
  %v5295 = vadd.f32 0.0, %v5294
  %5296 = vmatmul.f32.gmra.mxu0 %v5168
  %v5297 = vpop.f32.mrf.mxu0
  %v5298 = vadd.f32 0.0, %v5297
  %5299 = vmatmul.f32.gmra.mxu0 %v5171
  %v5300 = vpop.f32.mrf.mxu0
  %v5301 = vadd.f32 0.0, %v5300
  %5302 = vmatmul.f32.gmra.mxu0 %v5174
  %v5303 = vpop.f32.mrf.mxu0
  %v5304 = vadd.f32 0.0, %v5303
  %5305 = vmatmul.f32.gmra.mxu0 %v5177
  %v5306 = vpop.f32.mrf.mxu0
  %v5307 = vadd.f32 0.0, %v5306
  %5308 = vmatmul.f32.gmra.mxu0 %v5180
  %v5309 = vpop.f32.mrf.mxu0
  %v5310 = vadd.f32 0.0, %v5309
  %5311 = vmatmul.f32.gmra.mxu0 %v5183
  %v5312 = vpop.f32.mrf.mxu0
  %v5313 = vadd.f32 0.0, %v5312
  %5314 = vmatmul.f32.gmra.mxu0 %v5186
  %v5315 = vpop.f32.mrf.mxu0
  %v5316 = vadd.f32 0.0, %v5315
  %5317 = vmatmul.f32.gmra.mxu0 %v5189
  %v5318 = vpop.f32.mrf.mxu0
  %v5319 = vadd.f32 0.0, %v5318
  %5320 = vmatmul.f32.gmra.mxu0 %v5192
  %v5321 = vpop.f32.mrf.mxu0
  %v5322 = vadd.f32 0.0, %v5321
  %5323 = vmatmul.f32.gmra.mxu0 %v5195
  %v5324 = vpop.f32.mrf.mxu0
  %v5325 = vadd.f32 0.0, %v5324
  %5326 = vdwg.mxu0
  %v5327 = vadd.f32 %v5280, %v2100
  %v5328 = vadd.f32 %v5283, %v2100
  %v5329 = vadd.f32 %v5286, %v2100
  %v5330 = vadd.f32 %v5289, %v2100
  %v5331 = vadd.f32 %v5292, %v2100
  %v5332 = vadd.f32 %v5295, %v2100
  %v5333 = vadd.f32 %v5298, %v2100
  %v5334 = vadd.f32 %v5301, %v2100
  %v5335 = vadd.f32 %v5304, %v2100
  %v5336 = vadd.f32 %v5307, %v2100
  %v5337 = vadd.f32 %v5310, %v2100
  %v5338 = vadd.f32 %v5313, %v2100
  %v5339 = vadd.f32 %v5316, %v2100
  %v5340 = vadd.f32 %v5319, %v2100
  %v5341 = vadd.f32 %v5322, %v2100
  %v5342 = vadd.f32 %v5325, %v2100
  %v5343 = vmul.f32 %v5327, 0.5
  %v5344 = vmul.f32 %v5328, 0.5
  %v5345 = vmul.f32 %v5329, 0.5
  %v5346 = vmul.f32 %v5330, 0.5
  %v5347 = vmul.f32 %v5331, 0.5
  %v5348 = vmul.f32 %v5332, 0.5
  %v5349 = vmul.f32 %v5333, 0.5
  %v5350 = vmul.f32 %v5334, 0.5
  %v5351 = vmul.f32 %v5335, 0.5
  %v5352 = vmul.f32 %v5336, 0.5
  %v5353 = vmul.f32 %v5337, 0.5
  %v5354 = vmul.f32 %v5338, 0.5
  %v5355 = vmul.f32 %v5339, 0.5
  %v5356 = vmul.f32 %v5340, 0.5
  %v5357 = vmul.f32 %v5341, 0.5
  %v5358 = vmul.f32 %v5342, 0.5
  %v5359 = vtanh.pop %v5343
  %v5360 = vtanh.pop %v5344
  %v5361 = vtanh.pop %v5345
  %v5362 = vtanh.pop %v5346
  %v5363 = vtanh.pop %v5347
  %v5364 = vtanh.pop %v5348
  %v5365 = vtanh.pop %v5349
  %v5366 = vtanh.pop %v5350
  %v5367 = vtanh.pop %v5351
  %v5368 = vtanh.pop %v5352
  %v5369 = vtanh.pop %v5353
  %v5370 = vtanh.pop %v5354
  %v5371 = vtanh.pop %v5355
  %v5372 = vtanh.pop %v5356
  %v5373 = vtanh.pop %v5357
  %v5374 = vtanh.pop %v5358
  %v5375 = vmul.f32 %v5359, 0.5
  %v5376 = vmul.f32 %v5360, 0.5
  %v5377 = vmul.f32 %v5361, 0.5
  %v5378 = vmul.f32 %v5362, 0.5
  %v5379 = vmul.f32 %v5363, 0.5
  %v5380 = vmul.f32 %v5364, 0.5
  %v5381 = vmul.f32 %v5365, 0.5
  %v5382 = vmul.f32 %v5366, 0.5
  %v5383 = vmul.f32 %v5367, 0.5
  %v5384 = vmul.f32 %v5368, 0.5
  %v5385 = vmul.f32 %v5369, 0.5
  %v5386 = vmul.f32 %v5370, 0.5
  %v5387 = vmul.f32 %v5371, 0.5
  %v5388 = vmul.f32 %v5372, 0.5
  %v5389 = vmul.f32 %v5373, 0.5
  %v5390 = vmul.f32 %v5374, 0.5
  %v5391 = vadd.f32 %v5375, 0.5
  %v5392 = vadd.f32 %v5376, 0.5
  %v5393 = vadd.f32 %v5377, 0.5
  %v5394 = vadd.f32 %v5378, 0.5
  %v5395 = vadd.f32 %v5379, 0.5
  %v5396 = vadd.f32 %v5380, 0.5
  %v5397 = vadd.f32 %v5381, 0.5
  %v5398 = vadd.f32 %v5382, 0.5
  %v5399 = vadd.f32 %v5383, 0.5
  %v5400 = vadd.f32 %v5384, 0.5
  %v5401 = vadd.f32 %v5385, 0.5
  %v5402 = vadd.f32 %v5386, 0.5
  %v5403 = vadd.f32 %v5387, 0.5
  %v5404 = vadd.f32 %v5388, 0.5
  %v5405 = vadd.f32 %v5389, 0.5
  %v5406 = vadd.f32 %v5390, 0.5
  %v5407 = vtanh.pop %v5327
  %v5408 = vtanh.pop %v5328
  %v5409 = vtanh.pop %v5329
  %v5410 = vtanh.pop %v5330
  %v5411 = vtanh.pop %v5331
  %v5412 = vtanh.pop %v5332
  %v5413 = vtanh.pop %v5333
  %v5414 = vtanh.pop %v5334
  %v5415 = vtanh.pop %v5335
  %v5416 = vtanh.pop %v5336
  %v5417 = vtanh.pop %v5337
  %v5418 = vtanh.pop %v5338
  %v5419 = vtanh.pop %v5339
  %v5420 = vtanh.pop %v5340
  %v5421 = vtanh.pop %v5341
  %v5422 = vtanh.pop %v5342
  %v5423 = vmul.f32 %v5391, %v4508
  %v5424 = vmul.f32 %v5392, %v4509
  %v5425 = vmul.f32 %v5393, %v4510
  %v5426 = vmul.f32 %v5394, %v4511
  %v5427 = vmul.f32 %v5395, %v4512
  %v5428 = vmul.f32 %v5396, %v4513
  %v5429 = vmul.f32 %v5397, %v4514
  %v5430 = vmul.f32 %v5398, %v4515
  %v5431 = vmul.f32 %v5399, %v4516
  %v5432 = vmul.f32 %v5400, %v4517
  %v5433 = vmul.f32 %v5401, %v4518
  %v5434 = vmul.f32 %v5402, %v4519
  %v5435 = vmul.f32 %v5403, %v4520
  %v5436 = vmul.f32 %v5404, %v4521
  %v5437 = vmul.f32 %v5405, %v4522
  %v5438 = vmul.f32 %v5406, %v4523
  %5455 = vrot.lane.b32.xlu0 %v5407, 64
  %v5456 = vpop.permute.xlu0 %5455
  %5457 = vrot.lane.b32.xlu0 %v5408, 64
  %v5458 = vpop.permute.xlu0 %5457
  %5459 = vrot.lane.b32.xlu0 %v5409, 64
  %v5460 = vpop.permute.xlu0 %5459
  %5461 = vrot.lane.b32.xlu0 %v5410, 64
  %v5462 = vpop.permute.xlu0 %5461
  %5463 = vrot.lane.b32.xlu0 %v5411, 64
  %v5464 = vpop.permute.xlu0 %5463
  %5465 = vrot.lane.b32.xlu0 %v5412, 64
  %v5466 = vpop.permute.xlu0 %5465
  %5467 = vrot.lane.b32.xlu0 %v5413, 64
  %v5468 = vpop.permute.xlu0 %5467
  %5469 = vrot.lane.b32.xlu0 %v5414, 64
  %v5470 = vpop.permute.xlu0 %5469
  %5471 = vrot.lane.b32.xlu0 %v5415, 64
  %v5472 = vpop.permute.xlu0 %5471
  %5473 = vrot.lane.b32.xlu0 %v5416, 64
  %v5474 = vpop.permute.xlu0 %5473
  %5475 = vrot.lane.b32.xlu0 %v5417, 64
  %v5476 = vpop.permute.xlu0 %5475
  %5477 = vrot.lane.b32.xlu0 %v5418, 64
  %v5478 = vpop.permute.xlu0 %5477
  %5479 = vrot.lane.b32.xlu0 %v5419, 64
  %v5480 = vpop.permute.xlu0 %5479
  %5481 = vrot.lane.b32.xlu0 %v5420, 64
  %v5482 = vpop.permute.xlu0 %5481
  %5483 = vrot.lane.b32.xlu0 %v5421, 64
  %v5484 = vpop.permute.xlu0 %5483
  %5485 = vrot.lane.b32.xlu0 %v5422, 64
  %v5486 = vpop.permute.xlu0 %5485
  %v5503 = vmul.f32 %v5391, %v5456
  %v5504 = vmul.f32 %v5392, %v5458
  %v5505 = vmul.f32 %v5393, %v5460
  %v5506 = vmul.f32 %v5394, %v5462
  %v5507 = vmul.f32 %v5395, %v5464
  %v5508 = vmul.f32 %v5396, %v5466
  %v5509 = vmul.f32 %v5397, %v5468
  %v5510 = vmul.f32 %v5398, %v5470
  %v5511 = vmul.f32 %v5399, %v5472
  %v5512 = vmul.f32 %v5400, %v5474
  %v5513 = vmul.f32 %v5401, %v5476
  %v5514 = vmul.f32 %v5402, %v5478
  %v5515 = vmul.f32 %v5403, %v5480
  %v5516 = vmul.f32 %v5404, %v5482
  %v5517 = vmul.f32 %v5405, %v5484
  %v5518 = vmul.f32 %v5406, %v5486
  %5535 = vrot.lane.b32.xlu0 %v5503, 32
  %v5536 = vpop.permute.xlu0 %5535
  %5537 = vrot.lane.b32.xlu0 %v5504, 32
  %v5538 = vpop.permute.xlu0 %5537
  %5539 = vrot.lane.b32.xlu0 %v5505, 32
  %v5540 = vpop.permute.xlu0 %5539
  %5541 = vrot.lane.b32.xlu0 %v5506, 32
  %v5542 = vpop.permute.xlu0 %5541
  %5543 = vrot.lane.b32.xlu0 %v5507, 32
  %v5544 = vpop.permute.xlu0 %5543
  %5545 = vrot.lane.b32.xlu0 %v5508, 32
  %v5546 = vpop.permute.xlu0 %5545
  %5547 = vrot.lane.b32.xlu0 %v5509, 32
  %v5548 = vpop.permute.xlu0 %5547
  %5549 = vrot.lane.b32.xlu0 %v5510, 32
  %v5550 = vpop.permute.xlu0 %5549
  %5551 = vrot.lane.b32.xlu0 %v5511, 32
  %v5552 = vpop.permute.xlu0 %5551
  %5553 = vrot.lane.b32.xlu0 %v5512, 32
  %v5554 = vpop.permute.xlu0 %5553
  %5555 = vrot.lane.b32.xlu0 %v5513, 32
  %v5556 = vpop.permute.xlu0 %5555
  %5557 = vrot.lane.b32.xlu0 %v5514, 32
  %v5558 = vpop.permute.xlu0 %5557
  %5559 = vrot.lane.b32.xlu0 %v5515, 32
  %v5560 = vpop.permute.xlu0 %5559
  %5561 = vrot.lane.b32.xlu0 %v5516, 32
  %v5562 = vpop.permute.xlu0 %5561
  %5563 = vrot.lane.b32.xlu0 %v5517, 32
  %v5564 = vpop.permute.xlu0 %5563
  %5565 = vrot.lane.b32.xlu0 %v5518, 32
  %v5566 = vpop.permute.xlu0 %5565
  %v5583 = vadd.f32 %v5423, %v5536
  %v5584 = vadd.f32 %v5424, %v5538
  %v5585 = vadd.f32 %v5425, %v5540
  %v5586 = vadd.f32 %v5426, %v5542
  %v5587 = vadd.f32 %v5427, %v5544
  %v5588 = vadd.f32 %v5428, %v5546
  %v5589 = vadd.f32 %v5429, %v5548
  %v5590 = vadd.f32 %v5430, %v5550
  %v5591 = vadd.f32 %v5431, %v5552
  %v5592 = vadd.f32 %v5432, %v5554
  %v5593 = vadd.f32 %v5433, %v5556
  %v5594 = vadd.f32 %v5434, %v5558
  %v5595 = vadd.f32 %v5435, %v5560
  %v5596 = vadd.f32 %v5436, %v5562
  %v5597 = vadd.f32 %v5437, %v5564
  %v5598 = vadd.f32 %v5438, %v5566
  %v5599 = vtanh.pop %v5583
  %v5600 = vtanh.pop %v5584
  %v5601 = vtanh.pop %v5585
  %v5602 = vtanh.pop %v5586
  %v5603 = vtanh.pop %v5587
  %v5604 = vtanh.pop %v5588
  %v5605 = vtanh.pop %v5589
  %v5606 = vtanh.pop %v5590
  %v5607 = vtanh.pop %v5591
  %v5608 = vtanh.pop %v5592
  %v5609 = vtanh.pop %v5593
  %v5610 = vtanh.pop %v5594
  %v5611 = vtanh.pop %v5595
  %v5612 = vtanh.pop %v5596
  %v5613 = vtanh.pop %v5597
  %v5614 = vtanh.pop %v5598
  %5631 = vrot.lane.b32.xlu0 %v5599, 64
  %v5632 = vpop.permute.xlu0 %5631
  %5633 = vrot.lane.b32.xlu0 %v5600, 64
  %v5634 = vpop.permute.xlu0 %5633
  %5635 = vrot.lane.b32.xlu0 %v5601, 64
  %v5636 = vpop.permute.xlu0 %5635
  %5637 = vrot.lane.b32.xlu0 %v5602, 64
  %v5638 = vpop.permute.xlu0 %5637
  %5639 = vrot.lane.b32.xlu0 %v5603, 64
  %v5640 = vpop.permute.xlu0 %5639
  %5641 = vrot.lane.b32.xlu0 %v5604, 64
  %v5642 = vpop.permute.xlu0 %5641
  %5643 = vrot.lane.b32.xlu0 %v5605, 64
  %v5644 = vpop.permute.xlu0 %5643
  %5645 = vrot.lane.b32.xlu0 %v5606, 64
  %v5646 = vpop.permute.xlu0 %5645
  %5647 = vrot.lane.b32.xlu0 %v5607, 64
  %v5648 = vpop.permute.xlu0 %5647
  %5649 = vrot.lane.b32.xlu0 %v5608, 64
  %v5650 = vpop.permute.xlu0 %5649
  %5651 = vrot.lane.b32.xlu0 %v5609, 64
  %v5652 = vpop.permute.xlu0 %5651
  %5653 = vrot.lane.b32.xlu0 %v5610, 64
  %v5654 = vpop.permute.xlu0 %5653
  %5655 = vrot.lane.b32.xlu0 %v5611, 64
  %v5656 = vpop.permute.xlu0 %5655
  %5657 = vrot.lane.b32.xlu0 %v5612, 64
  %v5658 = vpop.permute.xlu0 %5657
  %5659 = vrot.lane.b32.xlu0 %v5613, 64
  %v5660 = vpop.permute.xlu0 %5659
  %5661 = vrot.lane.b32.xlu0 %v5614, 64
  %v5662 = vpop.permute.xlu0 %5661
  %v5679 = vmul.f32 %v5391, %v5632
  %v5680 = vmul.f32 %v5392, %v5634
  %v5681 = vmul.f32 %v5393, %v5636
  %v5682 = vmul.f32 %v5394, %v5638
  %v5683 = vmul.f32 %v5395, %v5640
  %v5684 = vmul.f32 %v5396, %v5642
  %v5685 = vmul.f32 %v5397, %v5644
  %v5686 = vmul.f32 %v5398, %v5646
  %v5687 = vmul.f32 %v5399, %v5648
  %v5688 = vmul.f32 %v5400, %v5650
  %v5689 = vmul.f32 %v5401, %v5652
  %v5690 = vmul.f32 %v5402, %v5654
  %v5691 = vmul.f32 %v5403, %v5656
  %v5692 = vmul.f32 %v5404, %v5658
  %v5693 = vmul.f32 %v5405, %v5660
  %v5694 = vmul.f32 %v5406, %v5662
  %s5695 = scalar_lea.vmem [#allocation2], 512
  %v5696 = vld [vmem:[%s5695] sm:$0xff]
  %v5697 = vld [vmem:[%s5695 + $0x8] sm:$0xff]
  %v5698 = vld [vmem:[%s5695 + $0x10] sm:$0xff]
  %v5699 = vld [vmem:[%s5695 + $0x18] sm:$0xff]
  %v5700 = vld [vmem:[%s5695 + $0x20] sm:$0xff]
  %v5701 = vld [vmem:[%s5695 + $0x28] sm:$0xff]
  %v5702 = vld [vmem:[%s5695 + $0x30] sm:$0xff]
  %v5703 = vld [vmem:[%s5695 + $0x38] sm:$0xff]
  %v5704 = vld [vmem:[%s5695 + $0x40] sm:$0xff]
  %v5705 = vld [vmem:[%s5695 + $0x48] sm:$0xff]
  %v5706 = vld [vmem:[%s5695 + $0x50] sm:$0xff]
  %v5707 = vld [vmem:[%s5695 + $0x58] sm:$0xff]
  %v5708 = vld [vmem:[%s5695 + $0x60] sm:$0xff]
  %v5709 = vld [vmem:[%s5695 + $0x68] sm:$0xff]
  %v5710 = vld [vmem:[%s5695 + $0x70] sm:$0xff]
  %v5711 = vld [vmem:[%s5695 + $0x78] sm:$0xff]
  %v5712 = vadd.f32 %v5215, %v5696
  %v5713 = vadd.f32 %v5218, %v5697
  %v5714 = vadd.f32 %v5221, %v5698
  %v5715 = vadd.f32 %v5224, %v5699
  %v5716 = vadd.f32 %v5227, %v5700
  %v5717 = vadd.f32 %v5230, %v5701
  %v5718 = vadd.f32 %v5233, %v5702
  %v5719 = vadd.f32 %v5236, %v5703
  %v5720 = vadd.f32 %v5239, %v5704
  %v5721 = vadd.f32 %v5242, %v5705
  %v5722 = vadd.f32 %v5245, %v5706
  %v5723 = vadd.f32 %v5248, %v5707
  %v5724 = vadd.f32 %v5251, %v5708
  %v5725 = vadd.f32 %v5254, %v5709
  %v5726 = vadd.f32 %v5257, %v5710
  %v5727 = vadd.f32 %v5260, %v5711
  %v5728 = vmul.f32 %v5712, 0.5
  %v5729 = vmul.f32 %v5713, 0.5
  %v5730 = vmul.f32 %v5714, 0.5
  %v5731 = vmul.f32 %v5715, 0.5
  %v5732 = vmul.f32 %v5716, 0.5
  %v5733 = vmul.f32 %v5717, 0.5
  %v5734 = vmul.f32 %v5718, 0.5
  %v5735 = vmul.f32 %v5719, 0.5
  %v5736 = vmul.f32 %v5720, 0.5
  %v5737 = vmul.f32 %v5721, 0.5
  %v5738 = vmul.f32 %v5722, 0.5
  %v5739 = vmul.f32 %v5723, 0.5
  %v5740 = vmul.f32 %v5724, 0.5
  %v5741 = vmul.f32 %v5725, 0.5
  %v5742 = vmul.f32 %v5726, 0.5
  %v5743 = vmul.f32 %v5727, 0.5
  %v5744 = vtanh.pop %v5728
  %v5745 = vtanh.pop %v5729
  %v5746 = vtanh.pop %v5730
  %v5747 = vtanh.pop %v5731
  %v5748 = vtanh.pop %v5732
  %v5749 = vtanh.pop %v5733
  %v5750 = vtanh.pop %v5734
  %v5751 = vtanh.pop %v5735
  %v5752 = vtanh.pop %v5736
  %v5753 = vtanh.pop %v5737
  %v5754 = vtanh.pop %v5738
  %v5755 = vtanh.pop %v5739
  %v5756 = vtanh.pop %v5740
  %v5757 = vtanh.pop %v5741
  %v5758 = vtanh.pop %v5742
  %v5759 = vtanh.pop %v5743
  %v5760 = vmul.f32 %v5744, 0.5
  %v5761 = vmul.f32 %v5745, 0.5
  %v5762 = vmul.f32 %v5746, 0.5
  %v5763 = vmul.f32 %v5747, 0.5
  %v5764 = vmul.f32 %v5748, 0.5
  %v5765 = vmul.f32 %v5749, 0.5
  %v5766 = vmul.f32 %v5750, 0.5
  %v5767 = vmul.f32 %v5751, 0.5
  %v5768 = vmul.f32 %v5752, 0.5
  %v5769 = vmul.f32 %v5753, 0.5
  %v5770 = vmul.f32 %v5754, 0.5
  %v5771 = vmul.f32 %v5755, 0.5
  %v5772 = vmul.f32 %v5756, 0.5
  %v5773 = vmul.f32 %v5757, 0.5
  %v5774 = vmul.f32 %v5758, 0.5
  %v5775 = vmul.f32 %v5759, 0.5
  %v5776 = vadd.f32 %v5760, 0.5
  %v5777 = vadd.f32 %v5761, 0.5
  %v5778 = vadd.f32 %v5762, 0.5
  %v5779 = vadd.f32 %v5763, 0.5
  %v5780 = vadd.f32 %v5764, 0.5
  %v5781 = vadd.f32 %v5765, 0.5
  %v5782 = vadd.f32 %v5766, 0.5
  %v5783 = vadd.f32 %v5767, 0.5
  %v5784 = vadd.f32 %v5768, 0.5
  %v5785 = vadd.f32 %v5769, 0.5
  %v5786 = vadd.f32 %v5770, 0.5
  %v5787 = vadd.f32 %v5771, 0.5
  %v5788 = vadd.f32 %v5772, 0.5
  %v5789 = vadd.f32 %v5773, 0.5
  %v5790 = vadd.f32 %v5774, 0.5
  %v5791 = vadd.f32 %v5775, 0.5
  %v5792 = vtanh.pop %v5712
  %v5793 = vtanh.pop %v5713
  %v5794 = vtanh.pop %v5714
  %v5795 = vtanh.pop %v5715
  %v5796 = vtanh.pop %v5716
  %v5797 = vtanh.pop %v5717
  %v5798 = vtanh.pop %v5718
  %v5799 = vtanh.pop %v5719
  %v5800 = vtanh.pop %v5720
  %v5801 = vtanh.pop %v5721
  %v5802 = vtanh.pop %v5722
  %v5803 = vtanh.pop %v5723
  %v5804 = vtanh.pop %v5724
  %v5805 = vtanh.pop %v5725
  %v5806 = vtanh.pop %v5726
  %v5807 = vtanh.pop %v5727
  %v5808 = vmul.f32 %v5776, %v4893
  %v5809 = vmul.f32 %v5777, %v4894
  %v5810 = vmul.f32 %v5778, %v4895
  %v5811 = vmul.f32 %v5779, %v4896
  %v5812 = vmul.f32 %v5780, %v4897
  %v5813 = vmul.f32 %v5781, %v4898
  %v5814 = vmul.f32 %v5782, %v4899
  %v5815 = vmul.f32 %v5783, %v4900
  %v5816 = vmul.f32 %v5784, %v4901
  %v5817 = vmul.f32 %v5785, %v4902
  %v5818 = vmul.f32 %v5786, %v4903
  %v5819 = vmul.f32 %v5787, %v4904
  %v5820 = vmul.f32 %v5788, %v4905
  %v5821 = vmul.f32 %v5789, %v4906
  %v5822 = vmul.f32 %v5790, %v4907
  %v5823 = vmul.f32 %v5791, %v4908
  %5840 = vrot.lane.b32.xlu0 %v5792, 64
  %v5841 = vpop.permute.xlu0 %5840
  %5842 = vrot.lane.b32.xlu0 %v5793, 64
  %v5843 = vpop.permute.xlu0 %5842
  %5844 = vrot.lane.b32.xlu0 %v5794, 64
  %v5845 = vpop.permute.xlu0 %5844
  %5846 = vrot.lane.b32.xlu0 %v5795, 64
  %v5847 = vpop.permute.xlu0 %5846
  %5848 = vrot.lane.b32.xlu0 %v5796, 64
  %v5849 = vpop.permute.xlu0 %5848
  %5850 = vrot.lane.b32.xlu0 %v5797, 64
  %v5851 = vpop.permute.xlu0 %5850
  %5852 = vrot.lane.b32.xlu0 %v5798, 64
  %v5853 = vpop.permute.xlu0 %5852
  %5854 = vrot.lane.b32.xlu0 %v5799, 64
  %v5855 = vpop.permute.xlu0 %5854
  %5856 = vrot.lane.b32.xlu0 %v5800, 64
  %v5857 = vpop.permute.xlu0 %5856
  %5858 = vrot.lane.b32.xlu0 %v5801, 64
  %v5859 = vpop.permute.xlu0 %5858
  %5860 = vrot.lane.b32.xlu0 %v5802, 64
  %v5861 = vpop.permute.xlu0 %5860
  %5862 = vrot.lane.b32.xlu0 %v5803, 64
  %v5863 = vpop.permute.xlu0 %5862
  %5864 = vrot.lane.b32.xlu0 %v5804, 64
  %v5865 = vpop.permute.xlu0 %5864
  %5866 = vrot.lane.b32.xlu0 %v5805, 64
  %v5867 = vpop.permute.xlu0 %5866
  %5868 = vrot.lane.b32.xlu0 %v5806, 64
  %v5869 = vpop.permute.xlu0 %5868
  %5870 = vrot.lane.b32.xlu0 %v5807, 64
  %v5871 = vpop.permute.xlu0 %5870
  %v5888 = vmul.f32 %v5776, %v5841
  %v5889 = vmul.f32 %v5777, %v5843
  %v5890 = vmul.f32 %v5778, %v5845
  %v5891 = vmul.f32 %v5779, %v5847
  %v5892 = vmul.f32 %v5780, %v5849
  %v5893 = vmul.f32 %v5781, %v5851
  %v5894 = vmul.f32 %v5782, %v5853
  %v5895 = vmul.f32 %v5783, %v5855
  %v5896 = vmul.f32 %v5784, %v5857
  %v5897 = vmul.f32 %v5785, %v5859
  %v5898 = vmul.f32 %v5786, %v5861
  %v5899 = vmul.f32 %v5787, %v5863
  %v5900 = vmul.f32 %v5788, %v5865
  %v5901 = vmul.f32 %v5789, %v5867
  %v5902 = vmul.f32 %v5790, %v5869
  %v5903 = vmul.f32 %v5791, %v5871
  %5920 = vrot.lane.b32.xlu0 %v5888, 32
  %v5921 = vpop.permute.xlu0 %5920
  %5922 = vrot.lane.b32.xlu0 %v5889, 32
  %v5923 = vpop.permute.xlu0 %5922
  %5924 = vrot.lane.b32.xlu0 %v5890, 32
  %v5925 = vpop.permute.xlu0 %5924
  %5926 = vrot.lane.b32.xlu0 %v5891, 32
  %v5927 = vpop.permute.xlu0 %5926
  %5928 = vrot.lane.b32.xlu0 %v5892, 32
  %v5929 = vpop.permute.xlu0 %5928
  %5930 = vrot.lane.b32.xlu0 %v5893, 32
  %v5931 = vpop.permute.xlu0 %5930
  %5932 = vrot.lane.b32.xlu0 %v5894, 32
  %v5933 = vpop.permute.xlu0 %5932
  %5934 = vrot.lane.b32.xlu0 %v5895, 32
  %v5935 = vpop.permute.xlu0 %5934
  %5936 = vrot.lane.b32.xlu0 %v5896, 32
  %v5937 = vpop.permute.xlu0 %5936
  %5938 = vrot.lane.b32.xlu0 %v5897, 32
  %v5939 = vpop.permute.xlu0 %5938
  %5940 = vrot.lane.b32.xlu0 %v5898, 32
  %v5941 = vpop.permute.xlu0 %5940
  %5942 = vrot.lane.b32.xlu0 %v5899, 32
  %v5943 = vpop.permute.xlu0 %5942
  %5944 = vrot.lane.b32.xlu0 %v5900, 32
  %v5945 = vpop.permute.xlu0 %5944
  %5946 = vrot.lane.b32.xlu0 %v5901, 32
  %v5947 = vpop.permute.xlu0 %5946
  %5948 = vrot.lane.b32.xlu0 %v5902, 32
  %v5949 = vpop.permute.xlu0 %5948
  %5950 = vrot.lane.b32.xlu0 %v5903, 32
  %v5951 = vpop.permute.xlu0 %5950
  %v5968 = vadd.f32 %v5808, %v5921
  %v5969 = vadd.f32 %v5809, %v5923
  %v5970 = vadd.f32 %v5810, %v5925
  %v5971 = vadd.f32 %v5811, %v5927
  %v5972 = vadd.f32 %v5812, %v5929
  %v5973 = vadd.f32 %v5813, %v5931
  %v5974 = vadd.f32 %v5814, %v5933
  %v5975 = vadd.f32 %v5815, %v5935
  %v5976 = vadd.f32 %v5816, %v5937
  %v5977 = vadd.f32 %v5817, %v5939
  %v5978 = vadd.f32 %v5818, %v5941
  %v5979 = vadd.f32 %v5819, %v5943
  %v5980 = vadd.f32 %v5820, %v5945
  %v5981 = vadd.f32 %v5821, %v5947
  %v5982 = vadd.f32 %v5822, %v5949
  %v5983 = vadd.f32 %v5823, %v5951
  %v5984 = vtanh.pop %v5968
  %v5985 = vtanh.pop %v5969
  %v5986 = vtanh.pop %v5970
  %v5987 = vtanh.pop %v5971
  %v5988 = vtanh.pop %v5972
  %v5989 = vtanh.pop %v5973
  %v5990 = vtanh.pop %v5974
  %v5991 = vtanh.pop %v5975
  %v5992 = vtanh.pop %v5976
  %v5993 = vtanh.pop %v5977
  %v5994 = vtanh.pop %v5978
  %v5995 = vtanh.pop %v5979
  %v5996 = vtanh.pop %v5980
  %v5997 = vtanh.pop %v5981
  %v5998 = vtanh.pop %v5982
  %v5999 = vtanh.pop %v5983
  %6016 = vrot.lane.b32.xlu0 %v5984, 64
  %v6017 = vpop.permute.xlu0 %6016
  %6018 = vrot.lane.b32.xlu0 %v5985, 64
  %v6019 = vpop.permute.xlu0 %6018
  %6020 = vrot.lane.b32.xlu0 %v5986, 64
  %v6021 = vpop.permute.xlu0 %6020
  %6022 = vrot.lane.b32.xlu0 %v5987, 64
  %v6023 = vpop.permute.xlu0 %6022
  %6024 = vrot.lane.b32.xlu0 %v5988, 64
  %v6025 = vpop.permute.xlu0 %6024
  %6026 = vrot.lane.b32.xlu0 %v5989, 64
  %v6027 = vpop.permute.xlu0 %6026
  %6028 = vrot.lane.b32.xlu0 %v5990, 64
  %v6029 = vpop.permute.xlu0 %6028
  %6030 = vrot.lane.b32.xlu0 %v5991, 64
  %v6031 = vpop.permute.xlu0 %6030
  %6032 = vrot.lane.b32.xlu0 %v5992, 64
  %v6033 = vpop.permute.xlu0 %6032
  %6034 = vrot.lane.b32.xlu0 %v5993, 64
  %v6035 = vpop.permute.xlu0 %6034
  %6036 = vrot.lane.b32.xlu0 %v5994, 64
  %v6037 = vpop.permute.xlu0 %6036
  %6038 = vrot.lane.b32.xlu0 %v5995, 64
  %v6039 = vpop.permute.xlu0 %6038
  %6040 = vrot.lane.b32.xlu0 %v5996, 64
  %v6041 = vpop.permute.xlu0 %6040
  %6042 = vrot.lane.b32.xlu0 %v5997, 64
  %v6043 = vpop.permute.xlu0 %6042
  %6044 = vrot.lane.b32.xlu0 %v5998, 64
  %v6045 = vpop.permute.xlu0 %6044
  %6046 = vrot.lane.b32.xlu0 %v5999, 64
  %v6047 = vpop.permute.xlu0 %6046
  %v6064 = vmul.f32 %v5776, %v6017
  %v6065 = vmul.f32 %v5777, %v6019
  %v6066 = vmul.f32 %v5778, %v6021
  %v6067 = vmul.f32 %v5779, %v6023
  %v6068 = vmul.f32 %v5780, %v6025
  %v6069 = vmul.f32 %v5781, %v6027
  %v6070 = vmul.f32 %v5782, %v6029
  %v6071 = vmul.f32 %v5783, %v6031
  %v6072 = vmul.f32 %v5784, %v6033
  %v6073 = vmul.f32 %v5785, %v6035
  %v6074 = vmul.f32 %v5786, %v6037
  %v6075 = vmul.f32 %v5787, %v6039
  %v6076 = vmul.f32 %v5788, %v6041
  %v6077 = vmul.f32 %v5789, %v6043
  %v6078 = vmul.f32 %v5790, %v6045
  %v6079 = vmul.f32 %v5791, %v6047
  %6096 = vrot.lane.b32.xlu0 %v6064, 32
  %v6097 = vpop.permute.xlu0 %6096
  %6098 = vrot.lane.b32.xlu0 %v6065, 32
  %v6099 = vpop.permute.xlu0 %6098
  %6100 = vrot.lane.b32.xlu0 %v6066, 32
  %v6101 = vpop.permute.xlu0 %6100
  %6102 = vrot.lane.b32.xlu0 %v6067, 32
  %v6103 = vpop.permute.xlu0 %6102
  %6104 = vrot.lane.b32.xlu0 %v6068, 32
  %v6105 = vpop.permute.xlu0 %6104
  %6106 = vrot.lane.b32.xlu0 %v6069, 32
  %v6107 = vpop.permute.xlu0 %6106
  %6108 = vrot.lane.b32.xlu0 %v6070, 32
  %v6109 = vpop.permute.xlu0 %6108
  %6110 = vrot.lane.b32.xlu0 %v6071, 32
  %v6111 = vpop.permute.xlu0 %6110
  %6112 = vrot.lane.b32.xlu0 %v6072, 32
  %v6113 = vpop.permute.xlu0 %6112
  %6114 = vrot.lane.b32.xlu0 %v6073, 32
  %v6115 = vpop.permute.xlu0 %6114
  %6116 = vrot.lane.b32.xlu0 %v6074, 32
  %v6117 = vpop.permute.xlu0 %6116
  %6118 = vrot.lane.b32.xlu0 %v6075, 32
  %v6119 = vpop.permute.xlu0 %6118
  %6120 = vrot.lane.b32.xlu0 %v6076, 32
  %v6121 = vpop.permute.xlu0 %6120
  %6122 = vrot.lane.b32.xlu0 %v6077, 32
  %v6123 = vpop.permute.xlu0 %6122
  %6124 = vrot.lane.b32.xlu0 %v6078, 32
  %v6125 = vpop.permute.xlu0 %6124
  %6126 = vrot.lane.b32.xlu0 %v6079, 32
  %v6127 = vpop.permute.xlu0 %6126
  %6160 = vrot.lane.b32.xlu0 %v5679, 64
  %v6161 = vpop.permute.xlu0 %6160
  %6162 = vrot.lane.b32.xlu0 %v5680, 64
  %v6163 = vpop.permute.xlu0 %6162
  %6164 = vrot.lane.b32.xlu0 %v5681, 64
  %v6165 = vpop.permute.xlu0 %6164
  %6166 = vrot.lane.b32.xlu0 %v5682, 64
  %v6167 = vpop.permute.xlu0 %6166
  %6168 = vrot.lane.b32.xlu0 %v5683, 64
  %v6169 = vpop.permute.xlu0 %6168
  %6170 = vrot.lane.b32.xlu0 %v5684, 64
  %v6171 = vpop.permute.xlu0 %6170
  %6172 = vrot.lane.b32.xlu0 %v5685, 64
  %v6173 = vpop.permute.xlu0 %6172
  %6174 = vrot.lane.b32.xlu0 %v5686, 64
  %v6175 = vpop.permute.xlu0 %6174
  %6176 = vrot.lane.b32.xlu0 %v5687, 64
  %v6177 = vpop.permute.xlu0 %6176
  %6178 = vrot.lane.b32.xlu0 %v5688, 64
  %v6179 = vpop.permute.xlu0 %6178
  %6180 = vrot.lane.b32.xlu0 %v5689, 64
  %v6181 = vpop.permute.xlu0 %6180
  %6182 = vrot.lane.b32.xlu0 %v5690, 64
  %v6183 = vpop.permute.xlu0 %6182
  %6184 = vrot.lane.b32.xlu0 %v5691, 64
  %v6185 = vpop.permute.xlu0 %6184
  %6186 = vrot.lane.b32.xlu0 %v5692, 64
  %v6187 = vpop.permute.xlu0 %6186
  %6188 = vrot.lane.b32.xlu0 %v5693, 64
  %v6189 = vpop.permute.xlu0 %6188
  %6190 = vrot.lane.b32.xlu0 %v5694, 64
  %v6191 = vpop.permute.xlu0 %6190
  %v6208 = vsel %vm1904, %v6097, %v6161
  %v6209 = vsel %vm1904, %v6099, %v6163
  %v6210 = vsel %vm1904, %v6101, %v6165
  %v6211 = vsel %vm1904, %v6103, %v6167
  %v6212 = vsel %vm1904, %v6105, %v6169
  %v6213 = vsel %vm1904, %v6107, %v6171
  %v6214 = vsel %vm1904, %v6109, %v6173
  %v6215 = vsel %vm1904, %v6111, %v6175
  %v6216 = vsel %vm1904, %v6113, %v6177
  %v6217 = vsel %vm1904, %v6115, %v6179
  %v6218 = vsel %vm1904, %v6117, %v6181
  %v6219 = vsel %vm1904, %v6119, %v6183
  %v6220 = vsel %vm1904, %v6121, %v6185
  %v6221 = vsel %vm1904, %v6123, %v6187
  %v6222 = vsel %vm1904, %v6125, %v6189
  %v6223 = vsel %vm1904, %v6127, %v6191
  %v6225 = vsel %vm246, %v6208, 0
  %v6228 = vsel %vm246, %v6209, 0
  %v6231 = vsel %vm246, %v6210, 0
  %v6234 = vsel %vm246, %v6211, 0
  %v6237 = vsel %vm246, %v6212, 0
  %v6240 = vsel %vm246, %v6213, 0
  %v6243 = vsel %vm246, %v6214, 0
  %v6246 = vsel %vm246, %v6215, 0
  %v6249 = vsel %vm246, %v6216, 0
  %v6252 = vsel %vm246, %v6217, 0
  %v6255 = vsel %vm246, %v6218, 0
  %v6258 = vsel %vm246, %v6219, 0
  %v6261 = vsel %vm246, %v6220, 0
  %v6264 = vsel %vm246, %v6221, 0
  %v6267 = vsel %vm246, %v6222, 0
  %v6270 = vsel %vm246, %v6223, 0
  %6272 = vmatpush.msra.mxu0 0.0
  %6273 = vmatpush.msra.mxu0 0.0
  %6274 = vmatpush.msra.mxu0 0.0
  %6275 = vmatpush.msra.mxu0 0.0
  %6276 = vmatpush.msra.mxu0 0.0
  %6277 = vmatpush.msra.mxu0 0.0
  %6278 = vmatpush.msra.mxu0 0.0
  %6279 = vmatpush.msra.mxu0 0.0
  %6280 = vmatpush.msra.mxu0 %v1469
  %6281 = vmatpush.msra.mxu0 %v1467
  %6282 = vmatpush.msra.mxu0 %v1465
  %6283 = vmatpush.msra.mxu0 %v1463
  %6284 = vmatpush.msra.mxu0 %v1461
  %6285 = vmatpush.msra.mxu0 %v1459
  %6286 = vmatpush.msra.mxu0 %v1457
  %6287 = vmatpush.msra.mxu0 %v1455
  %6288 = vmatmul.f32.gmra.mxu0 %v6225
  %v6289 = vpop.f32.mrf.mxu0
  %v6290 = vadd.f32 0.0, %v6289
  %6291 = vmatmul.f32.gmra.mxu0 %v6228
  %v6292 = vpop.f32.mrf.mxu0
  %v6293 = vadd.f32 0.0, %v6292
  %6294 = vmatmul.f32.gmra.mxu0 %v6231
  %v6295 = vpop.f32.mrf.mxu0
  %v6296 = vadd.f32 0.0, %v6295
  %6297 = vmatmul.f32.gmra.mxu0 %v6234
  %v6298 = vpop.f32.mrf.mxu0
  %v6299 = vadd.f32 0.0, %v6298
  %6300 = vmatmul.f32.gmra.mxu0 %v6237
  %v6301 = vpop.f32.mrf.mxu0
  %v6302 = vadd.f32 0.0, %v6301
  %6303 = vmatmul.f32.gmra.mxu0 %v6240
  %v6304 = vpop.f32.mrf.mxu0
  %v6305 = vadd.f32 0.0, %v6304
  %6306 = vmatmul.f32.gmra.mxu0 %v6243
  %v6307 = vpop.f32.mrf.mxu0
  %v6308 = vadd.f32 0.0, %v6307
  %6309 = vmatmul.f32.gmra.mxu0 %v6246
  %v6310 = vpop.f32.mrf.mxu0
  %v6311 = vadd.f32 0.0, %v6310
  %6312 = vmatmul.f32.gmra.mxu0 %v6249
  %v6313 = vpop.f32.mrf.mxu0
  %v6314 = vadd.f32 0.0, %v6313
  %6315 = vmatmul.f32.gmra.mxu0 %v6252
  %v6316 = vpop.f32.mrf.mxu0
  %v6317 = vadd.f32 0.0, %v6316
  %6318 = vmatmul.f32.gmra.mxu0 %v6255
  %v6319 = vpop.f32.mrf.mxu0
  %v6320 = vadd.f32 0.0, %v6319
  %6321 = vmatmul.f32.gmra.mxu0 %v6258
  %v6322 = vpop.f32.mrf.mxu0
  %v6323 = vadd.f32 0.0, %v6322
  %6324 = vmatmul.f32.gmra.mxu0 %v6261
  %v6325 = vpop.f32.mrf.mxu0
  %v6326 = vadd.f32 0.0, %v6325
  %6327 = vmatmul.f32.gmra.mxu0 %v6264
  %v6328 = vpop.f32.mrf.mxu0
  %v6329 = vadd.f32 0.0, %v6328
  %6330 = vmatmul.f32.gmra.mxu0 %v6267
  %v6331 = vpop.f32.mrf.mxu0
  %v6332 = vadd.f32 0.0, %v6331
  %6333 = vmatmul.f32.gmra.mxu0 %v6270
  %v6334 = vpop.f32.mrf.mxu0
  %v6335 = vadd.f32 0.0, %v6334
  %6336 = vdwg.mxu0
  %6337 = vmatpush.msra.mxu0 0.0
  %6338 = vmatpush.msra.mxu0 0.0
  %6339 = vmatpush.msra.mxu0 0.0
  %6340 = vmatpush.msra.mxu0 0.0
  %6341 = vmatpush.msra.mxu0 0.0
  %6342 = vmatpush.msra.mxu0 0.0
  %6343 = vmatpush.msra.mxu0 0.0
  %6344 = vmatpush.msra.mxu0 0.0
  %6345 = vmatpush.msra.mxu0 %v1470
  %6346 = vmatpush.msra.mxu0 %v1468
  %6347 = vmatpush.msra.mxu0 %v1466
  %6348 = vmatpush.msra.mxu0 %v1464
  %6349 = vmatpush.msra.mxu0 %v1462
  %6350 = vmatpush.msra.mxu0 %v1460
  %6351 = vmatpush.msra.mxu0 %v1458
  %6352 = vmatpush.msra.mxu0 %v1456
  %6353 = vmatmul.f32.gmra.mxu0 %v6225
  %v6354 = vpop.f32.mrf.mxu0
  %v6355 = vadd.f32 0.0, %v6354
  %6356 = vmatmul.f32.gmra.mxu0 %v6228
  %v6357 = vpop.f32.mrf.mxu0
  %v6358 = vadd.f32 0.0, %v6357
  %6359 = vmatmul.f32.gmra.mxu0 %v6231
  %v6360 = vpop.f32.mrf.mxu0
  %v6361 = vadd.f32 0.0, %v6360
  %6362 = vmatmul.f32.gmra.mxu0 %v6234
  %v6363 = vpop.f32.mrf.mxu0
  %v6364 = vadd.f32 0.0, %v6363
  %6365 = vmatmul.f32.gmra.mxu0 %v6237
  %v6366 = vpop.f32.mrf.mxu0
  %v6367 = vadd.f32 0.0, %v6366
  %6368 = vmatmul.f32.gmra.mxu0 %v6240
  %v6369 = vpop.f32.mrf.mxu0
  %v6370 = vadd.f32 0.0, %v6369
  %6371 = vmatmul.f32.gmra.mxu0 %v6243
  %v6372 = vpop.f32.mrf.mxu0
  %v6373 = vadd.f32 0.0, %v6372
  %6374 = vmatmul.f32.gmra.mxu0 %v6246
  %v6375 = vpop.f32.mrf.mxu0
  %v6376 = vadd.f32 0.0, %v6375
  %6377 = vmatmul.f32.gmra.mxu0 %v6249
  %v6378 = vpop.f32.mrf.mxu0
  %v6379 = vadd.f32 0.0, %v6378
  %6380 = vmatmul.f32.gmra.mxu0 %v6252
  %v6381 = vpop.f32.mrf.mxu0
  %v6382 = vadd.f32 0.0, %v6381
  %6383 = vmatmul.f32.gmra.mxu0 %v6255
  %v6384 = vpop.f32.mrf.mxu0
  %v6385 = vadd.f32 0.0, %v6384
  %6386 = vmatmul.f32.gmra.mxu0 %v6258
  %v6387 = vpop.f32.mrf.mxu0
  %v6388 = vadd.f32 0.0, %v6387
  %6389 = vmatmul.f32.gmra.mxu0 %v6261
  %v6390 = vpop.f32.mrf.mxu0
  %v6391 = vadd.f32 0.0, %v6390
  %6392 = vmatmul.f32.gmra.mxu0 %v6264
  %v6393 = vpop.f32.mrf.mxu0
  %v6394 = vadd.f32 0.0, %v6393
  %6395 = vmatmul.f32.gmra.mxu0 %v6267
  %v6396 = vpop.f32.mrf.mxu0
  %v6397 = vadd.f32 0.0, %v6396
  %6398 = vmatmul.f32.gmra.mxu0 %v6270
  %v6399 = vpop.f32.mrf.mxu0
  %v6400 = vadd.f32 0.0, %v6399
  %6401 = vdwg.mxu0
  %v6402 = vadd.f32 %v6355, %v2100
  %v6403 = vadd.f32 %v6358, %v2100
  %v6404 = vadd.f32 %v6361, %v2100
  %v6405 = vadd.f32 %v6364, %v2100
  %v6406 = vadd.f32 %v6367, %v2100
  %v6407 = vadd.f32 %v6370, %v2100
  %v6408 = vadd.f32 %v6373, %v2100
  %v6409 = vadd.f32 %v6376, %v2100
  %v6410 = vadd.f32 %v6379, %v2100
  %v6411 = vadd.f32 %v6382, %v2100
  %v6412 = vadd.f32 %v6385, %v2100
  %v6413 = vadd.f32 %v6388, %v2100
  %v6414 = vadd.f32 %v6391, %v2100
  %v6415 = vadd.f32 %v6394, %v2100
  %v6416 = vadd.f32 %v6397, %v2100
  %v6417 = vadd.f32 %v6400, %v2100
  %v6418 = vmul.f32 %v6402, 0.5
  %v6419 = vmul.f32 %v6403, 0.5
  %v6420 = vmul.f32 %v6404, 0.5
  %v6421 = vmul.f32 %v6405, 0.5
  %v6422 = vmul.f32 %v6406, 0.5
  %v6423 = vmul.f32 %v6407, 0.5
  %v6424 = vmul.f32 %v6408, 0.5
  %v6425 = vmul.f32 %v6409, 0.5
  %v6426 = vmul.f32 %v6410, 0.5
  %v6427 = vmul.f32 %v6411, 0.5
  %v6428 = vmul.f32 %v6412, 0.5
  %v6429 = vmul.f32 %v6413, 0.5
  %v6430 = vmul.f32 %v6414, 0.5
  %v6431 = vmul.f32 %v6415, 0.5
  %v6432 = vmul.f32 %v6416, 0.5
  %v6433 = vmul.f32 %v6417, 0.5
  %v6434 = vtanh.pop %v6418
  %v6435 = vtanh.pop %v6419
  %v6436 = vtanh.pop %v6420
  %v6437 = vtanh.pop %v6421
  %v6438 = vtanh.pop %v6422
  %v6439 = vtanh.pop %v6423
  %v6440 = vtanh.pop %v6424
  %v6441 = vtanh.pop %v6425
  %v6442 = vtanh.pop %v6426
  %v6443 = vtanh.pop %v6427
  %v6444 = vtanh.pop %v6428
  %v6445 = vtanh.pop %v6429
  %v6446 = vtanh.pop %v6430
  %v6447 = vtanh.pop %v6431
  %v6448 = vtanh.pop %v6432
  %v6449 = vtanh.pop %v6433
  %v6450 = vmul.f32 %v6434, 0.5
  %v6451 = vmul.f32 %v6435, 0.5
  %v6452 = vmul.f32 %v6436, 0.5
  %v6453 = vmul.f32 %v6437, 0.5
  %v6454 = vmul.f32 %v6438, 0.5
  %v6455 = vmul.f32 %v6439, 0.5
  %v6456 = vmul.f32 %v6440, 0.5
  %v6457 = vmul.f32 %v6441, 0.5
  %v6458 = vmul.f32 %v6442, 0.5
  %v6459 = vmul.f32 %v6443, 0.5
  %v6460 = vmul.f32 %v6444, 0.5
  %v6461 = vmul.f32 %v6445, 0.5
  %v6462 = vmul.f32 %v6446, 0.5
  %v6463 = vmul.f32 %v6447, 0.5
  %v6464 = vmul.f32 %v6448, 0.5
  %v6465 = vmul.f32 %v6449, 0.5
  %v6466 = vadd.f32 %v6450, 0.5
  %v6467 = vadd.f32 %v6451, 0.5
  %v6468 = vadd.f32 %v6452, 0.5
  %v6469 = vadd.f32 %v6453, 0.5
  %v6470 = vadd.f32 %v6454, 0.5
  %v6471 = vadd.f32 %v6455, 0.5
  %v6472 = vadd.f32 %v6456, 0.5
  %v6473 = vadd.f32 %v6457, 0.5
  %v6474 = vadd.f32 %v6458, 0.5
  %v6475 = vadd.f32 %v6459, 0.5
  %v6476 = vadd.f32 %v6460, 0.5
  %v6477 = vadd.f32 %v6461, 0.5
  %v6478 = vadd.f32 %v6462, 0.5
  %v6479 = vadd.f32 %v6463, 0.5
  %v6480 = vadd.f32 %v6464, 0.5
  %v6481 = vadd.f32 %v6465, 0.5
  %v6482 = vtanh.pop %v6402
  %v6483 = vtanh.pop %v6403
  %v6484 = vtanh.pop %v6404
  %v6485 = vtanh.pop %v6405
  %v6486 = vtanh.pop %v6406
  %v6487 = vtanh.pop %v6407
  %v6488 = vtanh.pop %v6408
  %v6489 = vtanh.pop %v6409
  %v6490 = vtanh.pop %v6410
  %v6491 = vtanh.pop %v6411
  %v6492 = vtanh.pop %v6412
  %v6493 = vtanh.pop %v6413
  %v6494 = vtanh.pop %v6414
  %v6495 = vtanh.pop %v6415
  %v6496 = vtanh.pop %v6416
  %v6497 = vtanh.pop %v6417
  %v6498 = vmul.f32 %v6466, %v5583
  %v6499 = vmul.f32 %v6467, %v5584
  %v6500 = vmul.f32 %v6468, %v5585
  %v6501 = vmul.f32 %v6469, %v5586
  %v6502 = vmul.f32 %v6470, %v5587
  %v6503 = vmul.f32 %v6471, %v5588
  %v6504 = vmul.f32 %v6472, %v5589
  %v6505 = vmul.f32 %v6473, %v5590
  %v6506 = vmul.f32 %v6474, %v5591
  %v6507 = vmul.f32 %v6475, %v5592
  %v6508 = vmul.f32 %v6476, %v5593
  %v6509 = vmul.f32 %v6477, %v5594
  %v6510 = vmul.f32 %v6478, %v5595
  %v6511 = vmul.f32 %v6479, %v5596
  %v6512 = vmul.f32 %v6480, %v5597
  %v6513 = vmul.f32 %v6481, %v5598
  %6530 = vrot.lane.b32.xlu0 %v6482, 64
  %v6531 = vpop.permute.xlu0 %6530
  %6532 = vrot.lane.b32.xlu0 %v6483, 64
  %v6533 = vpop.permute.xlu0 %6532
  %6534 = vrot.lane.b32.xlu0 %v6484, 64
  %v6535 = vpop.permute.xlu0 %6534
  %6536 = vrot.lane.b32.xlu0 %v6485, 64
  %v6537 = vpop.permute.xlu0 %6536
  %6538 = vrot.lane.b32.xlu0 %v6486, 64
  %v6539 = vpop.permute.xlu0 %6538
  %6540 = vrot.lane.b32.xlu0 %v6487, 64
  %v6541 = vpop.permute.xlu0 %6540
  %6542 = vrot.lane.b32.xlu0 %v6488, 64
  %v6543 = vpop.permute.xlu0 %6542
  %6544 = vrot.lane.b32.xlu0 %v6489, 64
  %v6545 = vpop.permute.xlu0 %6544
  %6546 = vrot.lane.b32.xlu0 %v6490, 64
  %v6547 = vpop.permute.xlu0 %6546
  %6548 = vrot.lane.b32.xlu0 %v6491, 64
  %v6549 = vpop.permute.xlu0 %6548
  %6550 = vrot.lane.b32.xlu0 %v6492, 64
  %v6551 = vpop.permute.xlu0 %6550
  %6552 = vrot.lane.b32.xlu0 %v6493, 64
  %v6553 = vpop.permute.xlu0 %6552
  %6554 = vrot.lane.b32.xlu0 %v6494, 64
  %v6555 = vpop.permute.xlu0 %6554
  %6556 = vrot.lane.b32.xlu0 %v6495, 64
  %v6557 = vpop.permute.xlu0 %6556
  %6558 = vrot.lane.b32.xlu0 %v6496, 64
  %v6559 = vpop.permute.xlu0 %6558
  %6560 = vrot.lane.b32.xlu0 %v6497, 64
  %v6561 = vpop.permute.xlu0 %6560
  %v6578 = vmul.f32 %v6466, %v6531
  %v6579 = vmul.f32 %v6467, %v6533
  %v6580 = vmul.f32 %v6468, %v6535
  %v6581 = vmul.f32 %v6469, %v6537
  %v6582 = vmul.f32 %v6470, %v6539
  %v6583 = vmul.f32 %v6471, %v6541
  %v6584 = vmul.f32 %v6472, %v6543
  %v6585 = vmul.f32 %v6473, %v6545
  %v6586 = vmul.f32 %v6474, %v6547
  %v6587 = vmul.f32 %v6475, %v6549
  %v6588 = vmul.f32 %v6476, %v6551
  %v6589 = vmul.f32 %v6477, %v6553
  %v6590 = vmul.f32 %v6478, %v6555
  %v6591 = vmul.f32 %v6479, %v6557
  %v6592 = vmul.f32 %v6480, %v6559
  %v6593 = vmul.f32 %v6481, %v6561
  %6610 = vrot.lane.b32.xlu0 %v6578, 32
  %v6611 = vpop.permute.xlu0 %6610
  %6612 = vrot.lane.b32.xlu0 %v6579, 32
  %v6613 = vpop.permute.xlu0 %6612
  %6614 = vrot.lane.b32.xlu0 %v6580, 32
  %v6615 = vpop.permute.xlu0 %6614
  %6616 = vrot.lane.b32.xlu0 %v6581, 32
  %v6617 = vpop.permute.xlu0 %6616
  %6618 = vrot.lane.b32.xlu0 %v6582, 32
  %v6619 = vpop.permute.xlu0 %6618
  %6620 = vrot.lane.b32.xlu0 %v6583, 32
  %v6621 = vpop.permute.xlu0 %6620
  %6622 = vrot.lane.b32.xlu0 %v6584, 32
  %v6623 = vpop.permute.xlu0 %6622
  %6624 = vrot.lane.b32.xlu0 %v6585, 32
  %v6625 = vpop.permute.xlu0 %6624
  %6626 = vrot.lane.b32.xlu0 %v6586, 32
  %v6627 = vpop.permute.xlu0 %6626
  %6628 = vrot.lane.b32.xlu0 %v6587, 32
  %v6629 = vpop.permute.xlu0 %6628
  %6630 = vrot.lane.b32.xlu0 %v6588, 32
  %v6631 = vpop.permute.xlu0 %6630
  %6632 = vrot.lane.b32.xlu0 %v6589, 32
  %v6633 = vpop.permute.xlu0 %6632
  %6634 = vrot.lane.b32.xlu0 %v6590, 32
  %v6635 = vpop.permute.xlu0 %6634
  %6636 = vrot.lane.b32.xlu0 %v6591, 32
  %v6637 = vpop.permute.xlu0 %6636
  %6638 = vrot.lane.b32.xlu0 %v6592, 32
  %v6639 = vpop.permute.xlu0 %6638
  %6640 = vrot.lane.b32.xlu0 %v6593, 32
  %v6641 = vpop.permute.xlu0 %6640
  %v6658 = vadd.f32 %v6498, %v6611
  %v6659 = vadd.f32 %v6499, %v6613
  %v6660 = vadd.f32 %v6500, %v6615
  %v6661 = vadd.f32 %v6501, %v6617
  %v6662 = vadd.f32 %v6502, %v6619
  %v6663 = vadd.f32 %v6503, %v6621
  %v6664 = vadd.f32 %v6504, %v6623
  %v6665 = vadd.f32 %v6505, %v6625
  %v6666 = vadd.f32 %v6506, %v6627
  %v6667 = vadd.f32 %v6507, %v6629
  %v6668 = vadd.f32 %v6508, %v6631
  %v6669 = vadd.f32 %v6509, %v6633
  %v6670 = vadd.f32 %v6510, %v6635
  %v6671 = vadd.f32 %v6511, %v6637
  %v6672 = vadd.f32 %v6512, %v6639
  %v6673 = vadd.f32 %v6513, %v6641
  %v6674 = vtanh.pop %v6658
  %v6675 = vtanh.pop %v6659
  %v6676 = vtanh.pop %v6660
  %v6677 = vtanh.pop %v6661
  %v6678 = vtanh.pop %v6662
  %v6679 = vtanh.pop %v6663
  %v6680 = vtanh.pop %v6664
  %v6681 = vtanh.pop %v6665
  %v6682 = vtanh.pop %v6666
  %v6683 = vtanh.pop %v6667
  %v6684 = vtanh.pop %v6668
  %v6685 = vtanh.pop %v6669
  %v6686 = vtanh.pop %v6670
  %v6687 = vtanh.pop %v6671
  %v6688 = vtanh.pop %v6672
  %v6689 = vtanh.pop %v6673
  %6706 = vrot.lane.b32.xlu0 %v6674, 64
  %v6707 = vpop.permute.xlu0 %6706
  %6708 = vrot.lane.b32.xlu0 %v6675, 64
  %v6709 = vpop.permute.xlu0 %6708
  %6710 = vrot.lane.b32.xlu0 %v6676, 64
  %v6711 = vpop.permute.xlu0 %6710
  %6712 = vrot.lane.b32.xlu0 %v6677, 64
  %v6713 = vpop.permute.xlu0 %6712
  %6714 = vrot.lane.b32.xlu0 %v6678, 64
  %v6715 = vpop.permute.xlu0 %6714
  %6716 = vrot.lane.b32.xlu0 %v6679, 64
  %v6717 = vpop.permute.xlu0 %6716
  %6718 = vrot.lane.b32.xlu0 %v6680, 64
  %v6719 = vpop.permute.xlu0 %6718
  %6720 = vrot.lane.b32.xlu0 %v6681, 64
  %v6721 = vpop.permute.xlu0 %6720
  %6722 = vrot.lane.b32.xlu0 %v6682, 64
  %v6723 = vpop.permute.xlu0 %6722
  %6724 = vrot.lane.b32.xlu0 %v6683, 64
  %v6725 = vpop.permute.xlu0 %6724
  %6726 = vrot.lane.b32.xlu0 %v6684, 64
  %v6727 = vpop.permute.xlu0 %6726
  %6728 = vrot.lane.b32.xlu0 %v6685, 64
  %v6729 = vpop.permute.xlu0 %6728
  %6730 = vrot.lane.b32.xlu0 %v6686, 64
  %v6731 = vpop.permute.xlu0 %6730
  %6732 = vrot.lane.b32.xlu0 %v6687, 64
  %v6733 = vpop.permute.xlu0 %6732
  %6734 = vrot.lane.b32.xlu0 %v6688, 64
  %v6735 = vpop.permute.xlu0 %6734
  %6736 = vrot.lane.b32.xlu0 %v6689, 64
  %v6737 = vpop.permute.xlu0 %6736
  %v6754 = vmul.f32 %v6466, %v6707
  %v6755 = vmul.f32 %v6467, %v6709
  %v6756 = vmul.f32 %v6468, %v6711
  %v6757 = vmul.f32 %v6469, %v6713
  %v6758 = vmul.f32 %v6470, %v6715
  %v6759 = vmul.f32 %v6471, %v6717
  %v6760 = vmul.f32 %v6472, %v6719
  %v6761 = vmul.f32 %v6473, %v6721
  %v6762 = vmul.f32 %v6474, %v6723
  %v6763 = vmul.f32 %v6475, %v6725
  %v6764 = vmul.f32 %v6476, %v6727
  %v6765 = vmul.f32 %v6477, %v6729
  %v6766 = vmul.f32 %v6478, %v6731
  %v6767 = vmul.f32 %v6479, %v6733
  %v6768 = vmul.f32 %v6480, %v6735
  %v6769 = vmul.f32 %v6481, %v6737
  %s6770 = scalar_lea.vmem [#allocation2], 640
  %v6771 = vld [vmem:[%s6770] sm:$0xff]
  %v6772 = vld [vmem:[%s6770 + $0x8] sm:$0xff]
  %v6773 = vld [vmem:[%s6770 + $0x10] sm:$0xff]
  %v6774 = vld [vmem:[%s6770 + $0x18] sm:$0xff]
  %v6775 = vld [vmem:[%s6770 + $0x20] sm:$0xff]
  %v6776 = vld [vmem:[%s6770 + $0x28] sm:$0xff]
  %v6777 = vld [vmem:[%s6770 + $0x30] sm:$0xff]
  %v6778 = vld [vmem:[%s6770 + $0x38] sm:$0xff]
  %v6779 = vld [vmem:[%s6770 + $0x40] sm:$0xff]
  %v6780 = vld [vmem:[%s6770 + $0x48] sm:$0xff]
  %v6781 = vld [vmem:[%s6770 + $0x50] sm:$0xff]
  %v6782 = vld [vmem:[%s6770 + $0x58] sm:$0xff]
  %v6783 = vld [vmem:[%s6770 + $0x60] sm:$0xff]
  %v6784 = vld [vmem:[%s6770 + $0x68] sm:$0xff]
  %v6785 = vld [vmem:[%s6770 + $0x70] sm:$0xff]
  %v6786 = vld [vmem:[%s6770 + $0x78] sm:$0xff]
  %v6787 = vadd.f32 %v6290, %v6771
  %v6788 = vadd.f32 %v6293, %v6772
  %v6789 = vadd.f32 %v6296, %v6773
  %v6790 = vadd.f32 %v6299, %v6774
  %v6791 = vadd.f32 %v6302, %v6775
  %v6792 = vadd.f32 %v6305, %v6776
  %v6793 = vadd.f32 %v6308, %v6777
  %v6794 = vadd.f32 %v6311, %v6778
  %v6795 = vadd.f32 %v6314, %v6779
  %v6796 = vadd.f32 %v6317, %v6780
  %v6797 = vadd.f32 %v6320, %v6781
  %v6798 = vadd.f32 %v6323, %v6782
  %v6799 = vadd.f32 %v6326, %v6783
  %v6800 = vadd.f32 %v6329, %v6784
  %v6801 = vadd.f32 %v6332, %v6785
  %v6802 = vadd.f32 %v6335, %v6786
  %v6803 = vmul.f32 %v6787, 0.5
  %v6804 = vmul.f32 %v6788, 0.5
  %v6805 = vmul.f32 %v6789, 0.5
  %v6806 = vmul.f32 %v6790, 0.5
  %v6807 = vmul.f32 %v6791, 0.5
  %v6808 = vmul.f32 %v6792, 0.5
  %v6809 = vmul.f32 %v6793, 0.5
  %v6810 = vmul.f32 %v6794, 0.5
  %v6811 = vmul.f32 %v6795, 0.5
  %v6812 = vmul.f32 %v6796, 0.5
  %v6813 = vmul.f32 %v6797, 0.5
  %v6814 = vmul.f32 %v6798, 0.5
  %v6815 = vmul.f32 %v6799, 0.5
  %v6816 = vmul.f32 %v6800, 0.5
  %v6817 = vmul.f32 %v6801, 0.5
  %v6818 = vmul.f32 %v6802, 0.5
  %v6819 = vtanh.pop %v6803
  %v6820 = vtanh.pop %v6804
  %v6821 = vtanh.pop %v6805
  %v6822 = vtanh.pop %v6806
  %v6823 = vtanh.pop %v6807
  %v6824 = vtanh.pop %v6808
  %v6825 = vtanh.pop %v6809
  %v6826 = vtanh.pop %v6810
  %v6827 = vtanh.pop %v6811
  %v6828 = vtanh.pop %v6812
  %v6829 = vtanh.pop %v6813
  %v6830 = vtanh.pop %v6814
  %v6831 = vtanh.pop %v6815
  %v6832 = vtanh.pop %v6816
  %v6833 = vtanh.pop %v6817
  %v6834 = vtanh.pop %v6818
  %v6835 = vmul.f32 %v6819, 0.5
  %v6836 = vmul.f32 %v6820, 0.5
  %v6837 = vmul.f32 %v6821, 0.5
  %v6838 = vmul.f32 %v6822, 0.5
  %v6839 = vmul.f32 %v6823, 0.5
  %v6840 = vmul.f32 %v6824, 0.5
  %v6841 = vmul.f32 %v6825, 0.5
  %v6842 = vmul.f32 %v6826, 0.5
  %v6843 = vmul.f32 %v6827, 0.5
  %v6844 = vmul.f32 %v6828, 0.5
  %v6845 = vmul.f32 %v6829, 0.5
  %v6846 = vmul.f32 %v6830, 0.5
  %v6847 = vmul.f32 %v6831, 0.5
  %v6848 = vmul.f32 %v6832, 0.5
  %v6849 = vmul.f32 %v6833, 0.5
  %v6850 = vmul.f32 %v6834, 0.5
  %v6851 = vadd.f32 %v6835, 0.5
  %v6852 = vadd.f32 %v6836, 0.5
  %v6853 = vadd.f32 %v6837, 0.5
  %v6854 = vadd.f32 %v6838, 0.5
  %v6855 = vadd.f32 %v6839, 0.5
  %v6856 = vadd.f32 %v6840, 0.5
  %v6857 = vadd.f32 %v6841, 0.5
  %v6858 = vadd.f32 %v6842, 0.5
  %v6859 = vadd.f32 %v6843, 0.5
  %v6860 = vadd.f32 %v6844, 0.5
  %v6861 = vadd.f32 %v6845, 0.5
  %v6862 = vadd.f32 %v6846, 0.5
  %v6863 = vadd.f32 %v6847, 0.5
  %v6864 = vadd.f32 %v6848, 0.5
  %v6865 = vadd.f32 %v6849, 0.5
  %v6866 = vadd.f32 %v6850, 0.5
  %v6867 = vtanh.pop %v6787
  %v6868 = vtanh.pop %v6788
  %v6869 = vtanh.pop %v6789
  %v6870 = vtanh.pop %v6790
  %v6871 = vtanh.pop %v6791
  %v6872 = vtanh.pop %v6792
  %v6873 = vtanh.pop %v6793
  %v6874 = vtanh.pop %v6794
  %v6875 = vtanh.pop %v6795
  %v6876 = vtanh.pop %v6796
  %v6877 = vtanh.pop %v6797
  %v6878 = vtanh.pop %v6798
  %v6879 = vtanh.pop %v6799
  %v6880 = vtanh.pop %v6800
  %v6881 = vtanh.pop %v6801
  %v6882 = vtanh.pop %v6802
  %v6883 = vmul.f32 %v6851, %v5968
  %v6884 = vmul.f32 %v6852, %v5969
  %v6885 = vmul.f32 %v6853, %v5970
  %v6886 = vmul.f32 %v6854, %v5971
  %v6887 = vmul.f32 %v6855, %v5972
  %v6888 = vmul.f32 %v6856, %v5973
  %v6889 = vmul.f32 %v6857, %v5974
  %v6890 = vmul.f32 %v6858, %v5975
  %v6891 = vmul.f32 %v6859, %v5976
  %v6892 = vmul.f32 %v6860, %v5977
  %v6893 = vmul.f32 %v6861, %v5978
  %v6894 = vmul.f32 %v6862, %v5979
  %v6895 = vmul.f32 %v6863, %v5980
  %v6896 = vmul.f32 %v6864, %v5981
  %v6897 = vmul.f32 %v6865, %v5982
  %v6898 = vmul.f32 %v6866, %v5983
  %6915 = vrot.lane.b32.xlu0 %v6867, 64
  %v6916 = vpop.permute.xlu0 %6915
  %6917 = vrot.lane.b32.xlu0 %v6868, 64
  %v6918 = vpop.permute.xlu0 %6917
  %6919 = vrot.lane.b32.xlu0 %v6869, 64
  %v6920 = vpop.permute.xlu0 %6919
  %6921 = vrot.lane.b32.xlu0 %v6870, 64
  %v6922 = vpop.permute.xlu0 %6921
  %6923 = vrot.lane.b32.xlu0 %v6871, 64
  %v6924 = vpop.permute.xlu0 %6923
  %6925 = vrot.lane.b32.xlu0 %v6872, 64
  %v6926 = vpop.permute.xlu0 %6925
  %6927 = vrot.lane.b32.xlu0 %v6873, 64
  %v6928 = vpop.permute.xlu0 %6927
  %6929 = vrot.lane.b32.xlu0 %v6874, 64
  %v6930 = vpop.permute.xlu0 %6929
  %6931 = vrot.lane.b32.xlu0 %v6875, 64
  %v6932 = vpop.permute.xlu0 %6931
  %6933 = vrot.lane.b32.xlu0 %v6876, 64
  %v6934 = vpop.permute.xlu0 %6933
  %6935 = vrot.lane.b32.xlu0 %v6877, 64
  %v6936 = vpop.permute.xlu0 %6935
  %6937 = vrot.lane.b32.xlu0 %v6878, 64
  %v6938 = vpop.permute.xlu0 %6937
  %6939 = vrot.lane.b32.xlu0 %v6879, 64
  %v6940 = vpop.permute.xlu0 %6939
  %6941 = vrot.lane.b32.xlu0 %v6880, 64
  %v6942 = vpop.permute.xlu0 %6941
  %6943 = vrot.lane.b32.xlu0 %v6881, 64
  %v6944 = vpop.permute.xlu0 %6943
  %6945 = vrot.lane.b32.xlu0 %v6882, 64
  %v6946 = vpop.permute.xlu0 %6945
  %v6963 = vmul.f32 %v6851, %v6916
  %v6964 = vmul.f32 %v6852, %v6918
  %v6965 = vmul.f32 %v6853, %v6920
  %v6966 = vmul.f32 %v6854, %v6922
  %v6967 = vmul.f32 %v6855, %v6924
  %v6968 = vmul.f32 %v6856, %v6926
  %v6969 = vmul.f32 %v6857, %v6928
  %v6970 = vmul.f32 %v6858, %v6930
  %v6971 = vmul.f32 %v6859, %v6932
  %v6972 = vmul.f32 %v6860, %v6934
  %v6973 = vmul.f32 %v6861, %v6936
  %v6974 = vmul.f32 %v6862, %v6938
  %v6975 = vmul.f32 %v6863, %v6940
  %v6976 = vmul.f32 %v6864, %v6942
  %v6977 = vmul.f32 %v6865, %v6944
  %v6978 = vmul.f32 %v6866, %v6946
  %6995 = vrot.lane.b32.xlu0 %v6963, 32
  %v6996 = vpop.permute.xlu0 %6995
  %6997 = vrot.lane.b32.xlu0 %v6964, 32
  %v6998 = vpop.permute.xlu0 %6997
  %6999 = vrot.lane.b32.xlu0 %v6965, 32
  %v7000 = vpop.permute.xlu0 %6999
  %7001 = vrot.lane.b32.xlu0 %v6966, 32
  %v7002 = vpop.permute.xlu0 %7001
  %7003 = vrot.lane.b32.xlu0 %v6967, 32
  %v7004 = vpop.permute.xlu0 %7003
  %7005 = vrot.lane.b32.xlu0 %v6968, 32
  %v7006 = vpop.permute.xlu0 %7005
  %7007 = vrot.lane.b32.xlu0 %v6969, 32
  %v7008 = vpop.permute.xlu0 %7007
  %7009 = vrot.lane.b32.xlu0 %v6970, 32
  %v7010 = vpop.permute.xlu0 %7009
  %7011 = vrot.lane.b32.xlu0 %v6971, 32
  %v7012 = vpop.permute.xlu0 %7011
  %7013 = vrot.lane.b32.xlu0 %v6972, 32
  %v7014 = vpop.permute.xlu0 %7013
  %7015 = vrot.lane.b32.xlu0 %v6973, 32
  %v7016 = vpop.permute.xlu0 %7015
  %7017 = vrot.lane.b32.xlu0 %v6974, 32
  %v7018 = vpop.permute.xlu0 %7017
  %7019 = vrot.lane.b32.xlu0 %v6975, 32
  %v7020 = vpop.permute.xlu0 %7019
  %7021 = vrot.lane.b32.xlu0 %v6976, 32
  %v7022 = vpop.permute.xlu0 %7021
  %7023 = vrot.lane.b32.xlu0 %v6977, 32
  %v7024 = vpop.permute.xlu0 %7023
  %7025 = vrot.lane.b32.xlu0 %v6978, 32
  %v7026 = vpop.permute.xlu0 %7025
  %v7043 = vadd.f32 %v6883, %v6996
  %v7044 = vadd.f32 %v6884, %v6998
  %v7045 = vadd.f32 %v6885, %v7000
  %v7046 = vadd.f32 %v6886, %v7002
  %v7047 = vadd.f32 %v6887, %v7004
  %v7048 = vadd.f32 %v6888, %v7006
  %v7049 = vadd.f32 %v6889, %v7008
  %v7050 = vadd.f32 %v6890, %v7010
  %v7051 = vadd.f32 %v6891, %v7012
  %v7052 = vadd.f32 %v6892, %v7014
  %v7053 = vadd.f32 %v6893, %v7016
  %v7054 = vadd.f32 %v6894, %v7018
  %v7055 = vadd.f32 %v6895, %v7020
  %v7056 = vadd.f32 %v6896, %v7022
  %v7057 = vadd.f32 %v6897, %v7024
  %v7058 = vadd.f32 %v6898, %v7026
  %v7059 = vtanh.pop %v7043
  %v7060 = vtanh.pop %v7044
  %v7061 = vtanh.pop %v7045
  %v7062 = vtanh.pop %v7046
  %v7063 = vtanh.pop %v7047
  %v7064 = vtanh.pop %v7048
  %v7065 = vtanh.pop %v7049
  %v7066 = vtanh.pop %v7050
  %v7067 = vtanh.pop %v7051
  %v7068 = vtanh.pop %v7052
  %v7069 = vtanh.pop %v7053
  %v7070 = vtanh.pop %v7054
  %v7071 = vtanh.pop %v7055
  %v7072 = vtanh.pop %v7056
  %v7073 = vtanh.pop %v7057
  %v7074 = vtanh.pop %v7058
  %7091 = vrot.lane.b32.xlu0 %v7059, 64
  %v7092 = vpop.permute.xlu0 %7091
  %7093 = vrot.lane.b32.xlu0 %v7060, 64
  %v7094 = vpop.permute.xlu0 %7093
  %7095 = vrot.lane.b32.xlu0 %v7061, 64
  %v7096 = vpop.permute.xlu0 %7095
  %7097 = vrot.lane.b32.xlu0 %v7062, 64
  %v7098 = vpop.permute.xlu0 %7097
  %7099 = vrot.lane.b32.xlu0 %v7063, 64
  %v7100 = vpop.permute.xlu0 %7099
  %7101 = vrot.lane.b32.xlu0 %v7064, 64
  %v7102 = vpop.permute.xlu0 %7101
  %7103 = vrot.lane.b32.xlu0 %v7065, 64
  %v7104 = vpop.permute.xlu0 %7103
  %7105 = vrot.lane.b32.xlu0 %v7066, 64
  %v7106 = vpop.permute.xlu0 %7105
  %7107 = vrot.lane.b32.xlu0 %v7067, 64
  %v7108 = vpop.permute.xlu0 %7107
  %7109 = vrot.lane.b32.xlu0 %v7068, 64
  %v7110 = vpop.permute.xlu0 %7109
  %7111 = vrot.lane.b32.xlu0 %v7069, 64
  %v7112 = vpop.permute.xlu0 %7111
  %7113 = vrot.lane.b32.xlu0 %v7070, 64
  %v7114 = vpop.permute.xlu0 %7113
  %7115 = vrot.lane.b32.xlu0 %v7071, 64
  %v7116 = vpop.permute.xlu0 %7115
  %7117 = vrot.lane.b32.xlu0 %v7072, 64
  %v7118 = vpop.permute.xlu0 %7117
  %7119 = vrot.lane.b32.xlu0 %v7073, 64
  %v7120 = vpop.permute.xlu0 %7119
  %7121 = vrot.lane.b32.xlu0 %v7074, 64
  %v7122 = vpop.permute.xlu0 %7121
  %v7139 = vmul.f32 %v6851, %v7092
  %v7140 = vmul.f32 %v6852, %v7094
  %v7141 = vmul.f32 %v6853, %v7096
  %v7142 = vmul.f32 %v6854, %v7098
  %v7143 = vmul.f32 %v6855, %v7100
  %v7144 = vmul.f32 %v6856, %v7102
  %v7145 = vmul.f32 %v6857, %v7104
  %v7146 = vmul.f32 %v6858, %v7106
  %v7147 = vmul.f32 %v6859, %v7108
  %v7148 = vmul.f32 %v6860, %v7110
  %v7149 = vmul.f32 %v6861, %v7112
  %v7150 = vmul.f32 %v6862, %v7114
  %v7151 = vmul.f32 %v6863, %v7116
  %v7152 = vmul.f32 %v6864, %v7118
  %v7153 = vmul.f32 %v6865, %v7120
  %v7154 = vmul.f32 %v6866, %v7122
  %7171 = vrot.lane.b32.xlu0 %v7139, 32
  %v7172 = vpop.permute.xlu0 %7171
  %7173 = vrot.lane.b32.xlu0 %v7140, 32
  %v7174 = vpop.permute.xlu0 %7173
  %7175 = vrot.lane.b32.xlu0 %v7141, 32
  %v7176 = vpop.permute.xlu0 %7175
  %7177 = vrot.lane.b32.xlu0 %v7142, 32
  %v7178 = vpop.permute.xlu0 %7177
  %7179 = vrot.lane.b32.xlu0 %v7143, 32
  %v7180 = vpop.permute.xlu0 %7179
  %7181 = vrot.lane.b32.xlu0 %v7144, 32
  %v7182 = vpop.permute.xlu0 %7181
  %7183 = vrot.lane.b32.xlu0 %v7145, 32
  %v7184 = vpop.permute.xlu0 %7183
  %7185 = vrot.lane.b32.xlu0 %v7146, 32
  %v7186 = vpop.permute.xlu0 %7185
  %7187 = vrot.lane.b32.xlu0 %v7147, 32
  %v7188 = vpop.permute.xlu0 %7187
  %7189 = vrot.lane.b32.xlu0 %v7148, 32
  %v7190 = vpop.permute.xlu0 %7189
  %7191 = vrot.lane.b32.xlu0 %v7149, 32
  %v7192 = vpop.permute.xlu0 %7191
  %7193 = vrot.lane.b32.xlu0 %v7150, 32
  %v7194 = vpop.permute.xlu0 %7193
  %7195 = vrot.lane.b32.xlu0 %v7151, 32
  %v7196 = vpop.permute.xlu0 %7195
  %7197 = vrot.lane.b32.xlu0 %v7152, 32
  %v7198 = vpop.permute.xlu0 %7197
  %7199 = vrot.lane.b32.xlu0 %v7153, 32
  %v7200 = vpop.permute.xlu0 %7199
  %7201 = vrot.lane.b32.xlu0 %v7154, 32
  %v7202 = vpop.permute.xlu0 %7201
  %7235 = vrot.lane.b32.xlu0 %v6754, 64
  %v7236 = vpop.permute.xlu0 %7235
  %7237 = vrot.lane.b32.xlu0 %v6755, 64
  %v7238 = vpop.permute.xlu0 %7237
  %7239 = vrot.lane.b32.xlu0 %v6756, 64
  %v7240 = vpop.permute.xlu0 %7239
  %7241 = vrot.lane.b32.xlu0 %v6757, 64
  %v7242 = vpop.permute.xlu0 %7241
  %7243 = vrot.lane.b32.xlu0 %v6758, 64
  %v7244 = vpop.permute.xlu0 %7243
  %7245 = vrot.lane.b32.xlu0 %v6759, 64
  %v7246 = vpop.permute.xlu0 %7245
  %7247 = vrot.lane.b32.xlu0 %v6760, 64
  %v7248 = vpop.permute.xlu0 %7247
  %7249 = vrot.lane.b32.xlu0 %v6761, 64
  %v7250 = vpop.permute.xlu0 %7249
  %7251 = vrot.lane.b32.xlu0 %v6762, 64
  %v7252 = vpop.permute.xlu0 %7251
  %7253 = vrot.lane.b32.xlu0 %v6763, 64
  %v7254 = vpop.permute.xlu0 %7253
  %7255 = vrot.lane.b32.xlu0 %v6764, 64
  %v7256 = vpop.permute.xlu0 %7255
  %7257 = vrot.lane.b32.xlu0 %v6765, 64
  %v7258 = vpop.permute.xlu0 %7257
  %7259 = vrot.lane.b32.xlu0 %v6766, 64
  %v7260 = vpop.permute.xlu0 %7259
  %7261 = vrot.lane.b32.xlu0 %v6767, 64
  %v7262 = vpop.permute.xlu0 %7261
  %7263 = vrot.lane.b32.xlu0 %v6768, 64
  %v7264 = vpop.permute.xlu0 %7263
  %7265 = vrot.lane.b32.xlu0 %v6769, 64
  %v7266 = vpop.permute.xlu0 %7265
  %v7283 = vsel %vm1904, %v7172, %v7236
  %v7284 = vsel %vm1904, %v7174, %v7238
  %v7285 = vsel %vm1904, %v7176, %v7240
  %v7286 = vsel %vm1904, %v7178, %v7242
  %v7287 = vsel %vm1904, %v7180, %v7244
  %v7288 = vsel %vm1904, %v7182, %v7246
  %v7289 = vsel %vm1904, %v7184, %v7248
  %v7290 = vsel %vm1904, %v7186, %v7250
  %v7291 = vsel %vm1904, %v7188, %v7252
  %v7292 = vsel %vm1904, %v7190, %v7254
  %v7293 = vsel %vm1904, %v7192, %v7256
  %v7294 = vsel %vm1904, %v7194, %v7258
  %v7295 = vsel %vm1904, %v7196, %v7260
  %v7296 = vsel %vm1904, %v7198, %v7262
  %v7297 = vsel %vm1904, %v7200, %v7264
  %v7298 = vsel %vm1904, %v7202, %v7266
  %v7300 = vsel %vm246, %v7283, 0
  %v7303 = vsel %vm246, %v7284, 0
  %v7306 = vsel %vm246, %v7285, 0
  %v7309 = vsel %vm246, %v7286, 0
  %v7312 = vsel %vm246, %v7287, 0
  %v7315 = vsel %vm246, %v7288, 0
  %v7318 = vsel %vm246, %v7289, 0
  %v7321 = vsel %vm246, %v7290, 0
  %v7324 = vsel %vm246, %v7291, 0
  %v7327 = vsel %vm246, %v7292, 0
  %v7330 = vsel %vm246, %v7293, 0
  %v7333 = vsel %vm246, %v7294, 0
  %v7336 = vsel %vm246, %v7295, 0
  %v7339 = vsel %vm246, %v7296, 0
  %v7342 = vsel %vm246, %v7297, 0
  %v7345 = vsel %vm246, %v7298, 0
  %7347 = vmatpush.msra.mxu0 0.0
  %7348 = vmatpush.msra.mxu0 0.0
  %7349 = vmatpush.msra.mxu0 0.0
  %7350 = vmatpush.msra.mxu0 0.0
  %7351 = vmatpush.msra.mxu0 0.0
  %7352 = vmatpush.msra.mxu0 0.0
  %7353 = vmatpush.msra.mxu0 0.0
  %7354 = vmatpush.msra.mxu0 0.0
  %7355 = vmatpush.msra.mxu0 %v1469
  %7356 = vmatpush.msra.mxu0 %v1467
  %7357 = vmatpush.msra.mxu0 %v1465
  %7358 = vmatpush.msra.mxu0 %v1463
  %7359 = vmatpush.msra.mxu0 %v1461
  %7360 = vmatpush.msra.mxu0 %v1459
  %7361 = vmatpush.msra.mxu0 %v1457
  %7362 = vmatpush.msra.mxu0 %v1455
  %7363 = vmatmul.f32.gmra.mxu0 %v7300
  %v7364 = vpop.f32.mrf.mxu0
  %v7365 = vadd.f32 0.0, %v7364
  %7366 = vmatmul.f32.gmra.mxu0 %v7303
  %v7367 = vpop.f32.mrf.mxu0
  %v7368 = vadd.f32 0.0, %v7367
  %7369 = vmatmul.f32.gmra.mxu0 %v7306
  %v7370 = vpop.f32.mrf.mxu0
  %v7371 = vadd.f32 0.0, %v7370
  %7372 = vmatmul.f32.gmra.mxu0 %v7309
  %v7373 = vpop.f32.mrf.mxu0
  %v7374 = vadd.f32 0.0, %v7373
  %7375 = vmatmul.f32.gmra.mxu0 %v7312
  %v7376 = vpop.f32.mrf.mxu0
  %v7377 = vadd.f32 0.0, %v7376
  %7378 = vmatmul.f32.gmra.mxu0 %v7315
  %v7379 = vpop.f32.mrf.mxu0
  %v7380 = vadd.f32 0.0, %v7379
  %7381 = vmatmul.f32.gmra.mxu0 %v7318
  %v7382 = vpop.f32.mrf.mxu0
  %v7383 = vadd.f32 0.0, %v7382
  %7384 = vmatmul.f32.gmra.mxu0 %v7321
  %v7385 = vpop.f32.mrf.mxu0
  %v7386 = vadd.f32 0.0, %v7385
  %7387 = vmatmul.f32.gmra.mxu0 %v7324
  %v7388 = vpop.f32.mrf.mxu0
  %v7389 = vadd.f32 0.0, %v7388
  %7390 = vmatmul.f32.gmra.mxu0 %v7327
  %v7391 = vpop.f32.mrf.mxu0
  %v7392 = vadd.f32 0.0, %v7391
  %7393 = vmatmul.f32.gmra.mxu0 %v7330
  %v7394 = vpop.f32.mrf.mxu0
  %v7395 = vadd.f32 0.0, %v7394
  %7396 = vmatmul.f32.gmra.mxu0 %v7333
  %v7397 = vpop.f32.mrf.mxu0
  %v7398 = vadd.f32 0.0, %v7397
  %7399 = vmatmul.f32.gmra.mxu0 %v7336
  %v7400 = vpop.f32.mrf.mxu0
  %v7401 = vadd.f32 0.0, %v7400
  %7402 = vmatmul.f32.gmra.mxu0 %v7339
  %v7403 = vpop.f32.mrf.mxu0
  %v7404 = vadd.f32 0.0, %v7403
  %7405 = vmatmul.f32.gmra.mxu0 %v7342
  %v7406 = vpop.f32.mrf.mxu0
  %v7407 = vadd.f32 0.0, %v7406
  %7408 = vmatmul.f32.gmra.mxu0 %v7345
  %v7409 = vpop.f32.mrf.mxu0
  %v7410 = vadd.f32 0.0, %v7409
  %7411 = vdwg.mxu0
  %7412 = vmatpush.msra.mxu0 0.0
  %7413 = vmatpush.msra.mxu0 0.0
  %7414 = vmatpush.msra.mxu0 0.0
  %7415 = vmatpush.msra.mxu0 0.0
  %7416 = vmatpush.msra.mxu0 0.0
  %7417 = vmatpush.msra.mxu0 0.0
  %7418 = vmatpush.msra.mxu0 0.0
  %7419 = vmatpush.msra.mxu0 0.0
  %7420 = vmatpush.msra.mxu0 %v1470
  %7421 = vmatpush.msra.mxu0 %v1468
  %7422 = vmatpush.msra.mxu0 %v1466
  %7423 = vmatpush.msra.mxu0 %v1464
  %7424 = vmatpush.msra.mxu0 %v1462
  %7425 = vmatpush.msra.mxu0 %v1460
  %7426 = vmatpush.msra.mxu0 %v1458
  %7427 = vmatpush.msra.mxu0 %v1456
  %7428 = vmatmul.f32.gmra.mxu0 %v7300
  %v7429 = vpop.f32.mrf.mxu0
  %v7430 = vadd.f32 0.0, %v7429
  %7431 = vmatmul.f32.gmra.mxu0 %v7303
  %v7432 = vpop.f32.mrf.mxu0
  %v7433 = vadd.f32 0.0, %v7432
  %7434 = vmatmul.f32.gmra.mxu0 %v7306
  %v7435 = vpop.f32.mrf.mxu0
  %v7436 = vadd.f32 0.0, %v7435
  %7437 = vmatmul.f32.gmra.mxu0 %v7309
  %v7438 = vpop.f32.mrf.mxu0
  %v7439 = vadd.f32 0.0, %v7438
  %7440 = vmatmul.f32.gmra.mxu0 %v7312
  %v7441 = vpop.f32.mrf.mxu0
  %v7442 = vadd.f32 0.0, %v7441
  %7443 = vmatmul.f32.gmra.mxu0 %v7315
  %v7444 = vpop.f32.mrf.mxu0
  %v7445 = vadd.f32 0.0, %v7444
  %7446 = vmatmul.f32.gmra.mxu0 %v7318
  %v7447 = vpop.f32.mrf.mxu0
  %v7448 = vadd.f32 0.0, %v7447
  %7449 = vmatmul.f32.gmra.mxu0 %v7321
  %v7450 = vpop.f32.mrf.mxu0
  %v7451 = vadd.f32 0.0, %v7450
  %7452 = vmatmul.f32.gmra.mxu0 %v7324
  %v7453 = vpop.f32.mrf.mxu0
  %v7454 = vadd.f32 0.0, %v7453
  %7455 = vmatmul.f32.gmra.mxu0 %v7327
  %v7456 = vpop.f32.mrf.mxu0
  %v7457 = vadd.f32 0.0, %v7456
  %7458 = vmatmul.f32.gmra.mxu0 %v7330
  %v7459 = vpop.f32.mrf.mxu0
  %v7460 = vadd.f32 0.0, %v7459
  %7461 = vmatmul.f32.gmra.mxu0 %v7333
  %v7462 = vpop.f32.mrf.mxu0
  %v7463 = vadd.f32 0.0, %v7462
  %7464 = vmatmul.f32.gmra.mxu0 %v7336
  %v7465 = vpop.f32.mrf.mxu0
  %v7466 = vadd.f32 0.0, %v7465
  %7467 = vmatmul.f32.gmra.mxu0 %v7339
  %v7468 = vpop.f32.mrf.mxu0
  %v7469 = vadd.f32 0.0, %v7468
  %7470 = vmatmul.f32.gmra.mxu0 %v7342
  %v7471 = vpop.f32.mrf.mxu0
  %v7472 = vadd.f32 0.0, %v7471
  %7473 = vmatmul.f32.gmra.mxu0 %v7345
  %v7474 = vpop.f32.mrf.mxu0
  %v7475 = vadd.f32 0.0, %v7474
  %7476 = vdwg.mxu0
  %v7477 = vadd.f32 %v7430, %v2100
  %v7478 = vadd.f32 %v7433, %v2100
  %v7479 = vadd.f32 %v7436, %v2100
  %v7480 = vadd.f32 %v7439, %v2100
  %v7481 = vadd.f32 %v7442, %v2100
  %v7482 = vadd.f32 %v7445, %v2100
  %v7483 = vadd.f32 %v7448, %v2100
  %v7484 = vadd.f32 %v7451, %v2100
  %v7485 = vadd.f32 %v7454, %v2100
  %v7486 = vadd.f32 %v7457, %v2100
  %v7487 = vadd.f32 %v7460, %v2100
  %v7488 = vadd.f32 %v7463, %v2100
  %v7489 = vadd.f32 %v7466, %v2100
  %v7490 = vadd.f32 %v7469, %v2100
  %v7491 = vadd.f32 %v7472, %v2100
  %v7492 = vadd.f32 %v7475, %v2100
  %v7493 = vmul.f32 %v7477, 0.5
  %v7494 = vmul.f32 %v7478, 0.5
  %v7495 = vmul.f32 %v7479, 0.5
  %v7496 = vmul.f32 %v7480, 0.5
  %v7497 = vmul.f32 %v7481, 0.5
  %v7498 = vmul.f32 %v7482, 0.5
  %v7499 = vmul.f32 %v7483, 0.5
  %v7500 = vmul.f32 %v7484, 0.5
  %v7501 = vmul.f32 %v7485, 0.5
  %v7502 = vmul.f32 %v7486, 0.5
  %v7503 = vmul.f32 %v7487, 0.5
  %v7504 = vmul.f32 %v7488, 0.5
  %v7505 = vmul.f32 %v7489, 0.5
  %v7506 = vmul.f32 %v7490, 0.5
  %v7507 = vmul.f32 %v7491, 0.5
  %v7508 = vmul.f32 %v7492, 0.5
  %v7509 = vtanh.pop %v7493
  %v7510 = vtanh.pop %v7494
  %v7511 = vtanh.pop %v7495
  %v7512 = vtanh.pop %v7496
  %v7513 = vtanh.pop %v7497
  %v7514 = vtanh.pop %v7498
  %v7515 = vtanh.pop %v7499
  %v7516 = vtanh.pop %v7500
  %v7517 = vtanh.pop %v7501
  %v7518 = vtanh.pop %v7502
  %v7519 = vtanh.pop %v7503
  %v7520 = vtanh.pop %v7504
  %v7521 = vtanh.pop %v7505
  %v7522 = vtanh.pop %v7506
  %v7523 = vtanh.pop %v7507
  %v7524 = vtanh.pop %v7508
  %v7525 = vmul.f32 %v7509, 0.5
  %v7526 = vmul.f32 %v7510, 0.5
  %v7527 = vmul.f32 %v7511, 0.5
  %v7528 = vmul.f32 %v7512, 0.5
  %v7529 = vmul.f32 %v7513, 0.5
  %v7530 = vmul.f32 %v7514, 0.5
  %v7531 = vmul.f32 %v7515, 0.5
  %v7532 = vmul.f32 %v7516, 0.5
  %v7533 = vmul.f32 %v7517, 0.5
  %v7534 = vmul.f32 %v7518, 0.5
  %v7535 = vmul.f32 %v7519, 0.5
  %v7536 = vmul.f32 %v7520, 0.5
  %v7537 = vmul.f32 %v7521, 0.5
  %v7538 = vmul.f32 %v7522, 0.5
  %v7539 = vmul.f32 %v7523, 0.5
  %v7540 = vmul.f32 %v7524, 0.5
  %v7541 = vadd.f32 %v7525, 0.5
  %v7542 = vadd.f32 %v7526, 0.5
  %v7543 = vadd.f32 %v7527, 0.5
  %v7544 = vadd.f32 %v7528, 0.5
  %v7545 = vadd.f32 %v7529, 0.5
  %v7546 = vadd.f32 %v7530, 0.5
  %v7547 = vadd.f32 %v7531, 0.5
  %v7548 = vadd.f32 %v7532, 0.5
  %v7549 = vadd.f32 %v7533, 0.5
  %v7550 = vadd.f32 %v7534, 0.5
  %v7551 = vadd.f32 %v7535, 0.5
  %v7552 = vadd.f32 %v7536, 0.5
  %v7553 = vadd.f32 %v7537, 0.5
  %v7554 = vadd.f32 %v7538, 0.5
  %v7555 = vadd.f32 %v7539, 0.5
  %v7556 = vadd.f32 %v7540, 0.5
  %v7557 = vtanh.pop %v7477
  %v7558 = vtanh.pop %v7478
  %v7559 = vtanh.pop %v7479
  %v7560 = vtanh.pop %v7480
  %v7561 = vtanh.pop %v7481
  %v7562 = vtanh.pop %v7482
  %v7563 = vtanh.pop %v7483
  %v7564 = vtanh.pop %v7484
  %v7565 = vtanh.pop %v7485
  %v7566 = vtanh.pop %v7486
  %v7567 = vtanh.pop %v7487
  %v7568 = vtanh.pop %v7488
  %v7569 = vtanh.pop %v7489
  %v7570 = vtanh.pop %v7490
  %v7571 = vtanh.pop %v7491
  %v7572 = vtanh.pop %v7492
  %v7573 = vmul.f32 %v7541, %v6658
  %v7574 = vmul.f32 %v7542, %v6659
  %v7575 = vmul.f32 %v7543, %v6660
  %v7576 = vmul.f32 %v7544, %v6661
  %v7577 = vmul.f32 %v7545, %v6662
  %v7578 = vmul.f32 %v7546, %v6663
  %v7579 = vmul.f32 %v7547, %v6664
  %v7580 = vmul.f32 %v7548, %v6665
  %v7581 = vmul.f32 %v7549, %v6666
  %v7582 = vmul.f32 %v7550, %v6667
  %v7583 = vmul.f32 %v7551, %v6668
  %v7584 = vmul.f32 %v7552, %v6669
  %v7585 = vmul.f32 %v7553, %v6670
  %v7586 = vmul.f32 %v7554, %v6671
  %v7587 = vmul.f32 %v7555, %v6672
  %v7588 = vmul.f32 %v7556, %v6673
  %7605 = vrot.lane.b32.xlu0 %v7557, 64
  %v7606 = vpop.permute.xlu0 %7605
  %7607 = vrot.lane.b32.xlu0 %v7558, 64
  %v7608 = vpop.permute.xlu0 %7607
  %7609 = vrot.lane.b32.xlu0 %v7559, 64
  %v7610 = vpop.permute.xlu0 %7609
  %7611 = vrot.lane.b32.xlu0 %v7560, 64
  %v7612 = vpop.permute.xlu0 %7611
  %7613 = vrot.lane.b32.xlu0 %v7561, 64
  %v7614 = vpop.permute.xlu0 %7613
  %7615 = vrot.lane.b32.xlu0 %v7562, 64
  %v7616 = vpop.permute.xlu0 %7615
  %7617 = vrot.lane.b32.xlu0 %v7563, 64
  %v7618 = vpop.permute.xlu0 %7617
  %7619 = vrot.lane.b32.xlu0 %v7564, 64
  %v7620 = vpop.permute.xlu0 %7619
  %7621 = vrot.lane.b32.xlu0 %v7565, 64
  %v7622 = vpop.permute.xlu0 %7621
  %7623 = vrot.lane.b32.xlu0 %v7566, 64
  %v7624 = vpop.permute.xlu0 %7623
  %7625 = vrot.lane.b32.xlu0 %v7567, 64
  %v7626 = vpop.permute.xlu0 %7625
  %7627 = vrot.lane.b32.xlu0 %v7568, 64
  %v7628 = vpop.permute.xlu0 %7627
  %7629 = vrot.lane.b32.xlu0 %v7569, 64
  %v7630 = vpop.permute.xlu0 %7629
  %7631 = vrot.lane.b32.xlu0 %v7570, 64
  %v7632 = vpop.permute.xlu0 %7631
  %7633 = vrot.lane.b32.xlu0 %v7571, 64
  %v7634 = vpop.permute.xlu0 %7633
  %7635 = vrot.lane.b32.xlu0 %v7572, 64
  %v7636 = vpop.permute.xlu0 %7635
  %v7653 = vmul.f32 %v7541, %v7606
  %v7654 = vmul.f32 %v7542, %v7608
  %v7655 = vmul.f32 %v7543, %v7610
  %v7656 = vmul.f32 %v7544, %v7612
  %v7657 = vmul.f32 %v7545, %v7614
  %v7658 = vmul.f32 %v7546, %v7616
  %v7659 = vmul.f32 %v7547, %v7618
  %v7660 = vmul.f32 %v7548, %v7620
  %v7661 = vmul.f32 %v7549, %v7622
  %v7662 = vmul.f32 %v7550, %v7624
  %v7663 = vmul.f32 %v7551, %v7626
  %v7664 = vmul.f32 %v7552, %v7628
  %v7665 = vmul.f32 %v7553, %v7630
  %v7666 = vmul.f32 %v7554, %v7632
  %v7667 = vmul.f32 %v7555, %v7634
  %v7668 = vmul.f32 %v7556, %v7636
  %7685 = vrot.lane.b32.xlu0 %v7653, 32
  %v7686 = vpop.permute.xlu0 %7685
  %7687 = vrot.lane.b32.xlu0 %v7654, 32
  %v7688 = vpop.permute.xlu0 %7687
  %7689 = vrot.lane.b32.xlu0 %v7655, 32
  %v7690 = vpop.permute.xlu0 %7689
  %7691 = vrot.lane.b32.xlu0 %v7656, 32
  %v7692 = vpop.permute.xlu0 %7691
  %7693 = vrot.lane.b32.xlu0 %v7657, 32
  %v7694 = vpop.permute.xlu0 %7693
  %7695 = vrot.lane.b32.xlu0 %v7658, 32
  %v7696 = vpop.permute.xlu0 %7695
  %7697 = vrot.lane.b32.xlu0 %v7659, 32
  %v7698 = vpop.permute.xlu0 %7697
  %7699 = vrot.lane.b32.xlu0 %v7660, 32
  %v7700 = vpop.permute.xlu0 %7699
  %7701 = vrot.lane.b32.xlu0 %v7661, 32
  %v7702 = vpop.permute.xlu0 %7701
  %7703 = vrot.lane.b32.xlu0 %v7662, 32
  %v7704 = vpop.permute.xlu0 %7703
  %7705 = vrot.lane.b32.xlu0 %v7663, 32
  %v7706 = vpop.permute.xlu0 %7705
  %7707 = vrot.lane.b32.xlu0 %v7664, 32
  %v7708 = vpop.permute.xlu0 %7707
  %7709 = vrot.lane.b32.xlu0 %v7665, 32
  %v7710 = vpop.permute.xlu0 %7709
  %7711 = vrot.lane.b32.xlu0 %v7666, 32
  %v7712 = vpop.permute.xlu0 %7711
  %7713 = vrot.lane.b32.xlu0 %v7667, 32
  %v7714 = vpop.permute.xlu0 %7713
  %7715 = vrot.lane.b32.xlu0 %v7668, 32
  %v7716 = vpop.permute.xlu0 %7715
  %v7733 = vadd.f32 %v7573, %v7686
  %v7734 = vadd.f32 %v7574, %v7688
  %v7735 = vadd.f32 %v7575, %v7690
  %v7736 = vadd.f32 %v7576, %v7692
  %v7737 = vadd.f32 %v7577, %v7694
  %v7738 = vadd.f32 %v7578, %v7696
  %v7739 = vadd.f32 %v7579, %v7698
  %v7740 = vadd.f32 %v7580, %v7700
  %v7741 = vadd.f32 %v7581, %v7702
  %v7742 = vadd.f32 %v7582, %v7704
  %v7743 = vadd.f32 %v7583, %v7706
  %v7744 = vadd.f32 %v7584, %v7708
  %v7745 = vadd.f32 %v7585, %v7710
  %v7746 = vadd.f32 %v7586, %v7712
  %v7747 = vadd.f32 %v7587, %v7714
  %v7748 = vadd.f32 %v7588, %v7716
  %v7749 = vtanh.pop %v7733
  %v7750 = vtanh.pop %v7734
  %v7751 = vtanh.pop %v7735
  %v7752 = vtanh.pop %v7736
  %v7753 = vtanh.pop %v7737
  %v7754 = vtanh.pop %v7738
  %v7755 = vtanh.pop %v7739
  %v7756 = vtanh.pop %v7740
  %v7757 = vtanh.pop %v7741
  %v7758 = vtanh.pop %v7742
  %v7759 = vtanh.pop %v7743
  %v7760 = vtanh.pop %v7744
  %v7761 = vtanh.pop %v7745
  %v7762 = vtanh.pop %v7746
  %v7763 = vtanh.pop %v7747
  %v7764 = vtanh.pop %v7748
  %7781 = vrot.lane.b32.xlu0 %v7749, 64
  %v7782 = vpop.permute.xlu0 %7781
  %7783 = vrot.lane.b32.xlu0 %v7750, 64
  %v7784 = vpop.permute.xlu0 %7783
  %7785 = vrot.lane.b32.xlu0 %v7751, 64
  %v7786 = vpop.permute.xlu0 %7785
  %7787 = vrot.lane.b32.xlu0 %v7752, 64
  %v7788 = vpop.permute.xlu0 %7787
  %7789 = vrot.lane.b32.xlu0 %v7753, 64
  %v7790 = vpop.permute.xlu0 %7789
  %7791 = vrot.lane.b32.xlu0 %v7754, 64
  %v7792 = vpop.permute.xlu0 %7791
  %7793 = vrot.lane.b32.xlu0 %v7755, 64
  %v7794 = vpop.permute.xlu0 %7793
  %7795 = vrot.lane.b32.xlu0 %v7756, 64
  %v7796 = vpop.permute.xlu0 %7795
  %7797 = vrot.lane.b32.xlu0 %v7757, 64
  %v7798 = vpop.permute.xlu0 %7797
  %7799 = vrot.lane.b32.xlu0 %v7758, 64
  %v7800 = vpop.permute.xlu0 %7799
  %7801 = vrot.lane.b32.xlu0 %v7759, 64
  %v7802 = vpop.permute.xlu0 %7801
  %7803 = vrot.lane.b32.xlu0 %v7760, 64
  %v7804 = vpop.permute.xlu0 %7803
  %7805 = vrot.lane.b32.xlu0 %v7761, 64
  %v7806 = vpop.permute.xlu0 %7805
  %7807 = vrot.lane.b32.xlu0 %v7762, 64
  %v7808 = vpop.permute.xlu0 %7807
  %7809 = vrot.lane.b32.xlu0 %v7763, 64
  %v7810 = vpop.permute.xlu0 %7809
  %7811 = vrot.lane.b32.xlu0 %v7764, 64
  %v7812 = vpop.permute.xlu0 %7811
  %v7829 = vmul.f32 %v7541, %v7782
  %v7830 = vmul.f32 %v7542, %v7784
  %v7831 = vmul.f32 %v7543, %v7786
  %v7832 = vmul.f32 %v7544, %v7788
  %v7833 = vmul.f32 %v7545, %v7790
  %v7834 = vmul.f32 %v7546, %v7792
  %v7835 = vmul.f32 %v7547, %v7794
  %v7836 = vmul.f32 %v7548, %v7796
  %v7837 = vmul.f32 %v7549, %v7798
  %v7838 = vmul.f32 %v7550, %v7800
  %v7839 = vmul.f32 %v7551, %v7802
  %v7840 = vmul.f32 %v7552, %v7804
  %v7841 = vmul.f32 %v7553, %v7806
  %v7842 = vmul.f32 %v7554, %v7808
  %v7843 = vmul.f32 %v7555, %v7810
  %v7844 = vmul.f32 %v7556, %v7812
  %s7845 = scalar_lea.vmem [#allocation2], 768
  %v7846 = vld [vmem:[%s7845] sm:$0xff]
  %v7847 = vld [vmem:[%s7845 + $0x8] sm:$0xff]
  %v7848 = vld [vmem:[%s7845 + $0x10] sm:$0xff]
  %v7849 = vld [vmem:[%s7845 + $0x18] sm:$0xff]
  %v7850 = vld [vmem:[%s7845 + $0x20] sm:$0xff]
  %v7851 = vld [vmem:[%s7845 + $0x28] sm:$0xff]
  %v7852 = vld [vmem:[%s7845 + $0x30] sm:$0xff]
  %v7853 = vld [vmem:[%s7845 + $0x38] sm:$0xff]
  %v7854 = vld [vmem:[%s7845 + $0x40] sm:$0xff]
  %v7855 = vld [vmem:[%s7845 + $0x48] sm:$0xff]
  %v7856 = vld [vmem:[%s7845 + $0x50] sm:$0xff]
  %v7857 = vld [vmem:[%s7845 + $0x58] sm:$0xff]
  %v7858 = vld [vmem:[%s7845 + $0x60] sm:$0xff]
  %v7859 = vld [vmem:[%s7845 + $0x68] sm:$0xff]
  %v7860 = vld [vmem:[%s7845 + $0x70] sm:$0xff]
  %v7861 = vld [vmem:[%s7845 + $0x78] sm:$0xff]
  %v7862 = vadd.f32 %v7365, %v7846
  %v7863 = vadd.f32 %v7368, %v7847
  %v7864 = vadd.f32 %v7371, %v7848
  %v7865 = vadd.f32 %v7374, %v7849
  %v7866 = vadd.f32 %v7377, %v7850
  %v7867 = vadd.f32 %v7380, %v7851
  %v7868 = vadd.f32 %v7383, %v7852
  %v7869 = vadd.f32 %v7386, %v7853
  %v7870 = vadd.f32 %v7389, %v7854
  %v7871 = vadd.f32 %v7392, %v7855
  %v7872 = vadd.f32 %v7395, %v7856
  %v7873 = vadd.f32 %v7398, %v7857
  %v7874 = vadd.f32 %v7401, %v7858
  %v7875 = vadd.f32 %v7404, %v7859
  %v7876 = vadd.f32 %v7407, %v7860
  %v7877 = vadd.f32 %v7410, %v7861
  %v7878 = vmul.f32 %v7862, 0.5
  %v7879 = vmul.f32 %v7863, 0.5
  %v7880 = vmul.f32 %v7864, 0.5
  %v7881 = vmul.f32 %v7865, 0.5
  %v7882 = vmul.f32 %v7866, 0.5
  %v7883 = vmul.f32 %v7867, 0.5
  %v7884 = vmul.f32 %v7868, 0.5
  %v7885 = vmul.f32 %v7869, 0.5
  %v7886 = vmul.f32 %v7870, 0.5
  %v7887 = vmul.f32 %v7871, 0.5
  %v7888 = vmul.f32 %v7872, 0.5
  %v7889 = vmul.f32 %v7873, 0.5
  %v7890 = vmul.f32 %v7874, 0.5
  %v7891 = vmul.f32 %v7875, 0.5
  %v7892 = vmul.f32 %v7876, 0.5
  %v7893 = vmul.f32 %v7877, 0.5
  %v7894 = vtanh.pop %v7878
  %v7895 = vtanh.pop %v7879
  %v7896 = vtanh.pop %v7880
  %v7897 = vtanh.pop %v7881
  %v7898 = vtanh.pop %v7882
  %v7899 = vtanh.pop %v7883
  %v7900 = vtanh.pop %v7884
  %v7901 = vtanh.pop %v7885
  %v7902 = vtanh.pop %v7886
  %v7903 = vtanh.pop %v7887
  %v7904 = vtanh.pop %v7888
  %v7905 = vtanh.pop %v7889
  %v7906 = vtanh.pop %v7890
  %v7907 = vtanh.pop %v7891
  %v7908 = vtanh.pop %v7892
  %v7909 = vtanh.pop %v7893
  %v7910 = vmul.f32 %v7894, 0.5
  %v7911 = vmul.f32 %v7895, 0.5
  %v7912 = vmul.f32 %v7896, 0.5
  %v7913 = vmul.f32 %v7897, 0.5
  %v7914 = vmul.f32 %v7898, 0.5
  %v7915 = vmul.f32 %v7899, 0.5
  %v7916 = vmul.f32 %v7900, 0.5
  %v7917 = vmul.f32 %v7901, 0.5
  %v7918 = vmul.f32 %v7902, 0.5
  %v7919 = vmul.f32 %v7903, 0.5
  %v7920 = vmul.f32 %v7904, 0.5
  %v7921 = vmul.f32 %v7905, 0.5
  %v7922 = vmul.f32 %v7906, 0.5
  %v7923 = vmul.f32 %v7907, 0.5
  %v7924 = vmul.f32 %v7908, 0.5
  %v7925 = vmul.f32 %v7909, 0.5
  %v7926 = vadd.f32 %v7910, 0.5
  %v7927 = vadd.f32 %v7911, 0.5
  %v7928 = vadd.f32 %v7912, 0.5
  %v7929 = vadd.f32 %v7913, 0.5
  %v7930 = vadd.f32 %v7914, 0.5
  %v7931 = vadd.f32 %v7915, 0.5
  %v7932 = vadd.f32 %v7916, 0.5
  %v7933 = vadd.f32 %v7917, 0.5
  %v7934 = vadd.f32 %v7918, 0.5
  %v7935 = vadd.f32 %v7919, 0.5
  %v7936 = vadd.f32 %v7920, 0.5
  %v7937 = vadd.f32 %v7921, 0.5
  %v7938 = vadd.f32 %v7922, 0.5
  %v7939 = vadd.f32 %v7923, 0.5
  %v7940 = vadd.f32 %v7924, 0.5
  %v7941 = vadd.f32 %v7925, 0.5
  %v7942 = vtanh.pop %v7862
  %v7943 = vtanh.pop %v7863
  %v7944 = vtanh.pop %v7864
  %v7945 = vtanh.pop %v7865
  %v7946 = vtanh.pop %v7866
  %v7947 = vtanh.pop %v7867
  %v7948 = vtanh.pop %v7868
  %v7949 = vtanh.pop %v7869
  %v7950 = vtanh.pop %v7870
  %v7951 = vtanh.pop %v7871
  %v7952 = vtanh.pop %v7872
  %v7953 = vtanh.pop %v7873
  %v7954 = vtanh.pop %v7874
  %v7955 = vtanh.pop %v7875
  %v7956 = vtanh.pop %v7876
  %v7957 = vtanh.pop %v7877
  %v7958 = vmul.f32 %v7926, %v7043
  %v7959 = vmul.f32 %v7927, %v7044
  %v7960 = vmul.f32 %v7928, %v7045
  %v7961 = vmul.f32 %v7929, %v7046
  %v7962 = vmul.f32 %v7930, %v7047
  %v7963 = vmul.f32 %v7931, %v7048
  %v7964 = vmul.f32 %v7932, %v7049
  %v7965 = vmul.f32 %v7933, %v7050
  %v7966 = vmul.f32 %v7934, %v7051
  %v7967 = vmul.f32 %v7935, %v7052
  %v7968 = vmul.f32 %v7936, %v7053
  %v7969 = vmul.f32 %v7937, %v7054
  %v7970 = vmul.f32 %v7938, %v7055
  %v7971 = vmul.f32 %v7939, %v7056
  %v7972 = vmul.f32 %v7940, %v7057
  %v7973 = vmul.f32 %v7941, %v7058
  %7990 = vrot.lane.b32.xlu0 %v7942, 64
  %v7991 = vpop.permute.xlu0 %7990
  %7992 = vrot.lane.b32.xlu0 %v7943, 64
  %v7993 = vpop.permute.xlu0 %7992
  %7994 = vrot.lane.b32.xlu0 %v7944, 64
  %v7995 = vpop.permute.xlu0 %7994
  %7996 = vrot.lane.b32.xlu0 %v7945, 64
  %v7997 = vpop.permute.xlu0 %7996
  %7998 = vrot.lane.b32.xlu0 %v7946, 64
  %v7999 = vpop.permute.xlu0 %7998
  %8000 = vrot.lane.b32.xlu0 %v7947, 64
  %v8001 = vpop.permute.xlu0 %8000
  %8002 = vrot.lane.b32.xlu0 %v7948, 64
  %v8003 = vpop.permute.xlu0 %8002
  %8004 = vrot.lane.b32.xlu0 %v7949, 64
  %v8005 = vpop.permute.xlu0 %8004
  %8006 = vrot.lane.b32.xlu0 %v7950, 64
  %v8007 = vpop.permute.xlu0 %8006
  %8008 = vrot.lane.b32.xlu0 %v7951, 64
  %v8009 = vpop.permute.xlu0 %8008
  %8010 = vrot.lane.b32.xlu0 %v7952, 64
  %v8011 = vpop.permute.xlu0 %8010
  %8012 = vrot.lane.b32.xlu0 %v7953, 64
  %v8013 = vpop.permute.xlu0 %8012
  %8014 = vrot.lane.b32.xlu0 %v7954, 64
  %v8015 = vpop.permute.xlu0 %8014
  %8016 = vrot.lane.b32.xlu0 %v7955, 64
  %v8017 = vpop.permute.xlu0 %8016
  %8018 = vrot.lane.b32.xlu0 %v7956, 64
  %v8019 = vpop.permute.xlu0 %8018
  %8020 = vrot.lane.b32.xlu0 %v7957, 64
  %v8021 = vpop.permute.xlu0 %8020
  %v8038 = vmul.f32 %v7926, %v7991
  %v8039 = vmul.f32 %v7927, %v7993
  %v8040 = vmul.f32 %v7928, %v7995
  %v8041 = vmul.f32 %v7929, %v7997
  %v8042 = vmul.f32 %v7930, %v7999
  %v8043 = vmul.f32 %v7931, %v8001
  %v8044 = vmul.f32 %v7932, %v8003
  %v8045 = vmul.f32 %v7933, %v8005
  %v8046 = vmul.f32 %v7934, %v8007
  %v8047 = vmul.f32 %v7935, %v8009
  %v8048 = vmul.f32 %v7936, %v8011
  %v8049 = vmul.f32 %v7937, %v8013
  %v8050 = vmul.f32 %v7938, %v8015
  %v8051 = vmul.f32 %v7939, %v8017
  %v8052 = vmul.f32 %v7940, %v8019
  %v8053 = vmul.f32 %v7941, %v8021
  %8070 = vrot.lane.b32.xlu0 %v8038, 32
  %v8071 = vpop.permute.xlu0 %8070
  %8072 = vrot.lane.b32.xlu0 %v8039, 32
  %v8073 = vpop.permute.xlu0 %8072
  %8074 = vrot.lane.b32.xlu0 %v8040, 32
  %v8075 = vpop.permute.xlu0 %8074
  %8076 = vrot.lane.b32.xlu0 %v8041, 32
  %v8077 = vpop.permute.xlu0 %8076
  %8078 = vrot.lane.b32.xlu0 %v8042, 32
  %v8079 = vpop.permute.xlu0 %8078
  %8080 = vrot.lane.b32.xlu0 %v8043, 32
  %v8081 = vpop.permute.xlu0 %8080
  %8082 = vrot.lane.b32.xlu0 %v8044, 32
  %v8083 = vpop.permute.xlu0 %8082
  %8084 = vrot.lane.b32.xlu0 %v8045, 32
  %v8085 = vpop.permute.xlu0 %8084
  %8086 = vrot.lane.b32.xlu0 %v8046, 32
  %v8087 = vpop.permute.xlu0 %8086
  %8088 = vrot.lane.b32.xlu0 %v8047, 32
  %v8089 = vpop.permute.xlu0 %8088
  %8090 = vrot.lane.b32.xlu0 %v8048, 32
  %v8091 = vpop.permute.xlu0 %8090
  %8092 = vrot.lane.b32.xlu0 %v8049, 32
  %v8093 = vpop.permute.xlu0 %8092
  %8094 = vrot.lane.b32.xlu0 %v8050, 32
  %v8095 = vpop.permute.xlu0 %8094
  %8096 = vrot.lane.b32.xlu0 %v8051, 32
  %v8097 = vpop.permute.xlu0 %8096
  %8098 = vrot.lane.b32.xlu0 %v8052, 32
  %v8099 = vpop.permute.xlu0 %8098
  %8100 = vrot.lane.b32.xlu0 %v8053, 32
  %v8101 = vpop.permute.xlu0 %8100
  %v8118 = vadd.f32 %v7958, %v8071
  %v8119 = vadd.f32 %v7959, %v8073
  %v8120 = vadd.f32 %v7960, %v8075
  %v8121 = vadd.f32 %v7961, %v8077
  %v8122 = vadd.f32 %v7962, %v8079
  %v8123 = vadd.f32 %v7963, %v8081
  %v8124 = vadd.f32 %v7964, %v8083
  %v8125 = vadd.f32 %v7965, %v8085
  %v8126 = vadd.f32 %v7966, %v8087
  %v8127 = vadd.f32 %v7967, %v8089
  %v8128 = vadd.f32 %v7968, %v8091
  %v8129 = vadd.f32 %v7969, %v8093
  %v8130 = vadd.f32 %v7970, %v8095
  %v8131 = vadd.f32 %v7971, %v8097
  %v8132 = vadd.f32 %v7972, %v8099
  %v8133 = vadd.f32 %v7973, %v8101
  %v8134 = vtanh.pop %v8118
  %v8135 = vtanh.pop %v8119
  %v8136 = vtanh.pop %v8120
  %v8137 = vtanh.pop %v8121
  %v8138 = vtanh.pop %v8122
  %v8139 = vtanh.pop %v8123
  %v8140 = vtanh.pop %v8124
  %v8141 = vtanh.pop %v8125
  %v8142 = vtanh.pop %v8126
  %v8143 = vtanh.pop %v8127
  %v8144 = vtanh.pop %v8128
  %v8145 = vtanh.pop %v8129
  %v8146 = vtanh.pop %v8130
  %v8147 = vtanh.pop %v8131
  %v8148 = vtanh.pop %v8132
  %v8149 = vtanh.pop %v8133
  %8166 = vrot.lane.b32.xlu0 %v8134, 64
  %v8167 = vpop.permute.xlu0 %8166
  %8168 = vrot.lane.b32.xlu0 %v8135, 64
  %v8169 = vpop.permute.xlu0 %8168
  %8170 = vrot.lane.b32.xlu0 %v8136, 64
  %v8171 = vpop.permute.xlu0 %8170
  %8172 = vrot.lane.b32.xlu0 %v8137, 64
  %v8173 = vpop.permute.xlu0 %8172
  %8174 = vrot.lane.b32.xlu0 %v8138, 64
  %v8175 = vpop.permute.xlu0 %8174
  %8176 = vrot.lane.b32.xlu0 %v8139, 64
  %v8177 = vpop.permute.xlu0 %8176
  %8178 = vrot.lane.b32.xlu0 %v8140, 64
  %v8179 = vpop.permute.xlu0 %8178
  %8180 = vrot.lane.b32.xlu0 %v8141, 64
  %v8181 = vpop.permute.xlu0 %8180
  %8182 = vrot.lane.b32.xlu0 %v8142, 64
  %v8183 = vpop.permute.xlu0 %8182
  %8184 = vrot.lane.b32.xlu0 %v8143, 64
  %v8185 = vpop.permute.xlu0 %8184
  %8186 = vrot.lane.b32.xlu0 %v8144, 64
  %v8187 = vpop.permute.xlu0 %8186
  %8188 = vrot.lane.b32.xlu0 %v8145, 64
  %v8189 = vpop.permute.xlu0 %8188
  %8190 = vrot.lane.b32.xlu0 %v8146, 64
  %v8191 = vpop.permute.xlu0 %8190
  %8192 = vrot.lane.b32.xlu0 %v8147, 64
  %v8193 = vpop.permute.xlu0 %8192
  %8194 = vrot.lane.b32.xlu0 %v8148, 64
  %v8195 = vpop.permute.xlu0 %8194
  %8196 = vrot.lane.b32.xlu0 %v8149, 64
  %v8197 = vpop.permute.xlu0 %8196
  %v8214 = vmul.f32 %v7926, %v8167
  %v8215 = vmul.f32 %v7927, %v8169
  %v8216 = vmul.f32 %v7928, %v8171
  %v8217 = vmul.f32 %v7929, %v8173
  %v8218 = vmul.f32 %v7930, %v8175
  %v8219 = vmul.f32 %v7931, %v8177
  %v8220 = vmul.f32 %v7932, %v8179
  %v8221 = vmul.f32 %v7933, %v8181
  %v8222 = vmul.f32 %v7934, %v8183
  %v8223 = vmul.f32 %v7935, %v8185
  %v8224 = vmul.f32 %v7936, %v8187
  %v8225 = vmul.f32 %v7937, %v8189
  %v8226 = vmul.f32 %v7938, %v8191
  %v8227 = vmul.f32 %v7939, %v8193
  %v8228 = vmul.f32 %v7940, %v8195
  %v8229 = vmul.f32 %v7941, %v8197
  %8246 = vrot.lane.b32.xlu0 %v8214, 32
  %v8247 = vpop.permute.xlu0 %8246
  %8248 = vrot.lane.b32.xlu0 %v8215, 32
  %v8249 = vpop.permute.xlu0 %8248
  %8250 = vrot.lane.b32.xlu0 %v8216, 32
  %v8251 = vpop.permute.xlu0 %8250
  %8252 = vrot.lane.b32.xlu0 %v8217, 32
  %v8253 = vpop.permute.xlu0 %8252
  %8254 = vrot.lane.b32.xlu0 %v8218, 32
  %v8255 = vpop.permute.xlu0 %8254
  %8256 = vrot.lane.b32.xlu0 %v8219, 32
  %v8257 = vpop.permute.xlu0 %8256
  %8258 = vrot.lane.b32.xlu0 %v8220, 32
  %v8259 = vpop.permute.xlu0 %8258
  %8260 = vrot.lane.b32.xlu0 %v8221, 32
  %v8261 = vpop.permute.xlu0 %8260
  %8262 = vrot.lane.b32.xlu0 %v8222, 32
  %v8263 = vpop.permute.xlu0 %8262
  %8264 = vrot.lane.b32.xlu0 %v8223, 32
  %v8265 = vpop.permute.xlu0 %8264
  %8266 = vrot.lane.b32.xlu0 %v8224, 32
  %v8267 = vpop.permute.xlu0 %8266
  %8268 = vrot.lane.b32.xlu0 %v8225, 32
  %v8269 = vpop.permute.xlu0 %8268
  %8270 = vrot.lane.b32.xlu0 %v8226, 32
  %v8271 = vpop.permute.xlu0 %8270
  %8272 = vrot.lane.b32.xlu0 %v8227, 32
  %v8273 = vpop.permute.xlu0 %8272
  %8274 = vrot.lane.b32.xlu0 %v8228, 32
  %v8275 = vpop.permute.xlu0 %8274
  %8276 = vrot.lane.b32.xlu0 %v8229, 32
  %v8277 = vpop.permute.xlu0 %8276
  %8310 = vrot.lane.b32.xlu0 %v7829, 64
  %v8311 = vpop.permute.xlu0 %8310
  %8312 = vrot.lane.b32.xlu0 %v7830, 64
  %v8313 = vpop.permute.xlu0 %8312
  %8314 = vrot.lane.b32.xlu0 %v7831, 64
  %v8315 = vpop.permute.xlu0 %8314
  %8316 = vrot.lane.b32.xlu0 %v7832, 64
  %v8317 = vpop.permute.xlu0 %8316
  %8318 = vrot.lane.b32.xlu0 %v7833, 64
  %v8319 = vpop.permute.xlu0 %8318
  %8320 = vrot.lane.b32.xlu0 %v7834, 64
  %v8321 = vpop.permute.xlu0 %8320
  %8322 = vrot.lane.b32.xlu0 %v7835, 64
  %v8323 = vpop.permute.xlu0 %8322
  %8324 = vrot.lane.b32.xlu0 %v7836, 64
  %v8325 = vpop.permute.xlu0 %8324
  %8326 = vrot.lane.b32.xlu0 %v7837, 64
  %v8327 = vpop.permute.xlu0 %8326
  %8328 = vrot.lane.b32.xlu0 %v7838, 64
  %v8329 = vpop.permute.xlu0 %8328
  %8330 = vrot.lane.b32.xlu0 %v7839, 64
  %v8331 = vpop.permute.xlu0 %8330
  %8332 = vrot.lane.b32.xlu0 %v7840, 64
  %v8333 = vpop.permute.xlu0 %8332
  %8334 = vrot.lane.b32.xlu0 %v7841, 64
  %v8335 = vpop.permute.xlu0 %8334
  %8336 = vrot.lane.b32.xlu0 %v7842, 64
  %v8337 = vpop.permute.xlu0 %8336
  %8338 = vrot.lane.b32.xlu0 %v7843, 64
  %v8339 = vpop.permute.xlu0 %8338
  %8340 = vrot.lane.b32.xlu0 %v7844, 64
  %v8341 = vpop.permute.xlu0 %8340
  %v8358 = vsel %vm1904, %v8247, %v8311
  %v8359 = vsel %vm1904, %v8249, %v8313
  %v8360 = vsel %vm1904, %v8251, %v8315
  %v8361 = vsel %vm1904, %v8253, %v8317
  %v8362 = vsel %vm1904, %v8255, %v8319
  %v8363 = vsel %vm1904, %v8257, %v8321
  %v8364 = vsel %vm1904, %v8259, %v8323
  %v8365 = vsel %vm1904, %v8261, %v8325
  %v8366 = vsel %vm1904, %v8263, %v8327
  %v8367 = vsel %vm1904, %v8265, %v8329
  %v8368 = vsel %vm1904, %v8267, %v8331
  %v8369 = vsel %vm1904, %v8269, %v8333
  %v8370 = vsel %vm1904, %v8271, %v8335
  %v8371 = vsel %vm1904, %v8273, %v8337
  %v8372 = vsel %vm1904, %v8275, %v8339
  %v8373 = vsel %vm1904, %v8277, %v8341
  %v8375 = vsel %vm246, %v8358, 0
  %v8378 = vsel %vm246, %v8359, 0
  %v8381 = vsel %vm246, %v8360, 0
  %v8384 = vsel %vm246, %v8361, 0
  %v8387 = vsel %vm246, %v8362, 0
  %v8390 = vsel %vm246, %v8363, 0
  %v8393 = vsel %vm246, %v8364, 0
  %v8396 = vsel %vm246, %v8365, 0
  %v8399 = vsel %vm246, %v8366, 0
  %v8402 = vsel %vm246, %v8367, 0
  %v8405 = vsel %vm246, %v8368, 0
  %v8408 = vsel %vm246, %v8369, 0
  %v8411 = vsel %vm246, %v8370, 0
  %v8414 = vsel %vm246, %v8371, 0
  %v8417 = vsel %vm246, %v8372, 0
  %v8420 = vsel %vm246, %v8373, 0
  %8422 = vmatpush.msra.mxu0 0.0
  %8423 = vmatpush.msra.mxu0 0.0
  %8424 = vmatpush.msra.mxu0 0.0
  %8425 = vmatpush.msra.mxu0 0.0
  %8426 = vmatpush.msra.mxu0 0.0
  %8427 = vmatpush.msra.mxu0 0.0
  %8428 = vmatpush.msra.mxu0 0.0
  %8429 = vmatpush.msra.mxu0 0.0
  %8430 = vmatpush.msra.mxu0 %v1469
  %8431 = vmatpush.msra.mxu0 %v1467
  %8432 = vmatpush.msra.mxu0 %v1465
  %8433 = vmatpush.msra.mxu0 %v1463
  %8434 = vmatpush.msra.mxu0 %v1461
  %8435 = vmatpush.msra.mxu0 %v1459
  %8436 = vmatpush.msra.mxu0 %v1457
  %8437 = vmatpush.msra.mxu0 %v1455
  %8438 = vmatmul.f32.gmra.mxu0 %v8375
  %v8439 = vpop.f32.mrf.mxu0
  %v8440 = vadd.f32 0.0, %v8439
  %8441 = vmatmul.f32.gmra.mxu0 %v8378
  %v8442 = vpop.f32.mrf.mxu0
  %v8443 = vadd.f32 0.0, %v8442
  %8444 = vmatmul.f32.gmra.mxu0 %v8381
  %v8445 = vpop.f32.mrf.mxu0
  %v8446 = vadd.f32 0.0, %v8445
  %8447 = vmatmul.f32.gmra.mxu0 %v8384
  %v8448 = vpop.f32.mrf.mxu0
  %v8449 = vadd.f32 0.0, %v8448
  %8450 = vmatmul.f32.gmra.mxu0 %v8387
  %v8451 = vpop.f32.mrf.mxu0
  %v8452 = vadd.f32 0.0, %v8451
  %8453 = vmatmul.f32.gmra.mxu0 %v8390
  %v8454 = vpop.f32.mrf.mxu0
  %v8455 = vadd.f32 0.0, %v8454
  %8456 = vmatmul.f32.gmra.mxu0 %v8393
  %v8457 = vpop.f32.mrf.mxu0
  %v8458 = vadd.f32 0.0, %v8457
  %8459 = vmatmul.f32.gmra.mxu0 %v8396
  %v8460 = vpop.f32.mrf.mxu0
  %v8461 = vadd.f32 0.0, %v8460
  %8462 = vmatmul.f32.gmra.mxu0 %v8399
  %v8463 = vpop.f32.mrf.mxu0
  %v8464 = vadd.f32 0.0, %v8463
  %8465 = vmatmul.f32.gmra.mxu0 %v8402
  %v8466 = vpop.f32.mrf.mxu0
  %v8467 = vadd.f32 0.0, %v8466
  %8468 = vmatmul.f32.gmra.mxu0 %v8405
  %v8469 = vpop.f32.mrf.mxu0
  %v8470 = vadd.f32 0.0, %v8469
  %8471 = vmatmul.f32.gmra.mxu0 %v8408
  %v8472 = vpop.f32.mrf.mxu0
  %v8473 = vadd.f32 0.0, %v8472
  %8474 = vmatmul.f32.gmra.mxu0 %v8411
  %v8475 = vpop.f32.mrf.mxu0
  %v8476 = vadd.f32 0.0, %v8475
  %8477 = vmatmul.f32.gmra.mxu0 %v8414
  %v8478 = vpop.f32.mrf.mxu0
  %v8479 = vadd.f32 0.0, %v8478
  %8480 = vmatmul.f32.gmra.mxu0 %v8417
  %v8481 = vpop.f32.mrf.mxu0
  %v8482 = vadd.f32 0.0, %v8481
  %8483 = vmatmul.f32.gmra.mxu0 %v8420
  %v8484 = vpop.f32.mrf.mxu0
  %v8485 = vadd.f32 0.0, %v8484
  %8486 = vdwg.mxu0
  %8487 = vmatpush.msra.mxu0 0.0
  %8488 = vmatpush.msra.mxu0 0.0
  %8489 = vmatpush.msra.mxu0 0.0
  %8490 = vmatpush.msra.mxu0 0.0
  %8491 = vmatpush.msra.mxu0 0.0
  %8492 = vmatpush.msra.mxu0 0.0
  %8493 = vmatpush.msra.mxu0 0.0
  %8494 = vmatpush.msra.mxu0 0.0
  %8495 = vmatpush.msra.mxu0 %v1470
  %8496 = vmatpush.msra.mxu0 %v1468
  %8497 = vmatpush.msra.mxu0 %v1466
  %8498 = vmatpush.msra.mxu0 %v1464
  %8499 = vmatpush.msra.mxu0 %v1462
  %8500 = vmatpush.msra.mxu0 %v1460
  %8501 = vmatpush.msra.mxu0 %v1458
  %8502 = vmatpush.msra.mxu0 %v1456
  %8503 = vmatmul.f32.gmra.mxu0 %v8375
  %v8504 = vpop.f32.mrf.mxu0
  %v8505 = vadd.f32 0.0, %v8504
  %8506 = vmatmul.f32.gmra.mxu0 %v8378
  %v8507 = vpop.f32.mrf.mxu0
  %v8508 = vadd.f32 0.0, %v8507
  %8509 = vmatmul.f32.gmra.mxu0 %v8381
  %v8510 = vpop.f32.mrf.mxu0
  %v8511 = vadd.f32 0.0, %v8510
  %8512 = vmatmul.f32.gmra.mxu0 %v8384
  %v8513 = vpop.f32.mrf.mxu0
  %v8514 = vadd.f32 0.0, %v8513
  %8515 = vmatmul.f32.gmra.mxu0 %v8387
  %v8516 = vpop.f32.mrf.mxu0
  %v8517 = vadd.f32 0.0, %v8516
  %8518 = vmatmul.f32.gmra.mxu0 %v8390
  %v8519 = vpop.f32.mrf.mxu0
  %v8520 = vadd.f32 0.0, %v8519
  %8521 = vmatmul.f32.gmra.mxu0 %v8393
  %v8522 = vpop.f32.mrf.mxu0
  %v8523 = vadd.f32 0.0, %v8522
  %8524 = vmatmul.f32.gmra.mxu0 %v8396
  %v8525 = vpop.f32.mrf.mxu0
  %v8526 = vadd.f32 0.0, %v8525
  %8527 = vmatmul.f32.gmra.mxu0 %v8399
  %v8528 = vpop.f32.mrf.mxu0
  %v8529 = vadd.f32 0.0, %v8528
  %8530 = vmatmul.f32.gmra.mxu0 %v8402
  %v8531 = vpop.f32.mrf.mxu0
  %v8532 = vadd.f32 0.0, %v8531
  %8533 = vmatmul.f32.gmra.mxu0 %v8405
  %v8534 = vpop.f32.mrf.mxu0
  %v8535 = vadd.f32 0.0, %v8534
  %8536 = vmatmul.f32.gmra.mxu0 %v8408
  %v8537 = vpop.f32.mrf.mxu0
  %v8538 = vadd.f32 0.0, %v8537
  %8539 = vmatmul.f32.gmra.mxu0 %v8411
  %v8540 = vpop.f32.mrf.mxu0
  %v8541 = vadd.f32 0.0, %v8540
  %8542 = vmatmul.f32.gmra.mxu0 %v8414
  %v8543 = vpop.f32.mrf.mxu0
  %v8544 = vadd.f32 0.0, %v8543
  %8545 = vmatmul.f32.gmra.mxu0 %v8417
  %v8546 = vpop.f32.mrf.mxu0
  %v8547 = vadd.f32 0.0, %v8546
  %8548 = vmatmul.f32.gmra.mxu0 %v8420
  %v8549 = vpop.f32.mrf.mxu0
  %v8550 = vadd.f32 0.0, %v8549
  %8551 = vdwg.mxu0
  %v8552 = vadd.f32 %v8505, %v2100
  %v8553 = vadd.f32 %v8508, %v2100
  %v8554 = vadd.f32 %v8511, %v2100
  %v8555 = vadd.f32 %v8514, %v2100
  %v8556 = vadd.f32 %v8517, %v2100
  %v8557 = vadd.f32 %v8520, %v2100
  %v8558 = vadd.f32 %v8523, %v2100
  %v8559 = vadd.f32 %v8526, %v2100
  %v8560 = vadd.f32 %v8529, %v2100
  %v8561 = vadd.f32 %v8532, %v2100
  %v8562 = vadd.f32 %v8535, %v2100
  %v8563 = vadd.f32 %v8538, %v2100
  %v8564 = vadd.f32 %v8541, %v2100
  %v8565 = vadd.f32 %v8544, %v2100
  %v8566 = vadd.f32 %v8547, %v2100
  %v8567 = vadd.f32 %v8550, %v2100
  %v8568 = vmul.f32 %v8552, 0.5
  %v8569 = vmul.f32 %v8553, 0.5
  %v8570 = vmul.f32 %v8554, 0.5
  %v8571 = vmul.f32 %v8555, 0.5
  %v8572 = vmul.f32 %v8556, 0.5
  %v8573 = vmul.f32 %v8557, 0.5
  %v8574 = vmul.f32 %v8558, 0.5
  %v8575 = vmul.f32 %v8559, 0.5
  %v8576 = vmul.f32 %v8560, 0.5
  %v8577 = vmul.f32 %v8561, 0.5
  %v8578 = vmul.f32 %v8562, 0.5
  %v8579 = vmul.f32 %v8563, 0.5
  %v8580 = vmul.f32 %v8564, 0.5
  %v8581 = vmul.f32 %v8565, 0.5
  %v8582 = vmul.f32 %v8566, 0.5
  %v8583 = vmul.f32 %v8567, 0.5
  %v8584 = vtanh.pop %v8568
  %v8585 = vtanh.pop %v8569
  %v8586 = vtanh.pop %v8570
  %v8587 = vtanh.pop %v8571
  %v8588 = vtanh.pop %v8572
  %v8589 = vtanh.pop %v8573
  %v8590 = vtanh.pop %v8574
  %v8591 = vtanh.pop %v8575
  %v8592 = vtanh.pop %v8576
  %v8593 = vtanh.pop %v8577
  %v8594 = vtanh.pop %v8578
  %v8595 = vtanh.pop %v8579
  %v8596 = vtanh.pop %v8580
  %v8597 = vtanh.pop %v8581
  %v8598 = vtanh.pop %v8582
  %v8599 = vtanh.pop %v8583
  %v8600 = vmul.f32 %v8584, 0.5
  %v8601 = vmul.f32 %v8585, 0.5
  %v8602 = vmul.f32 %v8586, 0.5
  %v8603 = vmul.f32 %v8587, 0.5
  %v8604 = vmul.f32 %v8588, 0.5
  %v8605 = vmul.f32 %v8589, 0.5
  %v8606 = vmul.f32 %v8590, 0.5
  %v8607 = vmul.f32 %v8591, 0.5
  %v8608 = vmul.f32 %v8592, 0.5
  %v8609 = vmul.f32 %v8593, 0.5
  %v8610 = vmul.f32 %v8594, 0.5
  %v8611 = vmul.f32 %v8595, 0.5
  %v8612 = vmul.f32 %v8596, 0.5
  %v8613 = vmul.f32 %v8597, 0.5
  %v8614 = vmul.f32 %v8598, 0.5
  %v8615 = vmul.f32 %v8599, 0.5
  %v8616 = vadd.f32 %v8600, 0.5
  %v8617 = vadd.f32 %v8601, 0.5
  %v8618 = vadd.f32 %v8602, 0.5
  %v8619 = vadd.f32 %v8603, 0.5
  %v8620 = vadd.f32 %v8604, 0.5
  %v8621 = vadd.f32 %v8605, 0.5
  %v8622 = vadd.f32 %v8606, 0.5
  %v8623 = vadd.f32 %v8607, 0.5
  %v8624 = vadd.f32 %v8608, 0.5
  %v8625 = vadd.f32 %v8609, 0.5
  %v8626 = vadd.f32 %v8610, 0.5
  %v8627 = vadd.f32 %v8611, 0.5
  %v8628 = vadd.f32 %v8612, 0.5
  %v8629 = vadd.f32 %v8613, 0.5
  %v8630 = vadd.f32 %v8614, 0.5
  %v8631 = vadd.f32 %v8615, 0.5
  %v8632 = vtanh.pop %v8552
  %v8633 = vtanh.pop %v8553
  %v8634 = vtanh.pop %v8554
  %v8635 = vtanh.pop %v8555
  %v8636 = vtanh.pop %v8556
  %v8637 = vtanh.pop %v8557
  %v8638 = vtanh.pop %v8558
  %v8639 = vtanh.pop %v8559
  %v8640 = vtanh.pop %v8560
  %v8641 = vtanh.pop %v8561
  %v8642 = vtanh.pop %v8562
  %v8643 = vtanh.pop %v8563
  %v8644 = vtanh.pop %v8564
  %v8645 = vtanh.pop %v8565
  %v8646 = vtanh.pop %v8566
  %v8647 = vtanh.pop %v8567
  %v8648 = vmul.f32 %v8616, %v7733
  %v8649 = vmul.f32 %v8617, %v7734
  %v8650 = vmul.f32 %v8618, %v7735
  %v8651 = vmul.f32 %v8619, %v7736
  %v8652 = vmul.f32 %v8620, %v7737
  %v8653 = vmul.f32 %v8621, %v7738
  %v8654 = vmul.f32 %v8622, %v7739
  %v8655 = vmul.f32 %v8623, %v7740
  %v8656 = vmul.f32 %v8624, %v7741
  %v8657 = vmul.f32 %v8625, %v7742
  %v8658 = vmul.f32 %v8626, %v7743
  %v8659 = vmul.f32 %v8627, %v7744
  %v8660 = vmul.f32 %v8628, %v7745
  %v8661 = vmul.f32 %v8629, %v7746
  %v8662 = vmul.f32 %v8630, %v7747
  %v8663 = vmul.f32 %v8631, %v7748
  %8680 = vrot.lane.b32.xlu0 %v8632, 64
  %v8681 = vpop.permute.xlu0 %8680
  %8682 = vrot.lane.b32.xlu0 %v8633, 64
  %v8683 = vpop.permute.xlu0 %8682
  %8684 = vrot.lane.b32.xlu0 %v8634, 64
  %v8685 = vpop.permute.xlu0 %8684
  %8686 = vrot.lane.b32.xlu0 %v8635, 64
  %v8687 = vpop.permute.xlu0 %8686
  %8688 = vrot.lane.b32.xlu0 %v8636, 64
  %v8689 = vpop.permute.xlu0 %8688
  %8690 = vrot.lane.b32.xlu0 %v8637, 64
  %v8691 = vpop.permute.xlu0 %8690
  %8692 = vrot.lane.b32.xlu0 %v8638, 64
  %v8693 = vpop.permute.xlu0 %8692
  %8694 = vrot.lane.b32.xlu0 %v8639, 64
  %v8695 = vpop.permute.xlu0 %8694
  %8696 = vrot.lane.b32.xlu0 %v8640, 64
  %v8697 = vpop.permute.xlu0 %8696
  %8698 = vrot.lane.b32.xlu0 %v8641, 64
  %v8699 = vpop.permute.xlu0 %8698
  %8700 = vrot.lane.b32.xlu0 %v8642, 64
  %v8701 = vpop.permute.xlu0 %8700
  %8702 = vrot.lane.b32.xlu0 %v8643, 64
  %v8703 = vpop.permute.xlu0 %8702
  %8704 = vrot.lane.b32.xlu0 %v8644, 64
  %v8705 = vpop.permute.xlu0 %8704
  %8706 = vrot.lane.b32.xlu0 %v8645, 64
  %v8707 = vpop.permute.xlu0 %8706
  %8708 = vrot.lane.b32.xlu0 %v8646, 64
  %v8709 = vpop.permute.xlu0 %8708
  %8710 = vrot.lane.b32.xlu0 %v8647, 64
  %v8711 = vpop.permute.xlu0 %8710
  %v8728 = vmul.f32 %v8616, %v8681
  %v8729 = vmul.f32 %v8617, %v8683
  %v8730 = vmul.f32 %v8618, %v8685
  %v8731 = vmul.f32 %v8619, %v8687
  %v8732 = vmul.f32 %v8620, %v8689
  %v8733 = vmul.f32 %v8621, %v8691
  %v8734 = vmul.f32 %v8622, %v8693
  %v8735 = vmul.f32 %v8623, %v8695
  %v8736 = vmul.f32 %v8624, %v8697
  %v8737 = vmul.f32 %v8625, %v8699
  %v8738 = vmul.f32 %v8626, %v8701
  %v8739 = vmul.f32 %v8627, %v8703
  %v8740 = vmul.f32 %v8628, %v8705
  %v8741 = vmul.f32 %v8629, %v8707
  %v8742 = vmul.f32 %v8630, %v8709
  %v8743 = vmul.f32 %v8631, %v8711
  %8760 = vrot.lane.b32.xlu0 %v8728, 32
  %v8761 = vpop.permute.xlu0 %8760
  %8762 = vrot.lane.b32.xlu0 %v8729, 32
  %v8763 = vpop.permute.xlu0 %8762
  %8764 = vrot.lane.b32.xlu0 %v8730, 32
  %v8765 = vpop.permute.xlu0 %8764
  %8766 = vrot.lane.b32.xlu0 %v8731, 32
  %v8767 = vpop.permute.xlu0 %8766
  %8768 = vrot.lane.b32.xlu0 %v8732, 32
  %v8769 = vpop.permute.xlu0 %8768
  %8770 = vrot.lane.b32.xlu0 %v8733, 32
  %v8771 = vpop.permute.xlu0 %8770
  %8772 = vrot.lane.b32.xlu0 %v8734, 32
  %v8773 = vpop.permute.xlu0 %8772
  %8774 = vrot.lane.b32.xlu0 %v8735, 32
  %v8775 = vpop.permute.xlu0 %8774
  %8776 = vrot.lane.b32.xlu0 %v8736, 32
  %v8777 = vpop.permute.xlu0 %8776
  %8778 = vrot.lane.b32.xlu0 %v8737, 32
  %v8779 = vpop.permute.xlu0 %8778
  %8780 = vrot.lane.b32.xlu0 %v8738, 32
  %v8781 = vpop.permute.xlu0 %8780
  %8782 = vrot.lane.b32.xlu0 %v8739, 32
  %v8783 = vpop.permute.xlu0 %8782
  %8784 = vrot.lane.b32.xlu0 %v8740, 32
  %v8785 = vpop.permute.xlu0 %8784
  %8786 = vrot.lane.b32.xlu0 %v8741, 32
  %v8787 = vpop.permute.xlu0 %8786
  %8788 = vrot.lane.b32.xlu0 %v8742, 32
  %v8789 = vpop.permute.xlu0 %8788
  %8790 = vrot.lane.b32.xlu0 %v8743, 32
  %v8791 = vpop.permute.xlu0 %8790
  %v8808 = vadd.f32 %v8648, %v8761
  %v8809 = vadd.f32 %v8649, %v8763
  %v8810 = vadd.f32 %v8650, %v8765
  %v8811 = vadd.f32 %v8651, %v8767
  %v8812 = vadd.f32 %v8652, %v8769
  %v8813 = vadd.f32 %v8653, %v8771
  %v8814 = vadd.f32 %v8654, %v8773
  %v8815 = vadd.f32 %v8655, %v8775
  %v8816 = vadd.f32 %v8656, %v8777
  %v8817 = vadd.f32 %v8657, %v8779
  %v8818 = vadd.f32 %v8658, %v8781
  %v8819 = vadd.f32 %v8659, %v8783
  %v8820 = vadd.f32 %v8660, %v8785
  %v8821 = vadd.f32 %v8661, %v8787
  %v8822 = vadd.f32 %v8662, %v8789
  %v8823 = vadd.f32 %v8663, %v8791
  %v8824 = vtanh.pop %v8808
  %v8825 = vtanh.pop %v8809
  %v8826 = vtanh.pop %v8810
  %v8827 = vtanh.pop %v8811
  %v8828 = vtanh.pop %v8812
  %v8829 = vtanh.pop %v8813
  %v8830 = vtanh.pop %v8814
  %v8831 = vtanh.pop %v8815
  %v8832 = vtanh.pop %v8816
  %v8833 = vtanh.pop %v8817
  %v8834 = vtanh.pop %v8818
  %v8835 = vtanh.pop %v8819
  %v8836 = vtanh.pop %v8820
  %v8837 = vtanh.pop %v8821
  %v8838 = vtanh.pop %v8822
  %v8839 = vtanh.pop %v8823
  %8856 = vrot.lane.b32.xlu0 %v8824, 64
  %v8857 = vpop.permute.xlu0 %8856
  %8858 = vrot.lane.b32.xlu0 %v8825, 64
  %v8859 = vpop.permute.xlu0 %8858
  %8860 = vrot.lane.b32.xlu0 %v8826, 64
  %v8861 = vpop.permute.xlu0 %8860
  %8862 = vrot.lane.b32.xlu0 %v8827, 64
  %v8863 = vpop.permute.xlu0 %8862
  %8864 = vrot.lane.b32.xlu0 %v8828, 64
  %v8865 = vpop.permute.xlu0 %8864
  %8866 = vrot.lane.b32.xlu0 %v8829, 64
  %v8867 = vpop.permute.xlu0 %8866
  %8868 = vrot.lane.b32.xlu0 %v8830, 64
  %v8869 = vpop.permute.xlu0 %8868
  %8870 = vrot.lane.b32.xlu0 %v8831, 64
  %v8871 = vpop.permute.xlu0 %8870
  %8872 = vrot.lane.b32.xlu0 %v8832, 64
  %v8873 = vpop.permute.xlu0 %8872
  %8874 = vrot.lane.b32.xlu0 %v8833, 64
  %v8875 = vpop.permute.xlu0 %8874
  %8876 = vrot.lane.b32.xlu0 %v8834, 64
  %v8877 = vpop.permute.xlu0 %8876
  %8878 = vrot.lane.b32.xlu0 %v8835, 64
  %v8879 = vpop.permute.xlu0 %8878
  %8880 = vrot.lane.b32.xlu0 %v8836, 64
  %v8881 = vpop.permute.xlu0 %8880
  %8882 = vrot.lane.b32.xlu0 %v8837, 64
  %v8883 = vpop.permute.xlu0 %8882
  %8884 = vrot.lane.b32.xlu0 %v8838, 64
  %v8885 = vpop.permute.xlu0 %8884
  %8886 = vrot.lane.b32.xlu0 %v8839, 64
  %v8887 = vpop.permute.xlu0 %8886
  %v8904 = vmul.f32 %v8616, %v8857
  %v8905 = vmul.f32 %v8617, %v8859
  %v8906 = vmul.f32 %v8618, %v8861
  %v8907 = vmul.f32 %v8619, %v8863
  %v8908 = vmul.f32 %v8620, %v8865
  %v8909 = vmul.f32 %v8621, %v8867
  %v8910 = vmul.f32 %v8622, %v8869
  %v8911 = vmul.f32 %v8623, %v8871
  %v8912 = vmul.f32 %v8624, %v8873
  %v8913 = vmul.f32 %v8625, %v8875
  %v8914 = vmul.f32 %v8626, %v8877
  %v8915 = vmul.f32 %v8627, %v8879
  %v8916 = vmul.f32 %v8628, %v8881
  %v8917 = vmul.f32 %v8629, %v8883
  %v8918 = vmul.f32 %v8630, %v8885
  %v8919 = vmul.f32 %v8631, %v8887
  %s8920 = scalar_lea.vmem [#allocation2], 896
  %v8921 = vld [vmem:[%s8920] sm:$0xff]
  %v8922 = vld [vmem:[%s8920 + $0x8] sm:$0xff]
  %v8923 = vld [vmem:[%s8920 + $0x10] sm:$0xff]
  %v8924 = vld [vmem:[%s8920 + $0x18] sm:$0xff]
  %v8925 = vld [vmem:[%s8920 + $0x20] sm:$0xff]
  %v8926 = vld [vmem:[%s8920 + $0x28] sm:$0xff]
  %v8927 = vld [vmem:[%s8920 + $0x30] sm:$0xff]
  %v8928 = vld [vmem:[%s8920 + $0x38] sm:$0xff]
  %v8929 = vld [vmem:[%s8920 + $0x40] sm:$0xff]
  %v8930 = vld [vmem:[%s8920 + $0x48] sm:$0xff]
  %v8931 = vld [vmem:[%s8920 + $0x50] sm:$0xff]
  %v8932 = vld [vmem:[%s8920 + $0x58] sm:$0xff]
  %v8933 = vld [vmem:[%s8920 + $0x60] sm:$0xff]
  %v8934 = vld [vmem:[%s8920 + $0x68] sm:$0xff]
  %v8935 = vld [vmem:[%s8920 + $0x70] sm:$0xff]
  %v8936 = vld [vmem:[%s8920 + $0x78] sm:$0xff]
  %v8937 = vadd.f32 %v8440, %v8921
  %v8938 = vadd.f32 %v8443, %v8922
  %v8939 = vadd.f32 %v8446, %v8923
  %v8940 = vadd.f32 %v8449, %v8924
  %v8941 = vadd.f32 %v8452, %v8925
  %v8942 = vadd.f32 %v8455, %v8926
  %v8943 = vadd.f32 %v8458, %v8927
  %v8944 = vadd.f32 %v8461, %v8928
  %v8945 = vadd.f32 %v8464, %v8929
  %v8946 = vadd.f32 %v8467, %v8930
  %v8947 = vadd.f32 %v8470, %v8931
  %v8948 = vadd.f32 %v8473, %v8932
  %v8949 = vadd.f32 %v8476, %v8933
  %v8950 = vadd.f32 %v8479, %v8934
  %v8951 = vadd.f32 %v8482, %v8935
  %v8952 = vadd.f32 %v8485, %v8936
  %v8953 = vmul.f32 %v8937, 0.5
  %v8954 = vmul.f32 %v8938, 0.5
  %v8955 = vmul.f32 %v8939, 0.5
  %v8956 = vmul.f32 %v8940, 0.5
  %v8957 = vmul.f32 %v8941, 0.5
  %v8958 = vmul.f32 %v8942, 0.5
  %v8959 = vmul.f32 %v8943, 0.5
  %v8960 = vmul.f32 %v8944, 0.5
  %v8961 = vmul.f32 %v8945, 0.5
  %v8962 = vmul.f32 %v8946, 0.5
  %v8963 = vmul.f32 %v8947, 0.5
  %v8964 = vmul.f32 %v8948, 0.5
  %v8965 = vmul.f32 %v8949, 0.5
  %v8966 = vmul.f32 %v8950, 0.5
  %v8967 = vmul.f32 %v8951, 0.5
  %v8968 = vmul.f32 %v8952, 0.5
  %v8969 = vtanh.pop %v8953
  %v8970 = vtanh.pop %v8954
  %v8971 = vtanh.pop %v8955
  %v8972 = vtanh.pop %v8956
  %v8973 = vtanh.pop %v8957
  %v8974 = vtanh.pop %v8958
  %v8975 = vtanh.pop %v8959
  %v8976 = vtanh.pop %v8960
  %v8977 = vtanh.pop %v8961
  %v8978 = vtanh.pop %v8962
  %v8979 = vtanh.pop %v8963
  %v8980 = vtanh.pop %v8964
  %v8981 = vtanh.pop %v8965
  %v8982 = vtanh.pop %v8966
  %v8983 = vtanh.pop %v8967
  %v8984 = vtanh.pop %v8968
  %v8985 = vmul.f32 %v8969, 0.5
  %v8986 = vmul.f32 %v8970, 0.5
  %v8987 = vmul.f32 %v8971, 0.5
  %v8988 = vmul.f32 %v8972, 0.5
  %v8989 = vmul.f32 %v8973, 0.5
  %v8990 = vmul.f32 %v8974, 0.5
  %v8991 = vmul.f32 %v8975, 0.5
  %v8992 = vmul.f32 %v8976, 0.5
  %v8993 = vmul.f32 %v8977, 0.5
  %v8994 = vmul.f32 %v8978, 0.5
  %v8995 = vmul.f32 %v8979, 0.5
  %v8996 = vmul.f32 %v8980, 0.5
  %v8997 = vmul.f32 %v8981, 0.5
  %v8998 = vmul.f32 %v8982, 0.5
  %v8999 = vmul.f32 %v8983, 0.5
  %v9000 = vmul.f32 %v8984, 0.5
  %v9001 = vadd.f32 %v8985, 0.5
  %v9002 = vadd.f32 %v8986, 0.5
  %v9003 = vadd.f32 %v8987, 0.5
  %v9004 = vadd.f32 %v8988, 0.5
  %v9005 = vadd.f32 %v8989, 0.5
  %v9006 = vadd.f32 %v8990, 0.5
  %v9007 = vadd.f32 %v8991, 0.5
  %v9008 = vadd.f32 %v8992, 0.5
  %v9009 = vadd.f32 %v8993, 0.5
  %v9010 = vadd.f32 %v8994, 0.5
  %v9011 = vadd.f32 %v8995, 0.5
  %v9012 = vadd.f32 %v8996, 0.5
  %v9013 = vadd.f32 %v8997, 0.5
  %v9014 = vadd.f32 %v8998, 0.5
  %v9015 = vadd.f32 %v8999, 0.5
  %v9016 = vadd.f32 %v9000, 0.5
  %v9017 = vtanh.pop %v8937
  %v9018 = vtanh.pop %v8938
  %v9019 = vtanh.pop %v8939
  %v9020 = vtanh.pop %v8940
  %v9021 = vtanh.pop %v8941
  %v9022 = vtanh.pop %v8942
  %v9023 = vtanh.pop %v8943
  %v9024 = vtanh.pop %v8944
  %v9025 = vtanh.pop %v8945
  %v9026 = vtanh.pop %v8946
  %v9027 = vtanh.pop %v8947
  %v9028 = vtanh.pop %v8948
  %v9029 = vtanh.pop %v8949
  %v9030 = vtanh.pop %v8950
  %v9031 = vtanh.pop %v8951
  %v9032 = vtanh.pop %v8952
  %v9033 = vmul.f32 %v9001, %v8118
  %v9034 = vmul.f32 %v9002, %v8119
  %v9035 = vmul.f32 %v9003, %v8120
  %v9036 = vmul.f32 %v9004, %v8121
  %v9037 = vmul.f32 %v9005, %v8122
  %v9038 = vmul.f32 %v9006, %v8123
  %v9039 = vmul.f32 %v9007, %v8124
  %v9040 = vmul.f32 %v9008, %v8125
  %v9041 = vmul.f32 %v9009, %v8126
  %v9042 = vmul.f32 %v9010, %v8127
  %v9043 = vmul.f32 %v9011, %v8128
  %v9044 = vmul.f32 %v9012, %v8129
  %v9045 = vmul.f32 %v9013, %v8130
  %v9046 = vmul.f32 %v9014, %v8131
  %v9047 = vmul.f32 %v9015, %v8132
  %v9048 = vmul.f32 %v9016, %v8133
  %9065 = vrot.lane.b32.xlu0 %v9017, 64
  %v9066 = vpop.permute.xlu0 %9065
  %9067 = vrot.lane.b32.xlu0 %v9018, 64
  %v9068 = vpop.permute.xlu0 %9067
  %9069 = vrot.lane.b32.xlu0 %v9019, 64
  %v9070 = vpop.permute.xlu0 %9069
  %9071 = vrot.lane.b32.xlu0 %v9020, 64
  %v9072 = vpop.permute.xlu0 %9071
  %9073 = vrot.lane.b32.xlu0 %v9021, 64
  %v9074 = vpop.permute.xlu0 %9073
  %9075 = vrot.lane.b32.xlu0 %v9022, 64
  %v9076 = vpop.permute.xlu0 %9075
  %9077 = vrot.lane.b32.xlu0 %v9023, 64
  %v9078 = vpop.permute.xlu0 %9077
  %9079 = vrot.lane.b32.xlu0 %v9024, 64
  %v9080 = vpop.permute.xlu0 %9079
  %9081 = vrot.lane.b32.xlu0 %v9025, 64
  %v9082 = vpop.permute.xlu0 %9081
  %9083 = vrot.lane.b32.xlu0 %v9026, 64
  %v9084 = vpop.permute.xlu0 %9083
  %9085 = vrot.lane.b32.xlu0 %v9027, 64
  %v9086 = vpop.permute.xlu0 %9085
  %9087 = vrot.lane.b32.xlu0 %v9028, 64
  %v9088 = vpop.permute.xlu0 %9087
  %9089 = vrot.lane.b32.xlu0 %v9029, 64
  %v9090 = vpop.permute.xlu0 %9089
  %9091 = vrot.lane.b32.xlu0 %v9030, 64
  %v9092 = vpop.permute.xlu0 %9091
  %9093 = vrot.lane.b32.xlu0 %v9031, 64
  %v9094 = vpop.permute.xlu0 %9093
  %9095 = vrot.lane.b32.xlu0 %v9032, 64
  %v9096 = vpop.permute.xlu0 %9095
  %v9113 = vmul.f32 %v9001, %v9066
  %v9114 = vmul.f32 %v9002, %v9068
  %v9115 = vmul.f32 %v9003, %v9070
  %v9116 = vmul.f32 %v9004, %v9072
  %v9117 = vmul.f32 %v9005, %v9074
  %v9118 = vmul.f32 %v9006, %v9076
  %v9119 = vmul.f32 %v9007, %v9078
  %v9120 = vmul.f32 %v9008, %v9080
  %v9121 = vmul.f32 %v9009, %v9082
  %v9122 = vmul.f32 %v9010, %v9084
  %v9123 = vmul.f32 %v9011, %v9086
  %v9124 = vmul.f32 %v9012, %v9088
  %v9125 = vmul.f32 %v9013, %v9090
  %v9126 = vmul.f32 %v9014, %v9092
  %v9127 = vmul.f32 %v9015, %v9094
  %v9128 = vmul.f32 %v9016, %v9096
  %9145 = vrot.lane.b32.xlu0 %v9113, 32
  %v9146 = vpop.permute.xlu0 %9145
  %9147 = vrot.lane.b32.xlu0 %v9114, 32
  %v9148 = vpop.permute.xlu0 %9147
  %9149 = vrot.lane.b32.xlu0 %v9115, 32
  %v9150 = vpop.permute.xlu0 %9149
  %9151 = vrot.lane.b32.xlu0 %v9116, 32
  %v9152 = vpop.permute.xlu0 %9151
  %9153 = vrot.lane.b32.xlu0 %v9117, 32
  %v9154 = vpop.permute.xlu0 %9153
  %9155 = vrot.lane.b32.xlu0 %v9118, 32
  %v9156 = vpop.permute.xlu0 %9155
  %9157 = vrot.lane.b32.xlu0 %v9119, 32
  %v9158 = vpop.permute.xlu0 %9157
  %9159 = vrot.lane.b32.xlu0 %v9120, 32
  %v9160 = vpop.permute.xlu0 %9159
  %9161 = vrot.lane.b32.xlu0 %v9121, 32
  %v9162 = vpop.permute.xlu0 %9161
  %9163 = vrot.lane.b32.xlu0 %v9122, 32
  %v9164 = vpop.permute.xlu0 %9163
  %9165 = vrot.lane.b32.xlu0 %v9123, 32
  %v9166 = vpop.permute.xlu0 %9165
  %9167 = vrot.lane.b32.xlu0 %v9124, 32
  %v9168 = vpop.permute.xlu0 %9167
  %9169 = vrot.lane.b32.xlu0 %v9125, 32
  %v9170 = vpop.permute.xlu0 %9169
  %9171 = vrot.lane.b32.xlu0 %v9126, 32
  %v9172 = vpop.permute.xlu0 %9171
  %9173 = vrot.lane.b32.xlu0 %v9127, 32
  %v9174 = vpop.permute.xlu0 %9173
  %9175 = vrot.lane.b32.xlu0 %v9128, 32
  %v9176 = vpop.permute.xlu0 %9175
  %v9193 = vadd.f32 %v9033, %v9146
  %v9194 = vadd.f32 %v9034, %v9148
  %v9195 = vadd.f32 %v9035, %v9150
  %v9196 = vadd.f32 %v9036, %v9152
  %v9197 = vadd.f32 %v9037, %v9154
  %v9198 = vadd.f32 %v9038, %v9156
  %v9199 = vadd.f32 %v9039, %v9158
  %v9200 = vadd.f32 %v9040, %v9160
  %v9201 = vadd.f32 %v9041, %v9162
  %v9202 = vadd.f32 %v9042, %v9164
  %v9203 = vadd.f32 %v9043, %v9166
  %v9204 = vadd.f32 %v9044, %v9168
  %v9205 = vadd.f32 %v9045, %v9170
  %v9206 = vadd.f32 %v9046, %v9172
  %v9207 = vadd.f32 %v9047, %v9174
  %v9208 = vadd.f32 %v9048, %v9176
  %v9209 = vtanh.pop %v9193
  %v9210 = vtanh.pop %v9194
  %v9211 = vtanh.pop %v9195
  %v9212 = vtanh.pop %v9196
  %v9213 = vtanh.pop %v9197
  %v9214 = vtanh.pop %v9198
  %v9215 = vtanh.pop %v9199
  %v9216 = vtanh.pop %v9200
  %v9217 = vtanh.pop %v9201
  %v9218 = vtanh.pop %v9202
  %v9219 = vtanh.pop %v9203
  %v9220 = vtanh.pop %v9204
  %v9221 = vtanh.pop %v9205
  %v9222 = vtanh.pop %v9206
  %v9223 = vtanh.pop %v9207
  %v9224 = vtanh.pop %v9208
  %9241 = vrot.lane.b32.xlu0 %v9209, 64
  %v9242 = vpop.permute.xlu0 %9241
  %9243 = vrot.lane.b32.xlu0 %v9210, 64
  %v9244 = vpop.permute.xlu0 %9243
  %9245 = vrot.lane.b32.xlu0 %v9211, 64
  %v9246 = vpop.permute.xlu0 %9245
  %9247 = vrot.lane.b32.xlu0 %v9212, 64
  %v9248 = vpop.permute.xlu0 %9247
  %9249 = vrot.lane.b32.xlu0 %v9213, 64
  %v9250 = vpop.permute.xlu0 %9249
  %9251 = vrot.lane.b32.xlu0 %v9214, 64
  %v9252 = vpop.permute.xlu0 %9251
  %9253 = vrot.lane.b32.xlu0 %v9215, 64
  %v9254 = vpop.permute.xlu0 %9253
  %9255 = vrot.lane.b32.xlu0 %v9216, 64
  %v9256 = vpop.permute.xlu0 %9255
  %9257 = vrot.lane.b32.xlu0 %v9217, 64
  %v9258 = vpop.permute.xlu0 %9257
  %9259 = vrot.lane.b32.xlu0 %v9218, 64
  %v9260 = vpop.permute.xlu0 %9259
  %9261 = vrot.lane.b32.xlu0 %v9219, 64
  %v9262 = vpop.permute.xlu0 %9261
  %9263 = vrot.lane.b32.xlu0 %v9220, 64
  %v9264 = vpop.permute.xlu0 %9263
  %9265 = vrot.lane.b32.xlu0 %v9221, 64
  %v9266 = vpop.permute.xlu0 %9265
  %9267 = vrot.lane.b32.xlu0 %v9222, 64
  %v9268 = vpop.permute.xlu0 %9267
  %9269 = vrot.lane.b32.xlu0 %v9223, 64
  %v9270 = vpop.permute.xlu0 %9269
  %9271 = vrot.lane.b32.xlu0 %v9224, 64
  %v9272 = vpop.permute.xlu0 %9271
  %v9289 = vmul.f32 %v9001, %v9242
  %v9290 = vmul.f32 %v9002, %v9244
  %v9291 = vmul.f32 %v9003, %v9246
  %v9292 = vmul.f32 %v9004, %v9248
  %v9293 = vmul.f32 %v9005, %v9250
  %v9294 = vmul.f32 %v9006, %v9252
  %v9295 = vmul.f32 %v9007, %v9254
  %v9296 = vmul.f32 %v9008, %v9256
  %v9297 = vmul.f32 %v9009, %v9258
  %v9298 = vmul.f32 %v9010, %v9260
  %v9299 = vmul.f32 %v9011, %v9262
  %v9300 = vmul.f32 %v9012, %v9264
  %v9301 = vmul.f32 %v9013, %v9266
  %v9302 = vmul.f32 %v9014, %v9268
  %v9303 = vmul.f32 %v9015, %v9270
  %v9304 = vmul.f32 %v9016, %v9272
  %9321 = vrot.lane.b32.xlu0 %v9289, 32
  %v9322 = vpop.permute.xlu0 %9321
  %9323 = vrot.lane.b32.xlu0 %v9290, 32
  %v9324 = vpop.permute.xlu0 %9323
  %9325 = vrot.lane.b32.xlu0 %v9291, 32
  %v9326 = vpop.permute.xlu0 %9325
  %9327 = vrot.lane.b32.xlu0 %v9292, 32
  %v9328 = vpop.permute.xlu0 %9327
  %9329 = vrot.lane.b32.xlu0 %v9293, 32
  %v9330 = vpop.permute.xlu0 %9329
  %9331 = vrot.lane.b32.xlu0 %v9294, 32
  %v9332 = vpop.permute.xlu0 %9331
  %9333 = vrot.lane.b32.xlu0 %v9295, 32
  %v9334 = vpop.permute.xlu0 %9333
  %9335 = vrot.lane.b32.xlu0 %v9296, 32
  %v9336 = vpop.permute.xlu0 %9335
  %9337 = vrot.lane.b32.xlu0 %v9297, 32
  %v9338 = vpop.permute.xlu0 %9337
  %9339 = vrot.lane.b32.xlu0 %v9298, 32
  %v9340 = vpop.permute.xlu0 %9339
  %9341 = vrot.lane.b32.xlu0 %v9299, 32
  %v9342 = vpop.permute.xlu0 %9341
  %9343 = vrot.lane.b32.xlu0 %v9300, 32
  %v9344 = vpop.permute.xlu0 %9343
  %9345 = vrot.lane.b32.xlu0 %v9301, 32
  %v9346 = vpop.permute.xlu0 %9345
  %9347 = vrot.lane.b32.xlu0 %v9302, 32
  %v9348 = vpop.permute.xlu0 %9347
  %9349 = vrot.lane.b32.xlu0 %v9303, 32
  %v9350 = vpop.permute.xlu0 %9349
  %9351 = vrot.lane.b32.xlu0 %v9304, 32
  %v9352 = vpop.permute.xlu0 %9351
  %9385 = vrot.lane.b32.xlu0 %v8904, 64
  %v9386 = vpop.permute.xlu0 %9385
  %9387 = vrot.lane.b32.xlu0 %v8905, 64
  %v9388 = vpop.permute.xlu0 %9387
  %9389 = vrot.lane.b32.xlu0 %v8906, 64
  %v9390 = vpop.permute.xlu0 %9389
  %9391 = vrot.lane.b32.xlu0 %v8907, 64
  %v9392 = vpop.permute.xlu0 %9391
  %9393 = vrot.lane.b32.xlu0 %v8908, 64
  %v9394 = vpop.permute.xlu0 %9393
  %9395 = vrot.lane.b32.xlu0 %v8909, 64
  %v9396 = vpop.permute.xlu0 %9395
  %9397 = vrot.lane.b32.xlu0 %v8910, 64
  %v9398 = vpop.permute.xlu0 %9397
  %9399 = vrot.lane.b32.xlu0 %v8911, 64
  %v9400 = vpop.permute.xlu0 %9399
  %9401 = vrot.lane.b32.xlu0 %v8912, 64
  %v9402 = vpop.permute.xlu0 %9401
  %9403 = vrot.lane.b32.xlu0 %v8913, 64
  %v9404 = vpop.permute.xlu0 %9403
  %9405 = vrot.lane.b32.xlu0 %v8914, 64
  %v9406 = vpop.permute.xlu0 %9405
  %9407 = vrot.lane.b32.xlu0 %v8915, 64
  %v9408 = vpop.permute.xlu0 %9407
  %9409 = vrot.lane.b32.xlu0 %v8916, 64
  %v9410 = vpop.permute.xlu0 %9409
  %9411 = vrot.lane.b32.xlu0 %v8917, 64
  %v9412 = vpop.permute.xlu0 %9411
  %9413 = vrot.lane.b32.xlu0 %v8918, 64
  %v9414 = vpop.permute.xlu0 %9413
  %9415 = vrot.lane.b32.xlu0 %v8919, 64
  %v9416 = vpop.permute.xlu0 %9415
  %v9433 = vsel %vm1904, %v9322, %v9386
  %v9434 = vsel %vm1904, %v9324, %v9388
  %v9435 = vsel %vm1904, %v9326, %v9390
  %v9436 = vsel %vm1904, %v9328, %v9392
  %v9437 = vsel %vm1904, %v9330, %v9394
  %v9438 = vsel %vm1904, %v9332, %v9396
  %v9439 = vsel %vm1904, %v9334, %v9398
  %v9440 = vsel %vm1904, %v9336, %v9400
  %v9441 = vsel %vm1904, %v9338, %v9402
  %v9442 = vsel %vm1904, %v9340, %v9404
  %v9443 = vsel %vm1904, %v9342, %v9406
  %v9444 = vsel %vm1904, %v9344, %v9408
  %v9445 = vsel %vm1904, %v9346, %v9410
  %v9446 = vsel %vm1904, %v9348, %v9412
  %v9447 = vsel %vm1904, %v9350, %v9414
  %v9448 = vsel %vm1904, %v9352, %v9416
  %v9450 = vsel %vm246, %v9433, 0
  %v9453 = vsel %vm246, %v9434, 0
  %v9456 = vsel %vm246, %v9435, 0
  %v9459 = vsel %vm246, %v9436, 0
  %v9462 = vsel %vm246, %v9437, 0
  %v9465 = vsel %vm246, %v9438, 0
  %v9468 = vsel %vm246, %v9439, 0
  %v9471 = vsel %vm246, %v9440, 0
  %v9474 = vsel %vm246, %v9441, 0
  %v9477 = vsel %vm246, %v9442, 0
  %v9480 = vsel %vm246, %v9443, 0
  %v9483 = vsel %vm246, %v9444, 0
  %v9486 = vsel %vm246, %v9445, 0
  %v9489 = vsel %vm246, %v9446, 0
  %v9492 = vsel %vm246, %v9447, 0
  %v9495 = vsel %vm246, %v9448, 0
  %9497 = vmatpush.msra.mxu0 0.0
  %9498 = vmatpush.msra.mxu0 0.0
  %9499 = vmatpush.msra.mxu0 0.0
  %9500 = vmatpush.msra.mxu0 0.0
  %9501 = vmatpush.msra.mxu0 0.0
  %9502 = vmatpush.msra.mxu0 0.0
  %9503 = vmatpush.msra.mxu0 0.0
  %9504 = vmatpush.msra.mxu0 0.0
  %9505 = vmatpush.msra.mxu0 %v1470
  %9506 = vmatpush.msra.mxu0 %v1468
  %9507 = vmatpush.msra.mxu0 %v1466
  %9508 = vmatpush.msra.mxu0 %v1464
  %9509 = vmatpush.msra.mxu0 %v1462
  %9510 = vmatpush.msra.mxu0 %v1460
  %9511 = vmatpush.msra.mxu0 %v1458
  %9512 = vmatpush.msra.mxu0 %v1456
  %9513 = vmatmul.f32.gmra.mxu0 %v9450
  %v9514 = vpop.f32.mrf.mxu0
  %v9515 = vadd.f32 0.0, %v9514
  %9516 = vmatmul.f32.gmra.mxu0 %v9453
  %v9517 = vpop.f32.mrf.mxu0
  %v9518 = vadd.f32 0.0, %v9517
  %9519 = vmatmul.f32.gmra.mxu0 %v9456
  %v9520 = vpop.f32.mrf.mxu0
  %v9521 = vadd.f32 0.0, %v9520
  %9522 = vmatmul.f32.gmra.mxu0 %v9459
  %v9523 = vpop.f32.mrf.mxu0
  %v9524 = vadd.f32 0.0, %v9523
  %9525 = vmatmul.f32.gmra.mxu0 %v9462
  %v9526 = vpop.f32.mrf.mxu0
  %v9527 = vadd.f32 0.0, %v9526
  %9528 = vmatmul.f32.gmra.mxu0 %v9465
  %v9529 = vpop.f32.mrf.mxu0
  %v9530 = vadd.f32 0.0, %v9529
  %9531 = vmatmul.f32.gmra.mxu0 %v9468
  %v9532 = vpop.f32.mrf.mxu0
  %v9533 = vadd.f32 0.0, %v9532
  %9534 = vmatmul.f32.gmra.mxu0 %v9471
  %v9535 = vpop.f32.mrf.mxu0
  %v9536 = vadd.f32 0.0, %v9535
  %9537 = vmatmul.f32.gmra.mxu0 %v9474
  %v9538 = vpop.f32.mrf.mxu0
  %v9539 = vadd.f32 0.0, %v9538
  %9540 = vmatmul.f32.gmra.mxu0 %v9477
  %v9541 = vpop.f32.mrf.mxu0
  %v9542 = vadd.f32 0.0, %v9541
  %9543 = vmatmul.f32.gmra.mxu0 %v9480
  %v9544 = vpop.f32.mrf.mxu0
  %v9545 = vadd.f32 0.0, %v9544
  %9546 = vmatmul.f32.gmra.mxu0 %v9483
  %v9547 = vpop.f32.mrf.mxu0
  %v9548 = vadd.f32 0.0, %v9547
  %9549 = vmatmul.f32.gmra.mxu0 %v9486
  %v9550 = vpop.f32.mrf.mxu0
  %v9551 = vadd.f32 0.0, %v9550
  %9552 = vmatmul.f32.gmra.mxu0 %v9489
  %v9553 = vpop.f32.mrf.mxu0
  %v9554 = vadd.f32 0.0, %v9553
  %9555 = vmatmul.f32.gmra.mxu0 %v9492
  %v9556 = vpop.f32.mrf.mxu0
  %v9557 = vadd.f32 0.0, %v9556
  %9558 = vmatmul.f32.gmra.mxu0 %v9495
  %v9559 = vpop.f32.mrf.mxu0
  %v9560 = vadd.f32 0.0, %v9559
  %9561 = vdwg.mxu0
  %v9562 = vadd.f32 %v9515, %v2100
  %v9563 = vadd.f32 %v9518, %v2100
  %v9564 = vadd.f32 %v9521, %v2100
  %v9565 = vadd.f32 %v9524, %v2100
  %v9566 = vadd.f32 %v9527, %v2100
  %v9567 = vadd.f32 %v9530, %v2100
  %v9568 = vadd.f32 %v9533, %v2100
  %v9569 = vadd.f32 %v9536, %v2100
  %v9570 = vadd.f32 %v9539, %v2100
  %v9571 = vadd.f32 %v9542, %v2100
  %v9572 = vadd.f32 %v9545, %v2100
  %v9573 = vadd.f32 %v9548, %v2100
  %v9574 = vadd.f32 %v9551, %v2100
  %v9575 = vadd.f32 %v9554, %v2100
  %v9576 = vadd.f32 %v9557, %v2100
  %v9577 = vadd.f32 %v9560, %v2100
  %v9578 = vmul.f32 %v9562, 0.5
  %v9579 = vmul.f32 %v9563, 0.5
  %v9580 = vmul.f32 %v9564, 0.5
  %v9581 = vmul.f32 %v9565, 0.5
  %v9582 = vmul.f32 %v9566, 0.5
  %v9583 = vmul.f32 %v9567, 0.5
  %v9584 = vmul.f32 %v9568, 0.5
  %v9585 = vmul.f32 %v9569, 0.5
  %v9586 = vmul.f32 %v9570, 0.5
  %v9587 = vmul.f32 %v9571, 0.5
  %v9588 = vmul.f32 %v9572, 0.5
  %v9589 = vmul.f32 %v9573, 0.5
  %v9590 = vmul.f32 %v9574, 0.5
  %v9591 = vmul.f32 %v9575, 0.5
  %v9592 = vmul.f32 %v9576, 0.5
  %v9593 = vmul.f32 %v9577, 0.5
  %v9594 = vtanh.pop %v9578
  %v9595 = vtanh.pop %v9579
  %v9596 = vtanh.pop %v9580
  %v9597 = vtanh.pop %v9581
  %v9598 = vtanh.pop %v9582
  %v9599 = vtanh.pop %v9583
  %v9600 = vtanh.pop %v9584
  %v9601 = vtanh.pop %v9585
  %v9602 = vtanh.pop %v9586
  %v9603 = vtanh.pop %v9587
  %v9604 = vtanh.pop %v9588
  %v9605 = vtanh.pop %v9589
  %v9606 = vtanh.pop %v9590
  %v9607 = vtanh.pop %v9591
  %v9608 = vtanh.pop %v9592
  %v9609 = vtanh.pop %v9593
  %v9610 = vmul.f32 %v9594, 0.5
  %v9611 = vmul.f32 %v9595, 0.5
  %v9612 = vmul.f32 %v9596, 0.5
  %v9613 = vmul.f32 %v9597, 0.5
  %v9614 = vmul.f32 %v9598, 0.5
  %v9615 = vmul.f32 %v9599, 0.5
  %v9616 = vmul.f32 %v9600, 0.5
  %v9617 = vmul.f32 %v9601, 0.5
  %v9618 = vmul.f32 %v9602, 0.5
  %v9619 = vmul.f32 %v9603, 0.5
  %v9620 = vmul.f32 %v9604, 0.5
  %v9621 = vmul.f32 %v9605, 0.5
  %v9622 = vmul.f32 %v9606, 0.5
  %v9623 = vmul.f32 %v9607, 0.5
  %v9624 = vmul.f32 %v9608, 0.5
  %v9625 = vmul.f32 %v9609, 0.5
  %v9626 = vadd.f32 %v9610, 0.5
  %v9627 = vadd.f32 %v9611, 0.5
  %v9628 = vadd.f32 %v9612, 0.5
  %v9629 = vadd.f32 %v9613, 0.5
  %v9630 = vadd.f32 %v9614, 0.5
  %v9631 = vadd.f32 %v9615, 0.5
  %v9632 = vadd.f32 %v9616, 0.5
  %v9633 = vadd.f32 %v9617, 0.5
  %v9634 = vadd.f32 %v9618, 0.5
  %v9635 = vadd.f32 %v9619, 0.5
  %v9636 = vadd.f32 %v9620, 0.5
  %v9637 = vadd.f32 %v9621, 0.5
  %v9638 = vadd.f32 %v9622, 0.5
  %v9639 = vadd.f32 %v9623, 0.5
  %v9640 = vadd.f32 %v9624, 0.5
  %v9641 = vadd.f32 %v9625, 0.5
  %v9642 = vtanh.pop %v9562
  %v9643 = vtanh.pop %v9563
  %v9644 = vtanh.pop %v9564
  %v9645 = vtanh.pop %v9565
  %v9646 = vtanh.pop %v9566
  %v9647 = vtanh.pop %v9567
  %v9648 = vtanh.pop %v9568
  %v9649 = vtanh.pop %v9569
  %v9650 = vtanh.pop %v9570
  %v9651 = vtanh.pop %v9571
  %v9652 = vtanh.pop %v9572
  %v9653 = vtanh.pop %v9573
  %v9654 = vtanh.pop %v9574
  %v9655 = vtanh.pop %v9575
  %v9656 = vtanh.pop %v9576
  %v9657 = vtanh.pop %v9577
  %v9658 = vmul.f32 %v9626, %v8808
  %v9659 = vmul.f32 %v9627, %v8809
  %v9660 = vmul.f32 %v9628, %v8810
  %v9661 = vmul.f32 %v9629, %v8811
  %v9662 = vmul.f32 %v9630, %v8812
  %v9663 = vmul.f32 %v9631, %v8813
  %v9664 = vmul.f32 %v9632, %v8814
  %v9665 = vmul.f32 %v9633, %v8815
  %v9666 = vmul.f32 %v9634, %v8816
  %v9667 = vmul.f32 %v9635, %v8817
  %v9668 = vmul.f32 %v9636, %v8818
  %v9669 = vmul.f32 %v9637, %v8819
  %v9670 = vmul.f32 %v9638, %v8820
  %v9671 = vmul.f32 %v9639, %v8821
  %v9672 = vmul.f32 %v9640, %v8822
  %v9673 = vmul.f32 %v9641, %v8823
  %9690 = vrot.lane.b32.xlu0 %v9642, 64
  %v9691 = vpop.permute.xlu0 %9690
  %9692 = vrot.lane.b32.xlu0 %v9643, 64
  %v9693 = vpop.permute.xlu0 %9692
  %9694 = vrot.lane.b32.xlu0 %v9644, 64
  %v9695 = vpop.permute.xlu0 %9694
  %9696 = vrot.lane.b32.xlu0 %v9645, 64
  %v9697 = vpop.permute.xlu0 %9696
  %9698 = vrot.lane.b32.xlu0 %v9646, 64
  %v9699 = vpop.permute.xlu0 %9698
  %9700 = vrot.lane.b32.xlu0 %v9647, 64
  %v9701 = vpop.permute.xlu0 %9700
  %9702 = vrot.lane.b32.xlu0 %v9648, 64
  %v9703 = vpop.permute.xlu0 %9702
  %9704 = vrot.lane.b32.xlu0 %v9649, 64
  %v9705 = vpop.permute.xlu0 %9704
  %9706 = vrot.lane.b32.xlu0 %v9650, 64
  %v9707 = vpop.permute.xlu0 %9706
  %9708 = vrot.lane.b32.xlu0 %v9651, 64
  %v9709 = vpop.permute.xlu0 %9708
  %9710 = vrot.lane.b32.xlu0 %v9652, 64
  %v9711 = vpop.permute.xlu0 %9710
  %9712 = vrot.lane.b32.xlu0 %v9653, 64
  %v9713 = vpop.permute.xlu0 %9712
  %9714 = vrot.lane.b32.xlu0 %v9654, 64
  %v9715 = vpop.permute.xlu0 %9714
  %9716 = vrot.lane.b32.xlu0 %v9655, 64
  %v9717 = vpop.permute.xlu0 %9716
  %9718 = vrot.lane.b32.xlu0 %v9656, 64
  %v9719 = vpop.permute.xlu0 %9718
  %9720 = vrot.lane.b32.xlu0 %v9657, 64
  %v9721 = vpop.permute.xlu0 %9720
  %v9738 = vmul.f32 %v9626, %v9691
  %v9739 = vmul.f32 %v9627, %v9693
  %v9740 = vmul.f32 %v9628, %v9695
  %v9741 = vmul.f32 %v9629, %v9697
  %v9742 = vmul.f32 %v9630, %v9699
  %v9743 = vmul.f32 %v9631, %v9701
  %v9744 = vmul.f32 %v9632, %v9703
  %v9745 = vmul.f32 %v9633, %v9705
  %v9746 = vmul.f32 %v9634, %v9707
  %v9747 = vmul.f32 %v9635, %v9709
  %v9748 = vmul.f32 %v9636, %v9711
  %v9749 = vmul.f32 %v9637, %v9713
  %v9750 = vmul.f32 %v9638, %v9715
  %v9751 = vmul.f32 %v9639, %v9717
  %v9752 = vmul.f32 %v9640, %v9719
  %v9753 = vmul.f32 %v9641, %v9721
  %9770 = vrot.lane.b32.xlu0 %v9738, 32
  %v9771 = vpop.permute.xlu0 %9770
  %9772 = vrot.lane.b32.xlu0 %v9739, 32
  %v9773 = vpop.permute.xlu0 %9772
  %9774 = vrot.lane.b32.xlu0 %v9740, 32
  %v9775 = vpop.permute.xlu0 %9774
  %9776 = vrot.lane.b32.xlu0 %v9741, 32
  %v9777 = vpop.permute.xlu0 %9776
  %9778 = vrot.lane.b32.xlu0 %v9742, 32
  %v9779 = vpop.permute.xlu0 %9778
  %9780 = vrot.lane.b32.xlu0 %v9743, 32
  %v9781 = vpop.permute.xlu0 %9780
  %9782 = vrot.lane.b32.xlu0 %v9744, 32
  %v9783 = vpop.permute.xlu0 %9782
  %9784 = vrot.lane.b32.xlu0 %v9745, 32
  %v9785 = vpop.permute.xlu0 %9784
  %9786 = vrot.lane.b32.xlu0 %v9746, 32
  %v9787 = vpop.permute.xlu0 %9786
  %9788 = vrot.lane.b32.xlu0 %v9747, 32
  %v9789 = vpop.permute.xlu0 %9788
  %9790 = vrot.lane.b32.xlu0 %v9748, 32
  %v9791 = vpop.permute.xlu0 %9790
  %9792 = vrot.lane.b32.xlu0 %v9749, 32
  %v9793 = vpop.permute.xlu0 %9792
  %9794 = vrot.lane.b32.xlu0 %v9750, 32
  %v9795 = vpop.permute.xlu0 %9794
  %9796 = vrot.lane.b32.xlu0 %v9751, 32
  %v9797 = vpop.permute.xlu0 %9796
  %9798 = vrot.lane.b32.xlu0 %v9752, 32
  %v9799 = vpop.permute.xlu0 %9798
  %9800 = vrot.lane.b32.xlu0 %v9753, 32
  %v9801 = vpop.permute.xlu0 %9800
  %v9818 = vadd.f32 %v9658, %v9771
  %v9819 = vadd.f32 %v9659, %v9773
  %v9820 = vadd.f32 %v9660, %v9775
  %v9821 = vadd.f32 %v9661, %v9777
  %v9822 = vadd.f32 %v9662, %v9779
  %v9823 = vadd.f32 %v9663, %v9781
  %v9824 = vadd.f32 %v9664, %v9783
  %v9825 = vadd.f32 %v9665, %v9785
  %v9826 = vadd.f32 %v9666, %v9787
  %v9827 = vadd.f32 %v9667, %v9789
  %v9828 = vadd.f32 %v9668, %v9791
  %v9829 = vadd.f32 %v9669, %v9793
  %v9830 = vadd.f32 %v9670, %v9795
  %v9831 = vadd.f32 %v9671, %v9797
  %v9832 = vadd.f32 %v9672, %v9799
  %v9833 = vadd.f32 %v9673, %v9801
  %v9834 = vtanh.pop %v9818
  %v9835 = vtanh.pop %v9819
  %v9836 = vtanh.pop %v9820
  %v9837 = vtanh.pop %v9821
  %v9838 = vtanh.pop %v9822
  %v9839 = vtanh.pop %v9823
  %v9840 = vtanh.pop %v9824
  %v9841 = vtanh.pop %v9825
  %v9842 = vtanh.pop %v9826
  %v9843 = vtanh.pop %v9827
  %v9844 = vtanh.pop %v9828
  %v9845 = vtanh.pop %v9829
  %v9846 = vtanh.pop %v9830
  %v9847 = vtanh.pop %v9831
  %v9848 = vtanh.pop %v9832
  %v9849 = vtanh.pop %v9833
  %9866 = vrot.lane.b32.xlu0 %v9834, 64
  %v9867 = vpop.permute.xlu0 %9866
  %9868 = vrot.lane.b32.xlu0 %v9835, 64
  %v9869 = vpop.permute.xlu0 %9868
  %9870 = vrot.lane.b32.xlu0 %v9836, 64
  %v9871 = vpop.permute.xlu0 %9870
  %9872 = vrot.lane.b32.xlu0 %v9837, 64
  %v9873 = vpop.permute.xlu0 %9872
  %9874 = vrot.lane.b32.xlu0 %v9838, 64
  %v9875 = vpop.permute.xlu0 %9874
  %9876 = vrot.lane.b32.xlu0 %v9839, 64
  %v9877 = vpop.permute.xlu0 %9876
  %9878 = vrot.lane.b32.xlu0 %v9840, 64
  %v9879 = vpop.permute.xlu0 %9878
  %9880 = vrot.lane.b32.xlu0 %v9841, 64
  %v9881 = vpop.permute.xlu0 %9880
  %9882 = vrot.lane.b32.xlu0 %v9842, 64
  %v9883 = vpop.permute.xlu0 %9882
  %9884 = vrot.lane.b32.xlu0 %v9843, 64
  %v9885 = vpop.permute.xlu0 %9884
  %9886 = vrot.lane.b32.xlu0 %v9844, 64
  %v9887 = vpop.permute.xlu0 %9886
  %9888 = vrot.lane.b32.xlu0 %v9845, 64
  %v9889 = vpop.permute.xlu0 %9888
  %9890 = vrot.lane.b32.xlu0 %v9846, 64
  %v9891 = vpop.permute.xlu0 %9890
  %9892 = vrot.lane.b32.xlu0 %v9847, 64
  %v9893 = vpop.permute.xlu0 %9892
  %9894 = vrot.lane.b32.xlu0 %v9848, 64
  %v9895 = vpop.permute.xlu0 %9894
  %9896 = vrot.lane.b32.xlu0 %v9849, 64
  %v9897 = vpop.permute.xlu0 %9896
  %v9914 = vmul.f32 %v9626, %v9867
  %v9915 = vmul.f32 %v9627, %v9869
  %v9916 = vmul.f32 %v9628, %v9871
  %v9917 = vmul.f32 %v9629, %v9873
  %v9918 = vmul.f32 %v9630, %v9875
  %v9919 = vmul.f32 %v9631, %v9877
  %v9920 = vmul.f32 %v9632, %v9879
  %v9921 = vmul.f32 %v9633, %v9881
  %v9922 = vmul.f32 %v9634, %v9883
  %v9923 = vmul.f32 %v9635, %v9885
  %v9924 = vmul.f32 %v9636, %v9887
  %v9925 = vmul.f32 %v9637, %v9889
  %v9926 = vmul.f32 %v9638, %v9891
  %v9927 = vmul.f32 %v9639, %v9893
  %v9928 = vmul.f32 %v9640, %v9895
  %v9929 = vmul.f32 %v9641, %v9897
  %vm9930 = vcmp.ge.f32.partialorder %v392, 0.0
  %vm9931 = vcmp.ge.f32.partialorder %v393, 0.0
  %vm9932 = vcmp.ge.f32.partialorder %v394, 0.0
  %vm9933 = vcmp.ge.f32.partialorder %v395, 0.0
  %vm9934 = vcmp.ge.f32.partialorder %v396, 0.0
  %vm9935 = vcmp.ge.f32.partialorder %v397, 0.0
  %vm9936 = vcmp.ge.f32.partialorder %v398, 0.0
  %vm9937 = vcmp.ge.f32.partialorder %v399, 0.0
  %vm9938 = vcmp.ge.f32.partialorder %v400, 0.0
  %vm9939 = vcmp.ge.f32.partialorder %v401, 0.0
  %vm9940 = vcmp.ge.f32.partialorder %v402, 0.0
  %vm9941 = vcmp.ge.f32.partialorder %v403, 0.0
  %vm9942 = vcmp.ge.f32.partialorder %v404, 0.0
  %vm9943 = vcmp.ge.f32.partialorder %v405, 0.0
  %vm9944 = vcmp.ge.f32.partialorder %v406, 0.0
  %vm9945 = vcmp.ge.f32.partialorder %v407, 0.0
  %v9946 = vmul.f32 %v392, 0.01
  %v9947 = vmul.f32 %v393, 0.01
  %v9948 = vmul.f32 %v394, 0.01
  %v9949 = vmul.f32 %v395, 0.01
  %v9950 = vmul.f32 %v396, 0.01
  %v9951 = vmul.f32 %v397, 0.01
  %v9952 = vmul.f32 %v398, 0.01
  %v9953 = vmul.f32 %v399, 0.01
  %v9954 = vmul.f32 %v400, 0.01
  %v9955 = vmul.f32 %v401, 0.01
  %v9956 = vmul.f32 %v402, 0.01
  %v9957 = vmul.f32 %v403, 0.01
  %v9958 = vmul.f32 %v404, 0.01
  %v9959 = vmul.f32 %v405, 0.01
  %v9960 = vmul.f32 %v406, 0.01
  %v9961 = vmul.f32 %v407, 0.01
  %v9962 = vsel %vm9930, %v392, %v9946
  %v9963 = vsel %vm9931, %v393, %v9947
  %v9964 = vsel %vm9932, %v394, %v9948
  %v9965 = vsel %vm9933, %v395, %v9949
  %v9966 = vsel %vm9934, %v396, %v9950
  %v9967 = vsel %vm9935, %v397, %v9951
  %v9968 = vsel %vm9936, %v398, %v9952
  %v9969 = vsel %vm9937, %v399, %v9953
  %v9970 = vsel %vm9938, %v400, %v9954
  %v9971 = vsel %vm9939, %v401, %v9955
  %v9972 = vsel %vm9940, %v402, %v9956
  %v9973 = vsel %vm9941, %v403, %v9957
  %v9974 = vsel %vm9942, %v404, %v9958
  %v9975 = vsel %vm9943, %v405, %v9959
  %v9976 = vsel %vm9944, %v406, %v9960
  %v9977 = vsel %vm9945, %v407, %v9961
  %v9978 = vld [vmem:[%s10] sm:$0xff]
  %v9979 = vld [vmem:[%s10 + $0x8] sm:$0xff]
  %v9980 = vld [vmem:[%s10 + $0x10] sm:$0xff]
  %vm9981 = vcmp.ge.f32.partialorder %v9914, 0.0
  %vm9982 = vcmp.ge.f32.partialorder %v9915, 0.0
  %vm9983 = vcmp.ge.f32.partialorder %v9916, 0.0
  %vm9984 = vcmp.ge.f32.partialorder %v9917, 0.0
  %vm9985 = vcmp.ge.f32.partialorder %v9918, 0.0
  %vm9986 = vcmp.ge.f32.partialorder %v9919, 0.0
  %vm9987 = vcmp.ge.f32.partialorder %v9920, 0.0
  %vm9988 = vcmp.ge.f32.partialorder %v9921, 0.0
  %vm9989 = vcmp.ge.f32.partialorder %v9922, 0.0
  %vm9990 = vcmp.ge.f32.partialorder %v9923, 0.0
  %vm9991 = vcmp.ge.f32.partialorder %v9924, 0.0
  %vm9992 = vcmp.ge.f32.partialorder %v9925, 0.0
  %vm9993 = vcmp.ge.f32.partialorder %v9926, 0.0
  %vm9994 = vcmp.ge.f32.partialorder %v9927, 0.0
  %vm9995 = vcmp.ge.f32.partialorder %v9928, 0.0
  %vm9996 = vcmp.ge.f32.partialorder %v9929, 0.0
  %v9997 = vmul.f32 %v9914, 0.01
  %v9998 = vmul.f32 %v9915, 0.01
  %v9999 = vmul.f32 %v9916, 0.01
  %v10000 = vmul.f32 %v9917, 0.01
  %v10001 = vmul.f32 %v9918, 0.01
  %v10002 = vmul.f32 %v9919, 0.01
  %v10003 = vmul.f32 %v9920, 0.01
  %v10004 = vmul.f32 %v9921, 0.01
  %v10005 = vmul.f32 %v9922, 0.01
  %v10006 = vmul.f32 %v9923, 0.01
  %v10007 = vmul.f32 %v9924, 0.01
  %v10008 = vmul.f32 %v9925, 0.01
  %v10009 = vmul.f32 %v9926, 0.01
  %v10010 = vmul.f32 %v9927, 0.01
  %v10011 = vmul.f32 %v9928, 0.01
  %v10012 = vmul.f32 %v9929, 0.01
  %v10013 = vsel %vm9981, %v9914, %v9997
  %v10014 = vsel %vm9982, %v9915, %v9998
  %v10015 = vsel %vm9983, %v9916, %v9999
  %v10016 = vsel %vm9984, %v9917, %v10000
  %v10017 = vsel %vm9985, %v9918, %v10001
  %v10018 = vsel %vm9986, %v9919, %v10002
  %v10019 = vsel %vm9987, %v9920, %v10003
  %v10020 = vsel %vm9988, %v9921, %v10004
  %v10021 = vsel %vm9989, %v9922, %v10005
  %v10022 = vsel %vm9990, %v9923, %v10006
  %v10023 = vsel %vm9991, %v9924, %v10007
  %v10024 = vsel %vm9992, %v9925, %v10008
  %v10025 = vsel %vm9993, %v9926, %v10009
  %v10026 = vsel %vm9994, %v9927, %v10010
  %v10027 = vsel %vm9995, %v9928, %v10011
  %v10028 = vsel %vm9996, %v9929, %v10012
  %v10029 = vld [vmem:[%s11] sm:$0xff]
  %v10030 = vld [vmem:[%s11 + $0x8] sm:$0xff]
  %v10031 = vld [vmem:[%s11 + $0x10] sm:$0xff]
  %v10032 = vld [vmem:[%s11 + $0x18] sm:$0xff]
  %10049 = vrot.lane.b32.xlu0 %v10013, 32
  %v10050 = vpop.permute.xlu0 %10049
  %10051 = vrot.lane.b32.xlu0 %v10014, 32
  %v10052 = vpop.permute.xlu0 %10051
  %10053 = vrot.lane.b32.xlu0 %v10015, 32
  %v10054 = vpop.permute.xlu0 %10053
  %10055 = vrot.lane.b32.xlu0 %v10016, 32
  %v10056 = vpop.permute.xlu0 %10055
  %10057 = vrot.lane.b32.xlu0 %v10017, 32
  %v10058 = vpop.permute.xlu0 %10057
  %10059 = vrot.lane.b32.xlu0 %v10018, 32
  %v10060 = vpop.permute.xlu0 %10059
  %10061 = vrot.lane.b32.xlu0 %v10019, 32
  %v10062 = vpop.permute.xlu0 %10061
  %10063 = vrot.lane.b32.xlu0 %v10020, 32
  %v10064 = vpop.permute.xlu0 %10063
  %10065 = vrot.lane.b32.xlu0 %v10021, 32
  %v10066 = vpop.permute.xlu0 %10065
  %10067 = vrot.lane.b32.xlu0 %v10022, 32
  %v10068 = vpop.permute.xlu0 %10067
  %10069 = vrot.lane.b32.xlu0 %v10023, 32
  %v10070 = vpop.permute.xlu0 %10069
  %10071 = vrot.lane.b32.xlu0 %v10024, 32
  %v10072 = vpop.permute.xlu0 %10071
  %10073 = vrot.lane.b32.xlu0 %v10025, 32
  %v10074 = vpop.permute.xlu0 %10073
  %10075 = vrot.lane.b32.xlu0 %v10026, 32
  %v10076 = vpop.permute.xlu0 %10075
  %10077 = vrot.lane.b32.xlu0 %v10027, 32
  %v10078 = vpop.permute.xlu0 %10077
  %10079 = vrot.lane.b32.xlu0 %v10028, 32
  %v10080 = vpop.permute.xlu0 %10079
  %v10081 = vsel %vm1904, %v10050, 0
  %v10083 = vsel %vm1904, %v10052, 0
  %v10085 = vsel %vm1904, %v10054, 0
  %v10087 = vsel %vm1904, %v10056, 0
  %v10089 = vsel %vm1904, %v10058, 0
  %v10091 = vsel %vm1904, %v10060, 0
  %v10093 = vsel %vm1904, %v10062, 0
  %v10095 = vsel %vm1904, %v10064, 0
  %v10097 = vsel %vm1904, %v10066, 0
  %v10099 = vsel %vm1904, %v10068, 0
  %v10101 = vsel %vm1904, %v10070, 0
  %v10103 = vsel %vm1904, %v10072, 0
  %v10105 = vsel %vm1904, %v10074, 0
  %v10107 = vsel %vm1904, %v10076, 0
  %v10109 = vsel %vm1904, %v10078, 0
  %v10111 = vsel %vm1904, %v10080, 0
  %10113 = vmatpush.msra.mxu0 0.0
  %10114 = vmatpush.msra.mxu0 0.0
  %10115 = vmatpush.msra.mxu0 0.0
  %10116 = vmatpush.msra.mxu0 0.0
  %10117 = vmatpush.msra.mxu0 0.0
  %10118 = vmatpush.msra.mxu0 0.0
  %10119 = vmatpush.msra.mxu0 0.0
  %10120 = vmatpush.msra.mxu0 0.0
  %10121 = vmatpush.msra.mxu0 0.0
  %10122 = vmatpush.msra.mxu0 0.0
  %10123 = vmatpush.msra.mxu0 0.0
  %10124 = vmatpush.msra.mxu0 0.0
  %10125 = vmatpush.msra.mxu0 %v10032
  %10126 = vmatpush.msra.mxu0 %v10031
  %10127 = vmatpush.msra.mxu0 %v10030
  %10128 = vmatpush.msra.mxu0 %v10029
  %10129 = vmatmul.f32.gmra.mxu0 %v10081
  %v10130 = vpop.f32.mrf.mxu0
  %v10131 = vadd.f32 0.0, %v10130
  %10132 = vmatmul.f32.gmra.mxu0 %v10083
  %v10133 = vpop.f32.mrf.mxu0
  %v10134 = vadd.f32 0.0, %v10133
  %10135 = vmatmul.f32.gmra.mxu0 %v10085
  %v10136 = vpop.f32.mrf.mxu0
  %v10137 = vadd.f32 0.0, %v10136
  %10138 = vmatmul.f32.gmra.mxu0 %v10087
  %v10139 = vpop.f32.mrf.mxu0
  %v10140 = vadd.f32 0.0, %v10139
  %10141 = vmatmul.f32.gmra.mxu0 %v10089
  %v10142 = vpop.f32.mrf.mxu0
  %v10143 = vadd.f32 0.0, %v10142
  %10144 = vmatmul.f32.gmra.mxu0 %v10091
  %v10145 = vpop.f32.mrf.mxu0
  %v10146 = vadd.f32 0.0, %v10145
  %10147 = vmatmul.f32.gmra.mxu0 %v10093
  %v10148 = vpop.f32.mrf.mxu0
  %v10149 = vadd.f32 0.0, %v10148
  %10150 = vmatmul.f32.gmra.mxu0 %v10095
  %v10151 = vpop.f32.mrf.mxu0
  %v10152 = vadd.f32 0.0, %v10151
  %10153 = vmatmul.f32.gmra.mxu0 %v10097
  %v10154 = vpop.f32.mrf.mxu0
  %v10155 = vadd.f32 0.0, %v10154
  %10156 = vmatmul.f32.gmra.mxu0 %v10099
  %v10157 = vpop.f32.mrf.mxu0
  %v10158 = vadd.f32 0.0, %v10157
  %10159 = vmatmul.f32.gmra.mxu0 %v10101
  %v10160 = vpop.f32.mrf.mxu0
  %v10161 = vadd.f32 0.0, %v10160
  %10162 = vmatmul.f32.gmra.mxu0 %v10103
  %v10163 = vpop.f32.mrf.mxu0
  %v10164 = vadd.f32 0.0, %v10163
  %10165 = vmatmul.f32.gmra.mxu0 %v10105
  %v10166 = vpop.f32.mrf.mxu0
  %v10167 = vadd.f32 0.0, %v10166
  %10168 = vmatmul.f32.gmra.mxu0 %v10107
  %v10169 = vpop.f32.mrf.mxu0
  %v10170 = vadd.f32 0.0, %v10169
  %10171 = vmatmul.f32.gmra.mxu0 %v10109
  %v10172 = vpop.f32.mrf.mxu0
  %v10173 = vadd.f32 0.0, %v10172
  %10174 = vmatmul.f32.gmra.mxu0 %v10111
  %v10175 = vpop.f32.mrf.mxu0
  %v10176 = vadd.f32 0.0, %v10175
  %10177 = vdwg.mxu0
  %vm10178 = vcmask 195584
  %v10180 = vsel %vm10178, %v9962, 0
  %v10183 = vsel %vm10178, %v9963, 0
  %v10186 = vsel %vm10178, %v9964, 0
  %v10189 = vsel %vm10178, %v9965, 0
  %v10192 = vsel %vm10178, %v9966, 0
  %v10195 = vsel %vm10178, %v9967, 0
  %v10198 = vsel %vm10178, %v9968, 0
  %v10201 = vsel %vm10178, %v9969, 0
  %v10204 = vsel %vm10178, %v9970, 0
  %v10207 = vsel %vm10178, %v9971, 0
  %v10210 = vsel %vm10178, %v9972, 0
  %v10213 = vsel %vm10178, %v9973, 0
  %v10216 = vsel %vm10178, %v9974, 0
  %v10219 = vsel %vm10178, %v9975, 0
  %v10222 = vsel %vm10178, %v9976, 0
  %v10225 = vsel %vm10178, %v9977, 0
  %10227 = vmatpush.msra.mxu0 0.0
  %10228 = vmatpush.msra.mxu0 0.0
  %10229 = vmatpush.msra.mxu0 0.0
  %10230 = vmatpush.msra.mxu0 0.0
  %10231 = vmatpush.msra.mxu0 0.0
  %10232 = vmatpush.msra.mxu0 0.0
  %10233 = vmatpush.msra.mxu0 0.0
  %10234 = vmatpush.msra.mxu0 0.0
  %10235 = vmatpush.msra.mxu0 0.0
  %10236 = vmatpush.msra.mxu0 0.0
  %10237 = vmatpush.msra.mxu0 0.0
  %10238 = vmatpush.msra.mxu0 0.0
  %10239 = vmatpush.msra.mxu0 0.0
  %10240 = vmatpush.msra.mxu0 %v9980
  %10241 = vmatpush.msra.mxu0 %v9979
  %10242 = vmatpush.msra.mxu0 %v9978
  %10243 = vmatmul.f32.gmra.mxu0 %v10180
  %v10244 = vpop.f32.mrf.mxu0
  %v10245 = vadd.f32 %v10131, %v10244
  %10246 = vmatmul.f32.gmra.mxu0 %v10183
  %v10247 = vpop.f32.mrf.mxu0
  %v10248 = vadd.f32 %v10134, %v10247
  %10249 = vmatmul.f32.gmra.mxu0 %v10186
  %v10250 = vpop.f32.mrf.mxu0
  %v10251 = vadd.f32 %v10137, %v10250
  %10252 = vmatmul.f32.gmra.mxu0 %v10189
  %v10253 = vpop.f32.mrf.mxu0
  %v10254 = vadd.f32 %v10140, %v10253
  %10255 = vmatmul.f32.gmra.mxu0 %v10192
  %v10256 = vpop.f32.mrf.mxu0
  %v10257 = vadd.f32 %v10143, %v10256
  %10258 = vmatmul.f32.gmra.mxu0 %v10195
  %v10259 = vpop.f32.mrf.mxu0
  %v10260 = vadd.f32 %v10146, %v10259
  %10261 = vmatmul.f32.gmra.mxu0 %v10198
  %v10262 = vpop.f32.mrf.mxu0
  %v10263 = vadd.f32 %v10149, %v10262
  %10264 = vmatmul.f32.gmra.mxu0 %v10201
  %v10265 = vpop.f32.mrf.mxu0
  %v10266 = vadd.f32 %v10152, %v10265
  %10267 = vmatmul.f32.gmra.mxu0 %v10204
  %v10268 = vpop.f32.mrf.mxu0
  %v10269 = vadd.f32 %v10155, %v10268
  %10270 = vmatmul.f32.gmra.mxu0 %v10207
  %v10271 = vpop.f32.mrf.mxu0
  %v10272 = vadd.f32 %v10158, %v10271
  %10273 = vmatmul.f32.gmra.mxu0 %v10210
  %v10274 = vpop.f32.mrf.mxu0
  %v10275 = vadd.f32 %v10161, %v10274
  %10276 = vmatmul.f32.gmra.mxu0 %v10213
  %v10277 = vpop.f32.mrf.mxu0
  %v10278 = vadd.f32 %v10164, %v10277
  %10279 = vmatmul.f32.gmra.mxu0 %v10216
  %v10280 = vpop.f32.mrf.mxu0
  %v10281 = vadd.f32 %v10167, %v10280
  %10282 = vmatmul.f32.gmra.mxu0 %v10219
  %v10283 = vpop.f32.mrf.mxu0
  %v10284 = vadd.f32 %v10170, %v10283
  %10285 = vmatmul.f32.gmra.mxu0 %v10222
  %v10286 = vpop.f32.mrf.mxu0
  %v10287 = vadd.f32 %v10173, %v10286
  %10288 = vmatmul.f32.gmra.mxu0 %v10225
  %v10289 = vpop.f32.mrf.mxu0
  %v10290 = vadd.f32 %v10176, %v10289
  %10291 = vdwg.mxu0
  %v10292 = vld [vmem:[%s12] sm:$0x1]
  %v10294 = vperm.slane %v10292, 0
  %v10296 = vadd.f32 %v10245, %v10294
  %v10297 = vadd.f32 %v10248, %v10294
  %v10298 = vadd.f32 %v10251, %v10294
  %v10299 = vadd.f32 %v10254, %v10294
  %v10300 = vadd.f32 %v10257, %v10294
  %v10301 = vadd.f32 %v10260, %v10294
  %v10302 = vadd.f32 %v10263, %v10294
  %v10303 = vadd.f32 %v10266, %v10294
  %v10304 = vadd.f32 %v10269, %v10294
  %v10305 = vadd.f32 %v10272, %v10294
  %v10306 = vadd.f32 %v10275, %v10294
  %v10307 = vadd.f32 %v10278, %v10294
  %v10308 = vadd.f32 %v10281, %v10294
  %v10309 = vadd.f32 %v10284, %v10294
  %v10310 = vadd.f32 %v10287, %v10294
  %v10311 = vadd.f32 %v10290, %v10294
  %vm10312 = vcmp.ge.f32.partialorder %v10296, 0.0
  %vm10313 = vcmp.ge.f32.partialorder %v10297, 0.0
  %vm10314 = vcmp.ge.f32.partialorder %v10298, 0.0
  %vm10315 = vcmp.ge.f32.partialorder %v10299, 0.0
  %vm10316 = vcmp.ge.f32.partialorder %v10300, 0.0
  %vm10317 = vcmp.ge.f32.partialorder %v10301, 0.0
  %vm10318 = vcmp.ge.f32.partialorder %v10302, 0.0
  %vm10319 = vcmp.ge.f32.partialorder %v10303, 0.0
  %vm10320 = vcmp.ge.f32.partialorder %v10304, 0.0
  %vm10321 = vcmp.ge.f32.partialorder %v10305, 0.0
  %vm10322 = vcmp.ge.f32.partialorder %v10306, 0.0
  %vm10323 = vcmp.ge.f32.partialorder %v10307, 0.0
  %vm10324 = vcmp.ge.f32.partialorder %v10308, 0.0
  %vm10325 = vcmp.ge.f32.partialorder %v10309, 0.0
  %vm10326 = vcmp.ge.f32.partialorder %v10310, 0.0
  %vm10327 = vcmp.ge.f32.partialorder %v10311, 0.0
  %v10328 = vmul.f32 %v10296, 0.01
  %v10329 = vmul.f32 %v10297, 0.01
  %v10330 = vmul.f32 %v10298, 0.01
  %v10331 = vmul.f32 %v10299, 0.01
  %v10332 = vmul.f32 %v10300, 0.01
  %v10333 = vmul.f32 %v10301, 0.01
  %v10334 = vmul.f32 %v10302, 0.01
  %v10335 = vmul.f32 %v10303, 0.01
  %v10336 = vmul.f32 %v10304, 0.01
  %v10337 = vmul.f32 %v10305, 0.01
  %v10338 = vmul.f32 %v10306, 0.01
  %v10339 = vmul.f32 %v10307, 0.01
  %v10340 = vmul.f32 %v10308, 0.01
  %v10341 = vmul.f32 %v10309, 0.01
  %v10342 = vmul.f32 %v10310, 0.01
  %v10343 = vmul.f32 %v10311, 0.01
  %v10344 = vsel %vm10312, %v10296, %v10328
  %v10345 = vsel %vm10313, %v10297, %v10329
  %v10346 = vsel %vm10314, %v10298, %v10330
  %v10347 = vsel %vm10315, %v10299, %v10331
  %v10348 = vsel %vm10316, %v10300, %v10332
  %v10349 = vsel %vm10317, %v10301, %v10333
  %v10350 = vsel %vm10318, %v10302, %v10334
  %v10351 = vsel %vm10319, %v10303, %v10335
  %v10352 = vsel %vm10320, %v10304, %v10336
  %v10353 = vsel %vm10321, %v10305, %v10337
  %v10354 = vsel %vm10322, %v10306, %v10338
  %v10355 = vsel %vm10323, %v10307, %v10339
  %v10356 = vsel %vm10324, %v10308, %v10340
  %v10357 = vsel %vm10325, %v10309, %v10341
  %v10358 = vsel %vm10326, %v10310, %v10342
  %v10359 = vsel %vm10327, %v10311, %v10343
  %v10360 = vld [vmem:[%s13] sm:$0xff]
  %v10361 = vld [vmem:[%s13 + $0x8] sm:$0xff]
  %v10362 = vld [vmem:[%s13 + $0x10] sm:$0xff]
  %v10363 = vld [vmem:[%s13 + $0x18] sm:$0xff]
  %v10364 = vld [vmem:[%s14] sm:$0x1]
  %v10366 = vperm.slane %v10364, 0
  %v10369 = vsel %vm1904, %v10344, 0
  %v10372 = vsel %vm1904, %v10345, 0
  %v10375 = vsel %vm1904, %v10346, 0
  %v10378 = vsel %vm1904, %v10347, 0
  %v10381 = vsel %vm1904, %v10348, 0
  %v10384 = vsel %vm1904, %v10349, 0
  %v10387 = vsel %vm1904, %v10350, 0
  %v10390 = vsel %vm1904, %v10351, 0
  %v10393 = vsel %vm1904, %v10352, 0
  %v10396 = vsel %vm1904, %v10353, 0
  %v10399 = vsel %vm1904, %v10354, 0
  %v10402 = vsel %vm1904, %v10355, 0
  %v10405 = vsel %vm1904, %v10356, 0
  %v10408 = vsel %vm1904, %v10357, 0
  %v10411 = vsel %vm1904, %v10358, 0
  %v10414 = vsel %vm1904, %v10359, 0
  %10416 = vmatpush.msra.mxu0 0.0
  %10417 = vmatpush.msra.mxu0 0.0
  %10418 = vmatpush.msra.mxu0 0.0
  %10419 = vmatpush.msra.mxu0 0.0
  %10420 = vmatpush.msra.mxu0 0.0
  %10421 = vmatpush.msra.mxu0 0.0
  %10422 = vmatpush.msra.mxu0 0.0
  %10423 = vmatpush.msra.mxu0 0.0
  %10424 = vmatpush.msra.mxu0 0.0
  %10425 = vmatpush.msra.mxu0 0.0
  %10426 = vmatpush.msra.mxu0 0.0
  %10427 = vmatpush.msra.mxu0 0.0
  %10428 = vmatpush.msra.mxu0 %v10363
  %10429 = vmatpush.msra.mxu0 %v10362
  %10430 = vmatpush.msra.mxu0 %v10361
  %10431 = vmatpush.msra.mxu0 %v10360
  %10432 = vmatmul.f32.gmra.mxu0 %v10369
  %v10433 = vpop.f32.mrf.mxu0
  %v10434 = vadd.f32 %v10366, %v10433
  %10435 = vmatmul.f32.gmra.mxu0 %v10372
  %v10436 = vpop.f32.mrf.mxu0
  %v10437 = vadd.f32 %v10366, %v10436
  %10438 = vmatmul.f32.gmra.mxu0 %v10375
  %v10439 = vpop.f32.mrf.mxu0
  %v10440 = vadd.f32 %v10366, %v10439
  %10441 = vmatmul.f32.gmra.mxu0 %v10378
  %v10442 = vpop.f32.mrf.mxu0
  %v10443 = vadd.f32 %v10366, %v10442
  %10444 = vmatmul.f32.gmra.mxu0 %v10381
  %v10445 = vpop.f32.mrf.mxu0
  %v10446 = vadd.f32 %v10366, %v10445
  %10447 = vmatmul.f32.gmra.mxu0 %v10384
  %v10448 = vpop.f32.mrf.mxu0
  %v10449 = vadd.f32 %v10366, %v10448
  %10450 = vmatmul.f32.gmra.mxu0 %v10387
  %v10451 = vpop.f32.mrf.mxu0
  %v10452 = vadd.f32 %v10366, %v10451
  %10453 = vmatmul.f32.gmra.mxu0 %v10390
  %v10454 = vpop.f32.mrf.mxu0
  %v10455 = vadd.f32 %v10366, %v10454
  %10456 = vmatmul.f32.gmra.mxu0 %v10393
  %v10457 = vpop.f32.mrf.mxu0
  %v10458 = vadd.f32 %v10366, %v10457
  %10459 = vmatmul.f32.gmra.mxu0 %v10396
  %v10460 = vpop.f32.mrf.mxu0
  %v10461 = vadd.f32 %v10366, %v10460
  %10462 = vmatmul.f32.gmra.mxu0 %v10399
  %v10463 = vpop.f32.mrf.mxu0
  %v10464 = vadd.f32 %v10366, %v10463
  %10465 = vmatmul.f32.gmra.mxu0 %v10402
  %v10466 = vpop.f32.mrf.mxu0
  %v10467 = vadd.f32 %v10366, %v10466
  %10468 = vmatmul.f32.gmra.mxu0 %v10405
  %v10469 = vpop.f32.mrf.mxu0
  %v10470 = vadd.f32 %v10366, %v10469
  %10471 = vmatmul.f32.gmra.mxu0 %v10408
  %v10472 = vpop.f32.mrf.mxu0
  %v10473 = vadd.f32 %v10366, %v10472
  %10474 = vmatmul.f32.gmra.mxu0 %v10411
  %v10475 = vpop.f32.mrf.mxu0
  %v10476 = vadd.f32 %v10366, %v10475
  %10477 = vmatmul.f32.gmra.mxu0 %v10414
  %v10478 = vpop.f32.mrf.mxu0
  %v10479 = vadd.f32 %v10366, %v10478
  %10480 = vdwg.mxu0
  %vm10481 = vcmask 31744
  %v10482 = vsel %vm10481, %v10434, -inf
  %10483 = vmax.xlane.f32.xlu0 %v10482
  %v10484 = vpop.xlane.xlu0 %10483
  %v10485 = vsel %vm10481, %v10437, -inf
  %10486 = vmax.xlane.f32.xlu0 %v10485
  %v10487 = vpop.xlane.xlu0 %10486
  %v10488 = vsel %vm10481, %v10440, -inf
  %10489 = vmax.xlane.f32.xlu0 %v10488
  %v10490 = vpop.xlane.xlu0 %10489
  %v10491 = vsel %vm10481, %v10443, -inf
  %10492 = vmax.xlane.f32.xlu0 %v10491
  %v10493 = vpop.xlane.xlu0 %10492
  %v10494 = vsel %vm10481, %v10446, -inf
  %10495 = vmax.xlane.f32.xlu0 %v10494
  %v10496 = vpop.xlane.xlu0 %10495
  %v10497 = vsel %vm10481, %v10449, -inf
  %10498 = vmax.xlane.f32.xlu0 %v10497
  %v10499 = vpop.xlane.xlu0 %10498
  %v10500 = vsel %vm10481, %v10452, -inf
  %10501 = vmax.xlane.f32.xlu0 %v10500
  %v10502 = vpop.xlane.xlu0 %10501
  %v10503 = vsel %vm10481, %v10455, -inf
  %10504 = vmax.xlane.f32.xlu0 %v10503
  %v10505 = vpop.xlane.xlu0 %10504
  %v10506 = vsel %vm10481, %v10458, -inf
  %10507 = vmax.xlane.f32.xlu0 %v10506
  %v10508 = vpop.xlane.xlu0 %10507
  %v10509 = vsel %vm10481, %v10461, -inf
  %10510 = vmax.xlane.f32.xlu0 %v10509
  %v10511 = vpop.xlane.xlu0 %10510
  %v10512 = vsel %vm10481, %v10464, -inf
  %10513 = vmax.xlane.f32.xlu0 %v10512
  %v10514 = vpop.xlane.xlu0 %10513
  %v10515 = vsel %vm10481, %v10467, -inf
  %10516 = vmax.xlane.f32.xlu0 %v10515
  %v10517 = vpop.xlane.xlu0 %10516
  %v10518 = vsel %vm10481, %v10470, -inf
  %10519 = vmax.xlane.f32.xlu0 %v10518
  %v10520 = vpop.xlane.xlu0 %10519
  %v10521 = vsel %vm10481, %v10473, -inf
  %10522 = vmax.xlane.f32.xlu0 %v10521
  %v10523 = vpop.xlane.xlu0 %10522
  %v10524 = vsel %vm10481, %v10476, -inf
  %10525 = vmax.xlane.f32.xlu0 %v10524
  %v10526 = vpop.xlane.xlu0 %10525
  %v10527 = vsel %vm10481, %v10479, -inf
  %10528 = vmax.xlane.f32.xlu0 %v10527
  %v10529 = vpop.xlane.xlu0 %10528
  %v10530 = vsub.f32 %v10434, %v10484
  %v10531 = vsub.f32 %v10437, %v10487
  %v10532 = vsub.f32 %v10440, %v10490
  %v10533 = vsub.f32 %v10443, %v10493
  %v10534 = vsub.f32 %v10446, %v10496
  %v10535 = vsub.f32 %v10449, %v10499
  %v10536 = vsub.f32 %v10452, %v10502
  %v10537 = vsub.f32 %v10455, %v10505
  %v10538 = vsub.f32 %v10458, %v10508
  %v10539 = vsub.f32 %v10461, %v10511
  %v10540 = vsub.f32 %v10464, %v10514
  %v10541 = vsub.f32 %v10467, %v10517
  %v10542 = vsub.f32 %v10470, %v10520
  %v10543 = vsub.f32 %v10473, %v10523
  %v10544 = vsub.f32 %v10476, %v10526
  %v10545 = vsub.f32 %v10479, %v10529
  %v10546 = vmul.f32 %v10530, 1.442695
  %v10547 = vpow.pop %v10546
  %v10548 = vmul.f32 %v10531, 1.442695
  %v10549 = vpow.pop %v10548
  %v10550 = vmul.f32 %v10532, 1.442695
  %v10551 = vpow.pop %v10550
  %v10552 = vmul.f32 %v10533, 1.442695
  %v10553 = vpow.pop %v10552
  %v10554 = vmul.f32 %v10534, 1.442695
  %v10555 = vpow.pop %v10554
  %v10556 = vmul.f32 %v10535, 1.442695
  %v10557 = vpow.pop %v10556
  %v10558 = vmul.f32 %v10536, 1.442695
  %v10559 = vpow.pop %v10558
  %v10560 = vmul.f32 %v10537, 1.442695
  %v10561 = vpow.pop %v10560
  %v10562 = vmul.f32 %v10538, 1.442695
  %v10563 = vpow.pop %v10562
  %v10564 = vmul.f32 %v10539, 1.442695
  %v10565 = vpow.pop %v10564
  %v10566 = vmul.f32 %v10540, 1.442695
  %v10567 = vpow.pop %v10566
  %v10568 = vmul.f32 %v10541, 1.442695
  %v10569 = vpow.pop %v10568
  %v10570 = vmul.f32 %v10542, 1.442695
  %v10571 = vpow.pop %v10570
  %v10572 = vmul.f32 %v10543, 1.442695
  %v10573 = vpow.pop %v10572
  %v10574 = vmul.f32 %v10544, 1.442695
  %v10575 = vpow.pop %v10574
  %v10576 = vmul.f32 %v10545, 1.442695
  %v10577 = vpow.pop %v10576
  %v10578 = vsel %vm10481, %v10547, 0.0
  %10579 = vadd.xlane.f32.xlu0 %v10578
  %v10580 = vpop.xlane.xlu0 %10579
  %v10581 = vsel %vm10481, %v10549, 0.0
  %10582 = vadd.xlane.f32.xlu0 %v10581
  %v10583 = vpop.xlane.xlu0 %10582
  %v10584 = vsel %vm10481, %v10551, 0.0
  %10585 = vadd.xlane.f32.xlu0 %v10584
  %v10586 = vpop.xlane.xlu0 %10585
  %v10587 = vsel %vm10481, %v10553, 0.0
  %10588 = vadd.xlane.f32.xlu0 %v10587
  %v10589 = vpop.xlane.xlu0 %10588
  %v10590 = vsel %vm10481, %v10555, 0.0
  %10591 = vadd.xlane.f32.xlu0 %v10590
  %v10592 = vpop.xlane.xlu0 %10591
  %v10593 = vsel %vm10481, %v10557, 0.0
  %10594 = vadd.xlane.f32.xlu0 %v10593
  %v10595 = vpop.xlane.xlu0 %10594
  %v10596 = vsel %vm10481, %v10559, 0.0
  %10597 = vadd.xlane.f32.xlu0 %v10596
  %v10598 = vpop.xlane.xlu0 %10597
  %v10599 = vsel %vm10481, %v10561, 0.0
  %10600 = vadd.xlane.f32.xlu0 %v10599
  %v10601 = vpop.xlane.xlu0 %10600
  %v10602 = vsel %vm10481, %v10563, 0.0
  %10603 = vadd.xlane.f32.xlu0 %v10602
  %v10604 = vpop.xlane.xlu0 %10603
  %v10605 = vsel %vm10481, %v10565, 0.0
  %10606 = vadd.xlane.f32.xlu0 %v10605
  %v10607 = vpop.xlane.xlu0 %10606
  %v10608 = vsel %vm10481, %v10567, 0.0
  %10609 = vadd.xlane.f32.xlu0 %v10608
  %v10610 = vpop.xlane.xlu0 %10609
  %v10611 = vsel %vm10481, %v10569, 0.0
  %10612 = vadd.xlane.f32.xlu0 %v10611
  %v10613 = vpop.xlane.xlu0 %10612
  %v10614 = vsel %vm10481, %v10571, 0.0
  %10615 = vadd.xlane.f32.xlu0 %v10614
  %v10616 = vpop.xlane.xlu0 %10615
  %v10617 = vsel %vm10481, %v10573, 0.0
  %10618 = vadd.xlane.f32.xlu0 %v10617
  %v10619 = vpop.xlane.xlu0 %10618
  %v10620 = vsel %vm10481, %v10575, 0.0
  %10621 = vadd.xlane.f32.xlu0 %v10620
  %v10622 = vpop.xlane.xlu0 %10621
  %v10623 = vsel %vm10481, %v10577, 0.0
  %10624 = vadd.xlane.f32.xlu0 %v10623
  %v10625 = vpop.xlane.xlu0 %10624
  %v10626 = vrcp.pop %v10580
  %v10627 = vmul.f32 %v10580, %v10626
  %v10628 = vsub.f32 1.0, %v10627
  %v10629 = vmul.f32 %v10626, %v10628
  %v10630 = vadd.f32 %v10626, %v10629
  %vm10631 = vweird.f32 %v10580
  %vm10632 = vweird.f32 %v10626
  %vm10633 = vmor %vm10631, %vm10632
  %v10634 = vsel %vm10633, %v10626, %v10630
  %v10635 = vand.u32 2147483647, %v10580
  %vm10636 = vcmp.eq.f32.partialorder %v10635, 8.507059e+37
  %v10637 = vand.u32 %v10580, 2147483648
  %v10638 = vor.u32 1.1754944e-38, %v10637
  %v10639 = vsel %vm10636, %v10638, %v10634
  %v10640 = vmul.f32 %v10547, %v10639
  %v10641 = vrcp.pop %v10583
  %v10642 = vmul.f32 %v10583, %v10641
  %v10643 = vsub.f32 1.0, %v10642
  %v10644 = vmul.f32 %v10641, %v10643
  %v10645 = vadd.f32 %v10641, %v10644
  %vm10646 = vweird.f32 %v10583
  %vm10647 = vweird.f32 %v10641
  %vm10648 = vmor %vm10646, %vm10647
  %v10649 = vsel %vm10648, %v10641, %v10645
  %v10650 = vand.u32 2147483647, %v10583
  %vm10651 = vcmp.eq.f32.partialorder %v10650, 8.507059e+37
  %v10652 = vand.u32 %v10583, 2147483648
  %v10653 = vor.u32 1.1754944e-38, %v10652
  %v10654 = vsel %vm10651, %v10653, %v10649
  %v10655 = vmul.f32 %v10549, %v10654
  %v10656 = vrcp.pop %v10586
  %v10657 = vmul.f32 %v10586, %v10656
  %v10658 = vsub.f32 1.0, %v10657
  %v10659 = vmul.f32 %v10656, %v10658
  %v10660 = vadd.f32 %v10656, %v10659
  %vm10661 = vweird.f32 %v10586
  %vm10662 = vweird.f32 %v10656
  %vm10663 = vmor %vm10661, %vm10662
  %v10664 = vsel %vm10663, %v10656, %v10660
  %v10665 = vand.u32 2147483647, %v10586
  %vm10666 = vcmp.eq.f32.partialorder %v10665, 8.507059e+37
  %v10667 = vand.u32 %v10586, 2147483648
  %v10668 = vor.u32 1.1754944e-38, %v10667
  %v10669 = vsel %vm10666, %v10668, %v10664
  %v10670 = vmul.f32 %v10551, %v10669
  %v10671 = vrcp.pop %v10589
  %v10672 = vmul.f32 %v10589, %v10671
  %v10673 = vsub.f32 1.0, %v10672
  %v10674 = vmul.f32 %v10671, %v10673
  %v10675 = vadd.f32 %v10671, %v10674
  %vm10676 = vweird.f32 %v10589
  %vm10677 = vweird.f32 %v10671
  %vm10678 = vmor %vm10676, %vm10677
  %v10679 = vsel %vm10678, %v10671, %v10675
  %v10680 = vand.u32 2147483647, %v10589
  %vm10681 = vcmp.eq.f32.partialorder %v10680, 8.507059e+37
  %v10682 = vand.u32 %v10589, 2147483648
  %v10683 = vor.u32 1.1754944e-38, %v10682
  %v10684 = vsel %vm10681, %v10683, %v10679
  %v10685 = vmul.f32 %v10553, %v10684
  %v10686 = vrcp.pop %v10592
  %v10687 = vmul.f32 %v10592, %v10686
  %v10688 = vsub.f32 1.0, %v10687
  %v10689 = vmul.f32 %v10686, %v10688
  %v10690 = vadd.f32 %v10686, %v10689
  %vm10691 = vweird.f32 %v10592
  %vm10692 = vweird.f32 %v10686
  %vm10693 = vmor %vm10691, %vm10692
  %v10694 = vsel %vm10693, %v10686, %v10690
  %v10695 = vand.u32 2147483647, %v10592
  %vm10696 = vcmp.eq.f32.partialorder %v10695, 8.507059e+37
  %v10697 = vand.u32 %v10592, 2147483648
  %v10698 = vor.u32 1.1754944e-38, %v10697
  %v10699 = vsel %vm10696, %v10698, %v10694
  %v10700 = vmul.f32 %v10555, %v10699
  %v10701 = vrcp.pop %v10595
  %v10702 = vmul.f32 %v10595, %v10701
  %v10703 = vsub.f32 1.0, %v10702
  %v10704 = vmul.f32 %v10701, %v10703
  %v10705 = vadd.f32 %v10701, %v10704
  %vm10706 = vweird.f32 %v10595
  %vm10707 = vweird.f32 %v10701
  %vm10708 = vmor %vm10706, %vm10707
  %v10709 = vsel %vm10708, %v10701, %v10705
  %v10710 = vand.u32 2147483647, %v10595
  %vm10711 = vcmp.eq.f32.partialorder %v10710, 8.507059e+37
  %v10712 = vand.u32 %v10595, 2147483648
  %v10713 = vor.u32 1.1754944e-38, %v10712
  %v10714 = vsel %vm10711, %v10713, %v10709
  %v10715 = vmul.f32 %v10557, %v10714
  %v10716 = vrcp.pop %v10598
  %v10717 = vmul.f32 %v10598, %v10716
  %v10718 = vsub.f32 1.0, %v10717
  %v10719 = vmul.f32 %v10716, %v10718
  %v10720 = vadd.f32 %v10716, %v10719
  %vm10721 = vweird.f32 %v10598
  %vm10722 = vweird.f32 %v10716
  %vm10723 = vmor %vm10721, %vm10722
  %v10724 = vsel %vm10723, %v10716, %v10720
  %v10725 = vand.u32 2147483647, %v10598
  %vm10726 = vcmp.eq.f32.partialorder %v10725, 8.507059e+37
  %v10727 = vand.u32 %v10598, 2147483648
  %v10728 = vor.u32 1.1754944e-38, %v10727
  %v10729 = vsel %vm10726, %v10728, %v10724
  %v10730 = vmul.f32 %v10559, %v10729
  %v10731 = vrcp.pop %v10601
  %v10732 = vmul.f32 %v10601, %v10731
  %v10733 = vsub.f32 1.0, %v10732
  %v10734 = vmul.f32 %v10731, %v10733
  %v10735 = vadd.f32 %v10731, %v10734
  %vm10736 = vweird.f32 %v10601
  %vm10737 = vweird.f32 %v10731
  %vm10738 = vmor %vm10736, %vm10737
  %v10739 = vsel %vm10738, %v10731, %v10735
  %v10740 = vand.u32 2147483647, %v10601
  %vm10741 = vcmp.eq.f32.partialorder %v10740, 8.507059e+37
  %v10742 = vand.u32 %v10601, 2147483648
  %v10743 = vor.u32 1.1754944e-38, %v10742
  %v10744 = vsel %vm10741, %v10743, %v10739
  %v10745 = vmul.f32 %v10561, %v10744
  %v10746 = vrcp.pop %v10604
  %v10747 = vmul.f32 %v10604, %v10746
  %v10748 = vsub.f32 1.0, %v10747
  %v10749 = vmul.f32 %v10746, %v10748
  %v10750 = vadd.f32 %v10746, %v10749
  %vm10751 = vweird.f32 %v10604
  %vm10752 = vweird.f32 %v10746
  %vm10753 = vmor %vm10751, %vm10752
  %v10754 = vsel %vm10753, %v10746, %v10750
  %v10755 = vand.u32 2147483647, %v10604
  %vm10756 = vcmp.eq.f32.partialorder %v10755, 8.507059e+37
  %v10757 = vand.u32 %v10604, 2147483648
  %v10758 = vor.u32 1.1754944e-38, %v10757
  %v10759 = vsel %vm10756, %v10758, %v10754
  %v10760 = vmul.f32 %v10563, %v10759
  %v10761 = vrcp.pop %v10607
  %v10762 = vmul.f32 %v10607, %v10761
  %v10763 = vsub.f32 1.0, %v10762
  %v10764 = vmul.f32 %v10761, %v10763
  %v10765 = vadd.f32 %v10761, %v10764
  %vm10766 = vweird.f32 %v10607
  %vm10767 = vweird.f32 %v10761
  %vm10768 = vmor %vm10766, %vm10767
  %v10769 = vsel %vm10768, %v10761, %v10765
  %v10770 = vand.u32 2147483647, %v10607
  %vm10771 = vcmp.eq.f32.partialorder %v10770, 8.507059e+37
  %v10772 = vand.u32 %v10607, 2147483648
  %v10773 = vor.u32 1.1754944e-38, %v10772
  %v10774 = vsel %vm10771, %v10773, %v10769
  %v10775 = vmul.f32 %v10565, %v10774
  %v10776 = vrcp.pop %v10610
  %v10777 = vmul.f32 %v10610, %v10776
  %v10778 = vsub.f32 1.0, %v10777
  %v10779 = vmul.f32 %v10776, %v10778
  %v10780 = vadd.f32 %v10776, %v10779
  %vm10781 = vweird.f32 %v10610
  %vm10782 = vweird.f32 %v10776
  %vm10783 = vmor %vm10781, %vm10782
  %v10784 = vsel %vm10783, %v10776, %v10780
  %v10785 = vand.u32 2147483647, %v10610
  %vm10786 = vcmp.eq.f32.partialorder %v10785, 8.507059e+37
  %v10787 = vand.u32 %v10610, 2147483648
  %v10788 = vor.u32 1.1754944e-38, %v10787
  %v10789 = vsel %vm10786, %v10788, %v10784
  %v10790 = vmul.f32 %v10567, %v10789
  %v10791 = vrcp.pop %v10613
  %v10792 = vmul.f32 %v10613, %v10791
  %v10793 = vsub.f32 1.0, %v10792
  %v10794 = vmul.f32 %v10791, %v10793
  %v10795 = vadd.f32 %v10791, %v10794
  %vm10796 = vweird.f32 %v10613
  %vm10797 = vweird.f32 %v10791
  %vm10798 = vmor %vm10796, %vm10797
  %v10799 = vsel %vm10798, %v10791, %v10795
  %v10800 = vand.u32 2147483647, %v10613
  %vm10801 = vcmp.eq.f32.partialorder %v10800, 8.507059e+37
  %v10802 = vand.u32 %v10613, 2147483648
  %v10803 = vor.u32 1.1754944e-38, %v10802
  %v10804 = vsel %vm10801, %v10803, %v10799
  %v10805 = vmul.f32 %v10569, %v10804
  %v10806 = vrcp.pop %v10616
  %v10807 = vmul.f32 %v10616, %v10806
  %v10808 = vsub.f32 1.0, %v10807
  %v10809 = vmul.f32 %v10806, %v10808
  %v10810 = vadd.f32 %v10806, %v10809
  %vm10811 = vweird.f32 %v10616
  %vm10812 = vweird.f32 %v10806
  %vm10813 = vmor %vm10811, %vm10812
  %v10814 = vsel %vm10813, %v10806, %v10810
  %v10815 = vand.u32 2147483647, %v10616
  %vm10816 = vcmp.eq.f32.partialorder %v10815, 8.507059e+37
  %v10817 = vand.u32 %v10616, 2147483648
  %v10818 = vor.u32 1.1754944e-38, %v10817
  %v10819 = vsel %vm10816, %v10818, %v10814
  %v10820 = vmul.f32 %v10571, %v10819
  %v10821 = vrcp.pop %v10619
  %v10822 = vmul.f32 %v10619, %v10821
  %v10823 = vsub.f32 1.0, %v10822
  %v10824 = vmul.f32 %v10821, %v10823
  %v10825 = vadd.f32 %v10821, %v10824
  %vm10826 = vweird.f32 %v10619
  %vm10827 = vweird.f32 %v10821
  %vm10828 = vmor %vm10826, %vm10827
  %v10829 = vsel %vm10828, %v10821, %v10825
  %v10830 = vand.u32 2147483647, %v10619
  %vm10831 = vcmp.eq.f32.partialorder %v10830, 8.507059e+37
  %v10832 = vand.u32 %v10619, 2147483648
  %v10833 = vor.u32 1.1754944e-38, %v10832
  %v10834 = vsel %vm10831, %v10833, %v10829
  %v10835 = vmul.f32 %v10573, %v10834
  %v10836 = vrcp.pop %v10622
  %v10837 = vmul.f32 %v10622, %v10836
  %v10838 = vsub.f32 1.0, %v10837
  %v10839 = vmul.f32 %v10836, %v10838
  %v10840 = vadd.f32 %v10836, %v10839
  %vm10841 = vweird.f32 %v10622
  %vm10842 = vweird.f32 %v10836
  %vm10843 = vmor %vm10841, %vm10842
  %v10844 = vsel %vm10843, %v10836, %v10840
  %v10845 = vand.u32 2147483647, %v10622
  %vm10846 = vcmp.eq.f32.partialorder %v10845, 8.507059e+37
  %v10847 = vand.u32 %v10622, 2147483648
  %v10848 = vor.u32 1.1754944e-38, %v10847
  %v10849 = vsel %vm10846, %v10848, %v10844
  %v10850 = vmul.f32 %v10575, %v10849
  %v10851 = vrcp.pop %v10625
  %v10852 = vmul.f32 %v10625, %v10851
  %v10853 = vsub.f32 1.0, %v10852
  %v10854 = vmul.f32 %v10851, %v10853
  %v10855 = vadd.f32 %v10851, %v10854
  %vm10856 = vweird.f32 %v10625
  %vm10857 = vweird.f32 %v10851
  %vm10858 = vmor %vm10856, %vm10857
  %v10859 = vsel %vm10858, %v10851, %v10855
  %v10860 = vand.u32 2147483647, %v10625
  %vm10861 = vcmp.eq.f32.partialorder %v10860, 8.507059e+37
  %v10862 = vand.u32 %v10625, 2147483648
  %v10863 = vor.u32 1.1754944e-38, %v10862
  %v10864 = vsel %vm10861, %v10863, %v10859
  %v10865 = vmul.f32 %v10577, %v10864
  %10866 = vst.msk [vmem:[%s15] sm:$0xff] %vm10481, %v10640
  %10867 = vst.msk [vmem:[%s15 + $0x8] sm:$0xff] %vm10481, %v10655
  %10868 = vst.msk [vmem:[%s15 + $0x10] sm:$0xff] %vm10481, %v10670
  %10869 = vst.msk [vmem:[%s15 + $0x18] sm:$0xff] %vm10481, %v10685
  %10870 = vst.msk [vmem:[%s15 + $0x20] sm:$0xff] %vm10481, %v10700
  %10871 = vst.msk [vmem:[%s15 + $0x28] sm:$0xff] %vm10481, %v10715
  %10872 = vst.msk [vmem:[%s15 + $0x30] sm:$0xff] %vm10481, %v10730
  %10873 = vst.msk [vmem:[%s15 + $0x38] sm:$0xff] %vm10481, %v10745
  %10874 = vst.msk [vmem:[%s15 + $0x40] sm:$0xff] %vm10481, %v10760
  %10875 = vst.msk [vmem:[%s15 + $0x48] sm:$0xff] %vm10481, %v10775
  %10876 = vst.msk [vmem:[%s15 + $0x50] sm:$0xff] %vm10481, %v10790
  %10877 = vst.msk [vmem:[%s15 + $0x58] sm:$0xff] %vm10481, %v10805
  %10878 = vst.msk [vmem:[%s15 + $0x60] sm:$0xff] %vm10481, %v10820
  %10879 = vst.msk [vmem:[%s15 + $0x68] sm:$0xff] %vm10481, %v10835
  %10880 = vst.msk [vmem:[%s15 + $0x70] sm:$0xff] %vm10481, %v10850
  %10881 = vst.msk [vmem:[%s15 + $0x78] sm:$0xff] %vm10481, %v10865
  // Predicated region
  $region62: #{tpu_custom_call.1} parent=0 // pred_check
    _
  $region63: #{tpu_custom_call.1} parent=0 // pred_check_branch
    %10883 = sbr.rel (0) target = $region65
  $region64: #{tpu_custom_call.1} parent=0 // pred_region
    _
  $region65: #{tpu_custom_call.1} parent=0 // pred_fallthru
    _
  // Predicated region
  $region66: #{tpu_custom_call.1} parent=0 // pred_check
    _
  $region67: #{tpu_custom_call.1} parent=0 // pred_check_branch
    %10885 = sbr.rel (0) target = $region69
  $region68: #{tpu_custom_call.1} parent=0 // pred_region
    _
  $region69: #{tpu_custom_call.1} parent=0 // pred_fallthru
    _

</llo_original>
